<compile_context>
chip_gen: v6e
topology: v6e:2x2x1
jax: 0.10.0
libtpu: 0.0.40
codegen_flags: <defaults>
</compile_context>

<pallas_src>
import jax
import jax.numpy as jnp
import numpy as np
from jax import lax
from jax.experimental import pallas as pl
from jax.experimental.pallas import tpu as pltpu


def _make_kernel(th, w):
    """Kernel for one (batch, row-tile) grid step. th = output rows per tile."""
    s = th * w                       # output pixels per tile
    cc0 = (((0,), (0,)), ((), ()))   # contract lhs dim0 with rhs dim0
    cc1 = (((1,), (1,)), ((), ()))   # contract lhs dim1 with rhs dim1

    def kernel(x1_ref, x2_ref, x3_ref,
               w1_ref, b1_ref, w2_ref, b2_ref, w3_ref, b3_ref,
               w4a_ref, w4b_ref, w4c_ref, b4_ref, out_ref):
        f32 = jnp.float32

        # ---- demo2: 1x1 conv + bias + relu at (th, w); accumulate into conv1.
        o2 = lax.dot_general(x2_ref[...], w2_ref[...], cc0,
                             preferred_element_type=f32)          # (s, 32)
        o2 = jnp.maximum(o2 + b2_ref[...], 0.0)
        acc = lax.dot_general(w4b_ref[...], o2, cc1,
                              preferred_element_type=f32)         # (48, s)

        # ---- demo1: 1x1 conv at (2*th, 2*w), 2x2/stride-2 max-pool.
        # Pool commutes with (per-channel bias + relu) => pool first, then
        # bias+relu on only s pixels instead of 4s.
        y1 = lax.dot_general(x1_ref[...], w1_ref[...], cc0,
                             preferred_element_type=f32)          # (4s, 32)
        y1 = jnp.max(y1.reshape(th, 2, 2 * w, 32), axis=1)        # pool rows
        y1 = jnp.max(y1.reshape(th, w, 2, 32), axis=2)            # pool cols
        o1 = jnp.maximum(y1.reshape(s, 32) + b1_ref[...], 0.0)
        acc = acc + lax.dot_general(w4a_ref[...], o1, cc1,
                                    preferred_element_type=f32)   # (48, s)

        # ---- demo3: 1x1 conv + bias + relu at (th/2, w/2), nearest x2 up.
        o3 = lax.dot_general(x3_ref[...], w3_ref[...], cc0,
                             preferred_element_type=f32)          # (s//4, 32)
        o3 = jnp.maximum(o3 + b3_ref[...], 0.0)
        o3 = o3.reshape(th // 2, w // 2, 32)
        o3 = jnp.broadcast_to(o3[:, :, None, :], (th // 2, w // 2, 2, 32))
        o3 = o3.reshape(th // 2, w, 32)                           # repeat cols
        o3 = jnp.broadcast_to(o3[:, None, :, :], (th // 2, 2, w, 32))
        o3 = o3.reshape(s, 32)                                    # repeat rows
        acc = acc + lax.dot_general(w4c_ref[...], o3, cc1,
                                    preferred_element_type=f32)   # (48, s)

        # ---- conv1 bias + relu, emitted channel-major = NCHW output tile.
        out_ref[...] = jnp.maximum(acc + b4_ref[...], 0.0)

    return kernel


def _pick_tile_rows(H, W, max_tile_elems=4096):
    """Output rows processed per grid step (keeps VMEM footprint modest)."""
    if H * W <= max_tile_elems:
        return H
    valid = [th for th in range(2, H, 2)
             if H % th == 0 and (th * W) % 512 == 0]
    fitting = [th for th in valid if th * W <= max_tile_elems]
    if fitting:
        return max(fitting)
    if valid:
        return min(valid)
    return H


def init_params(key, c1, c2, c3):
    """Deterministic PyTorch-Conv2d-style init (uniform +-1/sqrt(fan_in))."""
    def conv_init(k, cin, cout):
        kw, kb = jax.random.split(k)
        bound = 1.0 / float(np.sqrt(cin))
        w = jax.random.uniform(kw, (cin, cout), jnp.float32, -bound, bound)
        b = jax.random.uniform(kb, (1, cout), jnp.float32, -bound, bound)
        return w, b
    k1, k2, k3, k4 = jax.random.split(key, 4)
    w1, b1 = conv_init(k1, c1, 32)
    w2, b2 = conv_init(k2, c2, 32)
    w3, b3 = conv_init(k3, c3, 32)
    w4, b4 = conv_init(k4, 96, 48)
    return (w1, b1, w2, b2, w3, b3, w4, b4)


def content_fusion_forward(x1, x2, x3, params, *, tile_rows=None):
    # x1: (N, C1, 2H, 2W), x2: (N, C2, H, W), x3: (N, C3, H/2, W/2)  -- NCHW
    N, C1, H2, W2 = x1.shape
    H, W = H2 // 2, W2 // 2
    C2 = x2.shape[1]
    C3 = x3.shape[1]

    TH = _pick_tile_rows(H, W) if tile_rows is None else tile_rows
    S = TH * W                      # output pixels per tile

    # Free, metadata-only reshapes: no HBM traffic, stays NCHW.
    x1f = x1.reshape(N, C1, 4 * H * W)
    x2f = x2.reshape(N, C2, H * W)
    x3f = x3.reshape(N, C3, (H * W) // 4)

    (w1, b1, w2, b2, w3, b3, w4, b4) = params
    # Split conv1 weights per source branch (tiny one-time host work); each is
    # (48, 32) so the in-kernel concat of branch outputs is never materialized.
    w4a = w4[0:32, :].T             # pairs with demo1 output
    w4b = w4[32:64, :].T            # pairs with demo2 output
    w4c = w4[64:96, :].T            # pairs with demo3 output
    b4c = b4.reshape(48, 1)         # per-output-channel bias, lane-broadcast form

    out = pl.pallas_call(
        _make_kernel(TH, W),
        out_shape=jax.ShapeDtypeStruct((N, 48, H * W), jnp.float32),
        grid_spec=pltpu.PrefetchScalarGridSpec(
            num_scalar_prefetch=0,
            grid=(N, H // TH),
            in_specs=[
                pl.BlockSpec((None, C1, 4 * S), lambda n, i: (n, 0, i)),
                pl.BlockSpec((None, C2, S), lambda n, i: (n, 0, i)),
                pl.BlockSpec((None, C3, S // 4), lambda n, i: (n, 0, i)),
                pl.BlockSpec((C1, 32), lambda n, i: (0, 0)),
                pl.BlockSpec((1, 32), lambda n, i: (0, 0)),
                pl.BlockSpec((C2, 32), lambda n, i: (0, 0)),
                pl.BlockSpec((1, 32), lambda n, i: (0, 0)),
                pl.BlockSpec((C3, 32), lambda n, i: (0, 0)),
                pl.BlockSpec((1, 32), lambda n, i: (0, 0)),
                pl.BlockSpec((48, 32), lambda n, i: (0, 0)),
                pl.BlockSpec((48, 32), lambda n, i: (0, 0)),
                pl.BlockSpec((48, 32), lambda n, i: (0, 0)),
                pl.BlockSpec((48, 1), lambda n, i: (0, 0)),
            ],
            out_specs=pl.BlockSpec((None, 48, S), lambda n, i: (n, 0, i)),
        ),
        compiler_params=pltpu.CompilerParams(
            dimension_semantics=("parallel", "parallel"),
            vmem_limit_bytes=32 * 1024 * 1024),
    )(x1f, x2f, x3f, w1, b1, w2, b2, w3, b3, w4a, w4b, w4c, b4c)

    return out.reshape(N, 48, H, W)


def reference_forward(x1, x2, x3, params):
    """Pure-JAX reference matching the PyTorch module semantics (NCHW in/out)."""
    (w1, b1, w2, b2, w3, b3, w4, b4) = params

    def conv1x1_relu(x_nchw, w, b):
        x = jnp.transpose(x_nchw, (0, 2, 3, 1))
        y = jnp.einsum('nhwc,co->nhwo', x, w) + b.reshape(1, 1, 1, -1)
        return jnp.maximum(y, 0.0)

    o1 = conv1x1_relu(x1, w1, b1)                       # (N, 2H, 2W, 32)
    N, H2, W2, _ = o1.shape
    o1 = o1.reshape(N, H2 // 2, 2, W2 // 2, 2, 32).max(axis=(2, 4))
    o2 = conv1x1_relu(x2, w2, b2)                       # (N, H, W, 32)
    o3 = conv1x1_relu(x3, w3, b3)                       # (N, H/2, W/2, 32)
    o3 = jnp.repeat(jnp.repeat(o3, 2, axis=1), 2, axis=2)
    cat = jnp.concatenate([o1, o2, o3], axis=-1)        # (N, H, W, 96)
    out = jnp.maximum(
        jnp.einsum('nhwc,co->nhwo', cat, w4) + b4.reshape(1, 1, 1, -1), 0.0)
    return jnp.transpose(out, (0, 3, 1, 2))


if __name__ == "__main__":
    key = jax.random.PRNGKey(0)
    kp, k1, k2, k3 = jax.random.split(key, 4)

    N, C1, C2, C3, H, W = 2, 4, 8, 16, 16, 16
    x1 = jax.random.normal(k1, (N, C1, 2 * H, 2 * W), jnp.float32)
    x2 = jax.random.normal(k2, (N, C2, H, W), jnp.float32)
    x3 = jax.random.normal(k3, (N, C3, H // 2, W // 2), jnp.float32)
    params = init_params(kp, C1, C2, C3)

    out = jax.block_until_ready(content_fusion_forward(x1, x2, x3, params))
    ref = jax.block_until_ready(reference_forward(x1, x2, x3, params))
    assert out.shape == (N, 48, H, W), out.shape
    np.testing.assert_allclose(np.asarray(out), np.asarray(ref),
                               rtol=1e-5, atol=1e-5)

    # Exercise the spatially tiled / multi-step grid path (TH < H).
    Hb, Wb = 32, 32
    x1b = jax.random.normal(jax.random.PRNGKey(1), (1, C1, 2 * Hb, 2 * Wb), jnp.float32)
    x2b = jax.random.normal(jax.random.PRNGKey(2), (1, C2, Hb, Wb), jnp.float32)
    x3b = jax.random.normal(jax.random.PRNGKey(3), (1, C3, Hb // 2, Wb // 2), jnp.float32)
    outb = jax.block_until_ready(
        content_fusion_forward(x1b, x2b, x3b, params, tile_rows=16))
    refb = jax.block_until_ready(reference_forward(x1b, x2b, x3b, params))
    np.testing.assert_allclose(np.asarray(outb), np.asarray(refb),
                               rtol=1e-5, atol=1e-5)

    print("KERNEL_OK")
</pallas_src>

<mosaic_0001>
module attributes {stable_mosaic.version = 11 : i64} {
  func.func @kernel(%arg0: i32, %arg1: i32, %arg2: memref<1x4x1024xf32, #tpu.memory_space<vmem>>, %arg3: memref<1x8x256xf32, #tpu.memory_space<vmem>>, %arg4: memref<1x16x64xf32, #tpu.memory_space<vmem>>, %arg5: memref<4x32xf32, #tpu.memory_space<vmem>>, %arg6: memref<1x32xf32, #tpu.memory_space<vmem>>, %arg7: memref<8x32xf32, #tpu.memory_space<vmem>>, %arg8: memref<1x32xf32, #tpu.memory_space<vmem>>, %arg9: memref<16x32xf32, #tpu.memory_space<vmem>>, %arg10: memref<1x32xf32, #tpu.memory_space<vmem>>, %arg11: memref<48x32xf32, #tpu.memory_space<vmem>>, %arg12: memref<48x32xf32, #tpu.memory_space<vmem>>, %arg13: memref<48x32xf32, #tpu.memory_space<vmem>>, %arg14: memref<48x1xf32, #tpu.memory_space<vmem>>, %arg15: memref<1x48x256xf32, #tpu.memory_space<vmem>>) attributes {dimension_semantics = [#tpu.dimension_semantics<parallel>, #tpu.dimension_semantics<parallel>], iteration_bounds = array<i64: 2, 1>, scalar_prefetch = 0 : i64, scratch_operands = 0 : i64, tpu.core_type = #tpu.core_type<tc>, window_params = [{transform_indices = @transform_0, window_bounds = array<i64: 1, 4, 1024>}, {transform_indices = @transform_1, window_bounds = array<i64: 1, 8, 256>}, {transform_indices = @transform_2, window_bounds = array<i64: 1, 16, 64>}, {pipeline_mode = #tpu.pipeline_mode<synchronous>, transform_indices = @transform_3, window_bounds = array<i64: 4, 32>}, {pipeline_mode = #tpu.pipeline_mode<synchronous>, transform_indices = @transform_4, window_bounds = array<i64: 1, 32>}, {pipeline_mode = #tpu.pipeline_mode<synchronous>, transform_indices = @transform_5, window_bounds = array<i64: 8, 32>}, {pipeline_mode = #tpu.pipeline_mode<synchronous>, transform_indices = @transform_6, window_bounds = array<i64: 1, 32>}, {pipeline_mode = #tpu.pipeline_mode<synchronous>, transform_indices = @transform_7, window_bounds = array<i64: 16, 32>}, {pipeline_mode = #tpu.pipeline_mode<synchronous>, transform_indices = @transform_8, window_bounds = array<i64: 1, 32>}, {pipeline_mode = #tpu.pipeline_mode<synchronous>, transform_indices = @transform_9, window_bounds = array<i64: 48, 32>}, {pipeline_mode = #tpu.pipeline_mode<synchronous>, transform_indices = @transform_10, window_bounds = array<i64: 48, 32>}, {pipeline_mode = #tpu.pipeline_mode<synchronous>, transform_indices = @transform_11, window_bounds = array<i64: 48, 32>}, {pipeline_mode = #tpu.pipeline_mode<synchronous>, transform_indices = @transform_12, window_bounds = array<i64: 48, 1>}, {transform_indices = @transform_13, window_bounds = array<i64: 1, 48, 256>}]} {
    %c0 = arith.constant 0 : index
    %c0_0 = arith.constant 0 : index
    %c0_1 = arith.constant 0 : index
    %0 = vector.load %arg3[%c0, %c0_0, %c0_1] : memref<1x8x256xf32, #tpu.memory_space<vmem>>, vector<1x8x256xf32>
    %1 = vector.shape_cast %0 : vector<1x8x256xf32> to vector<8x256xf32>
    %c0_2 = arith.constant 0 : index
    %c0_3 = arith.constant 0 : index
    %2 = vector.load %arg7[%c0_2, %c0_3] : memref<8x32xf32, #tpu.memory_space<vmem>>, vector<8x32xf32>
    %cst = arith.constant dense<0.000000e+00> : vector<256x32xf32>
    %3 = tpu.matmul %1, %2, %cst {dimension_numbers = #tpu.dot_dimension_numbers<[0], [0], [1], [1], [0, 1, 1, 1], [], []>} : vector<8x256xf32>, vector<8x32xf32>, vector<256x32xf32> -> vector<256x32xf32>
    %c0_4 = arith.constant 0 : index
    %c0_5 = arith.constant 0 : index
    %4 = vector.load %arg8[%c0_4, %c0_5] : memref<1x32xf32, #tpu.memory_space<vmem>>, vector<1x32xf32>
    %5 = vector.broadcast %4 : vector<1x32xf32> to vector<256x32xf32>
    %6 = arith.addf %3, %5 : vector<256x32xf32>
    %cst_6 = arith.constant 0.000000e+00 : f32
    %7 = vector.broadcast %cst_6 : f32 to vector<256x32xf32>
    %8 = arith.maximumf %6, %7 : vector<256x32xf32>
    %c0_7 = arith.constant 0 : index
    %c0_8 = arith.constant 0 : index
    %9 = vector.load %arg12[%c0_7, %c0_8] : memref<48x32xf32, #tpu.memory_space<vmem>>, vector<48x32xf32>
    %cst_9 = arith.constant dense<0.000000e+00> : vector<48x256xf32>
    %10 = tpu.matmul %9, %8, %cst_9 {dimension_numbers = #tpu.dot_dimension_numbers<[1], [1], [0], [0], [0, 0, 1, 0], [], []>} : vector<48x32xf32>, vector<256x32xf32>, vector<48x256xf32> -> vector<48x256xf32>
    %c0_10 = arith.constant 0 : index
    %c0_11 = arith.constant 0 : index
    %c0_12 = arith.constant 0 : index
    %11 = vector.load %arg2[%c0_10, %c0_11, %c0_12] : memref<1x4x1024xf32, #tpu.memory_space<vmem>>, vector<1x4x1024xf32>
    %12 = vector.shape_cast %11 : vector<1x4x1024xf32> to vector<4x1024xf32>
    %c0_13 = arith.constant 0 : index
    %c0_14 = arith.constant 0 : index
    %13 = vector.load %arg5[%c0_13, %c0_14] : memref<4x32xf32, #tpu.memory_space<vmem>>, vector<4x32xf32>
    %cst_15 = arith.constant dense<0.000000e+00> : vector<1024x32xf32>
    %14 = tpu.matmul %12, %13, %cst_15 {dimension_numbers = #tpu.dot_dimension_numbers<[0], [0], [1], [1], [0, 1, 1, 1], [], []>} : vector<4x1024xf32>, vector<4x32xf32>, vector<1024x32xf32> -> vector<1024x32xf32>
    %15 = vector.shape_cast %14 : vector<1024x32xf32> to vector<16x2x32x32xf32>
    %cst_16 = arith.constant dense<0xFF800000> : vector<16x32x32xf32>
    %16 = vector.multi_reduction <maximumf>, %15, %cst_16 [1] : vector<16x2x32x32xf32> to vector<16x32x32xf32>
    %17 = vector.shape_cast %16 : vector<16x32x32xf32> to vector<16x16x2x32xf32>
    %cst_17 = arith.constant dense<0xFF800000> : vector<16x16x32xf32>
    %18 = vector.multi_reduction <maximumf>, %17, %cst_17 [2] : vector<16x16x2x32xf32> to vector<16x16x32xf32>
    %19 = vector.shape_cast %18 : vector<16x16x32xf32> to vector<256x32xf32>
    %c0_18 = arith.constant 0 : index
    %c0_19 = arith.constant 0 : index
    %20 = vector.load %arg6[%c0_18, %c0_19] : memref<1x32xf32, #tpu.memory_space<vmem>>, vector<1x32xf32>
    %21 = vector.broadcast %20 : vector<1x32xf32> to vector<256x32xf32>
    %22 = arith.addf %19, %21 : vector<256x32xf32>
    %cst_20 = arith.constant 0.000000e+00 : f32
    %23 = vector.broadcast %cst_20 : f32 to vector<256x32xf32>
    %24 = arith.maximumf %22, %23 : vector<256x32xf32>
    %c0_21 = arith.constant 0 : index
    %c0_22 = arith.constant 0 : index
    %25 = vector.load %arg11[%c0_21, %c0_22] : memref<48x32xf32, #tpu.memory_space<vmem>>, vector<48x32xf32>
    %cst_23 = arith.constant dense<0.000000e+00> : vector<48x256xf32>
    %26 = tpu.matmul %25, %24, %cst_23 {dimension_numbers = #tpu.dot_dimension_numbers<[1], [1], [0], [0], [0, 0, 1, 0], [], []>} : vector<48x32xf32>, vector<256x32xf32>, vector<48x256xf32> -> vector<48x256xf32>
    %27 = arith.addf %10, %26 : vector<48x256xf32>
    %c0_24 = arith.constant 0 : index
    %c0_25 = arith.constant 0 : index
    %c0_26 = arith.constant 0 : index
    %28 = vector.load %arg4[%c0_24, %c0_25, %c0_26] : memref<1x16x64xf32, #tpu.memory_space<vmem>>, vector<1x16x64xf32>
    %29 = vector.shape_cast %28 : vector<1x16x64xf32> to vector<16x64xf32>
    %c0_27 = arith.constant 0 : index
    %c0_28 = arith.constant 0 : index
    %30 = vector.load %arg9[%c0_27, %c0_28] : memref<16x32xf32, #tpu.memory_space<vmem>>, vector<16x32xf32>
    %cst_29 = arith.constant dense<0.000000e+00> : vector<64x32xf32>
    %31 = tpu.matmul %29, %30, %cst_29 {dimension_numbers = #tpu.dot_dimension_numbers<[0], [0], [1], [1], [0, 1, 1, 1], [], []>} : vector<16x64xf32>, vector<16x32xf32>, vector<64x32xf32> -> vector<64x32xf32>
    %c0_30 = arith.constant 0 : index
    %c0_31 = arith.constant 0 : index
    %32 = vector.load %arg10[%c0_30, %c0_31] : memref<1x32xf32, #tpu.memory_space<vmem>>, vector<1x32xf32>
    %33 = vector.broadcast %32 : vector<1x32xf32> to vector<64x32xf32>
    %34 = arith.addf %31, %33 : vector<64x32xf32>
    %cst_32 = arith.constant 0.000000e+00 : f32
    %35 = vector.broadcast %cst_32 : f32 to vector<64x32xf32>
    %36 = arith.maximumf %34, %35 : vector<64x32xf32>
    %37 = vector.shape_cast %36 : vector<64x32xf32> to vector<8x8x32xf32>
    %38 = vector.shape_cast %37 : vector<8x8x32xf32> to vector<8x8x1x32xf32>
    %39 = vector.shape_cast %38 : vector<8x8x1x32xf32> to vector<8x8x1x32xf32>
    %40 = vector.broadcast %39 : vector<8x8x1x32xf32> to vector<8x8x2x32xf32>
    %41 = vector.shape_cast %40 : vector<8x8x2x32xf32> to vector<8x16x32xf32>
    %42 = vector.shape_cast %41 : vector<8x16x32xf32> to vector<8x1x16x32xf32>
    %43 = vector.shape_cast %42 : vector<8x1x16x32xf32> to vector<8x1x16x32xf32>
    %44 = vector.broadcast %43 : vector<8x1x16x32xf32> to vector<8x2x16x32xf32>
    %45 = vector.shape_cast %44 : vector<8x2x16x32xf32> to vector<256x32xf32>
    %c0_33 = arith.constant 0 : index
    %c0_34 = arith.constant 0 : index
    %46 = vector.load %arg13[%c0_33, %c0_34] : memref<48x32xf32, #tpu.memory_space<vmem>>, vector<48x32xf32>
    %cst_35 = arith.constant dense<0.000000e+00> : vector<48x256xf32>
    %47 = tpu.matmul %46, %45, %cst_35 {dimension_numbers = #tpu.dot_dimension_numbers<[1], [1], [0], [0], [0, 0, 1, 0], [], []>} : vector<48x32xf32>, vector<256x32xf32>, vector<48x256xf32> -> vector<48x256xf32>
    %48 = arith.addf %27, %47 : vector<48x256xf32>
    %c0_36 = arith.constant 0 : index
    %c0_37 = arith.constant 0 : index
    %49 = vector.load %arg14[%c0_36, %c0_37] : memref<48x1xf32, #tpu.memory_space<vmem>>, vector<48x1xf32>
    %50 = vector.broadcast %49 : vector<48x1xf32> to vector<48x256xf32>
    %51 = arith.addf %48, %50 : vector<48x256xf32>
    %cst_38 = arith.constant 0.000000e+00 : f32
    %52 = vector.broadcast %cst_38 : f32 to vector<48x256xf32>
    %53 = arith.maximumf %51, %52 : vector<48x256xf32>
    %c0_39 = arith.constant 0 : index
    %c0_40 = arith.constant 0 : index
    %c0_41 = arith.constant 0 : index
    %54 = vector.load %arg15[%c0_39, %c0_40, %c0_41] : memref<1x48x256xf32, #tpu.memory_space<vmem>>, vector<1x48x256xf32>
    %55 = vector.shape_cast %54 : vector<1x48x256xf32> to vector<48x256xf32>
    %56 = vector.shape_cast %53 : vector<48x256xf32> to vector<1x48x256xf32>
    tpu.vector_store %arg15[%c0_39, %c0_40, %c0_41], %56 {strides = array<i32>} : memref<1x48x256xf32, #tpu.memory_space<vmem>>, vector<1x48x256xf32>,
    return
  }
  func.func @transform_0(%arg0: i32, %arg1: i32) -> (i32, i32, i32) {
    %c0_i32 = arith.constant 0 : i32
    %c0_i32_0 = arith.constant 0 : i32
    return %arg0, %c0_i32, %arg1 : i32, i32, i32
  }
  func.func @transform_1(%arg0: i32, %arg1: i32) -> (i32, i32, i32) {
    %c0_i32 = arith.constant 0 : i32
    %c0_i32_0 = arith.constant 0 : i32
    return %arg0, %c0_i32, %arg1 : i32, i32, i32
  }
  func.func @transform_2(%arg0: i32, %arg1: i32) -> (i32, i32, i32) {
    %c0_i32 = arith.constant 0 : i32
    %c0_i32_0 = arith.constant 0 : i32
    return %arg0, %c0_i32, %arg1 : i32, i32, i32
  }
  func.func @transform_3(%arg0: i32, %arg1: i32) -> (i32, i32) {
    %c0_i32 = arith.constant 0 : i32
    %c0_i32_0 = arith.constant 0 : i32
    %c0_i32_1 = arith.constant 0 : i32
    return %c0_i32, %c0_i32_0 : i32, i32
  }
  func.func @transform_4(%arg0: i32, %arg1: i32) -> (i32, i32) {
    %c0_i32 = arith.constant 0 : i32
    %c0_i32_0 = arith.constant 0 : i32
    %c0_i32_1 = arith.constant 0 : i32
    return %c0_i32, %c0_i32_0 : i32, i32
  }
  func.func @transform_5(%arg0: i32, %arg1: i32) -> (i32, i32) {
    %c0_i32 = arith.constant 0 : i32
    %c0_i32_0 = arith.constant 0 : i32
    %c0_i32_1 = arith.constant 0 : i32
    return %c0_i32, %c0_i32_0 : i32, i32
  }
  func.func @transform_6(%arg0: i32, %arg1: i32) -> (i32, i32) {
    %c0_i32 = arith.constant 0 : i32
    %c0_i32_0 = arith.constant 0 : i32
    %c0_i32_1 = arith.constant 0 : i32
    return %c0_i32, %c0_i32_0 : i32, i32
  }
  func.func @transform_7(%arg0: i32, %arg1: i32) -> (i32, i32) {
    %c0_i32 = arith.constant 0 : i32
    %c0_i32_0 = arith.constant 0 : i32
    %c0_i32_1 = arith.constant 0 : i32
    return %c0_i32, %c0_i32_0 : i32, i32
  }
  func.func @transform_8(%arg0: i32, %arg1: i32) -> (i32, i32) {
    %c0_i32 = arith.constant 0 : i32
    %c0_i32_0 = arith.constant 0 : i32
    %c0_i32_1 = arith.constant 0 : i32
    return %c0_i32, %c0_i32_0 : i32, i32
  }
  func.func @transform_9(%arg0: i32, %arg1: i32) -> (i32, i32) {
    %c0_i32 = arith.constant 0 : i32
    %c0_i32_0 = arith.constant 0 : i32
    %c0_i32_1 = arith.constant 0 : i32
    return %c0_i32, %c0_i32_0 : i32, i32
  }
  func.func @transform_10(%arg0: i32, %arg1: i32) -> (i32, i32) {
    %c0_i32 = arith.constant 0 : i32
    %c0_i32_0 = arith.constant 0 : i32
    %c0_i32_1 = arith.constant 0 : i32
    return %c0_i32, %c0_i32_0 : i32, i32
  }
  func.func @transform_11(%arg0: i32, %arg1: i32) -> (i32, i32) {
    %c0_i32 = arith.constant 0 : i32
    %c0_i32_0 = arith.constant 0 : i32
    %c0_i32_1 = arith.constant 0 : i32
    return %c0_i32, %c0_i32_0 : i32, i32
  }
  func.func @transform_12(%arg0: i32, %arg1: i32) -> (i32, i32) {
    %c0_i32 = arith.constant 0 : i32
    %c0_i32_0 = arith.constant 0 : i32
    %c0_i32_1 = arith.constant 0 : i32
    return %c0_i32, %c0_i32_0 : i32, i32
  }
  func.func @transform_13(%arg0: i32, %arg1: i32) -> (i32, i32, i32) {
    %c0_i32 = arith.constant 0 : i32
    %c0_i32_0 = arith.constant 0 : i32
    return %arg0, %c0_i32, %arg1 : i32, i32, i32
  }
}

</mosaic_0001>

<llo_original>
// kernel: tpu_custom_call.1
$region0: #{tpu_custom_call.1}
  #allocation0 [shape = 'u32[]', space=smem, size = 0x4, offset = 0x4, fixed_abs, tag = 'smem constant byte address 0x4 - core index']
  #allocation1 [shape = 'u32[144,128]{1,0:T(1,128)}', space=vmem, size = 0x12000, scoped, tag = 'internal scratch']
  %s0 = inlined_call_operand.vmem [shape: f32[2,4,1024], index: 0, kind: input, shape index: {}]
  %s1 = inlined_call_operand.vmem [shape: f32[2,8,256], index: 1, kind: input, shape index: {}]
  %s2 = inlined_call_operand.vmem [shape: f32[2,16,64], index: 2, kind: input, shape index: {}]
  %s3 = inlined_call_operand.vmem [shape: f32[4,32], index: 3, kind: input, shape index: {}]
  %s4 = inlined_call_operand.vmem [shape: f32[1,32], index: 4, kind: input, shape index: {}]
  %s5 = inlined_call_operand.vmem [shape: f32[8,32], index: 5, kind: input, shape index: {}]
  %s6 = inlined_call_operand.vmem [shape: f32[1,32], index: 6, kind: input, shape index: {}]
  %s7 = inlined_call_operand.vmem [shape: f32[16,32], index: 7, kind: input, shape index: {}]
  %s8 = inlined_call_operand.vmem [shape: f32[1,32], index: 8, kind: input, shape index: {}]
  %s9 = inlined_call_operand.vmem [shape: f32[48,32], index: 9, kind: input, shape index: {}]
  %s10 = inlined_call_operand.vmem [shape: f32[48,32], index: 10, kind: input, shape index: {}]
  %s11 = inlined_call_operand.vmem [shape: f32[48,32], index: 11, kind: input, shape index: {}]
  %s12 = inlined_call_operand.vmem [shape: f32[48,1], index: 12, kind: input, shape index: {}]
  %s13 = inlined_call_operand.hbm [shape: f32[2,48,256], index: 13, kind: output, shape index: {}]
  %s14 = sld [smem:[#allocation0]]
  $region85: #{tpu_custom_call.1} parent=0
    _
  %s16 = ssub.s32 1, %s14
  %s17 = scalar_select 0, %s16, %s14
  $region1: #{tpu_custom_call.1} parent=0
    #allocation2 [shape = 'u8[98304]{0}', space=vmem, size = 0x18000, scoped, tag = 'output window, operand 0']
    #allocation3 [shape = 's32[2]{0}', space=sflag, size = 0x8, scoped, tag = 'scoped memory for tpu_custom_call.1']
    %18 = vsyncpa [#allocation3], 0
    %s19 = scalar_lea.sflag [#allocation3], 1
    %20 = vsyncpa %s19, 0
    loop: start=0, step=1, limit=4
    $region2: #{tpu_custom_call.1} parent=1 // loop_pre_header
      _
    $region3: #{tpu_custom_call.1} parent=1 // loop_header
      %s22 = sphi 0, %s26
      %p23 = scmp.ge.s32.totalorder %s22, 4
      %s29 = sphi 0, %s41
      %s30 = sphi 0, %s37
      %s31 = sphi 0, %s29
      %s32 = sphi 0, %s30
      %s33 = sphi 0, %s31
      %s34 = sphi 0, %s32
      %s46 = sphi 0, %s48
      %s49 = sphi 0, %s46
      %s50 = sphi 0, %s49
      %s66 = sphi 0, %s50
      %s74 = sphi 0, %s76
      %s77 = sphi 0, %s74
      %s78 = sphi 0, %s77
      %s94 = sphi 0, %s78
      %s102 = sphi 0, %s104
      %s105 = sphi 0, %s102
      %s106 = sphi 0, %s105
      %s122 = sphi 0, %s106
      %s126 = sphi 0, %s126
      %s128 = sphi 0, %s126
      %s129 = sphi 0, %s128
      %s143 = sphi 0, %s129
      %s147 = sphi 0, %s147
      %s149 = sphi 0, %s147
      %s150 = sphi 0, %s149
      %s164 = sphi 0, %s150
      %s168 = sphi 0, %s168
      %s170 = sphi 0, %s168
      %s171 = sphi 0, %s170
      %s185 = sphi 0, %s171
      %s189 = sphi 0, %s189
      %s191 = sphi 0, %s189
      %s192 = sphi 0, %s191
      %s206 = sphi 0, %s192
      %s210 = sphi 0, %s210
      %s212 = sphi 0, %s210
      %s213 = sphi 0, %s212
      %s227 = sphi 0, %s213
      %s231 = sphi 0, %s231
      %s233 = sphi 0, %s231
      %s234 = sphi 0, %s233
      %s248 = sphi 0, %s234
      %s252 = sphi 0, %s252
      %s254 = sphi 0, %s252
      %s255 = sphi 0, %s254
      %s269 = sphi 0, %s255
      %s273 = sphi 0, %s273
      %s275 = sphi 0, %s273
      %s276 = sphi 0, %s275
      %s290 = sphi 0, %s276
      %s294 = sphi 0, %s294
      %s296 = sphi 0, %s294
      %s297 = sphi 0, %s296
      %s311 = sphi 0, %s297
      %s315 = sphi 0, %s315
      %s317 = sphi 0, %s315
      %s318 = sphi 0, %s317
      %s332 = sphi 0, %s318
      %s340 = sphi 0, %s342
      %s343 = sphi 0, %s340
      %s344 = sphi 0, %s343
      %s360 = sphi 0, %s344
    $region4: #{tpu_custom_call.1} parent=1 // loop_header_branch
      %25 = sbr.rel (%p23) target = $region8
    $region5: #{tpu_custom_call.1} parent=1 // loop_body
      %s27 = ssub.s32 %s22, 1
      %s28 = ssub.s32 %s22, 2
      %s35 = sadd.s32 1, %s30
      %p36 = scmp.ge.s32.totalorder %s35, 1
      %s37 = scalar_select %p36, 0, %s35
      %s38 = sadd.s32 1, %s29
      %s39 = scalar_select %p36, %s38, %s29
      %p40 = scmp.ge.s32.totalorder %s39, 2
      %s41 = scalar_select %p40, 0, %s39
      %s42 = ssub.s32 %s29, %s41
      %s43 = ssub.s32 %s30, %s37
      %s44 = sor.u32 %s42, %s43
      %p45 = scmp.eq.s32.totalorder %s44, 0
      %s47 = sadd.s32 %s46, 1
      %s48 = scalar_select %p45, %s46, %s47
      %p51 = pneg %p45
      %p52 = scmp.eq.s32.totalorder %s22, 1
      %p53 = por %p51, %p52
      %p54 = scmp.ne.s32.totalorder %s46, %s49
      %p55 = scmp.eq.s32.totalorder %s22, 0
      %p56 = por %p54, %p55
      %p57 = scmp.ne.s32.totalorder %s46, %s49
      %p58 = scmp.eq.s32.totalorder %s27, 1
      %p59 = por %p57, %p58
      %p60 = scmp.ne.s32.totalorder %s49, %s50
      %p61 = scmp.eq.s32.totalorder %s27, 0
      %p62 = por %p60, %p61
      %p63 = scmp.ne.s32.totalorder %s49, %s50
      %p64 = scmp.eq.s32.totalorder %s28, 1
      %p65 = por %p63, %p64
      %p67 = scmp.ne.s32.totalorder %s50, %s66
      %p68 = scmp.eq.s32.totalorder %s28, 0
      %p69 = por %p67, %p68
      %s70 = ssub.s32 %s29, %s41
      %s71 = ssub.s32 %s30, %s37
      %s72 = sor.u32 %s70, %s71
      %p73 = scmp.eq.s32.totalorder %s72, 0
      %s75 = sadd.s32 %s74, 1
      %s76 = scalar_select %p73, %s74, %s75
      %p79 = pneg %p73
      %p80 = scmp.eq.s32.totalorder %s22, 1
      %p81 = por %p79, %p80
      %p82 = scmp.ne.s32.totalorder %s74, %s77
      %p83 = scmp.eq.s32.totalorder %s22, 0
      %p84 = por %p82, %p83
      %p85 = scmp.ne.s32.totalorder %s74, %s77
      %p86 = scmp.eq.s32.totalorder %s27, 1
      %p87 = por %p85, %p86
      %p88 = scmp.ne.s32.totalorder %s77, %s78
      %p89 = scmp.eq.s32.totalorder %s27, 0
      %p90 = por %p88, %p89
      %p91 = scmp.ne.s32.totalorder %s77, %s78
      %p92 = scmp.eq.s32.totalorder %s28, 1
      %p93 = por %p91, %p92
      %p95 = scmp.ne.s32.totalorder %s78, %s94
      %p96 = scmp.eq.s32.totalorder %s28, 0
      %p97 = por %p95, %p96
      %s98 = ssub.s32 %s29, %s41
      %s99 = ssub.s32 %s30, %s37
      %s100 = sor.u32 %s98, %s99
      %p101 = scmp.eq.s32.totalorder %s100, 0
      %s103 = sadd.s32 %s102, 1
      %s104 = scalar_select %p101, %s102, %s103
      %p107 = pneg %p101
      %p108 = scmp.eq.s32.totalorder %s22, 1
      %p109 = por %p107, %p108
      %p110 = scmp.ne.s32.totalorder %s102, %s105
      %p111 = scmp.eq.s32.totalorder %s22, 0
      %p112 = por %p110, %p111
      %p113 = scmp.ne.s32.totalorder %s102, %s105
      %p114 = scmp.eq.s32.totalorder %s27, 1
      %p115 = por %p113, %p114
      %p116 = scmp.ne.s32.totalorder %s105, %s106
      %p117 = scmp.eq.s32.totalorder %s27, 0
      %p118 = por %p116, %p117
      %p119 = scmp.ne.s32.totalorder %s105, %s106
      %p120 = scmp.eq.s32.totalorder %s28, 1
      %p121 = por %p119, %p120
      %p123 = scmp.ne.s32.totalorder %s106, %s122
      %p124 = scmp.eq.s32.totalorder %s28, 0
      %p125 = por %p123, %p124
      %s127 = sadd.s32 %s126, 1
      %p130 = scmp.eq.s32.totalorder %s22, 1
      %p131 = scmp.ne.s32.totalorder %s126, %s128
      %p132 = scmp.eq.s32.totalorder %s22, 0
      %p133 = por %p131, %p132
      %p134 = scmp.ne.s32.totalorder %s126, %s128
      %p135 = scmp.eq.s32.totalorder %s27, 1
      %p136 = por %p134, %p135
      %p137 = scmp.ne.s32.totalorder %s128, %s129
      %p138 = scmp.eq.s32.totalorder %s27, 0
      %p139 = por %p137, %p138
      %p140 = scmp.ne.s32.totalorder %s128, %s129
      %p141 = scmp.eq.s32.totalorder %s28, 1
      %p142 = por %p140, %p141
      %p144 = scmp.ne.s32.totalorder %s129, %s143
      %p145 = scmp.eq.s32.totalorder %s28, 0
      %p146 = por %p144, %p145
      %s148 = sadd.s32 %s147, 1
      %p151 = scmp.eq.s32.totalorder %s22, 1
      %p152 = scmp.ne.s32.totalorder %s147, %s149
      %p153 = scmp.eq.s32.totalorder %s22, 0
      %p154 = por %p152, %p153
      %p155 = scmp.ne.s32.totalorder %s147, %s149
      %p156 = scmp.eq.s32.totalorder %s27, 1
      %p157 = por %p155, %p156
      %p158 = scmp.ne.s32.totalorder %s149, %s150
      %p159 = scmp.eq.s32.totalorder %s27, 0
      %p160 = por %p158, %p159
      %p161 = scmp.ne.s32.totalorder %s149, %s150
      %p162 = scmp.eq.s32.totalorder %s28, 1
      %p163 = por %p161, %p162
      %p165 = scmp.ne.s32.totalorder %s150, %s164
      %p166 = scmp.eq.s32.totalorder %s28, 0
      %p167 = por %p165, %p166
      %s169 = sadd.s32 %s168, 1
      %p172 = scmp.eq.s32.totalorder %s22, 1
      %p173 = scmp.ne.s32.totalorder %s168, %s170
      %p174 = scmp.eq.s32.totalorder %s22, 0
      %p175 = por %p173, %p174
      %p176 = scmp.ne.s32.totalorder %s168, %s170
      %p177 = scmp.eq.s32.totalorder %s27, 1
      %p178 = por %p176, %p177
      %p179 = scmp.ne.s32.totalorder %s170, %s171
      %p180 = scmp.eq.s32.totalorder %s27, 0
      %p181 = por %p179, %p180
      %p182 = scmp.ne.s32.totalorder %s170, %s171
      %p183 = scmp.eq.s32.totalorder %s28, 1
      %p184 = por %p182, %p183
      %p186 = scmp.ne.s32.totalorder %s171, %s185
      %p187 = scmp.eq.s32.totalorder %s28, 0
      %p188 = por %p186, %p187
      %s190 = sadd.s32 %s189, 1
      %p193 = scmp.eq.s32.totalorder %s22, 1
      %p194 = scmp.ne.s32.totalorder %s189, %s191
      %p195 = scmp.eq.s32.totalorder %s22, 0
      %p196 = por %p194, %p195
      %p197 = scmp.ne.s32.totalorder %s189, %s191
      %p198 = scmp.eq.s32.totalorder %s27, 1
      %p199 = por %p197, %p198
      %p200 = scmp.ne.s32.totalorder %s191, %s192
      %p201 = scmp.eq.s32.totalorder %s27, 0
      %p202 = por %p200, %p201
      %p203 = scmp.ne.s32.totalorder %s191, %s192
      %p204 = scmp.eq.s32.totalorder %s28, 1
      %p205 = por %p203, %p204
      %p207 = scmp.ne.s32.totalorder %s192, %s206
      %p208 = scmp.eq.s32.totalorder %s28, 0
      %p209 = por %p207, %p208
      %s211 = sadd.s32 %s210, 1
      %p214 = scmp.eq.s32.totalorder %s22, 1
      %p215 = scmp.ne.s32.totalorder %s210, %s212
      %p216 = scmp.eq.s32.totalorder %s22, 0
      %p217 = por %p215, %p216
      %p218 = scmp.ne.s32.totalorder %s210, %s212
      %p219 = scmp.eq.s32.totalorder %s27, 1
      %p220 = por %p218, %p219
      %p221 = scmp.ne.s32.totalorder %s212, %s213
      %p222 = scmp.eq.s32.totalorder %s27, 0
      %p223 = por %p221, %p222
      %p224 = scmp.ne.s32.totalorder %s212, %s213
      %p225 = scmp.eq.s32.totalorder %s28, 1
      %p226 = por %p224, %p225
      %p228 = scmp.ne.s32.totalorder %s213, %s227
      %p229 = scmp.eq.s32.totalorder %s28, 0
      %p230 = por %p228, %p229
      %s232 = sadd.s32 %s231, 1
      %p235 = scmp.eq.s32.totalorder %s22, 1
      %p236 = scmp.ne.s32.totalorder %s231, %s233
      %p237 = scmp.eq.s32.totalorder %s22, 0
      %p238 = por %p236, %p237
      %p239 = scmp.ne.s32.totalorder %s231, %s233
      %p240 = scmp.eq.s32.totalorder %s27, 1
      %p241 = por %p239, %p240
      %p242 = scmp.ne.s32.totalorder %s233, %s234
      %p243 = scmp.eq.s32.totalorder %s27, 0
      %p244 = por %p242, %p243
      %p245 = scmp.ne.s32.totalorder %s233, %s234
      %p246 = scmp.eq.s32.totalorder %s28, 1
      %p247 = por %p245, %p246
      %p249 = scmp.ne.s32.totalorder %s234, %s248
      %p250 = scmp.eq.s32.totalorder %s28, 0
      %p251 = por %p249, %p250
      %s253 = sadd.s32 %s252, 1
      %p256 = scmp.eq.s32.totalorder %s22, 1
      %p257 = scmp.ne.s32.totalorder %s252, %s254
      %p258 = scmp.eq.s32.totalorder %s22, 0
      %p259 = por %p257, %p258
      %p260 = scmp.ne.s32.totalorder %s252, %s254
      %p261 = scmp.eq.s32.totalorder %s27, 1
      %p262 = por %p260, %p261
      %p263 = scmp.ne.s32.totalorder %s254, %s255
      %p264 = scmp.eq.s32.totalorder %s27, 0
      %p265 = por %p263, %p264
      %p266 = scmp.ne.s32.totalorder %s254, %s255
      %p267 = scmp.eq.s32.totalorder %s28, 1
      %p268 = por %p266, %p267
      %p270 = scmp.ne.s32.totalorder %s255, %s269
      %p271 = scmp.eq.s32.totalorder %s28, 0
      %p272 = por %p270, %p271
      %s274 = sadd.s32 %s273, 1
      %p277 = scmp.eq.s32.totalorder %s22, 1
      %p278 = scmp.ne.s32.totalorder %s273, %s275
      %p279 = scmp.eq.s32.totalorder %s22, 0
      %p280 = por %p278, %p279
      %p281 = scmp.ne.s32.totalorder %s273, %s275
      %p282 = scmp.eq.s32.totalorder %s27, 1
      %p283 = por %p281, %p282
      %p284 = scmp.ne.s32.totalorder %s275, %s276
      %p285 = scmp.eq.s32.totalorder %s27, 0
      %p286 = por %p284, %p285
      %p287 = scmp.ne.s32.totalorder %s275, %s276
      %p288 = scmp.eq.s32.totalorder %s28, 1
      %p289 = por %p287, %p288
      %p291 = scmp.ne.s32.totalorder %s276, %s290
      %p292 = scmp.eq.s32.totalorder %s28, 0
      %p293 = por %p291, %p292
      %s295 = sadd.s32 %s294, 1
      %p298 = scmp.eq.s32.totalorder %s22, 1
      %p299 = scmp.ne.s32.totalorder %s294, %s296
      %p300 = scmp.eq.s32.totalorder %s22, 0
      %p301 = por %p299, %p300
      %p302 = scmp.ne.s32.totalorder %s294, %s296
      %p303 = scmp.eq.s32.totalorder %s27, 1
      %p304 = por %p302, %p303
      %p305 = scmp.ne.s32.totalorder %s296, %s297
      %p306 = scmp.eq.s32.totalorder %s27, 0
      %p307 = por %p305, %p306
      %p308 = scmp.ne.s32.totalorder %s296, %s297
      %p309 = scmp.eq.s32.totalorder %s28, 1
      %p310 = por %p308, %p309
      %p312 = scmp.ne.s32.totalorder %s297, %s311
      %p313 = scmp.eq.s32.totalorder %s28, 0
      %p314 = por %p312, %p313
      %s316 = sadd.s32 %s315, 1
      %p319 = scmp.eq.s32.totalorder %s22, 1
      %p320 = scmp.ne.s32.totalorder %s315, %s317
      %p321 = scmp.eq.s32.totalorder %s22, 0
      %p322 = por %p320, %p321
      %p323 = scmp.ne.s32.totalorder %s315, %s317
      %p324 = scmp.eq.s32.totalorder %s27, 1
      %p325 = por %p323, %p324
      %p326 = scmp.ne.s32.totalorder %s317, %s318
      %p327 = scmp.eq.s32.totalorder %s27, 0
      %p328 = por %p326, %p327
      %p329 = scmp.ne.s32.totalorder %s317, %s318
      %p330 = scmp.eq.s32.totalorder %s28, 1
      %p331 = por %p329, %p330
      %p333 = scmp.ne.s32.totalorder %s318, %s332
      %p334 = scmp.eq.s32.totalorder %s28, 0
      %p335 = por %p333, %p334
      %s336 = ssub.s32 %s29, %s41
      %s337 = ssub.s32 %s30, %s37
      %s338 = sor.u32 %s336, %s337
      %p339 = scmp.eq.s32.totalorder %s338, 0
      %s341 = sadd.s32 %s340, 1
      %s342 = scalar_select %p339, %s340, %s341
      %p345 = pneg %p339
      %p346 = scmp.eq.s32.totalorder %s22, 1
      %p347 = por %p345, %p346
      %p348 = scmp.ne.s32.totalorder %s340, %s343
      %p349 = scmp.eq.s32.totalorder %s22, 0
      %p350 = por %p348, %p349
      %p351 = scmp.ne.s32.totalorder %s340, %s343
      %p352 = scmp.eq.s32.totalorder %s27, 1
      %p353 = por %p351, %p352
      %p354 = scmp.ne.s32.totalorder %s343, %s344
      %p355 = scmp.eq.s32.totalorder %s27, 0
      %p356 = por %p354, %p355
      %p357 = scmp.ne.s32.totalorder %s343, %s344
      %p358 = scmp.eq.s32.totalorder %s28, 1
      %p359 = por %p357, %p358
      %p361 = scmp.ne.s32.totalorder %s344, %s360
      %p362 = scmp.eq.s32.totalorder %s28, 0
      %p363 = por %p361, %p362
      %p364 = scmp.le.s32.totalorder 1, %s22
      %p365 = scmp.lt.s32.totalorder %s22, 3
      %p366 = pnand %p364, %p365
      %p367 = pneg %p366
      // Predicated region
      $region9: #{tpu_custom_call.1} parent=5 // pred_check
        _
      $region10: #{tpu_custom_call.1} parent=5 // pred_check_branch
        %369 = sbr.rel (%p366) target = $region12
      $region11: #{tpu_custom_call.1} parent=5 // pred_region
        %s370 = ssub.s32 %s22, 1
        // Predicated region
        $region13: #{tpu_custom_call.1} parent=11 // pred_check
          %p371 = pneg %p139
        $region14: #{tpu_custom_call.1} parent=11 // pred_check_branch
          %373 = sbr.rel (%p371) target = $region16
        $region15: #{tpu_custom_call.1} parent=11 // pred_region
          _
        $region16: #{tpu_custom_call.1} parent=11 // pred_fallthru
          _
        // Predicated region
        $region17: #{tpu_custom_call.1} parent=11 // pred_check
          %p374 = pneg %p160
        $region18: #{tpu_custom_call.1} parent=11 // pred_check_branch
          %376 = sbr.rel (%p374) target = $region20
        $region19: #{tpu_custom_call.1} parent=11 // pred_region
          _
        $region20: #{tpu_custom_call.1} parent=11 // pred_fallthru
          _
        // Predicated region
        $region21: #{tpu_custom_call.1} parent=11 // pred_check
          %p377 = pneg %p181
        $region22: #{tpu_custom_call.1} parent=11 // pred_check_branch
          %379 = sbr.rel (%p377) target = $region24
        $region23: #{tpu_custom_call.1} parent=11 // pred_region
          _
        $region24: #{tpu_custom_call.1} parent=11 // pred_fallthru
          _
        // Predicated region
        $region25: #{tpu_custom_call.1} parent=11 // pred_check
          %p380 = pneg %p202
        $region26: #{tpu_custom_call.1} parent=11 // pred_check_branch
          %382 = sbr.rel (%p380) target = $region28
        $region27: #{tpu_custom_call.1} parent=11 // pred_region
          _
        $region28: #{tpu_custom_call.1} parent=11 // pred_fallthru
          _
        // Predicated region
        $region29: #{tpu_custom_call.1} parent=11 // pred_check
          %p383 = pneg %p223
        $region30: #{tpu_custom_call.1} parent=11 // pred_check_branch
          %385 = sbr.rel (%p383) target = $region32
        $region31: #{tpu_custom_call.1} parent=11 // pred_region
          _
        $region32: #{tpu_custom_call.1} parent=11 // pred_fallthru
          _
        // Predicated region
        $region33: #{tpu_custom_call.1} parent=11 // pred_check
          %p386 = pneg %p244
        $region34: #{tpu_custom_call.1} parent=11 // pred_check_branch
          %388 = sbr.rel (%p386) target = $region36
        $region35: #{tpu_custom_call.1} parent=11 // pred_region
          _
        $region36: #{tpu_custom_call.1} parent=11 // pred_fallthru
          _
        // Predicated region
        $region37: #{tpu_custom_call.1} parent=11 // pred_check
          %p389 = pneg %p265
        $region38: #{tpu_custom_call.1} parent=11 // pred_check_branch
          %391 = sbr.rel (%p389) target = $region40
        $region39: #{tpu_custom_call.1} parent=11 // pred_region
          _
        $region40: #{tpu_custom_call.1} parent=11 // pred_fallthru
          _
        // Predicated region
        $region41: #{tpu_custom_call.1} parent=11 // pred_check
          %p392 = pneg %p286
        $region42: #{tpu_custom_call.1} parent=11 // pred_check_branch
          %394 = sbr.rel (%p392) target = $region44
        $region43: #{tpu_custom_call.1} parent=11 // pred_region
          _
        $region44: #{tpu_custom_call.1} parent=11 // pred_fallthru
          _
        // Predicated region
        $region45: #{tpu_custom_call.1} parent=11 // pred_check
          %p395 = pneg %p307
        $region46: #{tpu_custom_call.1} parent=11 // pred_check_branch
          %397 = sbr.rel (%p395) target = $region48
        $region47: #{tpu_custom_call.1} parent=11 // pred_region
          _
        $region48: #{tpu_custom_call.1} parent=11 // pred_fallthru
          _
        // Predicated region
        $region49: #{tpu_custom_call.1} parent=11 // pred_check
          %p398 = pneg %p328
        $region50: #{tpu_custom_call.1} parent=11 // pred_check_branch
          %400 = sbr.rel (%p398) target = $region52
        $region51: #{tpu_custom_call.1} parent=11 // pred_region
          _
        $region52: #{tpu_custom_call.1} parent=11 // pred_fallthru
          _
      $region12: #{tpu_custom_call.1} parent=5 // pred_fallthru
        _
      %p401 = scmp.lt.s32.totalorder %s22, 2
      // Predicated region
      $region53: #{tpu_custom_call.1} parent=5 // pred_check
        %p402 = pneg %p401
      $region54: #{tpu_custom_call.1} parent=5 // pred_check_branch
        %404 = sbr.rel (%p402) target = $region56
      $region55: #{tpu_custom_call.1} parent=5 // pred_region
        // Predicated region
        $region57: #{tpu_custom_call.1} parent=55 // pred_check
          %p405 = pneg %p56
        $region58: #{tpu_custom_call.1} parent=55 // pred_check_branch
          %407 = sbr.rel (%p405) target = $region60
        $region59: #{tpu_custom_call.1} parent=55 // pred_region
          %s408 = smul.u32 8, %s30
          %p409 = scmp.lt.s32.totalorder %s29, 1
          %s410 = scalar_select %p409, %s29, 1
          %p411 = scmp.lt.s32.totalorder %s408, 7
          %s412 = scalar_select %p411, %s408, 7
          %s413 = smul.addr %s410, 8
          %s414 = sadd.s32 %s412, %s413
          %s415 = smul.addr %s414, 4
          %s416 = scalar_lea.vmem %s0, %s415
          %s417 = smul.u32 8, %s30
        $region60: #{tpu_custom_call.1} parent=55 // pred_fallthru
          _
        // Predicated region
        $region61: #{tpu_custom_call.1} parent=55 // pred_check
          %p418 = pneg %p84
        $region62: #{tpu_custom_call.1} parent=55 // pred_check_branch
          %420 = sbr.rel (%p418) target = $region64
        $region63: #{tpu_custom_call.1} parent=55 // pred_region
          %s421 = smul.u32 2, %s30
          %p422 = scmp.lt.s32.totalorder %s29, 1
          %s423 = scalar_select %p422, %s29, 1
          %p424 = scmp.lt.s32.totalorder %s421, 1
          %s425 = scalar_select %p424, %s421, 1
          %s426 = smul.addr %s423, 2
          %s427 = sadd.s32 %s425, %s426
          %s428 = smul.addr %s427, 8
          %s429 = scalar_lea.vmem %s1, %s428
          %s430 = smul.u32 2, %s30
        $region64: #{tpu_custom_call.1} parent=55 // pred_fallthru
          _
        // Predicated region
        $region65: #{tpu_custom_call.1} parent=55 // pred_check
          %p431 = pneg %p112
        $region66: #{tpu_custom_call.1} parent=55 // pred_check_branch
          %433 = sbr.rel (%p431) target = $region68
        $region67: #{tpu_custom_call.1} parent=55 // pred_region
          %p434 = scmp.lt.s32.totalorder %s29, 1
          %s435 = scalar_select %p434, %s29, 1
          %p436 = scmp.lt.s32.totalorder %s30, 0
          %s437 = scalar_select %p436, %s30, 0
          %s438 = smul.addr %s435, 2
          %s439 = sadd.s32 %s437, %s438
          %s440 = smul.addr %s439, 8
          %s441 = scalar_lea.vmem %s2, %s440
        $region68: #{tpu_custom_call.1} parent=55 // pred_fallthru
          _
      $region56: #{tpu_custom_call.1} parent=5 // pred_fallthru
        _
      %p442 = scmp.le.s32.totalorder 1, %s22
      %p443 = scmp.lt.s32.totalorder %s22, 3
      %p444 = pnand %p442, %p443
      %p445 = pneg %p444
      // Predicated region
      $region69: #{tpu_custom_call.1} parent=5 // pred_check
        _
      $region70: #{tpu_custom_call.1} parent=5 // pred_check_branch
        %447 = sbr.rel (%p444) target = $region72
      $region71: #{tpu_custom_call.1} parent=5 // pred_region
        %s448 = ssub.s32 %s22, 1
        %s449 = smul.u32 8, %s32
        %p450 = scmp.lt.s32.totalorder %s31, 1
        %s451 = scalar_select %p450, %s31, 1
        %p452 = scmp.lt.s32.totalorder %s449, 7
        %s453 = scalar_select %p452, %s449, 7
        %s454 = smul.addr %s451, 8
        %s455 = sadd.s32 %s453, %s454
        %s456 = smul.addr %s455, 4
        %s457 = scalar_lea.vmem %s0, %s456
        %p458 = pneg %p62
        %p459 = pneg %p59
        %s460 = smul.u32 2, %s32
        %p461 = scmp.lt.s32.totalorder %s31, 1
        %s462 = scalar_select %p461, %s31, 1
        %p463 = scmp.lt.s32.totalorder %s460, 1
        %s464 = scalar_select %p463, %s460, 1
        %s465 = smul.addr %s462, 2
        %s466 = sadd.s32 %s464, %s465
        %s467 = smul.addr %s466, 8
        %s468 = scalar_lea.vmem %s1, %s467
        %p469 = pneg %p90
        %p470 = pneg %p87
        %p471 = scmp.lt.s32.totalorder %s31, 1
        %s472 = scalar_select %p471, %s31, 1
        %p473 = scmp.lt.s32.totalorder %s32, 0
        %s474 = scalar_select %p473, %s32, 0
        %s475 = smul.addr %s472, 2
        %s476 = sadd.s32 %s474, %s475
        %s477 = smul.addr %s476, 8
        %s478 = scalar_lea.vmem %s2, %s477
        %p479 = pneg %p118
        %p480 = pneg %p115
        %p481 = pneg %p139
        %p482 = pneg %p136
        %p483 = pneg %p160
        %p484 = pneg %p157
        %p485 = pneg %p181
        %p486 = pneg %p178
        %p487 = pneg %p202
        %p488 = pneg %p199
        %p489 = pneg %p223
        %p490 = pneg %p220
        %p491 = pneg %p244
        %p492 = pneg %p241
        %p493 = pneg %p265
        %p494 = pneg %p262
        %p495 = pneg %p286
        %p496 = pneg %p283
        %p497 = pneg %p307
        %p498 = pneg %p304
        %p499 = pneg %p328
        %p500 = pneg %p325
        %p501 = pneg %p356
        %p502 = pneg %p353
        %s503 = sand.u32 %s343, 1
        %s504 = scalar_lea.sflag [#allocation3], %s503
        %s505 = sand.u32 %s343, 1
        %s506 = smul.addr %s505, 96
        %s507 = scalar_lea.vmem [#allocation2], %s506
        %s508 = smul.u32 8, %s32
        %p509 = scmp.lt.s32.totalorder %s31, 1
        %s510 = scalar_select %p509, %s31, 1
        %p511 = scmp.lt.s32.totalorder %s508, 7
        %s512 = scalar_select %p511, %s508, 7
        %s513 = smul.addr %s510, 8
        %s514 = sadd.s32 %s512, %s513
        %s515 = smul.addr %s514, 4
        %s516 = scalar_lea.vmem %s0, %s515
        %s517 = smul.u32 8, %s32
        %s518 = smul.u32 2, %s32
        %p519 = scmp.lt.s32.totalorder %s31, 1
        %s520 = scalar_select %p519, %s31, 1
        %p521 = scmp.lt.s32.totalorder %s518, 1
        %s522 = scalar_select %p521, %s518, 1
        %s523 = smul.addr %s520, 2
        %s524 = sadd.s32 %s522, %s523
        %s525 = smul.addr %s524, 8
        %s526 = scalar_lea.vmem %s1, %s525
        %s527 = smul.u32 2, %s32
        %p528 = scmp.lt.s32.totalorder %s31, 1
        %s529 = scalar_select %p528, %s31, 1
        %p530 = scmp.lt.s32.totalorder %s32, 0
        %s531 = scalar_select %p530, %s32, 0
        %s532 = smul.addr %s529, 2
        %s533 = sadd.s32 %s531, %s532
        %s534 = smul.addr %s533, 8
        %s535 = scalar_lea.vmem %s2, %s534
        %s536 = smul.u32 2, %s32
        %v537 = vld [vmem:[%s526] sm:$0xff]
        %v538 = vld [vmem:[%s526 + $0x8] sm:$0xff]
        %v539 = vld [vmem:[%s5] sm:$0xff]
        %v540 = vld [vmem:[%s6] sm:$0x1]
        %v542 = vlaneseq
        %v543 = vshrl.u32 %v542, 7
        %v544 = vsub.s32 0, %v543
        %v545 = vrot.slane %v540, %v544
        %547 = vxpose.xlu0.b32.start [1/16] %v537, 128
        %548 = vxpose.xlu0.b32.cont [2/16] 0.0, 128
        %549 = vxpose.xlu0.b32.cont [3/16] 0.0, 128
        %550 = vxpose.xlu0.b32.cont [4/16] 0.0, 128
        %551 = vxpose.xlu0.b32.cont [5/16] 0.0, 128
        %552 = vxpose.xlu0.b32.cont [6/16] 0.0, 128
        %553 = vxpose.xlu0.b32.cont [7/16] 0.0, 128
        %554 = vxpose.xlu0.b32.cont [8/16] 0.0, 128
        %555 = vxpose.xlu0.b32.cont [9/16] 0.0, 128
        %556 = vxpose.xlu0.b32.cont [10/16] 0.0, 128
        %557 = vxpose.xlu0.b32.cont [11/16] 0.0, 128
        %558 = vxpose.xlu0.b32.cont [12/16] 0.0, 128
        %559 = vxpose.xlu0.b32.cont [13/16] 0.0, 128
        %560 = vxpose.xlu0.b32.cont [14/16] 0.0, 128
        %561 = vxpose.xlu0.b32.cont [15/16] 0.0, 128
        %562 = vxpose.xlu0.b32.end [16/16] 0.0, 128
        %v563 = vpop.trf.xlu0
        %v564 = vpop.trf.xlu0
        %v565 = vpop.trf.xlu0
        %v566 = vpop.trf.xlu0
        %v567 = vpop.trf.xlu0
        %v568 = vpop.trf.xlu0
        %v569 = vpop.trf.xlu0
        %v570 = vpop.trf.xlu0
        %v571 = vpop.trf.xlu0
        %v572 = vpop.trf.xlu0
        %v573 = vpop.trf.xlu0
        %v574 = vpop.trf.xlu0
        %v575 = vpop.trf.xlu0
        %v576 = vpop.trf.xlu0
        %v577 = vpop.trf.xlu0
        %v578 = vpop.trf.xlu0
        %579 = vxpose.xlu0.b32.start [1/16] %v538, 128
        %580 = vxpose.xlu0.b32.cont [2/16] 0.0, 128
        %581 = vxpose.xlu0.b32.cont [3/16] 0.0, 128
        %582 = vxpose.xlu0.b32.cont [4/16] 0.0, 128
        %583 = vxpose.xlu0.b32.cont [5/16] 0.0, 128
        %584 = vxpose.xlu0.b32.cont [6/16] 0.0, 128
        %585 = vxpose.xlu0.b32.cont [7/16] 0.0, 128
        %586 = vxpose.xlu0.b32.cont [8/16] 0.0, 128
        %587 = vxpose.xlu0.b32.cont [9/16] 0.0, 128
        %588 = vxpose.xlu0.b32.cont [10/16] 0.0, 128
        %589 = vxpose.xlu0.b32.cont [11/16] 0.0, 128
        %590 = vxpose.xlu0.b32.cont [12/16] 0.0, 128
        %591 = vxpose.xlu0.b32.cont [13/16] 0.0, 128
        %592 = vxpose.xlu0.b32.cont [14/16] 0.0, 128
        %593 = vxpose.xlu0.b32.cont [15/16] 0.0, 128
        %594 = vxpose.xlu0.b32.end [16/16] 0.0, 128
        %v595 = vpop.trf.xlu0
        %v596 = vpop.trf.xlu0
        %v597 = vpop.trf.xlu0
        %v598 = vpop.trf.xlu0
        %v599 = vpop.trf.xlu0
        %v600 = vpop.trf.xlu0
        %v601 = vpop.trf.xlu0
        %v602 = vpop.trf.xlu0
        %v603 = vpop.trf.xlu0
        %v604 = vpop.trf.xlu0
        %v605 = vpop.trf.xlu0
        %v606 = vpop.trf.xlu0
        %v607 = vpop.trf.xlu0
        %v608 = vpop.trf.xlu0
        %v609 = vpop.trf.xlu0
        %v610 = vpop.trf.xlu0
        %vm611 = vcmask 64512
        %v613 = vsel %vm611, %v563, 0
        %v616 = vsel %vm611, %v564, 0
        %v619 = vsel %vm611, %v565, 0
        %v622 = vsel %vm611, %v566, 0
        %v625 = vsel %vm611, %v567, 0
        %v628 = vsel %vm611, %v568, 0
        %v631 = vsel %vm611, %v569, 0
        %v634 = vsel %vm611, %v570, 0
        %v637 = vsel %vm611, %v571, 0
        %v640 = vsel %vm611, %v572, 0
        %v643 = vsel %vm611, %v573, 0
        %v646 = vsel %vm611, %v574, 0
        %v649 = vsel %vm611, %v575, 0
        %v652 = vsel %vm611, %v576, 0
        %v655 = vsel %vm611, %v577, 0
        %v658 = vsel %vm611, %v578, 0
        %v661 = vsel %vm611, %v595, 0
        %v664 = vsel %vm611, %v596, 0
        %v667 = vsel %vm611, %v597, 0
        %v670 = vsel %vm611, %v598, 0
        %v673 = vsel %vm611, %v599, 0
        %v676 = vsel %vm611, %v600, 0
        %v679 = vsel %vm611, %v601, 0
        %v682 = vsel %vm611, %v602, 0
        %v685 = vsel %vm611, %v603, 0
        %v688 = vsel %vm611, %v604, 0
        %v691 = vsel %vm611, %v605, 0
        %v694 = vsel %vm611, %v606, 0
        %v697 = vsel %vm611, %v607, 0
        %v700 = vsel %vm611, %v608, 0
        %v703 = vsel %vm611, %v609, 0
        %v706 = vsel %vm611, %v610, 0
        %708 = vmatprep.subr.mxu0 0.0
        %709 = vmatpush1.msra.mxu0 0.0
        %710 = vmatprep.subr.mxu0 0.0
        %711 = vmatpush1.msra.mxu0 0.0
        %712 = vmatprep.subr.mxu0 0.0
        %713 = vmatpush1.msra.mxu0 0.0
        %714 = vmatprep.subr.mxu0 0.0
        %715 = vmatpush1.msra.mxu0 0.0
        %716 = vmatprep.subr.mxu0 0.0
        %717 = vmatpush1.msra.mxu0 0.0
        %718 = vmatprep.subr.mxu0 0.0
        %719 = vmatpush1.msra.mxu0 0.0
        %720 = vmatprep.subr.mxu0 0.0
        %721 = vmatpush1.msra.mxu0 0.0
        %722 = vmatprep.subr.mxu0 0.0
        %723 = vmatpush1.msra.mxu0 0.0
        %724 = vmatprep.subr.mxu0 0.0
        %725 = vmatpush1.msra.mxu0 0.0
        %726 = vmatprep.subr.mxu0 0.0
        %727 = vmatpush1.msra.mxu0 0.0
        %728 = vmatprep.subr.mxu0 0.0
        %729 = vmatpush1.msra.mxu0 0.0
        %730 = vmatprep.subr.mxu0 0.0
        %731 = vmatpush1.msra.mxu0 0.0
        %732 = vmatprep.subr.mxu0 0.0
        %733 = vmatpush1.msra.mxu0 0.0
        %734 = vmatprep.subr.mxu0 0.0
        %735 = vmatpush1.msra.mxu0 0.0
        %736 = vmatprep.subr.mxu0 0.0
        %737 = vmatpush1.msra.mxu0 0.0
        %738 = vmatprep.subr.mxu0 0.0
        %739 = vmatpush1.msra.mxu0 %v539
        %740 = vmatprep.subr.mxu0 0.0
        %741 = vmatpush2.msra.mxu0 0.0
        %742 = vmatprep.subr.mxu0 0.0
        %743 = vmatpush2.msra.mxu0 0.0
        %744 = vmatprep.subr.mxu0 0.0
        %745 = vmatpush2.msra.mxu0 0.0
        %746 = vmatprep.subr.mxu0 0.0
        %747 = vmatpush2.msra.mxu0 0.0
        %748 = vmatprep.subr.mxu0 0.0
        %749 = vmatpush2.msra.mxu0 0.0
        %750 = vmatprep.subr.mxu0 0.0
        %751 = vmatpush2.msra.mxu0 0.0
        %752 = vmatprep.subr.mxu0 0.0
        %753 = vmatpush2.msra.mxu0 0.0
        %754 = vmatprep.subr.mxu0 0.0
        %755 = vmatpush2.msra.mxu0 0.0
        %756 = vmatprep.subr.mxu0 0.0
        %757 = vmatpush2.msra.mxu0 0.0
        %758 = vmatprep.subr.mxu0 0.0
        %759 = vmatpush2.msra.mxu0 0.0
        %760 = vmatprep.subr.mxu0 0.0
        %761 = vmatpush2.msra.mxu0 0.0
        %762 = vmatprep.subr.mxu0 0.0
        %763 = vmatpush2.msra.mxu0 0.0
        %764 = vmatprep.subr.mxu0 0.0
        %765 = vmatpush2.msra.mxu0 0.0
        %766 = vmatprep.subr.mxu0 0.0
        %767 = vmatpush2.msra.mxu0 0.0
        %768 = vmatprep.subr.mxu0 0.0
        %769 = vmatpush2.msra.mxu0 0.0
        %770 = vmatprep.subr.mxu0 0.0
        %771 = vmatpush2.msra.mxu0 0.0
        %772 = vmatprep.mubr.f32.mxu0 0.0
        %773 = vmatmul.mubr.f32.gmra.mxu0 %v613
        %v774 = vpop.f32.mrf.mxu0
        %v775 = vadd.f32 %v545, %v774
        %v776 = vpop.f32.mrf.mxu0
        %777 = vmatprep.mubr.f32.mxu0 0.0
        %778 = vmatmul.mubr.f32.gmra.mxu0 %v616
        %v779 = vpop.f32.mrf.mxu0
        %v780 = vadd.f32 %v545, %v779
        %v781 = vpop.f32.mrf.mxu0
        %782 = vmatprep.mubr.f32.mxu0 0.0
        %783 = vmatmul.mubr.f32.gmra.mxu0 %v619
        %v784 = vpop.f32.mrf.mxu0
        %v785 = vadd.f32 %v545, %v784
        %v786 = vpop.f32.mrf.mxu0
        %787 = vmatprep.mubr.f32.mxu0 0.0
        %788 = vmatmul.mubr.f32.gmra.mxu0 %v622
        %v789 = vpop.f32.mrf.mxu0
        %v790 = vadd.f32 %v545, %v789
        %v791 = vpop.f32.mrf.mxu0
        %792 = vmatprep.mubr.f32.mxu0 0.0
        %793 = vmatmul.mubr.f32.gmra.mxu0 %v625
        %v794 = vpop.f32.mrf.mxu0
        %v795 = vadd.f32 %v545, %v794
        %v796 = vpop.f32.mrf.mxu0
        %797 = vmatprep.mubr.f32.mxu0 0.0
        %798 = vmatmul.mubr.f32.gmra.mxu0 %v628
        %v799 = vpop.f32.mrf.mxu0
        %v800 = vadd.f32 %v545, %v799
        %v801 = vpop.f32.mrf.mxu0
        %802 = vmatprep.mubr.f32.mxu0 0.0
        %803 = vmatmul.mubr.f32.gmra.mxu0 %v631
        %v804 = vpop.f32.mrf.mxu0
        %v805 = vadd.f32 %v545, %v804
        %v806 = vpop.f32.mrf.mxu0
        %807 = vmatprep.mubr.f32.mxu0 0.0
        %808 = vmatmul.mubr.f32.gmra.mxu0 %v634
        %v809 = vpop.f32.mrf.mxu0
        %v810 = vadd.f32 %v545, %v809
        %v811 = vpop.f32.mrf.mxu0
        %812 = vmatprep.mubr.f32.mxu0 0.0
        %813 = vmatmul.mubr.f32.gmra.mxu0 %v637
        %v814 = vpop.f32.mrf.mxu0
        %v815 = vadd.f32 %v545, %v814
        %v816 = vpop.f32.mrf.mxu0
        %817 = vmatprep.mubr.f32.mxu0 0.0
        %818 = vmatmul.mubr.f32.gmra.mxu0 %v640
        %v819 = vpop.f32.mrf.mxu0
        %v820 = vadd.f32 %v545, %v819
        %v821 = vpop.f32.mrf.mxu0
        %822 = vmatprep.mubr.f32.mxu0 0.0
        %823 = vmatmul.mubr.f32.gmra.mxu0 %v643
        %v824 = vpop.f32.mrf.mxu0
        %v825 = vadd.f32 %v545, %v824
        %v826 = vpop.f32.mrf.mxu0
        %827 = vmatprep.mubr.f32.mxu0 0.0
        %828 = vmatmul.mubr.f32.gmra.mxu0 %v646
        %v829 = vpop.f32.mrf.mxu0
        %v830 = vadd.f32 %v545, %v829
        %v831 = vpop.f32.mrf.mxu0
        %832 = vmatprep.mubr.f32.mxu0 0.0
        %833 = vmatmul.mubr.f32.gmra.mxu0 %v649
        %v834 = vpop.f32.mrf.mxu0
        %v835 = vadd.f32 %v545, %v834
        %v836 = vpop.f32.mrf.mxu0
        %837 = vmatprep.mubr.f32.mxu0 0.0
        %838 = vmatmul.mubr.f32.gmra.mxu0 %v652
        %v839 = vpop.f32.mrf.mxu0
        %v840 = vadd.f32 %v545, %v839
        %v841 = vpop.f32.mrf.mxu0
        %842 = vmatprep.mubr.f32.mxu0 0.0
        %843 = vmatmul.mubr.f32.gmra.mxu0 %v655
        %v844 = vpop.f32.mrf.mxu0
        %v845 = vadd.f32 %v545, %v844
        %v846 = vpop.f32.mrf.mxu0
        %847 = vmatprep.mubr.f32.mxu0 0.0
        %848 = vmatmul.mubr.f32.gmra.mxu0 %v658
        %v849 = vpop.f32.mrf.mxu0
        %v850 = vadd.f32 %v545, %v849
        %v851 = vpop.f32.mrf.mxu0
        %852 = vmatprep.mubr.f32.mxu0 0.0
        %853 = vmatmul.mubr.f32.gmra.mxu0 %v661
        %v854 = vpop.f32.mrf.mxu0
        %v855 = vadd.f32 %v545, %v854
        %v856 = vpop.f32.mrf.mxu0
        %857 = vmatprep.mubr.f32.mxu0 0.0
        %858 = vmatmul.mubr.f32.gmra.mxu0 %v664
        %v859 = vpop.f32.mrf.mxu0
        %v860 = vadd.f32 %v545, %v859
        %v861 = vpop.f32.mrf.mxu0
        %862 = vmatprep.mubr.f32.mxu0 0.0
        %863 = vmatmul.mubr.f32.gmra.mxu0 %v667
        %v864 = vpop.f32.mrf.mxu0
        %v865 = vadd.f32 %v545, %v864
        %v866 = vpop.f32.mrf.mxu0
        %867 = vmatprep.mubr.f32.mxu0 0.0
        %868 = vmatmul.mubr.f32.gmra.mxu0 %v670
        %v869 = vpop.f32.mrf.mxu0
        %v870 = vadd.f32 %v545, %v869
        %v871 = vpop.f32.mrf.mxu0
        %872 = vmatprep.mubr.f32.mxu0 0.0
        %873 = vmatmul.mubr.f32.gmra.mxu0 %v673
        %v874 = vpop.f32.mrf.mxu0
        %v875 = vadd.f32 %v545, %v874
        %v876 = vpop.f32.mrf.mxu0
        %877 = vmatprep.mubr.f32.mxu0 0.0
        %878 = vmatmul.mubr.f32.gmra.mxu0 %v676
        %v879 = vpop.f32.mrf.mxu0
        %v880 = vadd.f32 %v545, %v879
        %v881 = vpop.f32.mrf.mxu0
        %882 = vmatprep.mubr.f32.mxu0 0.0
        %883 = vmatmul.mubr.f32.gmra.mxu0 %v679
        %v884 = vpop.f32.mrf.mxu0
        %v885 = vadd.f32 %v545, %v884
        %v886 = vpop.f32.mrf.mxu0
        %887 = vmatprep.mubr.f32.mxu0 0.0
        %888 = vmatmul.mubr.f32.gmra.mxu0 %v682
        %v889 = vpop.f32.mrf.mxu0
        %v890 = vadd.f32 %v545, %v889
        %v891 = vpop.f32.mrf.mxu0
        %892 = vmatprep.mubr.f32.mxu0 0.0
        %893 = vmatmul.mubr.f32.gmra.mxu0 %v685
        %v894 = vpop.f32.mrf.mxu0
        %v895 = vadd.f32 %v545, %v894
        %v896 = vpop.f32.mrf.mxu0
        %897 = vmatprep.mubr.f32.mxu0 0.0
        %898 = vmatmul.mubr.f32.gmra.mxu0 %v688
        %v899 = vpop.f32.mrf.mxu0
        %v900 = vadd.f32 %v545, %v899
        %v901 = vpop.f32.mrf.mxu0
        %902 = vmatprep.mubr.f32.mxu0 0.0
        %903 = vmatmul.mubr.f32.gmra.mxu0 %v691
        %v904 = vpop.f32.mrf.mxu0
        %v905 = vadd.f32 %v545, %v904
        %v906 = vpop.f32.mrf.mxu0
        %907 = vmatprep.mubr.f32.mxu0 0.0
        %908 = vmatmul.mubr.f32.gmra.mxu0 %v694
        %v909 = vpop.f32.mrf.mxu0
        %v910 = vadd.f32 %v545, %v909
        %v911 = vpop.f32.mrf.mxu0
        %912 = vmatprep.mubr.f32.mxu0 0.0
        %913 = vmatmul.mubr.f32.gmra.mxu0 %v697
        %v914 = vpop.f32.mrf.mxu0
        %v915 = vadd.f32 %v545, %v914
        %v916 = vpop.f32.mrf.mxu0
        %917 = vmatprep.mubr.f32.mxu0 0.0
        %918 = vmatmul.mubr.f32.gmra.mxu0 %v700
        %v919 = vpop.f32.mrf.mxu0
        %v920 = vadd.f32 %v545, %v919
        %v921 = vpop.f32.mrf.mxu0
        %922 = vmatprep.mubr.f32.mxu0 0.0
        %923 = vmatmul.mubr.f32.gmra.mxu0 %v703
        %v924 = vpop.f32.mrf.mxu0
        %v925 = vadd.f32 %v545, %v924
        %v926 = vpop.f32.mrf.mxu0
        %927 = vmatprep.mubr.f32.mxu0 0.0
        %928 = vmatmul.mubr.f32.gmra.mxu0 %v706
        %v929 = vpop.f32.mrf.mxu0
        %v930 = vadd.f32 %v545, %v929
        %v931 = vpop.f32.mrf.mxu0
        %932 = vdwg.mxu0
        %v933 = vmax.f32 %v775, 0.0
        %v934 = vmax.f32 %v780, 0.0
        %v935 = vmax.f32 %v785, 0.0
        %v936 = vmax.f32 %v790, 0.0
        %v937 = vmax.f32 %v795, 0.0
        %v938 = vmax.f32 %v800, 0.0
        %v939 = vmax.f32 %v805, 0.0
        %v940 = vmax.f32 %v810, 0.0
        %v941 = vmax.f32 %v815, 0.0
        %v942 = vmax.f32 %v820, 0.0
        %v943 = vmax.f32 %v825, 0.0
        %v944 = vmax.f32 %v830, 0.0
        %v945 = vmax.f32 %v835, 0.0
        %v946 = vmax.f32 %v840, 0.0
        %v947 = vmax.f32 %v845, 0.0
        %v948 = vmax.f32 %v850, 0.0
        %v949 = vmax.f32 %v855, 0.0
        %v950 = vmax.f32 %v860, 0.0
        %v951 = vmax.f32 %v865, 0.0
        %v952 = vmax.f32 %v870, 0.0
        %v953 = vmax.f32 %v875, 0.0
        %v954 = vmax.f32 %v880, 0.0
        %v955 = vmax.f32 %v885, 0.0
        %v956 = vmax.f32 %v890, 0.0
        %v957 = vmax.f32 %v895, 0.0
        %v958 = vmax.f32 %v900, 0.0
        %v959 = vmax.f32 %v905, 0.0
        %v960 = vmax.f32 %v910, 0.0
        %v961 = vmax.f32 %v915, 0.0
        %v962 = vmax.f32 %v920, 0.0
        %v963 = vmax.f32 %v925, 0.0
        %v964 = vmax.f32 %v930, 0.0
        %v965 = vld [vmem:[%s10] sm:$0xff]
        %v966 = vld [vmem:[%s10 + $0x8] sm:$0xff]
        %v967 = vld [vmem:[%s10 + $0x10] sm:$0xff]
        %v968 = vld [vmem:[%s10 + $0x18] sm:$0xff]
        %v969 = vld [vmem:[%s10 + $0x20] sm:$0xff]
        %v970 = vld [vmem:[%s10 + $0x28] sm:$0xff]
        %v971 = vld [vmem:[%s516] sm:$0xff]
        %v972 = vld [vmem:[%s516 + $0x8] sm:$0xff]
        %v973 = vld [vmem:[%s516 + $0x10] sm:$0xff]
        %v974 = vld [vmem:[%s516 + $0x18] sm:$0xff]
        %v975 = vld [vmem:[%s3] sm:$0xf]
        %v980 = vcombine.high %v971, %v971
        %v981 = vcombine.high %v972, %v972
        %v982 = vcombine.high %v973, %v973
        %v983 = vcombine.high %v974, %v974
        %988 = vxpose.xlu0.b32.start [1/16] %v971, 128
        %989 = vxpose.xlu0.b32.cont [2/16] 0.0, 128
        %990 = vxpose.xlu0.b32.cont [3/16] 0.0, 128
        %991 = vxpose.xlu0.b32.cont [4/16] 0.0, 128
        %992 = vxpose.xlu0.b32.cont [5/16] 0.0, 128
        %993 = vxpose.xlu0.b32.cont [6/16] 0.0, 128
        %994 = vxpose.xlu0.b32.cont [7/16] 0.0, 128
        %995 = vxpose.xlu0.b32.cont [8/16] 0.0, 128
        %996 = vxpose.xlu0.b32.cont [9/16] 0.0, 128
        %997 = vxpose.xlu0.b32.cont [10/16] 0.0, 128
        %998 = vxpose.xlu0.b32.cont [11/16] 0.0, 128
        %999 = vxpose.xlu0.b32.cont [12/16] 0.0, 128
        %1000 = vxpose.xlu0.b32.cont [13/16] 0.0, 128
        %1001 = vxpose.xlu0.b32.cont [14/16] 0.0, 128
        %1002 = vxpose.xlu0.b32.cont [15/16] 0.0, 128
        %1003 = vxpose.xlu0.b32.end [16/16] 0.0, 128
        %v1004 = vpop.trf.xlu0
        %v1005 = vpop.trf.xlu0
        %v1006 = vpop.trf.xlu0
        %v1007 = vpop.trf.xlu0
        %v1008 = vpop.trf.xlu0
        %v1009 = vpop.trf.xlu0
        %v1010 = vpop.trf.xlu0
        %v1011 = vpop.trf.xlu0
        %v1012 = vpop.trf.xlu0
        %v1013 = vpop.trf.xlu0
        %v1014 = vpop.trf.xlu0
        %v1015 = vpop.trf.xlu0
        %v1016 = vpop.trf.xlu0
        %v1017 = vpop.trf.xlu0
        %v1018 = vpop.trf.xlu0
        %v1019 = vpop.trf.xlu0
        %1020 = vxpose.xlu0.b32.start [1/16] %v980, 128
        %1021 = vxpose.xlu0.b32.cont [2/16] 0.0, 128
        %1022 = vxpose.xlu0.b32.cont [3/16] 0.0, 128
        %1023 = vxpose.xlu0.b32.cont [4/16] 0.0, 128
        %1024 = vxpose.xlu0.b32.cont [5/16] 0.0, 128
        %1025 = vxpose.xlu0.b32.cont [6/16] 0.0, 128
        %1026 = vxpose.xlu0.b32.cont [7/16] 0.0, 128
        %1027 = vxpose.xlu0.b32.cont [8/16] 0.0, 128
        %1028 = vxpose.xlu0.b32.cont [9/16] 0.0, 128
        %1029 = vxpose.xlu0.b32.cont [10/16] 0.0, 128
        %1030 = vxpose.xlu0.b32.cont [11/16] 0.0, 128
        %1031 = vxpose.xlu0.b32.cont [12/16] 0.0, 128
        %1032 = vxpose.xlu0.b32.cont [13/16] 0.0, 128
        %1033 = vxpose.xlu0.b32.cont [14/16] 0.0, 128
        %1034 = vxpose.xlu0.b32.cont [15/16] 0.0, 128
        %1035 = vxpose.xlu0.b32.end [16/16] 0.0, 128
        %v1036 = vpop.trf.xlu0
        %v1037 = vpop.trf.xlu0
        %v1038 = vpop.trf.xlu0
        %v1039 = vpop.trf.xlu0
        %v1040 = vpop.trf.xlu0
        %v1041 = vpop.trf.xlu0
        %v1042 = vpop.trf.xlu0
        %v1043 = vpop.trf.xlu0
        %v1044 = vpop.trf.xlu0
        %v1045 = vpop.trf.xlu0
        %v1046 = vpop.trf.xlu0
        %v1047 = vpop.trf.xlu0
        %v1048 = vpop.trf.xlu0
        %v1049 = vpop.trf.xlu0
        %v1050 = vpop.trf.xlu0
        %v1051 = vpop.trf.xlu0
        %1052 = vxpose.xlu0.b32.start [1/16] %v972, 128
        %1053 = vxpose.xlu0.b32.cont [2/16] 0.0, 128
        %1054 = vxpose.xlu0.b32.cont [3/16] 0.0, 128
        %1055 = vxpose.xlu0.b32.cont [4/16] 0.0, 128
        %1056 = vxpose.xlu0.b32.cont [5/16] 0.0, 128
        %1057 = vxpose.xlu0.b32.cont [6/16] 0.0, 128
        %1058 = vxpose.xlu0.b32.cont [7/16] 0.0, 128
        %1059 = vxpose.xlu0.b32.cont [8/16] 0.0, 128
        %1060 = vxpose.xlu0.b32.cont [9/16] 0.0, 128
        %1061 = vxpose.xlu0.b32.cont [10/16] 0.0, 128
        %1062 = vxpose.xlu0.b32.cont [11/16] 0.0, 128
        %1063 = vxpose.xlu0.b32.cont [12/16] 0.0, 128
        %1064 = vxpose.xlu0.b32.cont [13/16] 0.0, 128
        %1065 = vxpose.xlu0.b32.cont [14/16] 0.0, 128
        %1066 = vxpose.xlu0.b32.cont [15/16] 0.0, 128
        %1067 = vxpose.xlu0.b32.end [16/16] 0.0, 128
        %v1068 = vpop.trf.xlu0
        %v1069 = vpop.trf.xlu0
        %v1070 = vpop.trf.xlu0
        %v1071 = vpop.trf.xlu0
        %v1072 = vpop.trf.xlu0
        %v1073 = vpop.trf.xlu0
        %v1074 = vpop.trf.xlu0
        %v1075 = vpop.trf.xlu0
        %v1076 = vpop.trf.xlu0
        %v1077 = vpop.trf.xlu0
        %v1078 = vpop.trf.xlu0
        %v1079 = vpop.trf.xlu0
        %v1080 = vpop.trf.xlu0
        %v1081 = vpop.trf.xlu0
        %v1082 = vpop.trf.xlu0
        %v1083 = vpop.trf.xlu0
        %1084 = vxpose.xlu0.b32.start [1/16] %v981, 128
        %1085 = vxpose.xlu0.b32.cont [2/16] 0.0, 128
        %1086 = vxpose.xlu0.b32.cont [3/16] 0.0, 128
        %1087 = vxpose.xlu0.b32.cont [4/16] 0.0, 128
        %1088 = vxpose.xlu0.b32.cont [5/16] 0.0, 128
        %1089 = vxpose.xlu0.b32.cont [6/16] 0.0, 128
        %1090 = vxpose.xlu0.b32.cont [7/16] 0.0, 128
        %1091 = vxpose.xlu0.b32.cont [8/16] 0.0, 128
        %1092 = vxpose.xlu0.b32.cont [9/16] 0.0, 128
        %1093 = vxpose.xlu0.b32.cont [10/16] 0.0, 128
        %1094 = vxpose.xlu0.b32.cont [11/16] 0.0, 128
        %1095 = vxpose.xlu0.b32.cont [12/16] 0.0, 128
        %1096 = vxpose.xlu0.b32.cont [13/16] 0.0, 128
        %1097 = vxpose.xlu0.b32.cont [14/16] 0.0, 128
        %1098 = vxpose.xlu0.b32.cont [15/16] 0.0, 128
        %1099 = vxpose.xlu0.b32.end [16/16] 0.0, 128
        %v1100 = vpop.trf.xlu0
        %v1101 = vpop.trf.xlu0
        %v1102 = vpop.trf.xlu0
        %v1103 = vpop.trf.xlu0
        %v1104 = vpop.trf.xlu0
        %v1105 = vpop.trf.xlu0
        %v1106 = vpop.trf.xlu0
        %v1107 = vpop.trf.xlu0
        %v1108 = vpop.trf.xlu0
        %v1109 = vpop.trf.xlu0
        %v1110 = vpop.trf.xlu0
        %v1111 = vpop.trf.xlu0
        %v1112 = vpop.trf.xlu0
        %v1113 = vpop.trf.xlu0
        %v1114 = vpop.trf.xlu0
        %v1115 = vpop.trf.xlu0
        %1116 = vxpose.xlu0.b32.start [1/16] %v973, 128
        %1117 = vxpose.xlu0.b32.cont [2/16] 0.0, 128
        %1118 = vxpose.xlu0.b32.cont [3/16] 0.0, 128
        %1119 = vxpose.xlu0.b32.cont [4/16] 0.0, 128
        %1120 = vxpose.xlu0.b32.cont [5/16] 0.0, 128
        %1121 = vxpose.xlu0.b32.cont [6/16] 0.0, 128
        %1122 = vxpose.xlu0.b32.cont [7/16] 0.0, 128
        %1123 = vxpose.xlu0.b32.cont [8/16] 0.0, 128
        %1124 = vxpose.xlu0.b32.cont [9/16] 0.0, 128
        %1125 = vxpose.xlu0.b32.cont [10/16] 0.0, 128
        %1126 = vxpose.xlu0.b32.cont [11/16] 0.0, 128
        %1127 = vxpose.xlu0.b32.cont [12/16] 0.0, 128
        %1128 = vxpose.xlu0.b32.cont [13/16] 0.0, 128
        %1129 = vxpose.xlu0.b32.cont [14/16] 0.0, 128
        %1130 = vxpose.xlu0.b32.cont [15/16] 0.0, 128
        %1131 = vxpose.xlu0.b32.end [16/16] 0.0, 128
        %v1132 = vpop.trf.xlu0
        %v1133 = vpop.trf.xlu0
        %v1134 = vpop.trf.xlu0
        %v1135 = vpop.trf.xlu0
        %v1136 = vpop.trf.xlu0
        %v1137 = vpop.trf.xlu0
        %v1138 = vpop.trf.xlu0
        %v1139 = vpop.trf.xlu0
        %v1140 = vpop.trf.xlu0
        %v1141 = vpop.trf.xlu0
        %v1142 = vpop.trf.xlu0
        %v1143 = vpop.trf.xlu0
        %v1144 = vpop.trf.xlu0
        %v1145 = vpop.trf.xlu0
        %v1146 = vpop.trf.xlu0
        %v1147 = vpop.trf.xlu0
        %1148 = vxpose.xlu0.b32.start [1/16] %v982, 128
        %1149 = vxpose.xlu0.b32.cont [2/16] 0.0, 128
        %1150 = vxpose.xlu0.b32.cont [3/16] 0.0, 128
        %1151 = vxpose.xlu0.b32.cont [4/16] 0.0, 128
        %1152 = vxpose.xlu0.b32.cont [5/16] 0.0, 128
        %1153 = vxpose.xlu0.b32.cont [6/16] 0.0, 128
        %1154 = vxpose.xlu0.b32.cont [7/16] 0.0, 128
        %1155 = vxpose.xlu0.b32.cont [8/16] 0.0, 128
        %1156 = vxpose.xlu0.b32.cont [9/16] 0.0, 128
        %1157 = vxpose.xlu0.b32.cont [10/16] 0.0, 128
        %1158 = vxpose.xlu0.b32.cont [11/16] 0.0, 128
        %1159 = vxpose.xlu0.b32.cont [12/16] 0.0, 128
        %1160 = vxpose.xlu0.b32.cont [13/16] 0.0, 128
        %1161 = vxpose.xlu0.b32.cont [14/16] 0.0, 128
        %1162 = vxpose.xlu0.b32.cont [15/16] 0.0, 128
        %1163 = vxpose.xlu0.b32.end [16/16] 0.0, 128
        %v1164 = vpop.trf.xlu0
        %v1165 = vpop.trf.xlu0
        %v1166 = vpop.trf.xlu0
        %v1167 = vpop.trf.xlu0
        %v1168 = vpop.trf.xlu0
        %v1169 = vpop.trf.xlu0
        %v1170 = vpop.trf.xlu0
        %v1171 = vpop.trf.xlu0
        %v1172 = vpop.trf.xlu0
        %v1173 = vpop.trf.xlu0
        %v1174 = vpop.trf.xlu0
        %v1175 = vpop.trf.xlu0
        %v1176 = vpop.trf.xlu0
        %v1177 = vpop.trf.xlu0
        %v1178 = vpop.trf.xlu0
        %v1179 = vpop.trf.xlu0
        %1180 = vxpose.xlu0.b32.start [1/16] %v974, 128
        %1181 = vxpose.xlu0.b32.cont [2/16] 0.0, 128
        %1182 = vxpose.xlu0.b32.cont [3/16] 0.0, 128
        %1183 = vxpose.xlu0.b32.cont [4/16] 0.0, 128
        %1184 = vxpose.xlu0.b32.cont [5/16] 0.0, 128
        %1185 = vxpose.xlu0.b32.cont [6/16] 0.0, 128
        %1186 = vxpose.xlu0.b32.cont [7/16] 0.0, 128
        %1187 = vxpose.xlu0.b32.cont [8/16] 0.0, 128
        %1188 = vxpose.xlu0.b32.cont [9/16] 0.0, 128
        %1189 = vxpose.xlu0.b32.cont [10/16] 0.0, 128
        %1190 = vxpose.xlu0.b32.cont [11/16] 0.0, 128
        %1191 = vxpose.xlu0.b32.cont [12/16] 0.0, 128
        %1192 = vxpose.xlu0.b32.cont [13/16] 0.0, 128
        %1193 = vxpose.xlu0.b32.cont [14/16] 0.0, 128
        %1194 = vxpose.xlu0.b32.cont [15/16] 0.0, 128
        %1195 = vxpose.xlu0.b32.end [16/16] 0.0, 128
        %v1196 = vpop.trf.xlu0
        %v1197 = vpop.trf.xlu0
        %v1198 = vpop.trf.xlu0
        %v1199 = vpop.trf.xlu0
        %v1200 = vpop.trf.xlu0
        %v1201 = vpop.trf.xlu0
        %v1202 = vpop.trf.xlu0
        %v1203 = vpop.trf.xlu0
        %v1204 = vpop.trf.xlu0
        %v1205 = vpop.trf.xlu0
        %v1206 = vpop.trf.xlu0
        %v1207 = vpop.trf.xlu0
        %v1208 = vpop.trf.xlu0
        %v1209 = vpop.trf.xlu0
        %v1210 = vpop.trf.xlu0
        %v1211 = vpop.trf.xlu0
        %1212 = vxpose.xlu0.b32.start [1/16] %v983, 128
        %1213 = vxpose.xlu0.b32.cont [2/16] 0.0, 128
        %1214 = vxpose.xlu0.b32.cont [3/16] 0.0, 128
        %1215 = vxpose.xlu0.b32.cont [4/16] 0.0, 128
        %1216 = vxpose.xlu0.b32.cont [5/16] 0.0, 128
        %1217 = vxpose.xlu0.b32.cont [6/16] 0.0, 128
        %1218 = vxpose.xlu0.b32.cont [7/16] 0.0, 128
        %1219 = vxpose.xlu0.b32.cont [8/16] 0.0, 128
        %1220 = vxpose.xlu0.b32.cont [9/16] 0.0, 128
        %1221 = vxpose.xlu0.b32.cont [10/16] 0.0, 128
        %1222 = vxpose.xlu0.b32.cont [11/16] 0.0, 128
        %1223 = vxpose.xlu0.b32.cont [12/16] 0.0, 128
        %1224 = vxpose.xlu0.b32.cont [13/16] 0.0, 128
        %1225 = vxpose.xlu0.b32.cont [14/16] 0.0, 128
        %1226 = vxpose.xlu0.b32.cont [15/16] 0.0, 128
        %1227 = vxpose.xlu0.b32.end [16/16] 0.0, 128
        %v1228 = vpop.trf.xlu0
        %v1229 = vpop.trf.xlu0
        %v1230 = vpop.trf.xlu0
        %v1231 = vpop.trf.xlu0
        %v1232 = vpop.trf.xlu0
        %v1233 = vpop.trf.xlu0
        %v1234 = vpop.trf.xlu0
        %v1235 = vpop.trf.xlu0
        %v1236 = vpop.trf.xlu0
        %v1237 = vpop.trf.xlu0
        %v1238 = vpop.trf.xlu0
        %v1239 = vpop.trf.xlu0
        %v1240 = vpop.trf.xlu0
        %v1241 = vpop.trf.xlu0
        %v1242 = vpop.trf.xlu0
        %v1243 = vpop.trf.xlu0
        %vm1244 = vcmask 31744
        %v1246 = vsel %vm1244, %v1004, 0
        %v1249 = vsel %vm1244, %v1005, 0
        %v1252 = vsel %vm1244, %v1006, 0
        %v1255 = vsel %vm1244, %v1007, 0
        %v1258 = vsel %vm1244, %v1008, 0
        %v1261 = vsel %vm1244, %v1009, 0
        %v1264 = vsel %vm1244, %v1010, 0
        %v1267 = vsel %vm1244, %v1011, 0
        %v1270 = vsel %vm1244, %v1012, 0
        %v1273 = vsel %vm1244, %v1013, 0
        %v1276 = vsel %vm1244, %v1014, 0
        %v1279 = vsel %vm1244, %v1015, 0
        %v1282 = vsel %vm1244, %v1016, 0
        %v1285 = vsel %vm1244, %v1017, 0
        %v1288 = vsel %vm1244, %v1018, 0
        %v1291 = vsel %vm1244, %v1019, 0
        %v1294 = vsel %vm1244, %v1036, 0
        %v1297 = vsel %vm1244, %v1037, 0
        %v1300 = vsel %vm1244, %v1038, 0
        %v1303 = vsel %vm1244, %v1039, 0
        %v1306 = vsel %vm1244, %v1040, 0
        %v1309 = vsel %vm1244, %v1041, 0
        %v1312 = vsel %vm1244, %v1042, 0
        %v1315 = vsel %vm1244, %v1043, 0
        %v1318 = vsel %vm1244, %v1044, 0
        %v1321 = vsel %vm1244, %v1045, 0
        %v1324 = vsel %vm1244, %v1046, 0
        %v1327 = vsel %vm1244, %v1047, 0
        %v1330 = vsel %vm1244, %v1048, 0
        %v1333 = vsel %vm1244, %v1049, 0
        %v1336 = vsel %vm1244, %v1050, 0
        %v1339 = vsel %vm1244, %v1051, 0
        %v1342 = vsel %vm1244, %v1068, 0
        %v1345 = vsel %vm1244, %v1069, 0
        %v1348 = vsel %vm1244, %v1070, 0
        %v1351 = vsel %vm1244, %v1071, 0
        %v1354 = vsel %vm1244, %v1072, 0
        %v1357 = vsel %vm1244, %v1073, 0
        %v1360 = vsel %vm1244, %v1074, 0
        %v1363 = vsel %vm1244, %v1075, 0
        %v1366 = vsel %vm1244, %v1076, 0
        %v1369 = vsel %vm1244, %v1077, 0
        %v1372 = vsel %vm1244, %v1078, 0
        %v1375 = vsel %vm1244, %v1079, 0
        %v1378 = vsel %vm1244, %v1080, 0
        %v1381 = vsel %vm1244, %v1081, 0
        %v1384 = vsel %vm1244, %v1082, 0
        %v1387 = vsel %vm1244, %v1083, 0
        %v1390 = vsel %vm1244, %v1100, 0
        %v1393 = vsel %vm1244, %v1101, 0
        %v1396 = vsel %vm1244, %v1102, 0
        %v1399 = vsel %vm1244, %v1103, 0
        %v1402 = vsel %vm1244, %v1104, 0
        %v1405 = vsel %vm1244, %v1105, 0
        %v1408 = vsel %vm1244, %v1106, 0
        %v1411 = vsel %vm1244, %v1107, 0
        %v1414 = vsel %vm1244, %v1108, 0
        %v1417 = vsel %vm1244, %v1109, 0
        %v1420 = vsel %vm1244, %v1110, 0
        %v1423 = vsel %vm1244, %v1111, 0
        %v1426 = vsel %vm1244, %v1112, 0
        %v1429 = vsel %vm1244, %v1113, 0
        %v1432 = vsel %vm1244, %v1114, 0
        %v1435 = vsel %vm1244, %v1115, 0
        %v1438 = vsel %vm1244, %v1132, 0
        %v1441 = vsel %vm1244, %v1133, 0
        %v1444 = vsel %vm1244, %v1134, 0
        %v1447 = vsel %vm1244, %v1135, 0
        %v1450 = vsel %vm1244, %v1136, 0
        %v1453 = vsel %vm1244, %v1137, 0
        %v1456 = vsel %vm1244, %v1138, 0
        %v1459 = vsel %vm1244, %v1139, 0
        %v1462 = vsel %vm1244, %v1140, 0
        %v1465 = vsel %vm1244, %v1141, 0
        %v1468 = vsel %vm1244, %v1142, 0
        %v1471 = vsel %vm1244, %v1143, 0
        %v1474 = vsel %vm1244, %v1144, 0
        %v1477 = vsel %vm1244, %v1145, 0
        %v1480 = vsel %vm1244, %v1146, 0
        %v1483 = vsel %vm1244, %v1147, 0
        %v1486 = vsel %vm1244, %v1164, 0
        %v1489 = vsel %vm1244, %v1165, 0
        %v1492 = vsel %vm1244, %v1166, 0
        %v1495 = vsel %vm1244, %v1167, 0
        %v1498 = vsel %vm1244, %v1168, 0
        %v1501 = vsel %vm1244, %v1169, 0
        %v1504 = vsel %vm1244, %v1170, 0
        %v1507 = vsel %vm1244, %v1171, 0
        %v1510 = vsel %vm1244, %v1172, 0
        %v1513 = vsel %vm1244, %v1173, 0
        %v1516 = vsel %vm1244, %v1174, 0
        %v1519 = vsel %vm1244, %v1175, 0
        %v1522 = vsel %vm1244, %v1176, 0
        %v1525 = vsel %vm1244, %v1177, 0
        %v1528 = vsel %vm1244, %v1178, 0
        %v1531 = vsel %vm1244, %v1179, 0
        %v1534 = vsel %vm1244, %v1196, 0
        %v1537 = vsel %vm1244, %v1197, 0
        %v1540 = vsel %vm1244, %v1198, 0
        %v1543 = vsel %vm1244, %v1199, 0
        %v1546 = vsel %vm1244, %v1200, 0
        %v1549 = vsel %vm1244, %v1201, 0
        %v1552 = vsel %vm1244, %v1202, 0
        %v1555 = vsel %vm1244, %v1203, 0
        %v1558 = vsel %vm1244, %v1204, 0
        %v1561 = vsel %vm1244, %v1205, 0
        %v1564 = vsel %vm1244, %v1206, 0
        %v1567 = vsel %vm1244, %v1207, 0
        %v1570 = vsel %vm1244, %v1208, 0
        %v1573 = vsel %vm1244, %v1209, 0
        %v1576 = vsel %vm1244, %v1210, 0
        %v1579 = vsel %vm1244, %v1211, 0
        %v1582 = vsel %vm1244, %v1228, 0
        %v1585 = vsel %vm1244, %v1229, 0
        %v1588 = vsel %vm1244, %v1230, 0
        %v1591 = vsel %vm1244, %v1231, 0
        %v1594 = vsel %vm1244, %v1232, 0
        %v1597 = vsel %vm1244, %v1233, 0
        %v1600 = vsel %vm1244, %v1234, 0
        %v1603 = vsel %vm1244, %v1235, 0
        %v1606 = vsel %vm1244, %v1236, 0
        %v1609 = vsel %vm1244, %v1237, 0
        %v1612 = vsel %vm1244, %v1238, 0
        %v1615 = vsel %vm1244, %v1239, 0
        %v1618 = vsel %vm1244, %v1240, 0
        %v1621 = vsel %vm1244, %v1241, 0
        %v1624 = vsel %vm1244, %v1242, 0
        %v1627 = vsel %vm1244, %v1243, 0
        %vm1629 = vcmask 1043456
        %v1631 = vsel %vm1629, %v975, 0
        %1633 = vmatprep.subr.mxu0 0.0
        %1634 = vmatpush1.msra.mxu0 0.0
        %1635 = vmatprep.subr.mxu0 0.0
        %1636 = vmatpush1.msra.mxu0 0.0
        %1637 = vmatprep.subr.mxu0 0.0
        %1638 = vmatpush1.msra.mxu0 0.0
        %1639 = vmatprep.subr.mxu0 0.0
        %1640 = vmatpush1.msra.mxu0 0.0
        %1641 = vmatprep.subr.mxu0 0.0
        %1642 = vmatpush1.msra.mxu0 0.0
        %1643 = vmatprep.subr.mxu0 0.0
        %1644 = vmatpush1.msra.mxu0 0.0
        %1645 = vmatprep.subr.mxu0 0.0
        %1646 = vmatpush1.msra.mxu0 0.0
        %1647 = vmatprep.subr.mxu0 0.0
        %1648 = vmatpush1.msra.mxu0 0.0
        %1649 = vmatprep.subr.mxu0 0.0
        %1650 = vmatpush1.msra.mxu0 0.0
        %1651 = vmatprep.subr.mxu0 0.0
        %1652 = vmatpush1.msra.mxu0 0.0
        %1653 = vmatprep.subr.mxu0 0.0
        %1654 = vmatpush1.msra.mxu0 0.0
        %1655 = vmatprep.subr.mxu0 0.0
        %1656 = vmatpush1.msra.mxu0 0.0
        %1657 = vmatprep.subr.mxu0 0.0
        %1658 = vmatpush1.msra.mxu0 0.0
        %1659 = vmatprep.subr.mxu0 0.0
        %1660 = vmatpush1.msra.mxu0 0.0
        %1661 = vmatprep.subr.mxu0 0.0
        %1662 = vmatpush1.msra.mxu0 0.0
        %1663 = vmatprep.subr.mxu0 0.0
        %1664 = vmatpush1.msra.mxu0 %v1631
        %1665 = vmatprep.subr.mxu0 0.0
        %1666 = vmatpush2.msra.mxu0 0.0
        %1667 = vmatprep.subr.mxu0 0.0
        %1668 = vmatpush2.msra.mxu0 0.0
        %1669 = vmatprep.subr.mxu0 0.0
        %1670 = vmatpush2.msra.mxu0 0.0
        %1671 = vmatprep.subr.mxu0 0.0
        %1672 = vmatpush2.msra.mxu0 0.0
        %1673 = vmatprep.subr.mxu0 0.0
        %1674 = vmatpush2.msra.mxu0 0.0
        %1675 = vmatprep.subr.mxu0 0.0
        %1676 = vmatpush2.msra.mxu0 0.0
        %1677 = vmatprep.subr.mxu0 0.0
        %1678 = vmatpush2.msra.mxu0 0.0
        %1679 = vmatprep.subr.mxu0 0.0
        %1680 = vmatpush2.msra.mxu0 0.0
        %1681 = vmatprep.subr.mxu0 0.0
        %1682 = vmatpush2.msra.mxu0 0.0
        %1683 = vmatprep.subr.mxu0 0.0
        %1684 = vmatpush2.msra.mxu0 0.0
        %1685 = vmatprep.subr.mxu0 0.0
        %1686 = vmatpush2.msra.mxu0 0.0
        %1687 = vmatprep.subr.mxu0 0.0
        %1688 = vmatpush2.msra.mxu0 0.0
        %1689 = vmatprep.subr.mxu0 0.0
        %1690 = vmatpush2.msra.mxu0 0.0
        %1691 = vmatprep.subr.mxu0 0.0
        %1692 = vmatpush2.msra.mxu0 0.0
        %1693 = vmatprep.subr.mxu0 0.0
        %1694 = vmatpush2.msra.mxu0 0.0
        %1695 = vmatprep.subr.mxu0 0.0
        %1696 = vmatpush2.msra.mxu0 0.0
        %1697 = vmatprep.mubr.f32.mxu0 0.0
        %1698 = vmatmul.mubr.f32.gmra.mxu0 %v1246
        %v1699 = vpop.f32.mrf.mxu0
        %v1700 = vadd.f32 0.0, %v1699
        %v1701 = vpop.f32.mrf.mxu0
        %1702 = vmatprep.mubr.f32.mxu0 0.0
        %1703 = vmatmul.mubr.f32.gmra.mxu0 %v1249
        %v1704 = vpop.f32.mrf.mxu0
        %v1705 = vadd.f32 0.0, %v1704
        %v1706 = vpop.f32.mrf.mxu0
        %1707 = vmatprep.mubr.f32.mxu0 0.0
        %1708 = vmatmul.mubr.f32.gmra.mxu0 %v1252
        %v1709 = vpop.f32.mrf.mxu0
        %v1710 = vadd.f32 0.0, %v1709
        %v1711 = vpop.f32.mrf.mxu0
        %1712 = vmatprep.mubr.f32.mxu0 0.0
        %1713 = vmatmul.mubr.f32.gmra.mxu0 %v1255
        %v1714 = vpop.f32.mrf.mxu0
        %v1715 = vadd.f32 0.0, %v1714
        %v1716 = vpop.f32.mrf.mxu0
        %1717 = vmatprep.mubr.f32.mxu0 0.0
        %1718 = vmatmul.mubr.f32.gmra.mxu0 %v1258
        %v1719 = vpop.f32.mrf.mxu0
        %v1720 = vadd.f32 0.0, %v1719
        %v1721 = vpop.f32.mrf.mxu0
        %1722 = vmatprep.mubr.f32.mxu0 0.0
        %1723 = vmatmul.mubr.f32.gmra.mxu0 %v1261
        %v1724 = vpop.f32.mrf.mxu0
        %v1725 = vadd.f32 0.0, %v1724
        %v1726 = vpop.f32.mrf.mxu0
        %1727 = vmatprep.mubr.f32.mxu0 0.0
        %1728 = vmatmul.mubr.f32.gmra.mxu0 %v1264
        %v1729 = vpop.f32.mrf.mxu0
        %v1730 = vadd.f32 0.0, %v1729
        %v1731 = vpop.f32.mrf.mxu0
        %1732 = vmatprep.mubr.f32.mxu0 0.0
        %1733 = vmatmul.mubr.f32.gmra.mxu0 %v1267
        %v1734 = vpop.f32.mrf.mxu0
        %v1735 = vadd.f32 0.0, %v1734
        %v1736 = vpop.f32.mrf.mxu0
        %1737 = vmatprep.mubr.f32.mxu0 0.0
        %1738 = vmatmul.mubr.f32.gmra.mxu0 %v1270
        %v1739 = vpop.f32.mrf.mxu0
        %v1740 = vadd.f32 0.0, %v1739
        %v1741 = vpop.f32.mrf.mxu0
        %1742 = vmatprep.mubr.f32.mxu0 0.0
        %1743 = vmatmul.mubr.f32.gmra.mxu0 %v1273
        %v1744 = vpop.f32.mrf.mxu0
        %v1745 = vadd.f32 0.0, %v1744
        %v1746 = vpop.f32.mrf.mxu0
        %1747 = vmatprep.mubr.f32.mxu0 0.0
        %1748 = vmatmul.mubr.f32.gmra.mxu0 %v1276
        %v1749 = vpop.f32.mrf.mxu0
        %v1750 = vadd.f32 0.0, %v1749
        %v1751 = vpop.f32.mrf.mxu0
        %1752 = vmatprep.mubr.f32.mxu0 0.0
        %1753 = vmatmul.mubr.f32.gmra.mxu0 %v1279
        %v1754 = vpop.f32.mrf.mxu0
        %v1755 = vadd.f32 0.0, %v1754
        %v1756 = vpop.f32.mrf.mxu0
        %1757 = vmatprep.mubr.f32.mxu0 0.0
        %1758 = vmatmul.mubr.f32.gmra.mxu0 %v1282
        %v1759 = vpop.f32.mrf.mxu0
        %v1760 = vadd.f32 0.0, %v1759
        %v1761 = vpop.f32.mrf.mxu0
        %1762 = vmatprep.mubr.f32.mxu0 0.0
        %1763 = vmatmul.mubr.f32.gmra.mxu0 %v1285
        %v1764 = vpop.f32.mrf.mxu0
        %v1765 = vadd.f32 0.0, %v1764
        %v1766 = vpop.f32.mrf.mxu0
        %1767 = vmatprep.mubr.f32.mxu0 0.0
        %1768 = vmatmul.mubr.f32.gmra.mxu0 %v1288
        %v1769 = vpop.f32.mrf.mxu0
        %v1770 = vadd.f32 0.0, %v1769
        %v1771 = vpop.f32.mrf.mxu0
        %1772 = vmatprep.mubr.f32.mxu0 0.0
        %1773 = vmatmul.mubr.f32.gmra.mxu0 %v1291
        %v1774 = vpop.f32.mrf.mxu0
        %v1775 = vadd.f32 0.0, %v1774
        %v1776 = vpop.f32.mrf.mxu0
        %1777 = vmatprep.mubr.f32.mxu0 0.0
        %1778 = vmatmul.mubr.f32.gmra.mxu0 %v1294
        %v1779 = vpop.f32.mrf.mxu0
        %v1780 = vadd.f32 0.0, %v1779
        %v1781 = vpop.f32.mrf.mxu0
        %1782 = vmatprep.mubr.f32.mxu0 0.0
        %1783 = vmatmul.mubr.f32.gmra.mxu0 %v1297
        %v1784 = vpop.f32.mrf.mxu0
        %v1785 = vadd.f32 0.0, %v1784
        %v1786 = vpop.f32.mrf.mxu0
        %1787 = vmatprep.mubr.f32.mxu0 0.0
        %1788 = vmatmul.mubr.f32.gmra.mxu0 %v1300
        %v1789 = vpop.f32.mrf.mxu0
        %v1790 = vadd.f32 0.0, %v1789
        %v1791 = vpop.f32.mrf.mxu0
        %1792 = vmatprep.mubr.f32.mxu0 0.0
        %1793 = vmatmul.mubr.f32.gmra.mxu0 %v1303
        %v1794 = vpop.f32.mrf.mxu0
        %v1795 = vadd.f32 0.0, %v1794
        %v1796 = vpop.f32.mrf.mxu0
        %1797 = vmatprep.mubr.f32.mxu0 0.0
        %1798 = vmatmul.mubr.f32.gmra.mxu0 %v1306
        %v1799 = vpop.f32.mrf.mxu0
        %v1800 = vadd.f32 0.0, %v1799
        %v1801 = vpop.f32.mrf.mxu0
        %1802 = vmatprep.mubr.f32.mxu0 0.0
        %1803 = vmatmul.mubr.f32.gmra.mxu0 %v1309
        %v1804 = vpop.f32.mrf.mxu0
        %v1805 = vadd.f32 0.0, %v1804
        %v1806 = vpop.f32.mrf.mxu0
        %1807 = vmatprep.mubr.f32.mxu0 0.0
        %1808 = vmatmul.mubr.f32.gmra.mxu0 %v1312
        %v1809 = vpop.f32.mrf.mxu0
        %v1810 = vadd.f32 0.0, %v1809
        %v1811 = vpop.f32.mrf.mxu0
        %1812 = vmatprep.mubr.f32.mxu0 0.0
        %1813 = vmatmul.mubr.f32.gmra.mxu0 %v1315
        %v1814 = vpop.f32.mrf.mxu0
        %v1815 = vadd.f32 0.0, %v1814
        %v1816 = vpop.f32.mrf.mxu0
        %1817 = vmatprep.mubr.f32.mxu0 0.0
        %1818 = vmatmul.mubr.f32.gmra.mxu0 %v1318
        %v1819 = vpop.f32.mrf.mxu0
        %v1820 = vadd.f32 0.0, %v1819
        %v1821 = vpop.f32.mrf.mxu0
        %1822 = vmatprep.mubr.f32.mxu0 0.0
        %1823 = vmatmul.mubr.f32.gmra.mxu0 %v1321
        %v1824 = vpop.f32.mrf.mxu0
        %v1825 = vadd.f32 0.0, %v1824
        %v1826 = vpop.f32.mrf.mxu0
        %1827 = vmatprep.mubr.f32.mxu0 0.0
        %1828 = vmatmul.mubr.f32.gmra.mxu0 %v1324
        %v1829 = vpop.f32.mrf.mxu0
        %v1830 = vadd.f32 0.0, %v1829
        %v1831 = vpop.f32.mrf.mxu0
        %1832 = vmatprep.mubr.f32.mxu0 0.0
        %1833 = vmatmul.mubr.f32.gmra.mxu0 %v1327
        %v1834 = vpop.f32.mrf.mxu0
        %v1835 = vadd.f32 0.0, %v1834
        %v1836 = vpop.f32.mrf.mxu0
        %1837 = vmatprep.mubr.f32.mxu0 0.0
        %1838 = vmatmul.mubr.f32.gmra.mxu0 %v1330
        %v1839 = vpop.f32.mrf.mxu0
        %v1840 = vadd.f32 0.0, %v1839
        %v1841 = vpop.f32.mrf.mxu0
        %1842 = vmatprep.mubr.f32.mxu0 0.0
        %1843 = vmatmul.mubr.f32.gmra.mxu0 %v1333
        %v1844 = vpop.f32.mrf.mxu0
        %v1845 = vadd.f32 0.0, %v1844
        %v1846 = vpop.f32.mrf.mxu0
        %1847 = vmatprep.mubr.f32.mxu0 0.0
        %1848 = vmatmul.mubr.f32.gmra.mxu0 %v1336
        %v1849 = vpop.f32.mrf.mxu0
        %v1850 = vadd.f32 0.0, %v1849
        %v1851 = vpop.f32.mrf.mxu0
        %1852 = vmatprep.mubr.f32.mxu0 0.0
        %1853 = vmatmul.mubr.f32.gmra.mxu0 %v1339
        %v1854 = vpop.f32.mrf.mxu0
        %v1855 = vadd.f32 0.0, %v1854
        %v1856 = vpop.f32.mrf.mxu0
        %1857 = vmatprep.mubr.f32.mxu0 0.0
        %1858 = vmatmul.mubr.f32.gmra.mxu0 %v1342
        %v1859 = vpop.f32.mrf.mxu0
        %v1860 = vadd.f32 0.0, %v1859
        %v1861 = vpop.f32.mrf.mxu0
        %1862 = vmatprep.mubr.f32.mxu0 0.0
        %1863 = vmatmul.mubr.f32.gmra.mxu0 %v1345
        %v1864 = vpop.f32.mrf.mxu0
        %v1865 = vadd.f32 0.0, %v1864
        %v1866 = vpop.f32.mrf.mxu0
        %1867 = vmatprep.mubr.f32.mxu0 0.0
        %1868 = vmatmul.mubr.f32.gmra.mxu0 %v1348
        %v1869 = vpop.f32.mrf.mxu0
        %v1870 = vadd.f32 0.0, %v1869
        %v1871 = vpop.f32.mrf.mxu0
        %1872 = vmatprep.mubr.f32.mxu0 0.0
        %1873 = vmatmul.mubr.f32.gmra.mxu0 %v1351
        %v1874 = vpop.f32.mrf.mxu0
        %v1875 = vadd.f32 0.0, %v1874
        %v1876 = vpop.f32.mrf.mxu0
        %1877 = vmatprep.mubr.f32.mxu0 0.0
        %1878 = vmatmul.mubr.f32.gmra.mxu0 %v1354
        %v1879 = vpop.f32.mrf.mxu0
        %v1880 = vadd.f32 0.0, %v1879
        %v1881 = vpop.f32.mrf.mxu0
        %1882 = vmatprep.mubr.f32.mxu0 0.0
        %1883 = vmatmul.mubr.f32.gmra.mxu0 %v1357
        %v1884 = vpop.f32.mrf.mxu0
        %v1885 = vadd.f32 0.0, %v1884
        %v1886 = vpop.f32.mrf.mxu0
        %1887 = vmatprep.mubr.f32.mxu0 0.0
        %1888 = vmatmul.mubr.f32.gmra.mxu0 %v1360
        %v1889 = vpop.f32.mrf.mxu0
        %v1890 = vadd.f32 0.0, %v1889
        %v1891 = vpop.f32.mrf.mxu0
        %1892 = vmatprep.mubr.f32.mxu0 0.0
        %1893 = vmatmul.mubr.f32.gmra.mxu0 %v1363
        %v1894 = vpop.f32.mrf.mxu0
        %v1895 = vadd.f32 0.0, %v1894
        %v1896 = vpop.f32.mrf.mxu0
        %1897 = vmatprep.mubr.f32.mxu0 0.0
        %1898 = vmatmul.mubr.f32.gmra.mxu0 %v1366
        %v1899 = vpop.f32.mrf.mxu0
        %v1900 = vadd.f32 0.0, %v1899
        %v1901 = vpop.f32.mrf.mxu0
        %1902 = vmatprep.mubr.f32.mxu0 0.0
        %1903 = vmatmul.mubr.f32.gmra.mxu0 %v1369
        %v1904 = vpop.f32.mrf.mxu0
        %v1905 = vadd.f32 0.0, %v1904
        %v1906 = vpop.f32.mrf.mxu0
        %1907 = vmatprep.mubr.f32.mxu0 0.0
        %1908 = vmatmul.mubr.f32.gmra.mxu0 %v1372
        %v1909 = vpop.f32.mrf.mxu0
        %v1910 = vadd.f32 0.0, %v1909
        %v1911 = vpop.f32.mrf.mxu0
        %1912 = vmatprep.mubr.f32.mxu0 0.0
        %1913 = vmatmul.mubr.f32.gmra.mxu0 %v1375
        %v1914 = vpop.f32.mrf.mxu0
        %v1915 = vadd.f32 0.0, %v1914
        %v1916 = vpop.f32.mrf.mxu0
        %1917 = vmatprep.mubr.f32.mxu0 0.0
        %1918 = vmatmul.mubr.f32.gmra.mxu0 %v1378
        %v1919 = vpop.f32.mrf.mxu0
        %v1920 = vadd.f32 0.0, %v1919
        %v1921 = vpop.f32.mrf.mxu0
        %1922 = vmatprep.mubr.f32.mxu0 0.0
        %1923 = vmatmul.mubr.f32.gmra.mxu0 %v1381
        %v1924 = vpop.f32.mrf.mxu0
        %v1925 = vadd.f32 0.0, %v1924
        %v1926 = vpop.f32.mrf.mxu0
        %1927 = vmatprep.mubr.f32.mxu0 0.0
        %1928 = vmatmul.mubr.f32.gmra.mxu0 %v1384
        %v1929 = vpop.f32.mrf.mxu0
        %v1930 = vadd.f32 0.0, %v1929
        %v1931 = vpop.f32.mrf.mxu0
        %1932 = vmatprep.mubr.f32.mxu0 0.0
        %1933 = vmatmul.mubr.f32.gmra.mxu0 %v1387
        %v1934 = vpop.f32.mrf.mxu0
        %v1935 = vadd.f32 0.0, %v1934
        %v1936 = vpop.f32.mrf.mxu0
        %1937 = vmatprep.mubr.f32.mxu0 0.0
        %1938 = vmatmul.mubr.f32.gmra.mxu0 %v1390
        %v1939 = vpop.f32.mrf.mxu0
        %v1940 = vadd.f32 0.0, %v1939
        %v1941 = vpop.f32.mrf.mxu0
        %1942 = vmatprep.mubr.f32.mxu0 0.0
        %1943 = vmatmul.mubr.f32.gmra.mxu0 %v1393
        %v1944 = vpop.f32.mrf.mxu0
        %v1945 = vadd.f32 0.0, %v1944
        %v1946 = vpop.f32.mrf.mxu0
        %1947 = vmatprep.mubr.f32.mxu0 0.0
        %1948 = vmatmul.mubr.f32.gmra.mxu0 %v1396
        %v1949 = vpop.f32.mrf.mxu0
        %v1950 = vadd.f32 0.0, %v1949
        %v1951 = vpop.f32.mrf.mxu0
        %1952 = vmatprep.mubr.f32.mxu0 0.0
        %1953 = vmatmul.mubr.f32.gmra.mxu0 %v1399
        %v1954 = vpop.f32.mrf.mxu0
        %v1955 = vadd.f32 0.0, %v1954
        %v1956 = vpop.f32.mrf.mxu0
        %1957 = vmatprep.mubr.f32.mxu0 0.0
        %1958 = vmatmul.mubr.f32.gmra.mxu0 %v1402
        %v1959 = vpop.f32.mrf.mxu0
        %v1960 = vadd.f32 0.0, %v1959
        %v1961 = vpop.f32.mrf.mxu0
        %1962 = vmatprep.mubr.f32.mxu0 0.0
        %1963 = vmatmul.mubr.f32.gmra.mxu0 %v1405
        %v1964 = vpop.f32.mrf.mxu0
        %v1965 = vadd.f32 0.0, %v1964
        %v1966 = vpop.f32.mrf.mxu0
        %1967 = vmatprep.mubr.f32.mxu0 0.0
        %1968 = vmatmul.mubr.f32.gmra.mxu0 %v1408
        %v1969 = vpop.f32.mrf.mxu0
        %v1970 = vadd.f32 0.0, %v1969
        %v1971 = vpop.f32.mrf.mxu0
        %1972 = vmatprep.mubr.f32.mxu0 0.0
        %1973 = vmatmul.mubr.f32.gmra.mxu0 %v1411
        %v1974 = vpop.f32.mrf.mxu0
        %v1975 = vadd.f32 0.0, %v1974
        %v1976 = vpop.f32.mrf.mxu0
        %1977 = vmatprep.mubr.f32.mxu0 0.0
        %1978 = vmatmul.mubr.f32.gmra.mxu0 %v1414
        %v1979 = vpop.f32.mrf.mxu0
        %v1980 = vadd.f32 0.0, %v1979
        %v1981 = vpop.f32.mrf.mxu0
        %1982 = vmatprep.mubr.f32.mxu0 0.0
        %1983 = vmatmul.mubr.f32.gmra.mxu0 %v1417
        %v1984 = vpop.f32.mrf.mxu0
        %v1985 = vadd.f32 0.0, %v1984
        %v1986 = vpop.f32.mrf.mxu0
        %1987 = vmatprep.mubr.f32.mxu0 0.0
        %1988 = vmatmul.mubr.f32.gmra.mxu0 %v1420
        %v1989 = vpop.f32.mrf.mxu0
        %v1990 = vadd.f32 0.0, %v1989
        %v1991 = vpop.f32.mrf.mxu0
        %1992 = vmatprep.mubr.f32.mxu0 0.0
        %1993 = vmatmul.mubr.f32.gmra.mxu0 %v1423
        %v1994 = vpop.f32.mrf.mxu0
        %v1995 = vadd.f32 0.0, %v1994
        %v1996 = vpop.f32.mrf.mxu0
        %1997 = vmatprep.mubr.f32.mxu0 0.0
        %1998 = vmatmul.mubr.f32.gmra.mxu0 %v1426
        %v1999 = vpop.f32.mrf.mxu0
        %v2000 = vadd.f32 0.0, %v1999
        %v2001 = vpop.f32.mrf.mxu0
        %2002 = vmatprep.mubr.f32.mxu0 0.0
        %2003 = vmatmul.mubr.f32.gmra.mxu0 %v1429
        %v2004 = vpop.f32.mrf.mxu0
        %v2005 = vadd.f32 0.0, %v2004
        %v2006 = vpop.f32.mrf.mxu0
        %2007 = vmatprep.mubr.f32.mxu0 0.0
        %2008 = vmatmul.mubr.f32.gmra.mxu0 %v1432
        %v2009 = vpop.f32.mrf.mxu0
        %v2010 = vadd.f32 0.0, %v2009
        %v2011 = vpop.f32.mrf.mxu0
        %2012 = vmatprep.mubr.f32.mxu0 0.0
        %2013 = vmatmul.mubr.f32.gmra.mxu0 %v1435
        %v2014 = vpop.f32.mrf.mxu0
        %v2015 = vadd.f32 0.0, %v2014
        %v2016 = vpop.f32.mrf.mxu0
        %2017 = vmatprep.mubr.f32.mxu0 0.0
        %2018 = vmatmul.mubr.f32.gmra.mxu0 %v1438
        %v2019 = vpop.f32.mrf.mxu0
        %v2020 = vadd.f32 0.0, %v2019
        %v2021 = vpop.f32.mrf.mxu0
        %2022 = vmatprep.mubr.f32.mxu0 0.0
        %2023 = vmatmul.mubr.f32.gmra.mxu0 %v1441
        %v2024 = vpop.f32.mrf.mxu0
        %v2025 = vadd.f32 0.0, %v2024
        %v2026 = vpop.f32.mrf.mxu0
        %2027 = vmatprep.mubr.f32.mxu0 0.0
        %2028 = vmatmul.mubr.f32.gmra.mxu0 %v1444
        %v2029 = vpop.f32.mrf.mxu0
        %v2030 = vadd.f32 0.0, %v2029
        %v2031 = vpop.f32.mrf.mxu0
        %2032 = vmatprep.mubr.f32.mxu0 0.0
        %2033 = vmatmul.mubr.f32.gmra.mxu0 %v1447
        %v2034 = vpop.f32.mrf.mxu0
        %v2035 = vadd.f32 0.0, %v2034
        %v2036 = vpop.f32.mrf.mxu0
        %2037 = vmatprep.mubr.f32.mxu0 0.0
        %2038 = vmatmul.mubr.f32.gmra.mxu0 %v1450
        %v2039 = vpop.f32.mrf.mxu0
        %v2040 = vadd.f32 0.0, %v2039
        %v2041 = vpop.f32.mrf.mxu0
        %2042 = vmatprep.mubr.f32.mxu0 0.0
        %2043 = vmatmul.mubr.f32.gmra.mxu0 %v1453
        %v2044 = vpop.f32.mrf.mxu0
        %v2045 = vadd.f32 0.0, %v2044
        %v2046 = vpop.f32.mrf.mxu0
        %2047 = vmatprep.mubr.f32.mxu0 0.0
        %2048 = vmatmul.mubr.f32.gmra.mxu0 %v1456
        %v2049 = vpop.f32.mrf.mxu0
        %v2050 = vadd.f32 0.0, %v2049
        %v2051 = vpop.f32.mrf.mxu0
        %2052 = vmatprep.mubr.f32.mxu0 0.0
        %2053 = vmatmul.mubr.f32.gmra.mxu0 %v1459
        %v2054 = vpop.f32.mrf.mxu0
        %v2055 = vadd.f32 0.0, %v2054
        %v2056 = vpop.f32.mrf.mxu0
        %2057 = vmatprep.mubr.f32.mxu0 0.0
        %2058 = vmatmul.mubr.f32.gmra.mxu0 %v1462
        %v2059 = vpop.f32.mrf.mxu0
        %v2060 = vadd.f32 0.0, %v2059
        %v2061 = vpop.f32.mrf.mxu0
        %2062 = vmatprep.mubr.f32.mxu0 0.0
        %2063 = vmatmul.mubr.f32.gmra.mxu0 %v1465
        %v2064 = vpop.f32.mrf.mxu0
        %v2065 = vadd.f32 0.0, %v2064
        %v2066 = vpop.f32.mrf.mxu0
        %2067 = vmatprep.mubr.f32.mxu0 0.0
        %2068 = vmatmul.mubr.f32.gmra.mxu0 %v1468
        %v2069 = vpop.f32.mrf.mxu0
        %v2070 = vadd.f32 0.0, %v2069
        %v2071 = vpop.f32.mrf.mxu0
        %2072 = vmatprep.mubr.f32.mxu0 0.0
        %2073 = vmatmul.mubr.f32.gmra.mxu0 %v1471
        %v2074 = vpop.f32.mrf.mxu0
        %v2075 = vadd.f32 0.0, %v2074
        %v2076 = vpop.f32.mrf.mxu0
        %2077 = vmatprep.mubr.f32.mxu0 0.0
        %2078 = vmatmul.mubr.f32.gmra.mxu0 %v1474
        %v2079 = vpop.f32.mrf.mxu0
        %v2080 = vadd.f32 0.0, %v2079
        %v2081 = vpop.f32.mrf.mxu0
        %2082 = vmatprep.mubr.f32.mxu0 0.0
        %2083 = vmatmul.mubr.f32.gmra.mxu0 %v1477
        %v2084 = vpop.f32.mrf.mxu0
        %v2085 = vadd.f32 0.0, %v2084
        %v2086 = vpop.f32.mrf.mxu0
        %2087 = vmatprep.mubr.f32.mxu0 0.0
        %2088 = vmatmul.mubr.f32.gmra.mxu0 %v1480
        %v2089 = vpop.f32.mrf.mxu0
        %v2090 = vadd.f32 0.0, %v2089
        %v2091 = vpop.f32.mrf.mxu0
        %2092 = vmatprep.mubr.f32.mxu0 0.0
        %2093 = vmatmul.mubr.f32.gmra.mxu0 %v1483
        %v2094 = vpop.f32.mrf.mxu0
        %v2095 = vadd.f32 0.0, %v2094
        %v2096 = vpop.f32.mrf.mxu0
        %2097 = vmatprep.mubr.f32.mxu0 0.0
        %2098 = vmatmul.mubr.f32.gmra.mxu0 %v1486
        %v2099 = vpop.f32.mrf.mxu0
        %v2100 = vadd.f32 0.0, %v2099
        %v2101 = vpop.f32.mrf.mxu0
        %2102 = vmatprep.mubr.f32.mxu0 0.0
        %2103 = vmatmul.mubr.f32.gmra.mxu0 %v1489
        %v2104 = vpop.f32.mrf.mxu0
        %v2105 = vadd.f32 0.0, %v2104
        %v2106 = vpop.f32.mrf.mxu0
        %2107 = vmatprep.mubr.f32.mxu0 0.0
        %2108 = vmatmul.mubr.f32.gmra.mxu0 %v1492
        %v2109 = vpop.f32.mrf.mxu0
        %v2110 = vadd.f32 0.0, %v2109
        %v2111 = vpop.f32.mrf.mxu0
        %2112 = vmatprep.mubr.f32.mxu0 0.0
        %2113 = vmatmul.mubr.f32.gmra.mxu0 %v1495
        %v2114 = vpop.f32.mrf.mxu0
        %v2115 = vadd.f32 0.0, %v2114
        %v2116 = vpop.f32.mrf.mxu0
        %2117 = vmatprep.mubr.f32.mxu0 0.0
        %2118 = vmatmul.mubr.f32.gmra.mxu0 %v1498
        %v2119 = vpop.f32.mrf.mxu0
        %v2120 = vadd.f32 0.0, %v2119
        %v2121 = vpop.f32.mrf.mxu0
        %2122 = vmatprep.mubr.f32.mxu0 0.0
        %2123 = vmatmul.mubr.f32.gmra.mxu0 %v1501
        %v2124 = vpop.f32.mrf.mxu0
        %v2125 = vadd.f32 0.0, %v2124
        %v2126 = vpop.f32.mrf.mxu0
        %2127 = vmatprep.mubr.f32.mxu0 0.0
        %2128 = vmatmul.mubr.f32.gmra.mxu0 %v1504
        %v2129 = vpop.f32.mrf.mxu0
        %v2130 = vadd.f32 0.0, %v2129
        %v2131 = vpop.f32.mrf.mxu0
        %2132 = vmatprep.mubr.f32.mxu0 0.0
        %2133 = vmatmul.mubr.f32.gmra.mxu0 %v1507
        %v2134 = vpop.f32.mrf.mxu0
        %v2135 = vadd.f32 0.0, %v2134
        %v2136 = vpop.f32.mrf.mxu0
        %2137 = vmatprep.mubr.f32.mxu0 0.0
        %2138 = vmatmul.mubr.f32.gmra.mxu0 %v1510
        %v2139 = vpop.f32.mrf.mxu0
        %v2140 = vadd.f32 0.0, %v2139
        %v2141 = vpop.f32.mrf.mxu0
        %2142 = vmatprep.mubr.f32.mxu0 0.0
        %2143 = vmatmul.mubr.f32.gmra.mxu0 %v1513
        %v2144 = vpop.f32.mrf.mxu0
        %v2145 = vadd.f32 0.0, %v2144
        %v2146 = vpop.f32.mrf.mxu0
        %2147 = vmatprep.mubr.f32.mxu0 0.0
        %2148 = vmatmul.mubr.f32.gmra.mxu0 %v1516
        %v2149 = vpop.f32.mrf.mxu0
        %v2150 = vadd.f32 0.0, %v2149
        %v2151 = vpop.f32.mrf.mxu0
        %2152 = vmatprep.mubr.f32.mxu0 0.0
        %2153 = vmatmul.mubr.f32.gmra.mxu0 %v1519
        %v2154 = vpop.f32.mrf.mxu0
        %v2155 = vadd.f32 0.0, %v2154
        %v2156 = vpop.f32.mrf.mxu0
        %2157 = vmatprep.mubr.f32.mxu0 0.0
        %2158 = vmatmul.mubr.f32.gmra.mxu0 %v1522
        %v2159 = vpop.f32.mrf.mxu0
        %v2160 = vadd.f32 0.0, %v2159
        %v2161 = vpop.f32.mrf.mxu0
        %2162 = vmatprep.mubr.f32.mxu0 0.0
        %2163 = vmatmul.mubr.f32.gmra.mxu0 %v1525
        %v2164 = vpop.f32.mrf.mxu0
        %v2165 = vadd.f32 0.0, %v2164
        %v2166 = vpop.f32.mrf.mxu0
        %2167 = vmatprep.mubr.f32.mxu0 0.0
        %2168 = vmatmul.mubr.f32.gmra.mxu0 %v1528
        %v2169 = vpop.f32.mrf.mxu0
        %v2170 = vadd.f32 0.0, %v2169
        %v2171 = vpop.f32.mrf.mxu0
        %2172 = vmatprep.mubr.f32.mxu0 0.0
        %2173 = vmatmul.mubr.f32.gmra.mxu0 %v1531
        %v2174 = vpop.f32.mrf.mxu0
        %v2175 = vadd.f32 0.0, %v2174
        %v2176 = vpop.f32.mrf.mxu0
        %2177 = vmatprep.mubr.f32.mxu0 0.0
        %2178 = vmatmul.mubr.f32.gmra.mxu0 %v1534
        %v2179 = vpop.f32.mrf.mxu0
        %v2180 = vadd.f32 0.0, %v2179
        %v2181 = vpop.f32.mrf.mxu0
        %2182 = vmatprep.mubr.f32.mxu0 0.0
        %2183 = vmatmul.mubr.f32.gmra.mxu0 %v1537
        %v2184 = vpop.f32.mrf.mxu0
        %v2185 = vadd.f32 0.0, %v2184
        %v2186 = vpop.f32.mrf.mxu0
        %2187 = vmatprep.mubr.f32.mxu0 0.0
        %2188 = vmatmul.mubr.f32.gmra.mxu0 %v1540
        %v2189 = vpop.f32.mrf.mxu0
        %v2190 = vadd.f32 0.0, %v2189
        %v2191 = vpop.f32.mrf.mxu0
        %2192 = vmatprep.mubr.f32.mxu0 0.0
        %2193 = vmatmul.mubr.f32.gmra.mxu0 %v1543
        %v2194 = vpop.f32.mrf.mxu0
        %v2195 = vadd.f32 0.0, %v2194
        %v2196 = vpop.f32.mrf.mxu0
        %2197 = vmatprep.mubr.f32.mxu0 0.0
        %2198 = vmatmul.mubr.f32.gmra.mxu0 %v1546
        %v2199 = vpop.f32.mrf.mxu0
        %v2200 = vadd.f32 0.0, %v2199
        %v2201 = vpop.f32.mrf.mxu0
        %2202 = vmatprep.mubr.f32.mxu0 0.0
        %2203 = vmatmul.mubr.f32.gmra.mxu0 %v1549
        %v2204 = vpop.f32.mrf.mxu0
        %v2205 = vadd.f32 0.0, %v2204
        %v2206 = vpop.f32.mrf.mxu0
        %2207 = vmatprep.mubr.f32.mxu0 0.0
        %2208 = vmatmul.mubr.f32.gmra.mxu0 %v1552
        %v2209 = vpop.f32.mrf.mxu0
        %v2210 = vadd.f32 0.0, %v2209
        %v2211 = vpop.f32.mrf.mxu0
        %2212 = vmatprep.mubr.f32.mxu0 0.0
        %2213 = vmatmul.mubr.f32.gmra.mxu0 %v1555
        %v2214 = vpop.f32.mrf.mxu0
        %v2215 = vadd.f32 0.0, %v2214
        %v2216 = vpop.f32.mrf.mxu0
        %2217 = vmatprep.mubr.f32.mxu0 0.0
        %2218 = vmatmul.mubr.f32.gmra.mxu0 %v1558
        %v2219 = vpop.f32.mrf.mxu0
        %v2220 = vadd.f32 0.0, %v2219
        %v2221 = vpop.f32.mrf.mxu0
        %2222 = vmatprep.mubr.f32.mxu0 0.0
        %2223 = vmatmul.mubr.f32.gmra.mxu0 %v1561
        %v2224 = vpop.f32.mrf.mxu0
        %v2225 = vadd.f32 0.0, %v2224
        %v2226 = vpop.f32.mrf.mxu0
        %2227 = vmatprep.mubr.f32.mxu0 0.0
        %2228 = vmatmul.mubr.f32.gmra.mxu0 %v1564
        %v2229 = vpop.f32.mrf.mxu0
        %v2230 = vadd.f32 0.0, %v2229
        %v2231 = vpop.f32.mrf.mxu0
        %2232 = vmatprep.mubr.f32.mxu0 0.0
        %2233 = vmatmul.mubr.f32.gmra.mxu0 %v1567
        %v2234 = vpop.f32.mrf.mxu0
        %v2235 = vadd.f32 0.0, %v2234
        %v2236 = vpop.f32.mrf.mxu0
        %2237 = vmatprep.mubr.f32.mxu0 0.0
        %2238 = vmatmul.mubr.f32.gmra.mxu0 %v1570
        %v2239 = vpop.f32.mrf.mxu0
        %v2240 = vadd.f32 0.0, %v2239
        %v2241 = vpop.f32.mrf.mxu0
        %2242 = vmatprep.mubr.f32.mxu0 0.0
        %2243 = vmatmul.mubr.f32.gmra.mxu0 %v1573
        %v2244 = vpop.f32.mrf.mxu0
        %v2245 = vadd.f32 0.0, %v2244
        %v2246 = vpop.f32.mrf.mxu0
        %2247 = vmatprep.mubr.f32.mxu0 0.0
        %2248 = vmatmul.mubr.f32.gmra.mxu0 %v1576
        %v2249 = vpop.f32.mrf.mxu0
        %v2250 = vadd.f32 0.0, %v2249
        %v2251 = vpop.f32.mrf.mxu0
        %2252 = vmatprep.mubr.f32.mxu0 0.0
        %2253 = vmatmul.mubr.f32.gmra.mxu0 %v1579
        %v2254 = vpop.f32.mrf.mxu0
        %v2255 = vadd.f32 0.0, %v2254
        %v2256 = vpop.f32.mrf.mxu0
        %2257 = vmatprep.mubr.f32.mxu0 0.0
        %2258 = vmatmul.mubr.f32.gmra.mxu0 %v1582
        %v2259 = vpop.f32.mrf.mxu0
        %v2260 = vadd.f32 0.0, %v2259
        %v2261 = vpop.f32.mrf.mxu0
        %2262 = vmatprep.mubr.f32.mxu0 0.0
        %2263 = vmatmul.mubr.f32.gmra.mxu0 %v1585
        %v2264 = vpop.f32.mrf.mxu0
        %v2265 = vadd.f32 0.0, %v2264
        %v2266 = vpop.f32.mrf.mxu0
        %2267 = vmatprep.mubr.f32.mxu0 0.0
        %2268 = vmatmul.mubr.f32.gmra.mxu0 %v1588
        %v2269 = vpop.f32.mrf.mxu0
        %v2270 = vadd.f32 0.0, %v2269
        %v2271 = vpop.f32.mrf.mxu0
        %2272 = vmatprep.mubr.f32.mxu0 0.0
        %2273 = vmatmul.mubr.f32.gmra.mxu0 %v1591
        %v2274 = vpop.f32.mrf.mxu0
        %v2275 = vadd.f32 0.0, %v2274
        %v2276 = vpop.f32.mrf.mxu0
        %2277 = vmatprep.mubr.f32.mxu0 0.0
        %2278 = vmatmul.mubr.f32.gmra.mxu0 %v1594
        %v2279 = vpop.f32.mrf.mxu0
        %v2280 = vadd.f32 0.0, %v2279
        %v2281 = vpop.f32.mrf.mxu0
        %2282 = vmatprep.mubr.f32.mxu0 0.0
        %2283 = vmatmul.mubr.f32.gmra.mxu0 %v1597
        %v2284 = vpop.f32.mrf.mxu0
        %v2285 = vadd.f32 0.0, %v2284
        %v2286 = vpop.f32.mrf.mxu0
        %2287 = vmatprep.mubr.f32.mxu0 0.0
        %2288 = vmatmul.mubr.f32.gmra.mxu0 %v1600
        %v2289 = vpop.f32.mrf.mxu0
        %v2290 = vadd.f32 0.0, %v2289
        %v2291 = vpop.f32.mrf.mxu0
        %2292 = vmatprep.mubr.f32.mxu0 0.0
        %2293 = vmatmul.mubr.f32.gmra.mxu0 %v1603
        %v2294 = vpop.f32.mrf.mxu0
        %v2295 = vadd.f32 0.0, %v2294
        %v2296 = vpop.f32.mrf.mxu0
        %2297 = vmatprep.mubr.f32.mxu0 0.0
        %2298 = vmatmul.mubr.f32.gmra.mxu0 %v1606
        %v2299 = vpop.f32.mrf.mxu0
        %v2300 = vadd.f32 0.0, %v2299
        %v2301 = vpop.f32.mrf.mxu0
        %2302 = vmatprep.mubr.f32.mxu0 0.0
        %2303 = vmatmul.mubr.f32.gmra.mxu0 %v1609
        %v2304 = vpop.f32.mrf.mxu0
        %v2305 = vadd.f32 0.0, %v2304
        %v2306 = vpop.f32.mrf.mxu0
        %2307 = vmatprep.mubr.f32.mxu0 0.0
        %2308 = vmatmul.mubr.f32.gmra.mxu0 %v1612
        %v2309 = vpop.f32.mrf.mxu0
        %v2310 = vadd.f32 0.0, %v2309
        %v2311 = vpop.f32.mrf.mxu0
        %2312 = vmatprep.mubr.f32.mxu0 0.0
        %2313 = vmatmul.mubr.f32.gmra.mxu0 %v1615
        %v2314 = vpop.f32.mrf.mxu0
        %v2315 = vadd.f32 0.0, %v2314
        %v2316 = vpop.f32.mrf.mxu0
        %2317 = vmatprep.mubr.f32.mxu0 0.0
        %2318 = vmatmul.mubr.f32.gmra.mxu0 %v1618
        %v2319 = vpop.f32.mrf.mxu0
        %v2320 = vadd.f32 0.0, %v2319
        %v2321 = vpop.f32.mrf.mxu0
        %2322 = vmatprep.mubr.f32.mxu0 0.0
        %2323 = vmatmul.mubr.f32.gmra.mxu0 %v1621
        %v2324 = vpop.f32.mrf.mxu0
        %v2325 = vadd.f32 0.0, %v2324
        %v2326 = vpop.f32.mrf.mxu0
        %2327 = vmatprep.mubr.f32.mxu0 0.0
        %2328 = vmatmul.mubr.f32.gmra.mxu0 %v1624
        %v2329 = vpop.f32.mrf.mxu0
        %v2330 = vadd.f32 0.0, %v2329
        %v2331 = vpop.f32.mrf.mxu0
        %2332 = vmatprep.mubr.f32.mxu0 0.0
        %2333 = vmatmul.mubr.f32.gmra.mxu0 %v1627
        %v2334 = vpop.f32.mrf.mxu0
        %v2335 = vadd.f32 0.0, %v2334
        %v2336 = vpop.f32.mrf.mxu0
        %2337 = vdwg.mxu0
        %vm2338 = vcmask 261120
        %v2339 = vsel %vm2338, %v1700, -inf
        %v2340 = vsel %vm2338, %v1720, -inf
        %v2341 = vmax.f32 %v2339, %v2340
        %v2342 = vsel %vm2338, %v1705, -inf
        %v2343 = vsel %vm2338, %v1725, -inf
        %v2344 = vmax.f32 %v2342, %v2343
        %v2345 = vsel %vm2338, %v1710, -inf
        %v2346 = vsel %vm2338, %v1730, -inf
        %v2347 = vmax.f32 %v2345, %v2346
        %v2348 = vsel %vm2338, %v1715, -inf
        %v2349 = vsel %vm2338, %v1735, -inf
        %v2350 = vmax.f32 %v2348, %v2349
        %v2351 = vsel %vm2338, %v1740, -inf
        %v2352 = vsel %vm2338, %v1760, -inf
        %v2353 = vmax.f32 %v2351, %v2352
        %v2354 = vsel %vm2338, %v1745, -inf
        %v2355 = vsel %vm2338, %v1765, -inf
        %v2356 = vmax.f32 %v2354, %v2355
        %v2357 = vsel %vm2338, %v1750, -inf
        %v2358 = vsel %vm2338, %v1770, -inf
        %v2359 = vmax.f32 %v2357, %v2358
        %v2360 = vsel %vm2338, %v1755, -inf
        %v2361 = vsel %vm2338, %v1775, -inf
        %v2362 = vmax.f32 %v2360, %v2361
        %v2363 = vsel %vm2338, %v1780, -inf
        %v2364 = vsel %vm2338, %v1800, -inf
        %v2365 = vmax.f32 %v2363, %v2364
        %v2366 = vsel %vm2338, %v1785, -inf
        %v2367 = vsel %vm2338, %v1805, -inf
        %v2368 = vmax.f32 %v2366, %v2367
        %v2369 = vsel %vm2338, %v1790, -inf
        %v2370 = vsel %vm2338, %v1810, -inf
        %v2371 = vmax.f32 %v2369, %v2370
        %v2372 = vsel %vm2338, %v1795, -inf
        %v2373 = vsel %vm2338, %v1815, -inf
        %v2374 = vmax.f32 %v2372, %v2373
        %v2375 = vsel %vm2338, %v1820, -inf
        %v2376 = vsel %vm2338, %v1840, -inf
        %v2377 = vmax.f32 %v2375, %v2376
        %v2378 = vsel %vm2338, %v1825, -inf
        %v2379 = vsel %vm2338, %v1845, -inf
        %v2380 = vmax.f32 %v2378, %v2379
        %v2381 = vsel %vm2338, %v1830, -inf
        %v2382 = vsel %vm2338, %v1850, -inf
        %v2383 = vmax.f32 %v2381, %v2382
        %v2384 = vsel %vm2338, %v1835, -inf
        %v2385 = vsel %vm2338, %v1855, -inf
        %v2386 = vmax.f32 %v2384, %v2385
        %v2387 = vsel %vm2338, %v1860, -inf
        %v2388 = vsel %vm2338, %v1880, -inf
        %v2389 = vmax.f32 %v2387, %v2388
        %v2390 = vsel %vm2338, %v1865, -inf
        %v2391 = vsel %vm2338, %v1885, -inf
        %v2392 = vmax.f32 %v2390, %v2391
        %v2393 = vsel %vm2338, %v1870, -inf
        %v2394 = vsel %vm2338, %v1890, -inf
        %v2395 = vmax.f32 %v2393, %v2394
        %v2396 = vsel %vm2338, %v1875, -inf
        %v2397 = vsel %vm2338, %v1895, -inf
        %v2398 = vmax.f32 %v2396, %v2397
        %v2399 = vsel %vm2338, %v1900, -inf
        %v2400 = vsel %vm2338, %v1920, -inf
        %v2401 = vmax.f32 %v2399, %v2400
        %v2402 = vsel %vm2338, %v1905, -inf
        %v2403 = vsel %vm2338, %v1925, -inf
        %v2404 = vmax.f32 %v2402, %v2403
        %v2405 = vsel %vm2338, %v1910, -inf
        %v2406 = vsel %vm2338, %v1930, -inf
        %v2407 = vmax.f32 %v2405, %v2406
        %v2408 = vsel %vm2338, %v1915, -inf
        %v2409 = vsel %vm2338, %v1935, -inf
        %v2410 = vmax.f32 %v2408, %v2409
        %v2411 = vsel %vm2338, %v1940, -inf
        %v2412 = vsel %vm2338, %v1960, -inf
        %v2413 = vmax.f32 %v2411, %v2412
        %v2414 = vsel %vm2338, %v1945, -inf
        %v2415 = vsel %vm2338, %v1965, -inf
        %v2416 = vmax.f32 %v2414, %v2415
        %v2417 = vsel %vm2338, %v1950, -inf
        %v2418 = vsel %vm2338, %v1970, -inf
        %v2419 = vmax.f32 %v2417, %v2418
        %v2420 = vsel %vm2338, %v1955, -inf
        %v2421 = vsel %vm2338, %v1975, -inf
        %v2422 = vmax.f32 %v2420, %v2421
        %v2423 = vsel %vm2338, %v1980, -inf
        %v2424 = vsel %vm2338, %v2000, -inf
        %v2425 = vmax.f32 %v2423, %v2424
        %v2426 = vsel %vm2338, %v1985, -inf
        %v2427 = vsel %vm2338, %v2005, -inf
        %v2428 = vmax.f32 %v2426, %v2427
        %v2429 = vsel %vm2338, %v1990, -inf
        %v2430 = vsel %vm2338, %v2010, -inf
        %v2431 = vmax.f32 %v2429, %v2430
        %v2432 = vsel %vm2338, %v1995, -inf
        %v2433 = vsel %vm2338, %v2015, -inf
        %v2434 = vmax.f32 %v2432, %v2433
        %v2435 = vsel %vm2338, %v2020, -inf
        %v2436 = vsel %vm2338, %v2040, -inf
        %v2437 = vmax.f32 %v2435, %v2436
        %v2438 = vsel %vm2338, %v2025, -inf
        %v2439 = vsel %vm2338, %v2045, -inf
        %v2440 = vmax.f32 %v2438, %v2439
        %v2441 = vsel %vm2338, %v2030, -inf
        %v2442 = vsel %vm2338, %v2050, -inf
        %v2443 = vmax.f32 %v2441, %v2442
        %v2444 = vsel %vm2338, %v2035, -inf
        %v2445 = vsel %vm2338, %v2055, -inf
        %v2446 = vmax.f32 %v2444, %v2445
        %v2447 = vsel %vm2338, %v2060, -inf
        %v2448 = vsel %vm2338, %v2080, -inf
        %v2449 = vmax.f32 %v2447, %v2448
        %v2450 = vsel %vm2338, %v2065, -inf
        %v2451 = vsel %vm2338, %v2085, -inf
        %v2452 = vmax.f32 %v2450, %v2451
        %v2453 = vsel %vm2338, %v2070, -inf
        %v2454 = vsel %vm2338, %v2090, -inf
        %v2455 = vmax.f32 %v2453, %v2454
        %v2456 = vsel %vm2338, %v2075, -inf
        %v2457 = vsel %vm2338, %v2095, -inf
        %v2458 = vmax.f32 %v2456, %v2457
        %v2459 = vsel %vm2338, %v2100, -inf
        %v2460 = vsel %vm2338, %v2120, -inf
        %v2461 = vmax.f32 %v2459, %v2460
        %v2462 = vsel %vm2338, %v2105, -inf
        %v2463 = vsel %vm2338, %v2125, -inf
        %v2464 = vmax.f32 %v2462, %v2463
        %v2465 = vsel %vm2338, %v2110, -inf
        %v2466 = vsel %vm2338, %v2130, -inf
        %v2467 = vmax.f32 %v2465, %v2466
        %v2468 = vsel %vm2338, %v2115, -inf
        %v2469 = vsel %vm2338, %v2135, -inf
        %v2470 = vmax.f32 %v2468, %v2469
        %v2471 = vsel %vm2338, %v2140, -inf
        %v2472 = vsel %vm2338, %v2160, -inf
        %v2473 = vmax.f32 %v2471, %v2472
        %v2474 = vsel %vm2338, %v2145, -inf
        %v2475 = vsel %vm2338, %v2165, -inf
        %v2476 = vmax.f32 %v2474, %v2475
        %v2477 = vsel %vm2338, %v2150, -inf
        %v2478 = vsel %vm2338, %v2170, -inf
        %v2479 = vmax.f32 %v2477, %v2478
        %v2480 = vsel %vm2338, %v2155, -inf
        %v2481 = vsel %vm2338, %v2175, -inf
        %v2482 = vmax.f32 %v2480, %v2481
        %v2483 = vsel %vm2338, %v2180, -inf
        %v2484 = vsel %vm2338, %v2200, -inf
        %v2485 = vmax.f32 %v2483, %v2484
        %v2486 = vsel %vm2338, %v2185, -inf
        %v2487 = vsel %vm2338, %v2205, -inf
        %v2488 = vmax.f32 %v2486, %v2487
        %v2489 = vsel %vm2338, %v2190, -inf
        %v2490 = vsel %vm2338, %v2210, -inf
        %v2491 = vmax.f32 %v2489, %v2490
        %v2492 = vsel %vm2338, %v2195, -inf
        %v2493 = vsel %vm2338, %v2215, -inf
        %v2494 = vmax.f32 %v2492, %v2493
        %v2495 = vsel %vm2338, %v2220, -inf
        %v2496 = vsel %vm2338, %v2240, -inf
        %v2497 = vmax.f32 %v2495, %v2496
        %v2498 = vsel %vm2338, %v2225, -inf
        %v2499 = vsel %vm2338, %v2245, -inf
        %v2500 = vmax.f32 %v2498, %v2499
        %v2501 = vsel %vm2338, %v2230, -inf
        %v2502 = vsel %vm2338, %v2250, -inf
        %v2503 = vmax.f32 %v2501, %v2502
        %v2504 = vsel %vm2338, %v2235, -inf
        %v2505 = vsel %vm2338, %v2255, -inf
        %v2506 = vmax.f32 %v2504, %v2505
        %v2507 = vsel %vm2338, %v2260, -inf
        %v2508 = vsel %vm2338, %v2280, -inf
        %v2509 = vmax.f32 %v2507, %v2508
        %v2510 = vsel %vm2338, %v2265, -inf
        %v2511 = vsel %vm2338, %v2285, -inf
        %v2512 = vmax.f32 %v2510, %v2511
        %v2513 = vsel %vm2338, %v2270, -inf
        %v2514 = vsel %vm2338, %v2290, -inf
        %v2515 = vmax.f32 %v2513, %v2514
        %v2516 = vsel %vm2338, %v2275, -inf
        %v2517 = vsel %vm2338, %v2295, -inf
        %v2518 = vmax.f32 %v2516, %v2517
        %v2519 = vsel %vm2338, %v2300, -inf
        %v2520 = vsel %vm2338, %v2320, -inf
        %v2521 = vmax.f32 %v2519, %v2520
        %v2522 = vsel %vm2338, %v2305, -inf
        %v2523 = vsel %vm2338, %v2325, -inf
        %v2524 = vmax.f32 %v2522, %v2523
        %v2525 = vsel %vm2338, %v2310, -inf
        %v2526 = vsel %vm2338, %v2330, -inf
        %v2527 = vmax.f32 %v2525, %v2526
        %v2528 = vsel %vm2338, %v2315, -inf
        %v2529 = vsel %vm2338, %v2335, -inf
        %v2530 = vmax.f32 %v2528, %v2529
        %v2595 = vcombine.high %v2341, %v2341
        %v2597 = vunpack.c.l.s4 1983009808
        %v2598 = vunpack.c.0.s8 %v2597
        %v2599 = vlaneseq
        %v2600 = vshrl.u32 %v2599, 7
        %v2601 = vsub.s32 %v2598, %v2600
        %v2602 = vrot.slane %v2341, %v2601
        %v2604 = vunpack.c.l.s4 1983009808
        %v2605 = vunpack.c.0.s8 %v2604
        %v2606 = vlaneseq
        %v2607 = vshrl.u32 %v2606, 7
        %v2608 = vsub.s32 %v2605, %v2607
        %v2609 = vrot.slane %v2595, %v2608
        %v2610 = vcombine.high %v2602, %v2602
        %v2611 = vcombine.high %v2609, %v2609
        %v2612 = vcombine.high %v2344, %v2344
        %v2614 = vunpack.c.l.s4 1983009808
        %v2615 = vunpack.c.0.s8 %v2614
        %v2616 = vlaneseq
        %v2617 = vshrl.u32 %v2616, 7
        %v2618 = vsub.s32 %v2615, %v2617
        %v2619 = vrot.slane %v2344, %v2618
        %v2621 = vunpack.c.l.s4 1983009808
        %v2622 = vunpack.c.0.s8 %v2621
        %v2623 = vlaneseq
        %v2624 = vshrl.u32 %v2623, 7
        %v2625 = vsub.s32 %v2622, %v2624
        %v2626 = vrot.slane %v2612, %v2625
        %v2627 = vcombine.high %v2619, %v2619
        %v2628 = vcombine.high %v2626, %v2626
        %v2629 = vcombine.high %v2347, %v2347
        %v2631 = vunpack.c.l.s4 1983009808
        %v2632 = vunpack.c.0.s8 %v2631
        %v2633 = vlaneseq
        %v2634 = vshrl.u32 %v2633, 7
        %v2635 = vsub.s32 %v2632, %v2634
        %v2636 = vrot.slane %v2347, %v2635
        %v2638 = vunpack.c.l.s4 1983009808
        %v2639 = vunpack.c.0.s8 %v2638
        %v2640 = vlaneseq
        %v2641 = vshrl.u32 %v2640, 7
        %v2642 = vsub.s32 %v2639, %v2641
        %v2643 = vrot.slane %v2629, %v2642
        %v2644 = vcombine.high %v2636, %v2636
        %v2645 = vcombine.high %v2643, %v2643
        %v2646 = vcombine.high %v2350, %v2350
        %v2648 = vunpack.c.l.s4 1983009808
        %v2649 = vunpack.c.0.s8 %v2648
        %v2650 = vlaneseq
        %v2651 = vshrl.u32 %v2650, 7
        %v2652 = vsub.s32 %v2649, %v2651
        %v2653 = vrot.slane %v2350, %v2652
        %v2655 = vunpack.c.l.s4 1983009808
        %v2656 = vunpack.c.0.s8 %v2655
        %v2657 = vlaneseq
        %v2658 = vshrl.u32 %v2657, 7
        %v2659 = vsub.s32 %v2656, %v2658
        %v2660 = vrot.slane %v2646, %v2659
        %v2661 = vcombine.high %v2653, %v2653
        %v2662 = vcombine.high %v2660, %v2660
        %v2663 = vcombine.high %v2353, %v2353
        %v2665 = vunpack.c.l.s4 1983009808
        %v2666 = vunpack.c.0.s8 %v2665
        %v2667 = vlaneseq
        %v2668 = vshrl.u32 %v2667, 7
        %v2669 = vsub.s32 %v2666, %v2668
        %v2670 = vrot.slane %v2353, %v2669
        %v2672 = vunpack.c.l.s4 1983009808
        %v2673 = vunpack.c.0.s8 %v2672
        %v2674 = vlaneseq
        %v2675 = vshrl.u32 %v2674, 7
        %v2676 = vsub.s32 %v2673, %v2675
        %v2677 = vrot.slane %v2663, %v2676
        %v2678 = vcombine.high %v2670, %v2670
        %v2679 = vcombine.high %v2677, %v2677
        %v2680 = vcombine.high %v2356, %v2356
        %v2682 = vunpack.c.l.s4 1983009808
        %v2683 = vunpack.c.0.s8 %v2682
        %v2684 = vlaneseq
        %v2685 = vshrl.u32 %v2684, 7
        %v2686 = vsub.s32 %v2683, %v2685
        %v2687 = vrot.slane %v2356, %v2686
        %v2689 = vunpack.c.l.s4 1983009808
        %v2690 = vunpack.c.0.s8 %v2689
        %v2691 = vlaneseq
        %v2692 = vshrl.u32 %v2691, 7
        %v2693 = vsub.s32 %v2690, %v2692
        %v2694 = vrot.slane %v2680, %v2693
        %v2695 = vcombine.high %v2687, %v2687
        %v2696 = vcombine.high %v2694, %v2694
        %v2697 = vcombine.high %v2359, %v2359
        %v2699 = vunpack.c.l.s4 1983009808
        %v2700 = vunpack.c.0.s8 %v2699
        %v2701 = vlaneseq
        %v2702 = vshrl.u32 %v2701, 7
        %v2703 = vsub.s32 %v2700, %v2702
        %v2704 = vrot.slane %v2359, %v2703
        %v2706 = vunpack.c.l.s4 1983009808
        %v2707 = vunpack.c.0.s8 %v2706
        %v2708 = vlaneseq
        %v2709 = vshrl.u32 %v2708, 7
        %v2710 = vsub.s32 %v2707, %v2709
        %v2711 = vrot.slane %v2697, %v2710
        %v2712 = vcombine.high %v2704, %v2704
        %v2713 = vcombine.high %v2711, %v2711
        %v2714 = vcombine.high %v2362, %v2362
        %v2716 = vunpack.c.l.s4 1983009808
        %v2717 = vunpack.c.0.s8 %v2716
        %v2718 = vlaneseq
        %v2719 = vshrl.u32 %v2718, 7
        %v2720 = vsub.s32 %v2717, %v2719
        %v2721 = vrot.slane %v2362, %v2720
        %v2723 = vunpack.c.l.s4 1983009808
        %v2724 = vunpack.c.0.s8 %v2723
        %v2725 = vlaneseq
        %v2726 = vshrl.u32 %v2725, 7
        %v2727 = vsub.s32 %v2724, %v2726
        %v2728 = vrot.slane %v2714, %v2727
        %v2729 = vcombine.high %v2721, %v2721
        %v2730 = vcombine.high %v2728, %v2728
        %v2731 = vcombine.high %v2365, %v2365
        %v2733 = vunpack.c.l.s4 1983009808
        %v2734 = vunpack.c.0.s8 %v2733
        %v2735 = vlaneseq
        %v2736 = vshrl.u32 %v2735, 7
        %v2737 = vsub.s32 %v2734, %v2736
        %v2738 = vrot.slane %v2365, %v2737
        %v2740 = vunpack.c.l.s4 1983009808
        %v2741 = vunpack.c.0.s8 %v2740
        %v2742 = vlaneseq
        %v2743 = vshrl.u32 %v2742, 7
        %v2744 = vsub.s32 %v2741, %v2743
        %v2745 = vrot.slane %v2731, %v2744
        %v2746 = vcombine.high %v2738, %v2738
        %v2747 = vcombine.high %v2745, %v2745
        %v2748 = vcombine.high %v2368, %v2368
        %v2750 = vunpack.c.l.s4 1983009808
        %v2751 = vunpack.c.0.s8 %v2750
        %v2752 = vlaneseq
        %v2753 = vshrl.u32 %v2752, 7
        %v2754 = vsub.s32 %v2751, %v2753
        %v2755 = vrot.slane %v2368, %v2754
        %v2757 = vunpack.c.l.s4 1983009808
        %v2758 = vunpack.c.0.s8 %v2757
        %v2759 = vlaneseq
        %v2760 = vshrl.u32 %v2759, 7
        %v2761 = vsub.s32 %v2758, %v2760
        %v2762 = vrot.slane %v2748, %v2761
        %v2763 = vcombine.high %v2755, %v2755
        %v2764 = vcombine.high %v2762, %v2762
        %v2765 = vcombine.high %v2371, %v2371
        %v2767 = vunpack.c.l.s4 1983009808
        %v2768 = vunpack.c.0.s8 %v2767
        %v2769 = vlaneseq
        %v2770 = vshrl.u32 %v2769, 7
        %v2771 = vsub.s32 %v2768, %v2770
        %v2772 = vrot.slane %v2371, %v2771
        %v2774 = vunpack.c.l.s4 1983009808
        %v2775 = vunpack.c.0.s8 %v2774
        %v2776 = vlaneseq
        %v2777 = vshrl.u32 %v2776, 7
        %v2778 = vsub.s32 %v2775, %v2777
        %v2779 = vrot.slane %v2765, %v2778
        %v2780 = vcombine.high %v2772, %v2772
        %v2781 = vcombine.high %v2779, %v2779
        %v2782 = vcombine.high %v2374, %v2374
        %v2784 = vunpack.c.l.s4 1983009808
        %v2785 = vunpack.c.0.s8 %v2784
        %v2786 = vlaneseq
        %v2787 = vshrl.u32 %v2786, 7
        %v2788 = vsub.s32 %v2785, %v2787
        %v2789 = vrot.slane %v2374, %v2788
        %v2791 = vunpack.c.l.s4 1983009808
        %v2792 = vunpack.c.0.s8 %v2791
        %v2793 = vlaneseq
        %v2794 = vshrl.u32 %v2793, 7
        %v2795 = vsub.s32 %v2792, %v2794
        %v2796 = vrot.slane %v2782, %v2795
        %v2797 = vcombine.high %v2789, %v2789
        %v2798 = vcombine.high %v2796, %v2796
        %v2799 = vcombine.high %v2377, %v2377
        %v2801 = vunpack.c.l.s4 1983009808
        %v2802 = vunpack.c.0.s8 %v2801
        %v2803 = vlaneseq
        %v2804 = vshrl.u32 %v2803, 7
        %v2805 = vsub.s32 %v2802, %v2804
        %v2806 = vrot.slane %v2377, %v2805
        %v2808 = vunpack.c.l.s4 1983009808
        %v2809 = vunpack.c.0.s8 %v2808
        %v2810 = vlaneseq
        %v2811 = vshrl.u32 %v2810, 7
        %v2812 = vsub.s32 %v2809, %v2811
        %v2813 = vrot.slane %v2799, %v2812
        %v2814 = vcombine.high %v2806, %v2806
        %v2815 = vcombine.high %v2813, %v2813
        %v2816 = vcombine.high %v2380, %v2380
        %v2818 = vunpack.c.l.s4 1983009808
        %v2819 = vunpack.c.0.s8 %v2818
        %v2820 = vlaneseq
        %v2821 = vshrl.u32 %v2820, 7
        %v2822 = vsub.s32 %v2819, %v2821
        %v2823 = vrot.slane %v2380, %v2822
        %v2825 = vunpack.c.l.s4 1983009808
        %v2826 = vunpack.c.0.s8 %v2825
        %v2827 = vlaneseq
        %v2828 = vshrl.u32 %v2827, 7
        %v2829 = vsub.s32 %v2826, %v2828
        %v2830 = vrot.slane %v2816, %v2829
        %v2831 = vcombine.high %v2823, %v2823
        %v2832 = vcombine.high %v2830, %v2830
        %v2833 = vcombine.high %v2383, %v2383
        %v2835 = vunpack.c.l.s4 1983009808
        %v2836 = vunpack.c.0.s8 %v2835
        %v2837 = vlaneseq
        %v2838 = vshrl.u32 %v2837, 7
        %v2839 = vsub.s32 %v2836, %v2838
        %v2840 = vrot.slane %v2383, %v2839
        %v2842 = vunpack.c.l.s4 1983009808
        %v2843 = vunpack.c.0.s8 %v2842
        %v2844 = vlaneseq
        %v2845 = vshrl.u32 %v2844, 7
        %v2846 = vsub.s32 %v2843, %v2845
        %v2847 = vrot.slane %v2833, %v2846
        %v2848 = vcombine.high %v2840, %v2840
        %v2849 = vcombine.high %v2847, %v2847
        %v2850 = vcombine.high %v2386, %v2386
        %v2852 = vunpack.c.l.s4 1983009808
        %v2853 = vunpack.c.0.s8 %v2852
        %v2854 = vlaneseq
        %v2855 = vshrl.u32 %v2854, 7
        %v2856 = vsub.s32 %v2853, %v2855
        %v2857 = vrot.slane %v2386, %v2856
        %v2859 = vunpack.c.l.s4 1983009808
        %v2860 = vunpack.c.0.s8 %v2859
        %v2861 = vlaneseq
        %v2862 = vshrl.u32 %v2861, 7
        %v2863 = vsub.s32 %v2860, %v2862
        %v2864 = vrot.slane %v2850, %v2863
        %v2865 = vcombine.high %v2857, %v2857
        %v2866 = vcombine.high %v2864, %v2864
        %v2867 = vcombine.high %v2389, %v2389
        %v2869 = vunpack.c.l.s4 1983009808
        %v2870 = vunpack.c.0.s8 %v2869
        %v2871 = vlaneseq
        %v2872 = vshrl.u32 %v2871, 7
        %v2873 = vsub.s32 %v2870, %v2872
        %v2874 = vrot.slane %v2389, %v2873
        %v2876 = vunpack.c.l.s4 1983009808
        %v2877 = vunpack.c.0.s8 %v2876
        %v2878 = vlaneseq
        %v2879 = vshrl.u32 %v2878, 7
        %v2880 = vsub.s32 %v2877, %v2879
        %v2881 = vrot.slane %v2867, %v2880
        %v2882 = vcombine.high %v2874, %v2874
        %v2883 = vcombine.high %v2881, %v2881
        %v2884 = vcombine.high %v2392, %v2392
        %v2886 = vunpack.c.l.s4 1983009808
        %v2887 = vunpack.c.0.s8 %v2886
        %v2888 = vlaneseq
        %v2889 = vshrl.u32 %v2888, 7
        %v2890 = vsub.s32 %v2887, %v2889
        %v2891 = vrot.slane %v2392, %v2890
        %v2893 = vunpack.c.l.s4 1983009808
        %v2894 = vunpack.c.0.s8 %v2893
        %v2895 = vlaneseq
        %v2896 = vshrl.u32 %v2895, 7
        %v2897 = vsub.s32 %v2894, %v2896
        %v2898 = vrot.slane %v2884, %v2897
        %v2899 = vcombine.high %v2891, %v2891
        %v2900 = vcombine.high %v2898, %v2898
        %v2901 = vcombine.high %v2395, %v2395
        %v2903 = vunpack.c.l.s4 1983009808
        %v2904 = vunpack.c.0.s8 %v2903
        %v2905 = vlaneseq
        %v2906 = vshrl.u32 %v2905, 7
        %v2907 = vsub.s32 %v2904, %v2906
        %v2908 = vrot.slane %v2395, %v2907
        %v2910 = vunpack.c.l.s4 1983009808
        %v2911 = vunpack.c.0.s8 %v2910
        %v2912 = vlaneseq
        %v2913 = vshrl.u32 %v2912, 7
        %v2914 = vsub.s32 %v2911, %v2913
        %v2915 = vrot.slane %v2901, %v2914
        %v2916 = vcombine.high %v2908, %v2908
        %v2917 = vcombine.high %v2915, %v2915
        %v2918 = vcombine.high %v2398, %v2398
        %v2920 = vunpack.c.l.s4 1983009808
        %v2921 = vunpack.c.0.s8 %v2920
        %v2922 = vlaneseq
        %v2923 = vshrl.u32 %v2922, 7
        %v2924 = vsub.s32 %v2921, %v2923
        %v2925 = vrot.slane %v2398, %v2924
        %v2927 = vunpack.c.l.s4 1983009808
        %v2928 = vunpack.c.0.s8 %v2927
        %v2929 = vlaneseq
        %v2930 = vshrl.u32 %v2929, 7
        %v2931 = vsub.s32 %v2928, %v2930
        %v2932 = vrot.slane %v2918, %v2931
        %v2933 = vcombine.high %v2925, %v2925
        %v2934 = vcombine.high %v2932, %v2932
        %v2935 = vcombine.high %v2401, %v2401
        %v2937 = vunpack.c.l.s4 1983009808
        %v2938 = vunpack.c.0.s8 %v2937
        %v2939 = vlaneseq
        %v2940 = vshrl.u32 %v2939, 7
        %v2941 = vsub.s32 %v2938, %v2940
        %v2942 = vrot.slane %v2401, %v2941
        %v2944 = vunpack.c.l.s4 1983009808
        %v2945 = vunpack.c.0.s8 %v2944
        %v2946 = vlaneseq
        %v2947 = vshrl.u32 %v2946, 7
        %v2948 = vsub.s32 %v2945, %v2947
        %v2949 = vrot.slane %v2935, %v2948
        %v2950 = vcombine.high %v2942, %v2942
        %v2951 = vcombine.high %v2949, %v2949
        %v2952 = vcombine.high %v2404, %v2404
        %v2954 = vunpack.c.l.s4 1983009808
        %v2955 = vunpack.c.0.s8 %v2954
        %v2956 = vlaneseq
        %v2957 = vshrl.u32 %v2956, 7
        %v2958 = vsub.s32 %v2955, %v2957
        %v2959 = vrot.slane %v2404, %v2958
        %v2961 = vunpack.c.l.s4 1983009808
        %v2962 = vunpack.c.0.s8 %v2961
        %v2963 = vlaneseq
        %v2964 = vshrl.u32 %v2963, 7
        %v2965 = vsub.s32 %v2962, %v2964
        %v2966 = vrot.slane %v2952, %v2965
        %v2967 = vcombine.high %v2959, %v2959
        %v2968 = vcombine.high %v2966, %v2966
        %v2969 = vcombine.high %v2407, %v2407
        %v2971 = vunpack.c.l.s4 1983009808
        %v2972 = vunpack.c.0.s8 %v2971
        %v2973 = vlaneseq
        %v2974 = vshrl.u32 %v2973, 7
        %v2975 = vsub.s32 %v2972, %v2974
        %v2976 = vrot.slane %v2407, %v2975
        %v2978 = vunpack.c.l.s4 1983009808
        %v2979 = vunpack.c.0.s8 %v2978
        %v2980 = vlaneseq
        %v2981 = vshrl.u32 %v2980, 7
        %v2982 = vsub.s32 %v2979, %v2981
        %v2983 = vrot.slane %v2969, %v2982
        %v2984 = vcombine.high %v2976, %v2976
        %v2985 = vcombine.high %v2983, %v2983
        %v2986 = vcombine.high %v2410, %v2410
        %v2988 = vunpack.c.l.s4 1983009808
        %v2989 = vunpack.c.0.s8 %v2988
        %v2990 = vlaneseq
        %v2991 = vshrl.u32 %v2990, 7
        %v2992 = vsub.s32 %v2989, %v2991
        %v2993 = vrot.slane %v2410, %v2992
        %v2995 = vunpack.c.l.s4 1983009808
        %v2996 = vunpack.c.0.s8 %v2995
        %v2997 = vlaneseq
        %v2998 = vshrl.u32 %v2997, 7
        %v2999 = vsub.s32 %v2996, %v2998
        %v3000 = vrot.slane %v2986, %v2999
        %v3001 = vcombine.high %v2993, %v2993
        %v3002 = vcombine.high %v3000, %v3000
        %v3003 = vcombine.high %v2413, %v2413
        %v3005 = vunpack.c.l.s4 1983009808
        %v3006 = vunpack.c.0.s8 %v3005
        %v3007 = vlaneseq
        %v3008 = vshrl.u32 %v3007, 7
        %v3009 = vsub.s32 %v3006, %v3008
        %v3010 = vrot.slane %v2413, %v3009
        %v3012 = vunpack.c.l.s4 1983009808
        %v3013 = vunpack.c.0.s8 %v3012
        %v3014 = vlaneseq
        %v3015 = vshrl.u32 %v3014, 7
        %v3016 = vsub.s32 %v3013, %v3015
        %v3017 = vrot.slane %v3003, %v3016
        %v3018 = vcombine.high %v3010, %v3010
        %v3019 = vcombine.high %v3017, %v3017
        %v3020 = vcombine.high %v2416, %v2416
        %v3022 = vunpack.c.l.s4 1983009808
        %v3023 = vunpack.c.0.s8 %v3022
        %v3024 = vlaneseq
        %v3025 = vshrl.u32 %v3024, 7
        %v3026 = vsub.s32 %v3023, %v3025
        %v3027 = vrot.slane %v2416, %v3026
        %v3029 = vunpack.c.l.s4 1983009808
        %v3030 = vunpack.c.0.s8 %v3029
        %v3031 = vlaneseq
        %v3032 = vshrl.u32 %v3031, 7
        %v3033 = vsub.s32 %v3030, %v3032
        %v3034 = vrot.slane %v3020, %v3033
        %v3035 = vcombine.high %v3027, %v3027
        %v3036 = vcombine.high %v3034, %v3034
        %v3037 = vcombine.high %v2419, %v2419
        %v3039 = vunpack.c.l.s4 1983009808
        %v3040 = vunpack.c.0.s8 %v3039
        %v3041 = vlaneseq
        %v3042 = vshrl.u32 %v3041, 7
        %v3043 = vsub.s32 %v3040, %v3042
        %v3044 = vrot.slane %v2419, %v3043
        %v3046 = vunpack.c.l.s4 1983009808
        %v3047 = vunpack.c.0.s8 %v3046
        %v3048 = vlaneseq
        %v3049 = vshrl.u32 %v3048, 7
        %v3050 = vsub.s32 %v3047, %v3049
        %v3051 = vrot.slane %v3037, %v3050
        %v3052 = vcombine.high %v3044, %v3044
        %v3053 = vcombine.high %v3051, %v3051
        %v3054 = vcombine.high %v2422, %v2422
        %v3056 = vunpack.c.l.s4 1983009808
        %v3057 = vunpack.c.0.s8 %v3056
        %v3058 = vlaneseq
        %v3059 = vshrl.u32 %v3058, 7
        %v3060 = vsub.s32 %v3057, %v3059
        %v3061 = vrot.slane %v2422, %v3060
        %v3063 = vunpack.c.l.s4 1983009808
        %v3064 = vunpack.c.0.s8 %v3063
        %v3065 = vlaneseq
        %v3066 = vshrl.u32 %v3065, 7
        %v3067 = vsub.s32 %v3064, %v3066
        %v3068 = vrot.slane %v3054, %v3067
        %v3069 = vcombine.high %v3061, %v3061
        %v3070 = vcombine.high %v3068, %v3068
        %v3071 = vcombine.high %v2425, %v2425
        %v3073 = vunpack.c.l.s4 1983009808
        %v3074 = vunpack.c.0.s8 %v3073
        %v3075 = vlaneseq
        %v3076 = vshrl.u32 %v3075, 7
        %v3077 = vsub.s32 %v3074, %v3076
        %v3078 = vrot.slane %v2425, %v3077
        %v3080 = vunpack.c.l.s4 1983009808
        %v3081 = vunpack.c.0.s8 %v3080
        %v3082 = vlaneseq
        %v3083 = vshrl.u32 %v3082, 7
        %v3084 = vsub.s32 %v3081, %v3083
        %v3085 = vrot.slane %v3071, %v3084
        %v3086 = vcombine.high %v3078, %v3078
        %v3087 = vcombine.high %v3085, %v3085
        %v3088 = vcombine.high %v2428, %v2428
        %v3090 = vunpack.c.l.s4 1983009808
        %v3091 = vunpack.c.0.s8 %v3090
        %v3092 = vlaneseq
        %v3093 = vshrl.u32 %v3092, 7
        %v3094 = vsub.s32 %v3091, %v3093
        %v3095 = vrot.slane %v2428, %v3094
        %v3097 = vunpack.c.l.s4 1983009808
        %v3098 = vunpack.c.0.s8 %v3097
        %v3099 = vlaneseq
        %v3100 = vshrl.u32 %v3099, 7
        %v3101 = vsub.s32 %v3098, %v3100
        %v3102 = vrot.slane %v3088, %v3101
        %v3103 = vcombine.high %v3095, %v3095
        %v3104 = vcombine.high %v3102, %v3102
        %v3105 = vcombine.high %v2431, %v2431
        %v3107 = vunpack.c.l.s4 1983009808
        %v3108 = vunpack.c.0.s8 %v3107
        %v3109 = vlaneseq
        %v3110 = vshrl.u32 %v3109, 7
        %v3111 = vsub.s32 %v3108, %v3110
        %v3112 = vrot.slane %v2431, %v3111
        %v3114 = vunpack.c.l.s4 1983009808
        %v3115 = vunpack.c.0.s8 %v3114
        %v3116 = vlaneseq
        %v3117 = vshrl.u32 %v3116, 7
        %v3118 = vsub.s32 %v3115, %v3117
        %v3119 = vrot.slane %v3105, %v3118
        %v3120 = vcombine.high %v3112, %v3112
        %v3121 = vcombine.high %v3119, %v3119
        %v3122 = vcombine.high %v2434, %v2434
        %v3124 = vunpack.c.l.s4 1983009808
        %v3125 = vunpack.c.0.s8 %v3124
        %v3126 = vlaneseq
        %v3127 = vshrl.u32 %v3126, 7
        %v3128 = vsub.s32 %v3125, %v3127
        %v3129 = vrot.slane %v2434, %v3128
        %v3131 = vunpack.c.l.s4 1983009808
        %v3132 = vunpack.c.0.s8 %v3131
        %v3133 = vlaneseq
        %v3134 = vshrl.u32 %v3133, 7
        %v3135 = vsub.s32 %v3132, %v3134
        %v3136 = vrot.slane %v3122, %v3135
        %v3137 = vcombine.high %v3129, %v3129
        %v3138 = vcombine.high %v3136, %v3136
        %v3139 = vcombine.high %v2437, %v2437
        %v3141 = vunpack.c.l.s4 1983009808
        %v3142 = vunpack.c.0.s8 %v3141
        %v3143 = vlaneseq
        %v3144 = vshrl.u32 %v3143, 7
        %v3145 = vsub.s32 %v3142, %v3144
        %v3146 = vrot.slane %v2437, %v3145
        %v3148 = vunpack.c.l.s4 1983009808
        %v3149 = vunpack.c.0.s8 %v3148
        %v3150 = vlaneseq
        %v3151 = vshrl.u32 %v3150, 7
        %v3152 = vsub.s32 %v3149, %v3151
        %v3153 = vrot.slane %v3139, %v3152
        %v3154 = vcombine.high %v3146, %v3146
        %v3155 = vcombine.high %v3153, %v3153
        %v3156 = vcombine.high %v2440, %v2440
        %v3158 = vunpack.c.l.s4 1983009808
        %v3159 = vunpack.c.0.s8 %v3158
        %v3160 = vlaneseq
        %v3161 = vshrl.u32 %v3160, 7
        %v3162 = vsub.s32 %v3159, %v3161
        %v3163 = vrot.slane %v2440, %v3162
        %v3165 = vunpack.c.l.s4 1983009808
        %v3166 = vunpack.c.0.s8 %v3165
        %v3167 = vlaneseq
        %v3168 = vshrl.u32 %v3167, 7
        %v3169 = vsub.s32 %v3166, %v3168
        %v3170 = vrot.slane %v3156, %v3169
        %v3171 = vcombine.high %v3163, %v3163
        %v3172 = vcombine.high %v3170, %v3170
        %v3173 = vcombine.high %v2443, %v2443
        %v3175 = vunpack.c.l.s4 1983009808
        %v3176 = vunpack.c.0.s8 %v3175
        %v3177 = vlaneseq
        %v3178 = vshrl.u32 %v3177, 7
        %v3179 = vsub.s32 %v3176, %v3178
        %v3180 = vrot.slane %v2443, %v3179
        %v3182 = vunpack.c.l.s4 1983009808
        %v3183 = vunpack.c.0.s8 %v3182
        %v3184 = vlaneseq
        %v3185 = vshrl.u32 %v3184, 7
        %v3186 = vsub.s32 %v3183, %v3185
        %v3187 = vrot.slane %v3173, %v3186
        %v3188 = vcombine.high %v3180, %v3180
        %v3189 = vcombine.high %v3187, %v3187
        %v3190 = vcombine.high %v2446, %v2446
        %v3192 = vunpack.c.l.s4 1983009808
        %v3193 = vunpack.c.0.s8 %v3192
        %v3194 = vlaneseq
        %v3195 = vshrl.u32 %v3194, 7
        %v3196 = vsub.s32 %v3193, %v3195
        %v3197 = vrot.slane %v2446, %v3196
        %v3199 = vunpack.c.l.s4 1983009808
        %v3200 = vunpack.c.0.s8 %v3199
        %v3201 = vlaneseq
        %v3202 = vshrl.u32 %v3201, 7
        %v3203 = vsub.s32 %v3200, %v3202
        %v3204 = vrot.slane %v3190, %v3203
        %v3205 = vcombine.high %v3197, %v3197
        %v3206 = vcombine.high %v3204, %v3204
        %v3207 = vcombine.high %v2449, %v2449
        %v3209 = vunpack.c.l.s4 1983009808
        %v3210 = vunpack.c.0.s8 %v3209
        %v3211 = vlaneseq
        %v3212 = vshrl.u32 %v3211, 7
        %v3213 = vsub.s32 %v3210, %v3212
        %v3214 = vrot.slane %v2449, %v3213
        %v3216 = vunpack.c.l.s4 1983009808
        %v3217 = vunpack.c.0.s8 %v3216
        %v3218 = vlaneseq
        %v3219 = vshrl.u32 %v3218, 7
        %v3220 = vsub.s32 %v3217, %v3219
        %v3221 = vrot.slane %v3207, %v3220
        %v3222 = vcombine.high %v3214, %v3214
        %v3223 = vcombine.high %v3221, %v3221
        %v3224 = vcombine.high %v2452, %v2452
        %v3226 = vunpack.c.l.s4 1983009808
        %v3227 = vunpack.c.0.s8 %v3226
        %v3228 = vlaneseq
        %v3229 = vshrl.u32 %v3228, 7
        %v3230 = vsub.s32 %v3227, %v3229
        %v3231 = vrot.slane %v2452, %v3230
        %v3233 = vunpack.c.l.s4 1983009808
        %v3234 = vunpack.c.0.s8 %v3233
        %v3235 = vlaneseq
        %v3236 = vshrl.u32 %v3235, 7
        %v3237 = vsub.s32 %v3234, %v3236
        %v3238 = vrot.slane %v3224, %v3237
        %v3239 = vcombine.high %v3231, %v3231
        %v3240 = vcombine.high %v3238, %v3238
        %v3241 = vcombine.high %v2455, %v2455
        %v3243 = vunpack.c.l.s4 1983009808
        %v3244 = vunpack.c.0.s8 %v3243
        %v3245 = vlaneseq
        %v3246 = vshrl.u32 %v3245, 7
        %v3247 = vsub.s32 %v3244, %v3246
        %v3248 = vrot.slane %v2455, %v3247
        %v3250 = vunpack.c.l.s4 1983009808
        %v3251 = vunpack.c.0.s8 %v3250
        %v3252 = vlaneseq
        %v3253 = vshrl.u32 %v3252, 7
        %v3254 = vsub.s32 %v3251, %v3253
        %v3255 = vrot.slane %v3241, %v3254
        %v3256 = vcombine.high %v3248, %v3248
        %v3257 = vcombine.high %v3255, %v3255
        %v3258 = vcombine.high %v2458, %v2458
        %v3260 = vunpack.c.l.s4 1983009808
        %v3261 = vunpack.c.0.s8 %v3260
        %v3262 = vlaneseq
        %v3263 = vshrl.u32 %v3262, 7
        %v3264 = vsub.s32 %v3261, %v3263
        %v3265 = vrot.slane %v2458, %v3264
        %v3267 = vunpack.c.l.s4 1983009808
        %v3268 = vunpack.c.0.s8 %v3267
        %v3269 = vlaneseq
        %v3270 = vshrl.u32 %v3269, 7
        %v3271 = vsub.s32 %v3268, %v3270
        %v3272 = vrot.slane %v3258, %v3271
        %v3273 = vcombine.high %v3265, %v3265
        %v3274 = vcombine.high %v3272, %v3272
        %v3275 = vcombine.high %v2461, %v2461
        %v3277 = vunpack.c.l.s4 1983009808
        %v3278 = vunpack.c.0.s8 %v3277
        %v3279 = vlaneseq
        %v3280 = vshrl.u32 %v3279, 7
        %v3281 = vsub.s32 %v3278, %v3280
        %v3282 = vrot.slane %v2461, %v3281
        %v3284 = vunpack.c.l.s4 1983009808
        %v3285 = vunpack.c.0.s8 %v3284
        %v3286 = vlaneseq
        %v3287 = vshrl.u32 %v3286, 7
        %v3288 = vsub.s32 %v3285, %v3287
        %v3289 = vrot.slane %v3275, %v3288
        %v3290 = vcombine.high %v3282, %v3282
        %v3291 = vcombine.high %v3289, %v3289
        %v3292 = vcombine.high %v2464, %v2464
        %v3294 = vunpack.c.l.s4 1983009808
        %v3295 = vunpack.c.0.s8 %v3294
        %v3296 = vlaneseq
        %v3297 = vshrl.u32 %v3296, 7
        %v3298 = vsub.s32 %v3295, %v3297
        %v3299 = vrot.slane %v2464, %v3298
        %v3301 = vunpack.c.l.s4 1983009808
        %v3302 = vunpack.c.0.s8 %v3301
        %v3303 = vlaneseq
        %v3304 = vshrl.u32 %v3303, 7
        %v3305 = vsub.s32 %v3302, %v3304
        %v3306 = vrot.slane %v3292, %v3305
        %v3307 = vcombine.high %v3299, %v3299
        %v3308 = vcombine.high %v3306, %v3306
        %v3309 = vcombine.high %v2467, %v2467
        %v3311 = vunpack.c.l.s4 1983009808
        %v3312 = vunpack.c.0.s8 %v3311
        %v3313 = vlaneseq
        %v3314 = vshrl.u32 %v3313, 7
        %v3315 = vsub.s32 %v3312, %v3314
        %v3316 = vrot.slane %v2467, %v3315
        %v3318 = vunpack.c.l.s4 1983009808
        %v3319 = vunpack.c.0.s8 %v3318
        %v3320 = vlaneseq
        %v3321 = vshrl.u32 %v3320, 7
        %v3322 = vsub.s32 %v3319, %v3321
        %v3323 = vrot.slane %v3309, %v3322
        %v3324 = vcombine.high %v3316, %v3316
        %v3325 = vcombine.high %v3323, %v3323
        %v3326 = vcombine.high %v2470, %v2470
        %v3328 = vunpack.c.l.s4 1983009808
        %v3329 = vunpack.c.0.s8 %v3328
        %v3330 = vlaneseq
        %v3331 = vshrl.u32 %v3330, 7
        %v3332 = vsub.s32 %v3329, %v3331
        %v3333 = vrot.slane %v2470, %v3332
        %v3335 = vunpack.c.l.s4 1983009808
        %v3336 = vunpack.c.0.s8 %v3335
        %v3337 = vlaneseq
        %v3338 = vshrl.u32 %v3337, 7
        %v3339 = vsub.s32 %v3336, %v3338
        %v3340 = vrot.slane %v3326, %v3339
        %v3341 = vcombine.high %v3333, %v3333
        %v3342 = vcombine.high %v3340, %v3340
        %v3343 = vcombine.high %v2473, %v2473
        %v3345 = vunpack.c.l.s4 1983009808
        %v3346 = vunpack.c.0.s8 %v3345
        %v3347 = vlaneseq
        %v3348 = vshrl.u32 %v3347, 7
        %v3349 = vsub.s32 %v3346, %v3348
        %v3350 = vrot.slane %v2473, %v3349
        %v3352 = vunpack.c.l.s4 1983009808
        %v3353 = vunpack.c.0.s8 %v3352
        %v3354 = vlaneseq
        %v3355 = vshrl.u32 %v3354, 7
        %v3356 = vsub.s32 %v3353, %v3355
        %v3357 = vrot.slane %v3343, %v3356
        %v3358 = vcombine.high %v3350, %v3350
        %v3359 = vcombine.high %v3357, %v3357
        %v3360 = vcombine.high %v2476, %v2476
        %v3362 = vunpack.c.l.s4 1983009808
        %v3363 = vunpack.c.0.s8 %v3362
        %v3364 = vlaneseq
        %v3365 = vshrl.u32 %v3364, 7
        %v3366 = vsub.s32 %v3363, %v3365
        %v3367 = vrot.slane %v2476, %v3366
        %v3369 = vunpack.c.l.s4 1983009808
        %v3370 = vunpack.c.0.s8 %v3369
        %v3371 = vlaneseq
        %v3372 = vshrl.u32 %v3371, 7
        %v3373 = vsub.s32 %v3370, %v3372
        %v3374 = vrot.slane %v3360, %v3373
        %v3375 = vcombine.high %v3367, %v3367
        %v3376 = vcombine.high %v3374, %v3374
        %v3377 = vcombine.high %v2479, %v2479
        %v3379 = vunpack.c.l.s4 1983009808
        %v3380 = vunpack.c.0.s8 %v3379
        %v3381 = vlaneseq
        %v3382 = vshrl.u32 %v3381, 7
        %v3383 = vsub.s32 %v3380, %v3382
        %v3384 = vrot.slane %v2479, %v3383
        %v3386 = vunpack.c.l.s4 1983009808
        %v3387 = vunpack.c.0.s8 %v3386
        %v3388 = vlaneseq
        %v3389 = vshrl.u32 %v3388, 7
        %v3390 = vsub.s32 %v3387, %v3389
        %v3391 = vrot.slane %v3377, %v3390
        %v3392 = vcombine.high %v3384, %v3384
        %v3393 = vcombine.high %v3391, %v3391
        %v3394 = vcombine.high %v2482, %v2482
        %v3396 = vunpack.c.l.s4 1983009808
        %v3397 = vunpack.c.0.s8 %v3396
        %v3398 = vlaneseq
        %v3399 = vshrl.u32 %v3398, 7
        %v3400 = vsub.s32 %v3397, %v3399
        %v3401 = vrot.slane %v2482, %v3400
        %v3403 = vunpack.c.l.s4 1983009808
        %v3404 = vunpack.c.0.s8 %v3403
        %v3405 = vlaneseq
        %v3406 = vshrl.u32 %v3405, 7
        %v3407 = vsub.s32 %v3404, %v3406
        %v3408 = vrot.slane %v3394, %v3407
        %v3409 = vcombine.high %v3401, %v3401
        %v3410 = vcombine.high %v3408, %v3408
        %v3411 = vcombine.high %v2485, %v2485
        %v3413 = vunpack.c.l.s4 1983009808
        %v3414 = vunpack.c.0.s8 %v3413
        %v3415 = vlaneseq
        %v3416 = vshrl.u32 %v3415, 7
        %v3417 = vsub.s32 %v3414, %v3416
        %v3418 = vrot.slane %v2485, %v3417
        %v3420 = vunpack.c.l.s4 1983009808
        %v3421 = vunpack.c.0.s8 %v3420
        %v3422 = vlaneseq
        %v3423 = vshrl.u32 %v3422, 7
        %v3424 = vsub.s32 %v3421, %v3423
        %v3425 = vrot.slane %v3411, %v3424
        %v3426 = vcombine.high %v3418, %v3418
        %v3427 = vcombine.high %v3425, %v3425
        %v3428 = vcombine.high %v2488, %v2488
        %v3430 = vunpack.c.l.s4 1983009808
        %v3431 = vunpack.c.0.s8 %v3430
        %v3432 = vlaneseq
        %v3433 = vshrl.u32 %v3432, 7
        %v3434 = vsub.s32 %v3431, %v3433
        %v3435 = vrot.slane %v2488, %v3434
        %v3437 = vunpack.c.l.s4 1983009808
        %v3438 = vunpack.c.0.s8 %v3437
        %v3439 = vlaneseq
        %v3440 = vshrl.u32 %v3439, 7
        %v3441 = vsub.s32 %v3438, %v3440
        %v3442 = vrot.slane %v3428, %v3441
        %v3443 = vcombine.high %v3435, %v3435
        %v3444 = vcombine.high %v3442, %v3442
        %v3445 = vcombine.high %v2491, %v2491
        %v3447 = vunpack.c.l.s4 1983009808
        %v3448 = vunpack.c.0.s8 %v3447
        %v3449 = vlaneseq
        %v3450 = vshrl.u32 %v3449, 7
        %v3451 = vsub.s32 %v3448, %v3450
        %v3452 = vrot.slane %v2491, %v3451
        %v3454 = vunpack.c.l.s4 1983009808
        %v3455 = vunpack.c.0.s8 %v3454
        %v3456 = vlaneseq
        %v3457 = vshrl.u32 %v3456, 7
        %v3458 = vsub.s32 %v3455, %v3457
        %v3459 = vrot.slane %v3445, %v3458
        %v3460 = vcombine.high %v3452, %v3452
        %v3461 = vcombine.high %v3459, %v3459
        %v3462 = vcombine.high %v2494, %v2494
        %v3464 = vunpack.c.l.s4 1983009808
        %v3465 = vunpack.c.0.s8 %v3464
        %v3466 = vlaneseq
        %v3467 = vshrl.u32 %v3466, 7
        %v3468 = vsub.s32 %v3465, %v3467
        %v3469 = vrot.slane %v2494, %v3468
        %v3471 = vunpack.c.l.s4 1983009808
        %v3472 = vunpack.c.0.s8 %v3471
        %v3473 = vlaneseq
        %v3474 = vshrl.u32 %v3473, 7
        %v3475 = vsub.s32 %v3472, %v3474
        %v3476 = vrot.slane %v3462, %v3475
        %v3477 = vcombine.high %v3469, %v3469
        %v3478 = vcombine.high %v3476, %v3476
        %v3479 = vcombine.high %v2497, %v2497
        %v3481 = vunpack.c.l.s4 1983009808
        %v3482 = vunpack.c.0.s8 %v3481
        %v3483 = vlaneseq
        %v3484 = vshrl.u32 %v3483, 7
        %v3485 = vsub.s32 %v3482, %v3484
        %v3486 = vrot.slane %v2497, %v3485
        %v3488 = vunpack.c.l.s4 1983009808
        %v3489 = vunpack.c.0.s8 %v3488
        %v3490 = vlaneseq
        %v3491 = vshrl.u32 %v3490, 7
        %v3492 = vsub.s32 %v3489, %v3491
        %v3493 = vrot.slane %v3479, %v3492
        %v3494 = vcombine.high %v3486, %v3486
        %v3495 = vcombine.high %v3493, %v3493
        %v3496 = vcombine.high %v2500, %v2500
        %v3498 = vunpack.c.l.s4 1983009808
        %v3499 = vunpack.c.0.s8 %v3498
        %v3500 = vlaneseq
        %v3501 = vshrl.u32 %v3500, 7
        %v3502 = vsub.s32 %v3499, %v3501
        %v3503 = vrot.slane %v2500, %v3502
        %v3505 = vunpack.c.l.s4 1983009808
        %v3506 = vunpack.c.0.s8 %v3505
        %v3507 = vlaneseq
        %v3508 = vshrl.u32 %v3507, 7
        %v3509 = vsub.s32 %v3506, %v3508
        %v3510 = vrot.slane %v3496, %v3509
        %v3511 = vcombine.high %v3503, %v3503
        %v3512 = vcombine.high %v3510, %v3510
        %v3513 = vcombine.high %v2503, %v2503
        %v3515 = vunpack.c.l.s4 1983009808
        %v3516 = vunpack.c.0.s8 %v3515
        %v3517 = vlaneseq
        %v3518 = vshrl.u32 %v3517, 7
        %v3519 = vsub.s32 %v3516, %v3518
        %v3520 = vrot.slane %v2503, %v3519
        %v3522 = vunpack.c.l.s4 1983009808
        %v3523 = vunpack.c.0.s8 %v3522
        %v3524 = vlaneseq
        %v3525 = vshrl.u32 %v3524, 7
        %v3526 = vsub.s32 %v3523, %v3525
        %v3527 = vrot.slane %v3513, %v3526
        %v3528 = vcombine.high %v3520, %v3520
        %v3529 = vcombine.high %v3527, %v3527
        %v3530 = vcombine.high %v2506, %v2506
        %v3532 = vunpack.c.l.s4 1983009808
        %v3533 = vunpack.c.0.s8 %v3532
        %v3534 = vlaneseq
        %v3535 = vshrl.u32 %v3534, 7
        %v3536 = vsub.s32 %v3533, %v3535
        %v3537 = vrot.slane %v2506, %v3536
        %v3539 = vunpack.c.l.s4 1983009808
        %v3540 = vunpack.c.0.s8 %v3539
        %v3541 = vlaneseq
        %v3542 = vshrl.u32 %v3541, 7
        %v3543 = vsub.s32 %v3540, %v3542
        %v3544 = vrot.slane %v3530, %v3543
        %v3545 = vcombine.high %v3537, %v3537
        %v3546 = vcombine.high %v3544, %v3544
        %v3547 = vcombine.high %v2509, %v2509
        %v3549 = vunpack.c.l.s4 1983009808
        %v3550 = vunpack.c.0.s8 %v3549
        %v3551 = vlaneseq
        %v3552 = vshrl.u32 %v3551, 7
        %v3553 = vsub.s32 %v3550, %v3552
        %v3554 = vrot.slane %v2509, %v3553
        %v3556 = vunpack.c.l.s4 1983009808
        %v3557 = vunpack.c.0.s8 %v3556
        %v3558 = vlaneseq
        %v3559 = vshrl.u32 %v3558, 7
        %v3560 = vsub.s32 %v3557, %v3559
        %v3561 = vrot.slane %v3547, %v3560
        %v3562 = vcombine.high %v3554, %v3554
        %v3563 = vcombine.high %v3561, %v3561
        %v3564 = vcombine.high %v2512, %v2512
        %v3566 = vunpack.c.l.s4 1983009808
        %v3567 = vunpack.c.0.s8 %v3566
        %v3568 = vlaneseq
        %v3569 = vshrl.u32 %v3568, 7
        %v3570 = vsub.s32 %v3567, %v3569
        %v3571 = vrot.slane %v2512, %v3570
        %v3573 = vunpack.c.l.s4 1983009808
        %v3574 = vunpack.c.0.s8 %v3573
        %v3575 = vlaneseq
        %v3576 = vshrl.u32 %v3575, 7
        %v3577 = vsub.s32 %v3574, %v3576
        %v3578 = vrot.slane %v3564, %v3577
        %v3579 = vcombine.high %v3571, %v3571
        %v3580 = vcombine.high %v3578, %v3578
        %v3581 = vcombine.high %v2515, %v2515
        %v3583 = vunpack.c.l.s4 1983009808
        %v3584 = vunpack.c.0.s8 %v3583
        %v3585 = vlaneseq
        %v3586 = vshrl.u32 %v3585, 7
        %v3587 = vsub.s32 %v3584, %v3586
        %v3588 = vrot.slane %v2515, %v3587
        %v3590 = vunpack.c.l.s4 1983009808
        %v3591 = vunpack.c.0.s8 %v3590
        %v3592 = vlaneseq
        %v3593 = vshrl.u32 %v3592, 7
        %v3594 = vsub.s32 %v3591, %v3593
        %v3595 = vrot.slane %v3581, %v3594
        %v3596 = vcombine.high %v3588, %v3588
        %v3597 = vcombine.high %v3595, %v3595
        %v3598 = vcombine.high %v2518, %v2518
        %v3600 = vunpack.c.l.s4 1983009808
        %v3601 = vunpack.c.0.s8 %v3600
        %v3602 = vlaneseq
        %v3603 = vshrl.u32 %v3602, 7
        %v3604 = vsub.s32 %v3601, %v3603
        %v3605 = vrot.slane %v2518, %v3604
        %v3607 = vunpack.c.l.s4 1983009808
        %v3608 = vunpack.c.0.s8 %v3607
        %v3609 = vlaneseq
        %v3610 = vshrl.u32 %v3609, 7
        %v3611 = vsub.s32 %v3608, %v3610
        %v3612 = vrot.slane %v3598, %v3611
        %v3613 = vcombine.high %v3605, %v3605
        %v3614 = vcombine.high %v3612, %v3612
        %v3615 = vcombine.high %v2521, %v2521
        %v3617 = vunpack.c.l.s4 1983009808
        %v3618 = vunpack.c.0.s8 %v3617
        %v3619 = vlaneseq
        %v3620 = vshrl.u32 %v3619, 7
        %v3621 = vsub.s32 %v3618, %v3620
        %v3622 = vrot.slane %v2521, %v3621
        %v3624 = vunpack.c.l.s4 1983009808
        %v3625 = vunpack.c.0.s8 %v3624
        %v3626 = vlaneseq
        %v3627 = vshrl.u32 %v3626, 7
        %v3628 = vsub.s32 %v3625, %v3627
        %v3629 = vrot.slane %v3615, %v3628
        %v3630 = vcombine.high %v3622, %v3622
        %v3631 = vcombine.high %v3629, %v3629
        %v3632 = vcombine.high %v2524, %v2524
        %v3634 = vunpack.c.l.s4 1983009808
        %v3635 = vunpack.c.0.s8 %v3634
        %v3636 = vlaneseq
        %v3637 = vshrl.u32 %v3636, 7
        %v3638 = vsub.s32 %v3635, %v3637
        %v3639 = vrot.slane %v2524, %v3638
        %v3641 = vunpack.c.l.s4 1983009808
        %v3642 = vunpack.c.0.s8 %v3641
        %v3643 = vlaneseq
        %v3644 = vshrl.u32 %v3643, 7
        %v3645 = vsub.s32 %v3642, %v3644
        %v3646 = vrot.slane %v3632, %v3645
        %v3647 = vcombine.high %v3639, %v3639
        %v3648 = vcombine.high %v3646, %v3646
        %v3649 = vcombine.high %v2527, %v2527
        %v3651 = vunpack.c.l.s4 1983009808
        %v3652 = vunpack.c.0.s8 %v3651
        %v3653 = vlaneseq
        %v3654 = vshrl.u32 %v3653, 7
        %v3655 = vsub.s32 %v3652, %v3654
        %v3656 = vrot.slane %v2527, %v3655
        %v3658 = vunpack.c.l.s4 1983009808
        %v3659 = vunpack.c.0.s8 %v3658
        %v3660 = vlaneseq
        %v3661 = vshrl.u32 %v3660, 7
        %v3662 = vsub.s32 %v3659, %v3661
        %v3663 = vrot.slane %v3649, %v3662
        %v3664 = vcombine.high %v3656, %v3656
        %v3665 = vcombine.high %v3663, %v3663
        %v3666 = vcombine.high %v2530, %v2530
        %v3668 = vunpack.c.l.s4 1983009808
        %v3669 = vunpack.c.0.s8 %v3668
        %v3670 = vlaneseq
        %v3671 = vshrl.u32 %v3670, 7
        %v3672 = vsub.s32 %v3669, %v3671
        %v3673 = vrot.slane %v2530, %v3672
        %v3675 = vunpack.c.l.s4 1983009808
        %v3676 = vunpack.c.0.s8 %v3675
        %v3677 = vlaneseq
        %v3678 = vshrl.u32 %v3677, 7
        %v3679 = vsub.s32 %v3676, %v3678
        %v3680 = vrot.slane %v3666, %v3679
        %v3681 = vcombine.high %v3673, %v3673
        %v3682 = vcombine.high %v3680, %v3680
        %vm3939 = vcmask 254976
        %v3940 = vsel %vm3939, %v2602, -inf
        %v3941 = vrot.slane %v3940, 4
        %v3942 = vmax.f32 %v3940, %v3941
        %v3943 = vrot.slane %v3942, 2
        %v3944 = vmax.f32 %v3942, %v3943
        %v3945 = vrot.slane %v3944, 1
        %v3946 = vmax.f32 %v3944, %v3945
        %v3947 = vsel %vm3939, %v2610, -inf
        %v3948 = vrot.slane %v3947, 4
        %v3949 = vmax.f32 %v3947, %v3948
        %v3950 = vrot.slane %v3949, 2
        %v3951 = vmax.f32 %v3949, %v3950
        %v3952 = vrot.slane %v3951, 1
        %v3953 = vmax.f32 %v3951, %v3952
        %v3954 = vsel %vm3939, %v2609, -inf
        %v3955 = vrot.slane %v3954, 4
        %v3956 = vmax.f32 %v3954, %v3955
        %v3957 = vrot.slane %v3956, 2
        %v3958 = vmax.f32 %v3956, %v3957
        %v3959 = vrot.slane %v3958, 1
        %v3960 = vmax.f32 %v3958, %v3959
        %v3961 = vsel %vm3939, %v2611, -inf
        %v3962 = vrot.slane %v3961, 4
        %v3963 = vmax.f32 %v3961, %v3962
        %v3964 = vrot.slane %v3963, 2
        %v3965 = vmax.f32 %v3963, %v3964
        %v3966 = vrot.slane %v3965, 1
        %v3967 = vmax.f32 %v3965, %v3966
        %v3968 = vsel %vm3939, %v2619, -inf
        %v3969 = vrot.slane %v3968, 4
        %v3970 = vmax.f32 %v3968, %v3969
        %v3971 = vrot.slane %v3970, 2
        %v3972 = vmax.f32 %v3970, %v3971
        %v3973 = vrot.slane %v3972, 1
        %v3974 = vmax.f32 %v3972, %v3973
        %v3975 = vsel %vm3939, %v2627, -inf
        %v3976 = vrot.slane %v3975, 4
        %v3977 = vmax.f32 %v3975, %v3976
        %v3978 = vrot.slane %v3977, 2
        %v3979 = vmax.f32 %v3977, %v3978
        %v3980 = vrot.slane %v3979, 1
        %v3981 = vmax.f32 %v3979, %v3980
        %v3982 = vsel %vm3939, %v2626, -inf
        %v3983 = vrot.slane %v3982, 4
        %v3984 = vmax.f32 %v3982, %v3983
        %v3985 = vrot.slane %v3984, 2
        %v3986 = vmax.f32 %v3984, %v3985
        %v3987 = vrot.slane %v3986, 1
        %v3988 = vmax.f32 %v3986, %v3987
        %v3989 = vsel %vm3939, %v2628, -inf
        %v3990 = vrot.slane %v3989, 4
        %v3991 = vmax.f32 %v3989, %v3990
        %v3992 = vrot.slane %v3991, 2
        %v3993 = vmax.f32 %v3991, %v3992
        %v3994 = vrot.slane %v3993, 1
        %v3995 = vmax.f32 %v3993, %v3994
        %v3996 = vsel %vm3939, %v2636, -inf
        %v3997 = vrot.slane %v3996, 4
        %v3998 = vmax.f32 %v3996, %v3997
        %v3999 = vrot.slane %v3998, 2
        %v4000 = vmax.f32 %v3998, %v3999
        %v4001 = vrot.slane %v4000, 1
        %v4002 = vmax.f32 %v4000, %v4001
        %v4003 = vsel %vm3939, %v2644, -inf
        %v4004 = vrot.slane %v4003, 4
        %v4005 = vmax.f32 %v4003, %v4004
        %v4006 = vrot.slane %v4005, 2
        %v4007 = vmax.f32 %v4005, %v4006
        %v4008 = vrot.slane %v4007, 1
        %v4009 = vmax.f32 %v4007, %v4008
        %v4010 = vsel %vm3939, %v2643, -inf
        %v4011 = vrot.slane %v4010, 4
        %v4012 = vmax.f32 %v4010, %v4011
        %v4013 = vrot.slane %v4012, 2
        %v4014 = vmax.f32 %v4012, %v4013
        %v4015 = vrot.slane %v4014, 1
        %v4016 = vmax.f32 %v4014, %v4015
        %v4017 = vsel %vm3939, %v2645, -inf
        %v4018 = vrot.slane %v4017, 4
        %v4019 = vmax.f32 %v4017, %v4018
        %v4020 = vrot.slane %v4019, 2
        %v4021 = vmax.f32 %v4019, %v4020
        %v4022 = vrot.slane %v4021, 1
        %v4023 = vmax.f32 %v4021, %v4022
        %v4024 = vsel %vm3939, %v2653, -inf
        %v4025 = vrot.slane %v4024, 4
        %v4026 = vmax.f32 %v4024, %v4025
        %v4027 = vrot.slane %v4026, 2
        %v4028 = vmax.f32 %v4026, %v4027
        %v4029 = vrot.slane %v4028, 1
        %v4030 = vmax.f32 %v4028, %v4029
        %v4031 = vsel %vm3939, %v2661, -inf
        %v4032 = vrot.slane %v4031, 4
        %v4033 = vmax.f32 %v4031, %v4032
        %v4034 = vrot.slane %v4033, 2
        %v4035 = vmax.f32 %v4033, %v4034
        %v4036 = vrot.slane %v4035, 1
        %v4037 = vmax.f32 %v4035, %v4036
        %v4038 = vsel %vm3939, %v2660, -inf
        %v4039 = vrot.slane %v4038, 4
        %v4040 = vmax.f32 %v4038, %v4039
        %v4041 = vrot.slane %v4040, 2
        %v4042 = vmax.f32 %v4040, %v4041
        %v4043 = vrot.slane %v4042, 1
        %v4044 = vmax.f32 %v4042, %v4043
        %v4045 = vsel %vm3939, %v2662, -inf
        %v4046 = vrot.slane %v4045, 4
        %v4047 = vmax.f32 %v4045, %v4046
        %v4048 = vrot.slane %v4047, 2
        %v4049 = vmax.f32 %v4047, %v4048
        %v4050 = vrot.slane %v4049, 1
        %v4051 = vmax.f32 %v4049, %v4050
        %v4052 = vsel %vm3939, %v2670, -inf
        %v4053 = vrot.slane %v4052, 4
        %v4054 = vmax.f32 %v4052, %v4053
        %v4055 = vrot.slane %v4054, 2
        %v4056 = vmax.f32 %v4054, %v4055
        %v4057 = vrot.slane %v4056, 1
        %v4058 = vmax.f32 %v4056, %v4057
        %v4059 = vsel %vm3939, %v2678, -inf
        %v4060 = vrot.slane %v4059, 4
        %v4061 = vmax.f32 %v4059, %v4060
        %v4062 = vrot.slane %v4061, 2
        %v4063 = vmax.f32 %v4061, %v4062
        %v4064 = vrot.slane %v4063, 1
        %v4065 = vmax.f32 %v4063, %v4064
        %v4066 = vsel %vm3939, %v2677, -inf
        %v4067 = vrot.slane %v4066, 4
        %v4068 = vmax.f32 %v4066, %v4067
        %v4069 = vrot.slane %v4068, 2
        %v4070 = vmax.f32 %v4068, %v4069
        %v4071 = vrot.slane %v4070, 1
        %v4072 = vmax.f32 %v4070, %v4071
        %v4073 = vsel %vm3939, %v2679, -inf
        %v4074 = vrot.slane %v4073, 4
        %v4075 = vmax.f32 %v4073, %v4074
        %v4076 = vrot.slane %v4075, 2
        %v4077 = vmax.f32 %v4075, %v4076
        %v4078 = vrot.slane %v4077, 1
        %v4079 = vmax.f32 %v4077, %v4078
        %v4080 = vsel %vm3939, %v2687, -inf
        %v4081 = vrot.slane %v4080, 4
        %v4082 = vmax.f32 %v4080, %v4081
        %v4083 = vrot.slane %v4082, 2
        %v4084 = vmax.f32 %v4082, %v4083
        %v4085 = vrot.slane %v4084, 1
        %v4086 = vmax.f32 %v4084, %v4085
        %v4087 = vsel %vm3939, %v2695, -inf
        %v4088 = vrot.slane %v4087, 4
        %v4089 = vmax.f32 %v4087, %v4088
        %v4090 = vrot.slane %v4089, 2
        %v4091 = vmax.f32 %v4089, %v4090
        %v4092 = vrot.slane %v4091, 1
        %v4093 = vmax.f32 %v4091, %v4092
        %v4094 = vsel %vm3939, %v2694, -inf
        %v4095 = vrot.slane %v4094, 4
        %v4096 = vmax.f32 %v4094, %v4095
        %v4097 = vrot.slane %v4096, 2
        %v4098 = vmax.f32 %v4096, %v4097
        %v4099 = vrot.slane %v4098, 1
        %v4100 = vmax.f32 %v4098, %v4099
        %v4101 = vsel %vm3939, %v2696, -inf
        %v4102 = vrot.slane %v4101, 4
        %v4103 = vmax.f32 %v4101, %v4102
        %v4104 = vrot.slane %v4103, 2
        %v4105 = vmax.f32 %v4103, %v4104
        %v4106 = vrot.slane %v4105, 1
        %v4107 = vmax.f32 %v4105, %v4106
        %v4108 = vsel %vm3939, %v2704, -inf
        %v4109 = vrot.slane %v4108, 4
        %v4110 = vmax.f32 %v4108, %v4109
        %v4111 = vrot.slane %v4110, 2
        %v4112 = vmax.f32 %v4110, %v4111
        %v4113 = vrot.slane %v4112, 1
        %v4114 = vmax.f32 %v4112, %v4113
        %v4115 = vsel %vm3939, %v2712, -inf
        %v4116 = vrot.slane %v4115, 4
        %v4117 = vmax.f32 %v4115, %v4116
        %v4118 = vrot.slane %v4117, 2
        %v4119 = vmax.f32 %v4117, %v4118
        %v4120 = vrot.slane %v4119, 1
        %v4121 = vmax.f32 %v4119, %v4120
        %v4122 = vsel %vm3939, %v2711, -inf
        %v4123 = vrot.slane %v4122, 4
        %v4124 = vmax.f32 %v4122, %v4123
        %v4125 = vrot.slane %v4124, 2
        %v4126 = vmax.f32 %v4124, %v4125
        %v4127 = vrot.slane %v4126, 1
        %v4128 = vmax.f32 %v4126, %v4127
        %v4129 = vsel %vm3939, %v2713, -inf
        %v4130 = vrot.slane %v4129, 4
        %v4131 = vmax.f32 %v4129, %v4130
        %v4132 = vrot.slane %v4131, 2
        %v4133 = vmax.f32 %v4131, %v4132
        %v4134 = vrot.slane %v4133, 1
        %v4135 = vmax.f32 %v4133, %v4134
        %v4136 = vsel %vm3939, %v2721, -inf
        %v4137 = vrot.slane %v4136, 4
        %v4138 = vmax.f32 %v4136, %v4137
        %v4139 = vrot.slane %v4138, 2
        %v4140 = vmax.f32 %v4138, %v4139
        %v4141 = vrot.slane %v4140, 1
        %v4142 = vmax.f32 %v4140, %v4141
        %v4143 = vsel %vm3939, %v2729, -inf
        %v4144 = vrot.slane %v4143, 4
        %v4145 = vmax.f32 %v4143, %v4144
        %v4146 = vrot.slane %v4145, 2
        %v4147 = vmax.f32 %v4145, %v4146
        %v4148 = vrot.slane %v4147, 1
        %v4149 = vmax.f32 %v4147, %v4148
        %v4150 = vsel %vm3939, %v2728, -inf
        %v4151 = vrot.slane %v4150, 4
        %v4152 = vmax.f32 %v4150, %v4151
        %v4153 = vrot.slane %v4152, 2
        %v4154 = vmax.f32 %v4152, %v4153
        %v4155 = vrot.slane %v4154, 1
        %v4156 = vmax.f32 %v4154, %v4155
        %v4157 = vsel %vm3939, %v2730, -inf
        %v4158 = vrot.slane %v4157, 4
        %v4159 = vmax.f32 %v4157, %v4158
        %v4160 = vrot.slane %v4159, 2
        %v4161 = vmax.f32 %v4159, %v4160
        %v4162 = vrot.slane %v4161, 1
        %v4163 = vmax.f32 %v4161, %v4162
        %v4164 = vsel %vm3939, %v2738, -inf
        %v4165 = vrot.slane %v4164, 4
        %v4166 = vmax.f32 %v4164, %v4165
        %v4167 = vrot.slane %v4166, 2
        %v4168 = vmax.f32 %v4166, %v4167
        %v4169 = vrot.slane %v4168, 1
        %v4170 = vmax.f32 %v4168, %v4169
        %v4171 = vsel %vm3939, %v2746, -inf
        %v4172 = vrot.slane %v4171, 4
        %v4173 = vmax.f32 %v4171, %v4172
        %v4174 = vrot.slane %v4173, 2
        %v4175 = vmax.f32 %v4173, %v4174
        %v4176 = vrot.slane %v4175, 1
        %v4177 = vmax.f32 %v4175, %v4176
        %v4178 = vsel %vm3939, %v2745, -inf
        %v4179 = vrot.slane %v4178, 4
        %v4180 = vmax.f32 %v4178, %v4179
        %v4181 = vrot.slane %v4180, 2
        %v4182 = vmax.f32 %v4180, %v4181
        %v4183 = vrot.slane %v4182, 1
        %v4184 = vmax.f32 %v4182, %v4183
        %v4185 = vsel %vm3939, %v2747, -inf
        %v4186 = vrot.slane %v4185, 4
        %v4187 = vmax.f32 %v4185, %v4186
        %v4188 = vrot.slane %v4187, 2
        %v4189 = vmax.f32 %v4187, %v4188
        %v4190 = vrot.slane %v4189, 1
        %v4191 = vmax.f32 %v4189, %v4190
        %v4192 = vsel %vm3939, %v2755, -inf
        %v4193 = vrot.slane %v4192, 4
        %v4194 = vmax.f32 %v4192, %v4193
        %v4195 = vrot.slane %v4194, 2
        %v4196 = vmax.f32 %v4194, %v4195
        %v4197 = vrot.slane %v4196, 1
        %v4198 = vmax.f32 %v4196, %v4197
        %v4199 = vsel %vm3939, %v2763, -inf
        %v4200 = vrot.slane %v4199, 4
        %v4201 = vmax.f32 %v4199, %v4200
        %v4202 = vrot.slane %v4201, 2
        %v4203 = vmax.f32 %v4201, %v4202
        %v4204 = vrot.slane %v4203, 1
        %v4205 = vmax.f32 %v4203, %v4204
        %v4206 = vsel %vm3939, %v2762, -inf
        %v4207 = vrot.slane %v4206, 4
        %v4208 = vmax.f32 %v4206, %v4207
        %v4209 = vrot.slane %v4208, 2
        %v4210 = vmax.f32 %v4208, %v4209
        %v4211 = vrot.slane %v4210, 1
        %v4212 = vmax.f32 %v4210, %v4211
        %v4213 = vsel %vm3939, %v2764, -inf
        %v4214 = vrot.slane %v4213, 4
        %v4215 = vmax.f32 %v4213, %v4214
        %v4216 = vrot.slane %v4215, 2
        %v4217 = vmax.f32 %v4215, %v4216
        %v4218 = vrot.slane %v4217, 1
        %v4219 = vmax.f32 %v4217, %v4218
        %v4220 = vsel %vm3939, %v2772, -inf
        %v4221 = vrot.slane %v4220, 4
        %v4222 = vmax.f32 %v4220, %v4221
        %v4223 = vrot.slane %v4222, 2
        %v4224 = vmax.f32 %v4222, %v4223
        %v4225 = vrot.slane %v4224, 1
        %v4226 = vmax.f32 %v4224, %v4225
        %v4227 = vsel %vm3939, %v2780, -inf
        %v4228 = vrot.slane %v4227, 4
        %v4229 = vmax.f32 %v4227, %v4228
        %v4230 = vrot.slane %v4229, 2
        %v4231 = vmax.f32 %v4229, %v4230
        %v4232 = vrot.slane %v4231, 1
        %v4233 = vmax.f32 %v4231, %v4232
        %v4234 = vsel %vm3939, %v2779, -inf
        %v4235 = vrot.slane %v4234, 4
        %v4236 = vmax.f32 %v4234, %v4235
        %v4237 = vrot.slane %v4236, 2
        %v4238 = vmax.f32 %v4236, %v4237
        %v4239 = vrot.slane %v4238, 1
        %v4240 = vmax.f32 %v4238, %v4239
        %v4241 = vsel %vm3939, %v2781, -inf
        %v4242 = vrot.slane %v4241, 4
        %v4243 = vmax.f32 %v4241, %v4242
        %v4244 = vrot.slane %v4243, 2
        %v4245 = vmax.f32 %v4243, %v4244
        %v4246 = vrot.slane %v4245, 1
        %v4247 = vmax.f32 %v4245, %v4246
        %v4248 = vsel %vm3939, %v2789, -inf
        %v4249 = vrot.slane %v4248, 4
        %v4250 = vmax.f32 %v4248, %v4249
        %v4251 = vrot.slane %v4250, 2
        %v4252 = vmax.f32 %v4250, %v4251
        %v4253 = vrot.slane %v4252, 1
        %v4254 = vmax.f32 %v4252, %v4253
        %v4255 = vsel %vm3939, %v2797, -inf
        %v4256 = vrot.slane %v4255, 4
        %v4257 = vmax.f32 %v4255, %v4256
        %v4258 = vrot.slane %v4257, 2
        %v4259 = vmax.f32 %v4257, %v4258
        %v4260 = vrot.slane %v4259, 1
        %v4261 = vmax.f32 %v4259, %v4260
        %v4262 = vsel %vm3939, %v2796, -inf
        %v4263 = vrot.slane %v4262, 4
        %v4264 = vmax.f32 %v4262, %v4263
        %v4265 = vrot.slane %v4264, 2
        %v4266 = vmax.f32 %v4264, %v4265
        %v4267 = vrot.slane %v4266, 1
        %v4268 = vmax.f32 %v4266, %v4267
        %v4269 = vsel %vm3939, %v2798, -inf
        %v4270 = vrot.slane %v4269, 4
        %v4271 = vmax.f32 %v4269, %v4270
        %v4272 = vrot.slane %v4271, 2
        %v4273 = vmax.f32 %v4271, %v4272
        %v4274 = vrot.slane %v4273, 1
        %v4275 = vmax.f32 %v4273, %v4274
        %v4276 = vsel %vm3939, %v2806, -inf
        %v4277 = vrot.slane %v4276, 4
        %v4278 = vmax.f32 %v4276, %v4277
        %v4279 = vrot.slane %v4278, 2
        %v4280 = vmax.f32 %v4278, %v4279
        %v4281 = vrot.slane %v4280, 1
        %v4282 = vmax.f32 %v4280, %v4281
        %v4283 = vsel %vm3939, %v2814, -inf
        %v4284 = vrot.slane %v4283, 4
        %v4285 = vmax.f32 %v4283, %v4284
        %v4286 = vrot.slane %v4285, 2
        %v4287 = vmax.f32 %v4285, %v4286
        %v4288 = vrot.slane %v4287, 1
        %v4289 = vmax.f32 %v4287, %v4288
        %v4290 = vsel %vm3939, %v2813, -inf
        %v4291 = vrot.slane %v4290, 4
        %v4292 = vmax.f32 %v4290, %v4291
        %v4293 = vrot.slane %v4292, 2
        %v4294 = vmax.f32 %v4292, %v4293
        %v4295 = vrot.slane %v4294, 1
        %v4296 = vmax.f32 %v4294, %v4295
        %v4297 = vsel %vm3939, %v2815, -inf
        %v4298 = vrot.slane %v4297, 4
        %v4299 = vmax.f32 %v4297, %v4298
        %v4300 = vrot.slane %v4299, 2
        %v4301 = vmax.f32 %v4299, %v4300
        %v4302 = vrot.slane %v4301, 1
        %v4303 = vmax.f32 %v4301, %v4302
        %v4304 = vsel %vm3939, %v2823, -inf
        %v4305 = vrot.slane %v4304, 4
        %v4306 = vmax.f32 %v4304, %v4305
        %v4307 = vrot.slane %v4306, 2
        %v4308 = vmax.f32 %v4306, %v4307
        %v4309 = vrot.slane %v4308, 1
        %v4310 = vmax.f32 %v4308, %v4309
        %v4311 = vsel %vm3939, %v2831, -inf
        %v4312 = vrot.slane %v4311, 4
        %v4313 = vmax.f32 %v4311, %v4312
        %v4314 = vrot.slane %v4313, 2
        %v4315 = vmax.f32 %v4313, %v4314
        %v4316 = vrot.slane %v4315, 1
        %v4317 = vmax.f32 %v4315, %v4316
        %v4318 = vsel %vm3939, %v2830, -inf
        %v4319 = vrot.slane %v4318, 4
        %v4320 = vmax.f32 %v4318, %v4319
        %v4321 = vrot.slane %v4320, 2
        %v4322 = vmax.f32 %v4320, %v4321
        %v4323 = vrot.slane %v4322, 1
        %v4324 = vmax.f32 %v4322, %v4323
        %v4325 = vsel %vm3939, %v2832, -inf
        %v4326 = vrot.slane %v4325, 4
        %v4327 = vmax.f32 %v4325, %v4326
        %v4328 = vrot.slane %v4327, 2
        %v4329 = vmax.f32 %v4327, %v4328
        %v4330 = vrot.slane %v4329, 1
        %v4331 = vmax.f32 %v4329, %v4330
        %v4332 = vsel %vm3939, %v2840, -inf
        %v4333 = vrot.slane %v4332, 4
        %v4334 = vmax.f32 %v4332, %v4333
        %v4335 = vrot.slane %v4334, 2
        %v4336 = vmax.f32 %v4334, %v4335
        %v4337 = vrot.slane %v4336, 1
        %v4338 = vmax.f32 %v4336, %v4337
        %v4339 = vsel %vm3939, %v2848, -inf
        %v4340 = vrot.slane %v4339, 4
        %v4341 = vmax.f32 %v4339, %v4340
        %v4342 = vrot.slane %v4341, 2
        %v4343 = vmax.f32 %v4341, %v4342
        %v4344 = vrot.slane %v4343, 1
        %v4345 = vmax.f32 %v4343, %v4344
        %v4346 = vsel %vm3939, %v2847, -inf
        %v4347 = vrot.slane %v4346, 4
        %v4348 = vmax.f32 %v4346, %v4347
        %v4349 = vrot.slane %v4348, 2
        %v4350 = vmax.f32 %v4348, %v4349
        %v4351 = vrot.slane %v4350, 1
        %v4352 = vmax.f32 %v4350, %v4351
        %v4353 = vsel %vm3939, %v2849, -inf
        %v4354 = vrot.slane %v4353, 4
        %v4355 = vmax.f32 %v4353, %v4354
        %v4356 = vrot.slane %v4355, 2
        %v4357 = vmax.f32 %v4355, %v4356
        %v4358 = vrot.slane %v4357, 1
        %v4359 = vmax.f32 %v4357, %v4358
        %v4360 = vsel %vm3939, %v2857, -inf
        %v4361 = vrot.slane %v4360, 4
        %v4362 = vmax.f32 %v4360, %v4361
        %v4363 = vrot.slane %v4362, 2
        %v4364 = vmax.f32 %v4362, %v4363
        %v4365 = vrot.slane %v4364, 1
        %v4366 = vmax.f32 %v4364, %v4365
        %v4367 = vsel %vm3939, %v2865, -inf
        %v4368 = vrot.slane %v4367, 4
        %v4369 = vmax.f32 %v4367, %v4368
        %v4370 = vrot.slane %v4369, 2
        %v4371 = vmax.f32 %v4369, %v4370
        %v4372 = vrot.slane %v4371, 1
        %v4373 = vmax.f32 %v4371, %v4372
        %v4374 = vsel %vm3939, %v2864, -inf
        %v4375 = vrot.slane %v4374, 4
        %v4376 = vmax.f32 %v4374, %v4375
        %v4377 = vrot.slane %v4376, 2
        %v4378 = vmax.f32 %v4376, %v4377
        %v4379 = vrot.slane %v4378, 1
        %v4380 = vmax.f32 %v4378, %v4379
        %v4381 = vsel %vm3939, %v2866, -inf
        %v4382 = vrot.slane %v4381, 4
        %v4383 = vmax.f32 %v4381, %v4382
        %v4384 = vrot.slane %v4383, 2
        %v4385 = vmax.f32 %v4383, %v4384
        %v4386 = vrot.slane %v4385, 1
        %v4387 = vmax.f32 %v4385, %v4386
        %v4388 = vsel %vm3939, %v2874, -inf
        %v4389 = vrot.slane %v4388, 4
        %v4390 = vmax.f32 %v4388, %v4389
        %v4391 = vrot.slane %v4390, 2
        %v4392 = vmax.f32 %v4390, %v4391
        %v4393 = vrot.slane %v4392, 1
        %v4394 = vmax.f32 %v4392, %v4393
        %v4395 = vsel %vm3939, %v2882, -inf
        %v4396 = vrot.slane %v4395, 4
        %v4397 = vmax.f32 %v4395, %v4396
        %v4398 = vrot.slane %v4397, 2
        %v4399 = vmax.f32 %v4397, %v4398
        %v4400 = vrot.slane %v4399, 1
        %v4401 = vmax.f32 %v4399, %v4400
        %v4402 = vsel %vm3939, %v2881, -inf
        %v4403 = vrot.slane %v4402, 4
        %v4404 = vmax.f32 %v4402, %v4403
        %v4405 = vrot.slane %v4404, 2
        %v4406 = vmax.f32 %v4404, %v4405
        %v4407 = vrot.slane %v4406, 1
        %v4408 = vmax.f32 %v4406, %v4407
        %v4409 = vsel %vm3939, %v2883, -inf
        %v4410 = vrot.slane %v4409, 4
        %v4411 = vmax.f32 %v4409, %v4410
        %v4412 = vrot.slane %v4411, 2
        %v4413 = vmax.f32 %v4411, %v4412
        %v4414 = vrot.slane %v4413, 1
        %v4415 = vmax.f32 %v4413, %v4414
        %v4416 = vsel %vm3939, %v2891, -inf
        %v4417 = vrot.slane %v4416, 4
        %v4418 = vmax.f32 %v4416, %v4417
        %v4419 = vrot.slane %v4418, 2
        %v4420 = vmax.f32 %v4418, %v4419
        %v4421 = vrot.slane %v4420, 1
        %v4422 = vmax.f32 %v4420, %v4421
        %v4423 = vsel %vm3939, %v2899, -inf
        %v4424 = vrot.slane %v4423, 4
        %v4425 = vmax.f32 %v4423, %v4424
        %v4426 = vrot.slane %v4425, 2
        %v4427 = vmax.f32 %v4425, %v4426
        %v4428 = vrot.slane %v4427, 1
        %v4429 = vmax.f32 %v4427, %v4428
        %v4430 = vsel %vm3939, %v2898, -inf
        %v4431 = vrot.slane %v4430, 4
        %v4432 = vmax.f32 %v4430, %v4431
        %v4433 = vrot.slane %v4432, 2
        %v4434 = vmax.f32 %v4432, %v4433
        %v4435 = vrot.slane %v4434, 1
        %v4436 = vmax.f32 %v4434, %v4435
        %v4437 = vsel %vm3939, %v2900, -inf
        %v4438 = vrot.slane %v4437, 4
        %v4439 = vmax.f32 %v4437, %v4438
        %v4440 = vrot.slane %v4439, 2
        %v4441 = vmax.f32 %v4439, %v4440
        %v4442 = vrot.slane %v4441, 1
        %v4443 = vmax.f32 %v4441, %v4442
        %v4444 = vsel %vm3939, %v2908, -inf
        %v4445 = vrot.slane %v4444, 4
        %v4446 = vmax.f32 %v4444, %v4445
        %v4447 = vrot.slane %v4446, 2
        %v4448 = vmax.f32 %v4446, %v4447
        %v4449 = vrot.slane %v4448, 1
        %v4450 = vmax.f32 %v4448, %v4449
        %v4451 = vsel %vm3939, %v2916, -inf
        %v4452 = vrot.slane %v4451, 4
        %v4453 = vmax.f32 %v4451, %v4452
        %v4454 = vrot.slane %v4453, 2
        %v4455 = vmax.f32 %v4453, %v4454
        %v4456 = vrot.slane %v4455, 1
        %v4457 = vmax.f32 %v4455, %v4456
        %v4458 = vsel %vm3939, %v2915, -inf
        %v4459 = vrot.slane %v4458, 4
        %v4460 = vmax.f32 %v4458, %v4459
        %v4461 = vrot.slane %v4460, 2
        %v4462 = vmax.f32 %v4460, %v4461
        %v4463 = vrot.slane %v4462, 1
        %v4464 = vmax.f32 %v4462, %v4463
        %v4465 = vsel %vm3939, %v2917, -inf
        %v4466 = vrot.slane %v4465, 4
        %v4467 = vmax.f32 %v4465, %v4466
        %v4468 = vrot.slane %v4467, 2
        %v4469 = vmax.f32 %v4467, %v4468
        %v4470 = vrot.slane %v4469, 1
        %v4471 = vmax.f32 %v4469, %v4470
        %v4472 = vsel %vm3939, %v2925, -inf
        %v4473 = vrot.slane %v4472, 4
        %v4474 = vmax.f32 %v4472, %v4473
        %v4475 = vrot.slane %v4474, 2
        %v4476 = vmax.f32 %v4474, %v4475
        %v4477 = vrot.slane %v4476, 1
        %v4478 = vmax.f32 %v4476, %v4477
        %v4479 = vsel %vm3939, %v2933, -inf
        %v4480 = vrot.slane %v4479, 4
        %v4481 = vmax.f32 %v4479, %v4480
        %v4482 = vrot.slane %v4481, 2
        %v4483 = vmax.f32 %v4481, %v4482
        %v4484 = vrot.slane %v4483, 1
        %v4485 = vmax.f32 %v4483, %v4484
        %v4486 = vsel %vm3939, %v2932, -inf
        %v4487 = vrot.slane %v4486, 4
        %v4488 = vmax.f32 %v4486, %v4487
        %v4489 = vrot.slane %v4488, 2
        %v4490 = vmax.f32 %v4488, %v4489
        %v4491 = vrot.slane %v4490, 1
        %v4492 = vmax.f32 %v4490, %v4491
        %v4493 = vsel %vm3939, %v2934, -inf
        %v4494 = vrot.slane %v4493, 4
        %v4495 = vmax.f32 %v4493, %v4494
        %v4496 = vrot.slane %v4495, 2
        %v4497 = vmax.f32 %v4495, %v4496
        %v4498 = vrot.slane %v4497, 1
        %v4499 = vmax.f32 %v4497, %v4498
        %v4500 = vsel %vm3939, %v2942, -inf
        %v4501 = vrot.slane %v4500, 4
        %v4502 = vmax.f32 %v4500, %v4501
        %v4503 = vrot.slane %v4502, 2
        %v4504 = vmax.f32 %v4502, %v4503
        %v4505 = vrot.slane %v4504, 1
        %v4506 = vmax.f32 %v4504, %v4505
        %v4507 = vsel %vm3939, %v2950, -inf
        %v4508 = vrot.slane %v4507, 4
        %v4509 = vmax.f32 %v4507, %v4508
        %v4510 = vrot.slane %v4509, 2
        %v4511 = vmax.f32 %v4509, %v4510
        %v4512 = vrot.slane %v4511, 1
        %v4513 = vmax.f32 %v4511, %v4512
        %v4514 = vsel %vm3939, %v2949, -inf
        %v4515 = vrot.slane %v4514, 4
        %v4516 = vmax.f32 %v4514, %v4515
        %v4517 = vrot.slane %v4516, 2
        %v4518 = vmax.f32 %v4516, %v4517
        %v4519 = vrot.slane %v4518, 1
        %v4520 = vmax.f32 %v4518, %v4519
        %v4521 = vsel %vm3939, %v2951, -inf
        %v4522 = vrot.slane %v4521, 4
        %v4523 = vmax.f32 %v4521, %v4522
        %v4524 = vrot.slane %v4523, 2
        %v4525 = vmax.f32 %v4523, %v4524
        %v4526 = vrot.slane %v4525, 1
        %v4527 = vmax.f32 %v4525, %v4526
        %v4528 = vsel %vm3939, %v2959, -inf
        %v4529 = vrot.slane %v4528, 4
        %v4530 = vmax.f32 %v4528, %v4529
        %v4531 = vrot.slane %v4530, 2
        %v4532 = vmax.f32 %v4530, %v4531
        %v4533 = vrot.slane %v4532, 1
        %v4534 = vmax.f32 %v4532, %v4533
        %v4535 = vsel %vm3939, %v2967, -inf
        %v4536 = vrot.slane %v4535, 4
        %v4537 = vmax.f32 %v4535, %v4536
        %v4538 = vrot.slane %v4537, 2
        %v4539 = vmax.f32 %v4537, %v4538
        %v4540 = vrot.slane %v4539, 1
        %v4541 = vmax.f32 %v4539, %v4540
        %v4542 = vsel %vm3939, %v2966, -inf
        %v4543 = vrot.slane %v4542, 4
        %v4544 = vmax.f32 %v4542, %v4543
        %v4545 = vrot.slane %v4544, 2
        %v4546 = vmax.f32 %v4544, %v4545
        %v4547 = vrot.slane %v4546, 1
        %v4548 = vmax.f32 %v4546, %v4547
        %v4549 = vsel %vm3939, %v2968, -inf
        %v4550 = vrot.slane %v4549, 4
        %v4551 = vmax.f32 %v4549, %v4550
        %v4552 = vrot.slane %v4551, 2
        %v4553 = vmax.f32 %v4551, %v4552
        %v4554 = vrot.slane %v4553, 1
        %v4555 = vmax.f32 %v4553, %v4554
        %v4556 = vsel %vm3939, %v2976, -inf
        %v4557 = vrot.slane %v4556, 4
        %v4558 = vmax.f32 %v4556, %v4557
        %v4559 = vrot.slane %v4558, 2
        %v4560 = vmax.f32 %v4558, %v4559
        %v4561 = vrot.slane %v4560, 1
        %v4562 = vmax.f32 %v4560, %v4561
        %v4563 = vsel %vm3939, %v2984, -inf
        %v4564 = vrot.slane %v4563, 4
        %v4565 = vmax.f32 %v4563, %v4564
        %v4566 = vrot.slane %v4565, 2
        %v4567 = vmax.f32 %v4565, %v4566
        %v4568 = vrot.slane %v4567, 1
        %v4569 = vmax.f32 %v4567, %v4568
        %v4570 = vsel %vm3939, %v2983, -inf
        %v4571 = vrot.slane %v4570, 4
        %v4572 = vmax.f32 %v4570, %v4571
        %v4573 = vrot.slane %v4572, 2
        %v4574 = vmax.f32 %v4572, %v4573
        %v4575 = vrot.slane %v4574, 1
        %v4576 = vmax.f32 %v4574, %v4575
        %v4577 = vsel %vm3939, %v2985, -inf
        %v4578 = vrot.slane %v4577, 4
        %v4579 = vmax.f32 %v4577, %v4578
        %v4580 = vrot.slane %v4579, 2
        %v4581 = vmax.f32 %v4579, %v4580
        %v4582 = vrot.slane %v4581, 1
        %v4583 = vmax.f32 %v4581, %v4582
        %v4584 = vsel %vm3939, %v2993, -inf
        %v4585 = vrot.slane %v4584, 4
        %v4586 = vmax.f32 %v4584, %v4585
        %v4587 = vrot.slane %v4586, 2
        %v4588 = vmax.f32 %v4586, %v4587
        %v4589 = vrot.slane %v4588, 1
        %v4590 = vmax.f32 %v4588, %v4589
        %v4591 = vsel %vm3939, %v3001, -inf
        %v4592 = vrot.slane %v4591, 4
        %v4593 = vmax.f32 %v4591, %v4592
        %v4594 = vrot.slane %v4593, 2
        %v4595 = vmax.f32 %v4593, %v4594
        %v4596 = vrot.slane %v4595, 1
        %v4597 = vmax.f32 %v4595, %v4596
        %v4598 = vsel %vm3939, %v3000, -inf
        %v4599 = vrot.slane %v4598, 4
        %v4600 = vmax.f32 %v4598, %v4599
        %v4601 = vrot.slane %v4600, 2
        %v4602 = vmax.f32 %v4600, %v4601
        %v4603 = vrot.slane %v4602, 1
        %v4604 = vmax.f32 %v4602, %v4603
        %v4605 = vsel %vm3939, %v3002, -inf
        %v4606 = vrot.slane %v4605, 4
        %v4607 = vmax.f32 %v4605, %v4606
        %v4608 = vrot.slane %v4607, 2
        %v4609 = vmax.f32 %v4607, %v4608
        %v4610 = vrot.slane %v4609, 1
        %v4611 = vmax.f32 %v4609, %v4610
        %v4612 = vsel %vm3939, %v3010, -inf
        %v4613 = vrot.slane %v4612, 4
        %v4614 = vmax.f32 %v4612, %v4613
        %v4615 = vrot.slane %v4614, 2
        %v4616 = vmax.f32 %v4614, %v4615
        %v4617 = vrot.slane %v4616, 1
        %v4618 = vmax.f32 %v4616, %v4617
        %v4619 = vsel %vm3939, %v3018, -inf
        %v4620 = vrot.slane %v4619, 4
        %v4621 = vmax.f32 %v4619, %v4620
        %v4622 = vrot.slane %v4621, 2
        %v4623 = vmax.f32 %v4621, %v4622
        %v4624 = vrot.slane %v4623, 1
        %v4625 = vmax.f32 %v4623, %v4624
        %v4626 = vsel %vm3939, %v3017, -inf
        %v4627 = vrot.slane %v4626, 4
        %v4628 = vmax.f32 %v4626, %v4627
        %v4629 = vrot.slane %v4628, 2
        %v4630 = vmax.f32 %v4628, %v4629
        %v4631 = vrot.slane %v4630, 1
        %v4632 = vmax.f32 %v4630, %v4631
        %v4633 = vsel %vm3939, %v3019, -inf
        %v4634 = vrot.slane %v4633, 4
        %v4635 = vmax.f32 %v4633, %v4634
        %v4636 = vrot.slane %v4635, 2
        %v4637 = vmax.f32 %v4635, %v4636
        %v4638 = vrot.slane %v4637, 1
        %v4639 = vmax.f32 %v4637, %v4638
        %v4640 = vsel %vm3939, %v3027, -inf
        %v4641 = vrot.slane %v4640, 4
        %v4642 = vmax.f32 %v4640, %v4641
        %v4643 = vrot.slane %v4642, 2
        %v4644 = vmax.f32 %v4642, %v4643
        %v4645 = vrot.slane %v4644, 1
        %v4646 = vmax.f32 %v4644, %v4645
        %v4647 = vsel %vm3939, %v3035, -inf
        %v4648 = vrot.slane %v4647, 4
        %v4649 = vmax.f32 %v4647, %v4648
        %v4650 = vrot.slane %v4649, 2
        %v4651 = vmax.f32 %v4649, %v4650
        %v4652 = vrot.slane %v4651, 1
        %v4653 = vmax.f32 %v4651, %v4652
        %v4654 = vsel %vm3939, %v3034, -inf
        %v4655 = vrot.slane %v4654, 4
        %v4656 = vmax.f32 %v4654, %v4655
        %v4657 = vrot.slane %v4656, 2
        %v4658 = vmax.f32 %v4656, %v4657
        %v4659 = vrot.slane %v4658, 1
        %v4660 = vmax.f32 %v4658, %v4659
        %v4661 = vsel %vm3939, %v3036, -inf
        %v4662 = vrot.slane %v4661, 4
        %v4663 = vmax.f32 %v4661, %v4662
        %v4664 = vrot.slane %v4663, 2
        %v4665 = vmax.f32 %v4663, %v4664
        %v4666 = vrot.slane %v4665, 1
        %v4667 = vmax.f32 %v4665, %v4666
        %v4668 = vsel %vm3939, %v3044, -inf
        %v4669 = vrot.slane %v4668, 4
        %v4670 = vmax.f32 %v4668, %v4669
        %v4671 = vrot.slane %v4670, 2
        %v4672 = vmax.f32 %v4670, %v4671
        %v4673 = vrot.slane %v4672, 1
        %v4674 = vmax.f32 %v4672, %v4673
        %v4675 = vsel %vm3939, %v3052, -inf
        %v4676 = vrot.slane %v4675, 4
        %v4677 = vmax.f32 %v4675, %v4676
        %v4678 = vrot.slane %v4677, 2
        %v4679 = vmax.f32 %v4677, %v4678
        %v4680 = vrot.slane %v4679, 1
        %v4681 = vmax.f32 %v4679, %v4680
        %v4682 = vsel %vm3939, %v3051, -inf
        %v4683 = vrot.slane %v4682, 4
        %v4684 = vmax.f32 %v4682, %v4683
        %v4685 = vrot.slane %v4684, 2
        %v4686 = vmax.f32 %v4684, %v4685
        %v4687 = vrot.slane %v4686, 1
        %v4688 = vmax.f32 %v4686, %v4687
        %v4689 = vsel %vm3939, %v3053, -inf
        %v4690 = vrot.slane %v4689, 4
        %v4691 = vmax.f32 %v4689, %v4690
        %v4692 = vrot.slane %v4691, 2
        %v4693 = vmax.f32 %v4691, %v4692
        %v4694 = vrot.slane %v4693, 1
        %v4695 = vmax.f32 %v4693, %v4694
        %v4696 = vsel %vm3939, %v3061, -inf
        %v4697 = vrot.slane %v4696, 4
        %v4698 = vmax.f32 %v4696, %v4697
        %v4699 = vrot.slane %v4698, 2
        %v4700 = vmax.f32 %v4698, %v4699
        %v4701 = vrot.slane %v4700, 1
        %v4702 = vmax.f32 %v4700, %v4701
        %v4703 = vsel %vm3939, %v3069, -inf
        %v4704 = vrot.slane %v4703, 4
        %v4705 = vmax.f32 %v4703, %v4704
        %v4706 = vrot.slane %v4705, 2
        %v4707 = vmax.f32 %v4705, %v4706
        %v4708 = vrot.slane %v4707, 1
        %v4709 = vmax.f32 %v4707, %v4708
        %v4710 = vsel %vm3939, %v3068, -inf
        %v4711 = vrot.slane %v4710, 4
        %v4712 = vmax.f32 %v4710, %v4711
        %v4713 = vrot.slane %v4712, 2
        %v4714 = vmax.f32 %v4712, %v4713
        %v4715 = vrot.slane %v4714, 1
        %v4716 = vmax.f32 %v4714, %v4715
        %v4717 = vsel %vm3939, %v3070, -inf
        %v4718 = vrot.slane %v4717, 4
        %v4719 = vmax.f32 %v4717, %v4718
        %v4720 = vrot.slane %v4719, 2
        %v4721 = vmax.f32 %v4719, %v4720
        %v4722 = vrot.slane %v4721, 1
        %v4723 = vmax.f32 %v4721, %v4722
        %v4724 = vsel %vm3939, %v3078, -inf
        %v4725 = vrot.slane %v4724, 4
        %v4726 = vmax.f32 %v4724, %v4725
        %v4727 = vrot.slane %v4726, 2
        %v4728 = vmax.f32 %v4726, %v4727
        %v4729 = vrot.slane %v4728, 1
        %v4730 = vmax.f32 %v4728, %v4729
        %v4731 = vsel %vm3939, %v3086, -inf
        %v4732 = vrot.slane %v4731, 4
        %v4733 = vmax.f32 %v4731, %v4732
        %v4734 = vrot.slane %v4733, 2
        %v4735 = vmax.f32 %v4733, %v4734
        %v4736 = vrot.slane %v4735, 1
        %v4737 = vmax.f32 %v4735, %v4736
        %v4738 = vsel %vm3939, %v3085, -inf
        %v4739 = vrot.slane %v4738, 4
        %v4740 = vmax.f32 %v4738, %v4739
        %v4741 = vrot.slane %v4740, 2
        %v4742 = vmax.f32 %v4740, %v4741
        %v4743 = vrot.slane %v4742, 1
        %v4744 = vmax.f32 %v4742, %v4743
        %v4745 = vsel %vm3939, %v3087, -inf
        %v4746 = vrot.slane %v4745, 4
        %v4747 = vmax.f32 %v4745, %v4746
        %v4748 = vrot.slane %v4747, 2
        %v4749 = vmax.f32 %v4747, %v4748
        %v4750 = vrot.slane %v4749, 1
        %v4751 = vmax.f32 %v4749, %v4750
        %v4752 = vsel %vm3939, %v3095, -inf
        %v4753 = vrot.slane %v4752, 4
        %v4754 = vmax.f32 %v4752, %v4753
        %v4755 = vrot.slane %v4754, 2
        %v4756 = vmax.f32 %v4754, %v4755
        %v4757 = vrot.slane %v4756, 1
        %v4758 = vmax.f32 %v4756, %v4757
        %v4759 = vsel %vm3939, %v3103, -inf
        %v4760 = vrot.slane %v4759, 4
        %v4761 = vmax.f32 %v4759, %v4760
        %v4762 = vrot.slane %v4761, 2
        %v4763 = vmax.f32 %v4761, %v4762
        %v4764 = vrot.slane %v4763, 1
        %v4765 = vmax.f32 %v4763, %v4764
        %v4766 = vsel %vm3939, %v3102, -inf
        %v4767 = vrot.slane %v4766, 4
        %v4768 = vmax.f32 %v4766, %v4767
        %v4769 = vrot.slane %v4768, 2
        %v4770 = vmax.f32 %v4768, %v4769
        %v4771 = vrot.slane %v4770, 1
        %v4772 = vmax.f32 %v4770, %v4771
        %v4773 = vsel %vm3939, %v3104, -inf
        %v4774 = vrot.slane %v4773, 4
        %v4775 = vmax.f32 %v4773, %v4774
        %v4776 = vrot.slane %v4775, 2
        %v4777 = vmax.f32 %v4775, %v4776
        %v4778 = vrot.slane %v4777, 1
        %v4779 = vmax.f32 %v4777, %v4778
        %v4780 = vsel %vm3939, %v3112, -inf
        %v4781 = vrot.slane %v4780, 4
        %v4782 = vmax.f32 %v4780, %v4781
        %v4783 = vrot.slane %v4782, 2
        %v4784 = vmax.f32 %v4782, %v4783
        %v4785 = vrot.slane %v4784, 1
        %v4786 = vmax.f32 %v4784, %v4785
        %v4787 = vsel %vm3939, %v3120, -inf
        %v4788 = vrot.slane %v4787, 4
        %v4789 = vmax.f32 %v4787, %v4788
        %v4790 = vrot.slane %v4789, 2
        %v4791 = vmax.f32 %v4789, %v4790
        %v4792 = vrot.slane %v4791, 1
        %v4793 = vmax.f32 %v4791, %v4792
        %v4794 = vsel %vm3939, %v3119, -inf
        %v4795 = vrot.slane %v4794, 4
        %v4796 = vmax.f32 %v4794, %v4795
        %v4797 = vrot.slane %v4796, 2
        %v4798 = vmax.f32 %v4796, %v4797
        %v4799 = vrot.slane %v4798, 1
        %v4800 = vmax.f32 %v4798, %v4799
        %v4801 = vsel %vm3939, %v3121, -inf
        %v4802 = vrot.slane %v4801, 4
        %v4803 = vmax.f32 %v4801, %v4802
        %v4804 = vrot.slane %v4803, 2
        %v4805 = vmax.f32 %v4803, %v4804
        %v4806 = vrot.slane %v4805, 1
        %v4807 = vmax.f32 %v4805, %v4806
        %v4808 = vsel %vm3939, %v3129, -inf
        %v4809 = vrot.slane %v4808, 4
        %v4810 = vmax.f32 %v4808, %v4809
        %v4811 = vrot.slane %v4810, 2
        %v4812 = vmax.f32 %v4810, %v4811
        %v4813 = vrot.slane %v4812, 1
        %v4814 = vmax.f32 %v4812, %v4813
        %v4815 = vsel %vm3939, %v3137, -inf
        %v4816 = vrot.slane %v4815, 4
        %v4817 = vmax.f32 %v4815, %v4816
        %v4818 = vrot.slane %v4817, 2
        %v4819 = vmax.f32 %v4817, %v4818
        %v4820 = vrot.slane %v4819, 1
        %v4821 = vmax.f32 %v4819, %v4820
        %v4822 = vsel %vm3939, %v3136, -inf
        %v4823 = vrot.slane %v4822, 4
        %v4824 = vmax.f32 %v4822, %v4823
        %v4825 = vrot.slane %v4824, 2
        %v4826 = vmax.f32 %v4824, %v4825
        %v4827 = vrot.slane %v4826, 1
        %v4828 = vmax.f32 %v4826, %v4827
        %v4829 = vsel %vm3939, %v3138, -inf
        %v4830 = vrot.slane %v4829, 4
        %v4831 = vmax.f32 %v4829, %v4830
        %v4832 = vrot.slane %v4831, 2
        %v4833 = vmax.f32 %v4831, %v4832
        %v4834 = vrot.slane %v4833, 1
        %v4835 = vmax.f32 %v4833, %v4834
        %v4836 = vsel %vm3939, %v3146, -inf
        %v4837 = vrot.slane %v4836, 4
        %v4838 = vmax.f32 %v4836, %v4837
        %v4839 = vrot.slane %v4838, 2
        %v4840 = vmax.f32 %v4838, %v4839
        %v4841 = vrot.slane %v4840, 1
        %v4842 = vmax.f32 %v4840, %v4841
        %v4843 = vsel %vm3939, %v3154, -inf
        %v4844 = vrot.slane %v4843, 4
        %v4845 = vmax.f32 %v4843, %v4844
        %v4846 = vrot.slane %v4845, 2
        %v4847 = vmax.f32 %v4845, %v4846
        %v4848 = vrot.slane %v4847, 1
        %v4849 = vmax.f32 %v4847, %v4848
        %v4850 = vsel %vm3939, %v3153, -inf
        %v4851 = vrot.slane %v4850, 4
        %v4852 = vmax.f32 %v4850, %v4851
        %v4853 = vrot.slane %v4852, 2
        %v4854 = vmax.f32 %v4852, %v4853
        %v4855 = vrot.slane %v4854, 1
        %v4856 = vmax.f32 %v4854, %v4855
        %v4857 = vsel %vm3939, %v3155, -inf
        %v4858 = vrot.slane %v4857, 4
        %v4859 = vmax.f32 %v4857, %v4858
        %v4860 = vrot.slane %v4859, 2
        %v4861 = vmax.f32 %v4859, %v4860
        %v4862 = vrot.slane %v4861, 1
        %v4863 = vmax.f32 %v4861, %v4862
        %v4864 = vsel %vm3939, %v3163, -inf
        %v4865 = vrot.slane %v4864, 4
        %v4866 = vmax.f32 %v4864, %v4865
        %v4867 = vrot.slane %v4866, 2
        %v4868 = vmax.f32 %v4866, %v4867
        %v4869 = vrot.slane %v4868, 1
        %v4870 = vmax.f32 %v4868, %v4869
        %v4871 = vsel %vm3939, %v3171, -inf
        %v4872 = vrot.slane %v4871, 4
        %v4873 = vmax.f32 %v4871, %v4872
        %v4874 = vrot.slane %v4873, 2
        %v4875 = vmax.f32 %v4873, %v4874
        %v4876 = vrot.slane %v4875, 1
        %v4877 = vmax.f32 %v4875, %v4876
        %v4878 = vsel %vm3939, %v3170, -inf
        %v4879 = vrot.slane %v4878, 4
        %v4880 = vmax.f32 %v4878, %v4879
        %v4881 = vrot.slane %v4880, 2
        %v4882 = vmax.f32 %v4880, %v4881
        %v4883 = vrot.slane %v4882, 1
        %v4884 = vmax.f32 %v4882, %v4883
        %v4885 = vsel %vm3939, %v3172, -inf
        %v4886 = vrot.slane %v4885, 4
        %v4887 = vmax.f32 %v4885, %v4886
        %v4888 = vrot.slane %v4887, 2
        %v4889 = vmax.f32 %v4887, %v4888
        %v4890 = vrot.slane %v4889, 1
        %v4891 = vmax.f32 %v4889, %v4890
        %v4892 = vsel %vm3939, %v3180, -inf
        %v4893 = vrot.slane %v4892, 4
        %v4894 = vmax.f32 %v4892, %v4893
        %v4895 = vrot.slane %v4894, 2
        %v4896 = vmax.f32 %v4894, %v4895
        %v4897 = vrot.slane %v4896, 1
        %v4898 = vmax.f32 %v4896, %v4897
        %v4899 = vsel %vm3939, %v3188, -inf
        %v4900 = vrot.slane %v4899, 4
        %v4901 = vmax.f32 %v4899, %v4900
        %v4902 = vrot.slane %v4901, 2
        %v4903 = vmax.f32 %v4901, %v4902
        %v4904 = vrot.slane %v4903, 1
        %v4905 = vmax.f32 %v4903, %v4904
        %v4906 = vsel %vm3939, %v3187, -inf
        %v4907 = vrot.slane %v4906, 4
        %v4908 = vmax.f32 %v4906, %v4907
        %v4909 = vrot.slane %v4908, 2
        %v4910 = vmax.f32 %v4908, %v4909
        %v4911 = vrot.slane %v4910, 1
        %v4912 = vmax.f32 %v4910, %v4911
        %v4913 = vsel %vm3939, %v3189, -inf
        %v4914 = vrot.slane %v4913, 4
        %v4915 = vmax.f32 %v4913, %v4914
        %v4916 = vrot.slane %v4915, 2
        %v4917 = vmax.f32 %v4915, %v4916
        %v4918 = vrot.slane %v4917, 1
        %v4919 = vmax.f32 %v4917, %v4918
        %v4920 = vsel %vm3939, %v3197, -inf
        %v4921 = vrot.slane %v4920, 4
        %v4922 = vmax.f32 %v4920, %v4921
        %v4923 = vrot.slane %v4922, 2
        %v4924 = vmax.f32 %v4922, %v4923
        %v4925 = vrot.slane %v4924, 1
        %v4926 = vmax.f32 %v4924, %v4925
        %v4927 = vsel %vm3939, %v3205, -inf
        %v4928 = vrot.slane %v4927, 4
        %v4929 = vmax.f32 %v4927, %v4928
        %v4930 = vrot.slane %v4929, 2
        %v4931 = vmax.f32 %v4929, %v4930
        %v4932 = vrot.slane %v4931, 1
        %v4933 = vmax.f32 %v4931, %v4932
        %v4934 = vsel %vm3939, %v3204, -inf
        %v4935 = vrot.slane %v4934, 4
        %v4936 = vmax.f32 %v4934, %v4935
        %v4937 = vrot.slane %v4936, 2
        %v4938 = vmax.f32 %v4936, %v4937
        %v4939 = vrot.slane %v4938, 1
        %v4940 = vmax.f32 %v4938, %v4939
        %v4941 = vsel %vm3939, %v3206, -inf
        %v4942 = vrot.slane %v4941, 4
        %v4943 = vmax.f32 %v4941, %v4942
        %v4944 = vrot.slane %v4943, 2
        %v4945 = vmax.f32 %v4943, %v4944
        %v4946 = vrot.slane %v4945, 1
        %v4947 = vmax.f32 %v4945, %v4946
        %v4948 = vsel %vm3939, %v3214, -inf
        %v4949 = vrot.slane %v4948, 4
        %v4950 = vmax.f32 %v4948, %v4949
        %v4951 = vrot.slane %v4950, 2
        %v4952 = vmax.f32 %v4950, %v4951
        %v4953 = vrot.slane %v4952, 1
        %v4954 = vmax.f32 %v4952, %v4953
        %v4955 = vsel %vm3939, %v3222, -inf
        %v4956 = vrot.slane %v4955, 4
        %v4957 = vmax.f32 %v4955, %v4956
        %v4958 = vrot.slane %v4957, 2
        %v4959 = vmax.f32 %v4957, %v4958
        %v4960 = vrot.slane %v4959, 1
        %v4961 = vmax.f32 %v4959, %v4960
        %v4962 = vsel %vm3939, %v3221, -inf
        %v4963 = vrot.slane %v4962, 4
        %v4964 = vmax.f32 %v4962, %v4963
        %v4965 = vrot.slane %v4964, 2
        %v4966 = vmax.f32 %v4964, %v4965
        %v4967 = vrot.slane %v4966, 1
        %v4968 = vmax.f32 %v4966, %v4967
        %v4969 = vsel %vm3939, %v3223, -inf
        %v4970 = vrot.slane %v4969, 4
        %v4971 = vmax.f32 %v4969, %v4970
        %v4972 = vrot.slane %v4971, 2
        %v4973 = vmax.f32 %v4971, %v4972
        %v4974 = vrot.slane %v4973, 1
        %v4975 = vmax.f32 %v4973, %v4974
        %v4976 = vsel %vm3939, %v3231, -inf
        %v4977 = vrot.slane %v4976, 4
        %v4978 = vmax.f32 %v4976, %v4977
        %v4979 = vrot.slane %v4978, 2
        %v4980 = vmax.f32 %v4978, %v4979
        %v4981 = vrot.slane %v4980, 1
        %v4982 = vmax.f32 %v4980, %v4981
        %v4983 = vsel %vm3939, %v3239, -inf
        %v4984 = vrot.slane %v4983, 4
        %v4985 = vmax.f32 %v4983, %v4984
        %v4986 = vrot.slane %v4985, 2
        %v4987 = vmax.f32 %v4985, %v4986
        %v4988 = vrot.slane %v4987, 1
        %v4989 = vmax.f32 %v4987, %v4988
        %v4990 = vsel %vm3939, %v3238, -inf
        %v4991 = vrot.slane %v4990, 4
        %v4992 = vmax.f32 %v4990, %v4991
        %v4993 = vrot.slane %v4992, 2
        %v4994 = vmax.f32 %v4992, %v4993
        %v4995 = vrot.slane %v4994, 1
        %v4996 = vmax.f32 %v4994, %v4995
        %v4997 = vsel %vm3939, %v3240, -inf
        %v4998 = vrot.slane %v4997, 4
        %v4999 = vmax.f32 %v4997, %v4998
        %v5000 = vrot.slane %v4999, 2
        %v5001 = vmax.f32 %v4999, %v5000
        %v5002 = vrot.slane %v5001, 1
        %v5003 = vmax.f32 %v5001, %v5002
        %v5004 = vsel %vm3939, %v3248, -inf
        %v5005 = vrot.slane %v5004, 4
        %v5006 = vmax.f32 %v5004, %v5005
        %v5007 = vrot.slane %v5006, 2
        %v5008 = vmax.f32 %v5006, %v5007
        %v5009 = vrot.slane %v5008, 1
        %v5010 = vmax.f32 %v5008, %v5009
        %v5011 = vsel %vm3939, %v3256, -inf
        %v5012 = vrot.slane %v5011, 4
        %v5013 = vmax.f32 %v5011, %v5012
        %v5014 = vrot.slane %v5013, 2
        %v5015 = vmax.f32 %v5013, %v5014
        %v5016 = vrot.slane %v5015, 1
        %v5017 = vmax.f32 %v5015, %v5016
        %v5018 = vsel %vm3939, %v3255, -inf
        %v5019 = vrot.slane %v5018, 4
        %v5020 = vmax.f32 %v5018, %v5019
        %v5021 = vrot.slane %v5020, 2
        %v5022 = vmax.f32 %v5020, %v5021
        %v5023 = vrot.slane %v5022, 1
        %v5024 = vmax.f32 %v5022, %v5023
        %v5025 = vsel %vm3939, %v3257, -inf
        %v5026 = vrot.slane %v5025, 4
        %v5027 = vmax.f32 %v5025, %v5026
        %v5028 = vrot.slane %v5027, 2
        %v5029 = vmax.f32 %v5027, %v5028
        %v5030 = vrot.slane %v5029, 1
        %v5031 = vmax.f32 %v5029, %v5030
        %v5032 = vsel %vm3939, %v3265, -inf
        %v5033 = vrot.slane %v5032, 4
        %v5034 = vmax.f32 %v5032, %v5033
        %v5035 = vrot.slane %v5034, 2
        %v5036 = vmax.f32 %v5034, %v5035
        %v5037 = vrot.slane %v5036, 1
        %v5038 = vmax.f32 %v5036, %v5037
        %v5039 = vsel %vm3939, %v3273, -inf
        %v5040 = vrot.slane %v5039, 4
        %v5041 = vmax.f32 %v5039, %v5040
        %v5042 = vrot.slane %v5041, 2
        %v5043 = vmax.f32 %v5041, %v5042
        %v5044 = vrot.slane %v5043, 1
        %v5045 = vmax.f32 %v5043, %v5044
        %v5046 = vsel %vm3939, %v3272, -inf
        %v5047 = vrot.slane %v5046, 4
        %v5048 = vmax.f32 %v5046, %v5047
        %v5049 = vrot.slane %v5048, 2
        %v5050 = vmax.f32 %v5048, %v5049
        %v5051 = vrot.slane %v5050, 1
        %v5052 = vmax.f32 %v5050, %v5051
        %v5053 = vsel %vm3939, %v3274, -inf
        %v5054 = vrot.slane %v5053, 4
        %v5055 = vmax.f32 %v5053, %v5054
        %v5056 = vrot.slane %v5055, 2
        %v5057 = vmax.f32 %v5055, %v5056
        %v5058 = vrot.slane %v5057, 1
        %v5059 = vmax.f32 %v5057, %v5058
        %v5060 = vsel %vm3939, %v3282, -inf
        %v5061 = vrot.slane %v5060, 4
        %v5062 = vmax.f32 %v5060, %v5061
        %v5063 = vrot.slane %v5062, 2
        %v5064 = vmax.f32 %v5062, %v5063
        %v5065 = vrot.slane %v5064, 1
        %v5066 = vmax.f32 %v5064, %v5065
        %v5067 = vsel %vm3939, %v3290, -inf
        %v5068 = vrot.slane %v5067, 4
        %v5069 = vmax.f32 %v5067, %v5068
        %v5070 = vrot.slane %v5069, 2
        %v5071 = vmax.f32 %v5069, %v5070
        %v5072 = vrot.slane %v5071, 1
        %v5073 = vmax.f32 %v5071, %v5072
        %v5074 = vsel %vm3939, %v3289, -inf
        %v5075 = vrot.slane %v5074, 4
        %v5076 = vmax.f32 %v5074, %v5075
        %v5077 = vrot.slane %v5076, 2
        %v5078 = vmax.f32 %v5076, %v5077
        %v5079 = vrot.slane %v5078, 1
        %v5080 = vmax.f32 %v5078, %v5079
        %v5081 = vsel %vm3939, %v3291, -inf
        %v5082 = vrot.slane %v5081, 4
        %v5083 = vmax.f32 %v5081, %v5082
        %v5084 = vrot.slane %v5083, 2
        %v5085 = vmax.f32 %v5083, %v5084
        %v5086 = vrot.slane %v5085, 1
        %v5087 = vmax.f32 %v5085, %v5086
        %v5088 = vsel %vm3939, %v3299, -inf
        %v5089 = vrot.slane %v5088, 4
        %v5090 = vmax.f32 %v5088, %v5089
        %v5091 = vrot.slane %v5090, 2
        %v5092 = vmax.f32 %v5090, %v5091
        %v5093 = vrot.slane %v5092, 1
        %v5094 = vmax.f32 %v5092, %v5093
        %v5095 = vsel %vm3939, %v3307, -inf
        %v5096 = vrot.slane %v5095, 4
        %v5097 = vmax.f32 %v5095, %v5096
        %v5098 = vrot.slane %v5097, 2
        %v5099 = vmax.f32 %v5097, %v5098
        %v5100 = vrot.slane %v5099, 1
        %v5101 = vmax.f32 %v5099, %v5100
        %v5102 = vsel %vm3939, %v3306, -inf
        %v5103 = vrot.slane %v5102, 4
        %v5104 = vmax.f32 %v5102, %v5103
        %v5105 = vrot.slane %v5104, 2
        %v5106 = vmax.f32 %v5104, %v5105
        %v5107 = vrot.slane %v5106, 1
        %v5108 = vmax.f32 %v5106, %v5107
        %v5109 = vsel %vm3939, %v3308, -inf
        %v5110 = vrot.slane %v5109, 4
        %v5111 = vmax.f32 %v5109, %v5110
        %v5112 = vrot.slane %v5111, 2
        %v5113 = vmax.f32 %v5111, %v5112
        %v5114 = vrot.slane %v5113, 1
        %v5115 = vmax.f32 %v5113, %v5114
        %v5116 = vsel %vm3939, %v3316, -inf
        %v5117 = vrot.slane %v5116, 4
        %v5118 = vmax.f32 %v5116, %v5117
        %v5119 = vrot.slane %v5118, 2
        %v5120 = vmax.f32 %v5118, %v5119
        %v5121 = vrot.slane %v5120, 1
        %v5122 = vmax.f32 %v5120, %v5121
        %v5123 = vsel %vm3939, %v3324, -inf
        %v5124 = vrot.slane %v5123, 4
        %v5125 = vmax.f32 %v5123, %v5124
        %v5126 = vrot.slane %v5125, 2
        %v5127 = vmax.f32 %v5125, %v5126
        %v5128 = vrot.slane %v5127, 1
        %v5129 = vmax.f32 %v5127, %v5128
        %v5130 = vsel %vm3939, %v3323, -inf
        %v5131 = vrot.slane %v5130, 4
        %v5132 = vmax.f32 %v5130, %v5131
        %v5133 = vrot.slane %v5132, 2
        %v5134 = vmax.f32 %v5132, %v5133
        %v5135 = vrot.slane %v5134, 1
        %v5136 = vmax.f32 %v5134, %v5135
        %v5137 = vsel %vm3939, %v3325, -inf
        %v5138 = vrot.slane %v5137, 4
        %v5139 = vmax.f32 %v5137, %v5138
        %v5140 = vrot.slane %v5139, 2
        %v5141 = vmax.f32 %v5139, %v5140
        %v5142 = vrot.slane %v5141, 1
        %v5143 = vmax.f32 %v5141, %v5142
        %v5144 = vsel %vm3939, %v3333, -inf
        %v5145 = vrot.slane %v5144, 4
        %v5146 = vmax.f32 %v5144, %v5145
        %v5147 = vrot.slane %v5146, 2
        %v5148 = vmax.f32 %v5146, %v5147
        %v5149 = vrot.slane %v5148, 1
        %v5150 = vmax.f32 %v5148, %v5149
        %v5151 = vsel %vm3939, %v3341, -inf
        %v5152 = vrot.slane %v5151, 4
        %v5153 = vmax.f32 %v5151, %v5152
        %v5154 = vrot.slane %v5153, 2
        %v5155 = vmax.f32 %v5153, %v5154
        %v5156 = vrot.slane %v5155, 1
        %v5157 = vmax.f32 %v5155, %v5156
        %v5158 = vsel %vm3939, %v3340, -inf
        %v5159 = vrot.slane %v5158, 4
        %v5160 = vmax.f32 %v5158, %v5159
        %v5161 = vrot.slane %v5160, 2
        %v5162 = vmax.f32 %v5160, %v5161
        %v5163 = vrot.slane %v5162, 1
        %v5164 = vmax.f32 %v5162, %v5163
        %v5165 = vsel %vm3939, %v3342, -inf
        %v5166 = vrot.slane %v5165, 4
        %v5167 = vmax.f32 %v5165, %v5166
        %v5168 = vrot.slane %v5167, 2
        %v5169 = vmax.f32 %v5167, %v5168
        %v5170 = vrot.slane %v5169, 1
        %v5171 = vmax.f32 %v5169, %v5170
        %v5172 = vsel %vm3939, %v3350, -inf
        %v5173 = vrot.slane %v5172, 4
        %v5174 = vmax.f32 %v5172, %v5173
        %v5175 = vrot.slane %v5174, 2
        %v5176 = vmax.f32 %v5174, %v5175
        %v5177 = vrot.slane %v5176, 1
        %v5178 = vmax.f32 %v5176, %v5177
        %v5179 = vsel %vm3939, %v3358, -inf
        %v5180 = vrot.slane %v5179, 4
        %v5181 = vmax.f32 %v5179, %v5180
        %v5182 = vrot.slane %v5181, 2
        %v5183 = vmax.f32 %v5181, %v5182
        %v5184 = vrot.slane %v5183, 1
        %v5185 = vmax.f32 %v5183, %v5184
        %v5186 = vsel %vm3939, %v3357, -inf
        %v5187 = vrot.slane %v5186, 4
        %v5188 = vmax.f32 %v5186, %v5187
        %v5189 = vrot.slane %v5188, 2
        %v5190 = vmax.f32 %v5188, %v5189
        %v5191 = vrot.slane %v5190, 1
        %v5192 = vmax.f32 %v5190, %v5191
        %v5193 = vsel %vm3939, %v3359, -inf
        %v5194 = vrot.slane %v5193, 4
        %v5195 = vmax.f32 %v5193, %v5194
        %v5196 = vrot.slane %v5195, 2
        %v5197 = vmax.f32 %v5195, %v5196
        %v5198 = vrot.slane %v5197, 1
        %v5199 = vmax.f32 %v5197, %v5198
        %v5200 = vsel %vm3939, %v3367, -inf
        %v5201 = vrot.slane %v5200, 4
        %v5202 = vmax.f32 %v5200, %v5201
        %v5203 = vrot.slane %v5202, 2
        %v5204 = vmax.f32 %v5202, %v5203
        %v5205 = vrot.slane %v5204, 1
        %v5206 = vmax.f32 %v5204, %v5205
        %v5207 = vsel %vm3939, %v3375, -inf
        %v5208 = vrot.slane %v5207, 4
        %v5209 = vmax.f32 %v5207, %v5208
        %v5210 = vrot.slane %v5209, 2
        %v5211 = vmax.f32 %v5209, %v5210
        %v5212 = vrot.slane %v5211, 1
        %v5213 = vmax.f32 %v5211, %v5212
        %v5214 = vsel %vm3939, %v3374, -inf
        %v5215 = vrot.slane %v5214, 4
        %v5216 = vmax.f32 %v5214, %v5215
        %v5217 = vrot.slane %v5216, 2
        %v5218 = vmax.f32 %v5216, %v5217
        %v5219 = vrot.slane %v5218, 1
        %v5220 = vmax.f32 %v5218, %v5219
        %v5221 = vsel %vm3939, %v3376, -inf
        %v5222 = vrot.slane %v5221, 4
        %v5223 = vmax.f32 %v5221, %v5222
        %v5224 = vrot.slane %v5223, 2
        %v5225 = vmax.f32 %v5223, %v5224
        %v5226 = vrot.slane %v5225, 1
        %v5227 = vmax.f32 %v5225, %v5226
        %v5228 = vsel %vm3939, %v3384, -inf
        %v5229 = vrot.slane %v5228, 4
        %v5230 = vmax.f32 %v5228, %v5229
        %v5231 = vrot.slane %v5230, 2
        %v5232 = vmax.f32 %v5230, %v5231
        %v5233 = vrot.slane %v5232, 1
        %v5234 = vmax.f32 %v5232, %v5233
        %v5235 = vsel %vm3939, %v3392, -inf
        %v5236 = vrot.slane %v5235, 4
        %v5237 = vmax.f32 %v5235, %v5236
        %v5238 = vrot.slane %v5237, 2
        %v5239 = vmax.f32 %v5237, %v5238
        %v5240 = vrot.slane %v5239, 1
        %v5241 = vmax.f32 %v5239, %v5240
        %v5242 = vsel %vm3939, %v3391, -inf
        %v5243 = vrot.slane %v5242, 4
        %v5244 = vmax.f32 %v5242, %v5243
        %v5245 = vrot.slane %v5244, 2
        %v5246 = vmax.f32 %v5244, %v5245
        %v5247 = vrot.slane %v5246, 1
        %v5248 = vmax.f32 %v5246, %v5247
        %v5249 = vsel %vm3939, %v3393, -inf
        %v5250 = vrot.slane %v5249, 4
        %v5251 = vmax.f32 %v5249, %v5250
        %v5252 = vrot.slane %v5251, 2
        %v5253 = vmax.f32 %v5251, %v5252
        %v5254 = vrot.slane %v5253, 1
        %v5255 = vmax.f32 %v5253, %v5254
        %v5256 = vsel %vm3939, %v3401, -inf
        %v5257 = vrot.slane %v5256, 4
        %v5258 = vmax.f32 %v5256, %v5257
        %v5259 = vrot.slane %v5258, 2
        %v5260 = vmax.f32 %v5258, %v5259
        %v5261 = vrot.slane %v5260, 1
        %v5262 = vmax.f32 %v5260, %v5261
        %v5263 = vsel %vm3939, %v3409, -inf
        %v5264 = vrot.slane %v5263, 4
        %v5265 = vmax.f32 %v5263, %v5264
        %v5266 = vrot.slane %v5265, 2
        %v5267 = vmax.f32 %v5265, %v5266
        %v5268 = vrot.slane %v5267, 1
        %v5269 = vmax.f32 %v5267, %v5268
        %v5270 = vsel %vm3939, %v3408, -inf
        %v5271 = vrot.slane %v5270, 4
        %v5272 = vmax.f32 %v5270, %v5271
        %v5273 = vrot.slane %v5272, 2
        %v5274 = vmax.f32 %v5272, %v5273
        %v5275 = vrot.slane %v5274, 1
        %v5276 = vmax.f32 %v5274, %v5275
        %v5277 = vsel %vm3939, %v3410, -inf
        %v5278 = vrot.slane %v5277, 4
        %v5279 = vmax.f32 %v5277, %v5278
        %v5280 = vrot.slane %v5279, 2
        %v5281 = vmax.f32 %v5279, %v5280
        %v5282 = vrot.slane %v5281, 1
        %v5283 = vmax.f32 %v5281, %v5282
        %v5284 = vsel %vm3939, %v3418, -inf
        %v5285 = vrot.slane %v5284, 4
        %v5286 = vmax.f32 %v5284, %v5285
        %v5287 = vrot.slane %v5286, 2
        %v5288 = vmax.f32 %v5286, %v5287
        %v5289 = vrot.slane %v5288, 1
        %v5290 = vmax.f32 %v5288, %v5289
        %v5291 = vsel %vm3939, %v3426, -inf
        %v5292 = vrot.slane %v5291, 4
        %v5293 = vmax.f32 %v5291, %v5292
        %v5294 = vrot.slane %v5293, 2
        %v5295 = vmax.f32 %v5293, %v5294
        %v5296 = vrot.slane %v5295, 1
        %v5297 = vmax.f32 %v5295, %v5296
        %v5298 = vsel %vm3939, %v3425, -inf
        %v5299 = vrot.slane %v5298, 4
        %v5300 = vmax.f32 %v5298, %v5299
        %v5301 = vrot.slane %v5300, 2
        %v5302 = vmax.f32 %v5300, %v5301
        %v5303 = vrot.slane %v5302, 1
        %v5304 = vmax.f32 %v5302, %v5303
        %v5305 = vsel %vm3939, %v3427, -inf
        %v5306 = vrot.slane %v5305, 4
        %v5307 = vmax.f32 %v5305, %v5306
        %v5308 = vrot.slane %v5307, 2
        %v5309 = vmax.f32 %v5307, %v5308
        %v5310 = vrot.slane %v5309, 1
        %v5311 = vmax.f32 %v5309, %v5310
        %v5312 = vsel %vm3939, %v3435, -inf
        %v5313 = vrot.slane %v5312, 4
        %v5314 = vmax.f32 %v5312, %v5313
        %v5315 = vrot.slane %v5314, 2
        %v5316 = vmax.f32 %v5314, %v5315
        %v5317 = vrot.slane %v5316, 1
        %v5318 = vmax.f32 %v5316, %v5317
        %v5319 = vsel %vm3939, %v3443, -inf
        %v5320 = vrot.slane %v5319, 4
        %v5321 = vmax.f32 %v5319, %v5320
        %v5322 = vrot.slane %v5321, 2
        %v5323 = vmax.f32 %v5321, %v5322
        %v5324 = vrot.slane %v5323, 1
        %v5325 = vmax.f32 %v5323, %v5324
        %v5326 = vsel %vm3939, %v3442, -inf
        %v5327 = vrot.slane %v5326, 4
        %v5328 = vmax.f32 %v5326, %v5327
        %v5329 = vrot.slane %v5328, 2
        %v5330 = vmax.f32 %v5328, %v5329
        %v5331 = vrot.slane %v5330, 1
        %v5332 = vmax.f32 %v5330, %v5331
        %v5333 = vsel %vm3939, %v3444, -inf
        %v5334 = vrot.slane %v5333, 4
        %v5335 = vmax.f32 %v5333, %v5334
        %v5336 = vrot.slane %v5335, 2
        %v5337 = vmax.f32 %v5335, %v5336
        %v5338 = vrot.slane %v5337, 1
        %v5339 = vmax.f32 %v5337, %v5338
        %v5340 = vsel %vm3939, %v3452, -inf
        %v5341 = vrot.slane %v5340, 4
        %v5342 = vmax.f32 %v5340, %v5341
        %v5343 = vrot.slane %v5342, 2
        %v5344 = vmax.f32 %v5342, %v5343
        %v5345 = vrot.slane %v5344, 1
        %v5346 = vmax.f32 %v5344, %v5345
        %v5347 = vsel %vm3939, %v3460, -inf
        %v5348 = vrot.slane %v5347, 4
        %v5349 = vmax.f32 %v5347, %v5348
        %v5350 = vrot.slane %v5349, 2
        %v5351 = vmax.f32 %v5349, %v5350
        %v5352 = vrot.slane %v5351, 1
        %v5353 = vmax.f32 %v5351, %v5352
        %v5354 = vsel %vm3939, %v3459, -inf
        %v5355 = vrot.slane %v5354, 4
        %v5356 = vmax.f32 %v5354, %v5355
        %v5357 = vrot.slane %v5356, 2
        %v5358 = vmax.f32 %v5356, %v5357
        %v5359 = vrot.slane %v5358, 1
        %v5360 = vmax.f32 %v5358, %v5359
        %v5361 = vsel %vm3939, %v3461, -inf
        %v5362 = vrot.slane %v5361, 4
        %v5363 = vmax.f32 %v5361, %v5362
        %v5364 = vrot.slane %v5363, 2
        %v5365 = vmax.f32 %v5363, %v5364
        %v5366 = vrot.slane %v5365, 1
        %v5367 = vmax.f32 %v5365, %v5366
        %v5368 = vsel %vm3939, %v3469, -inf
        %v5369 = vrot.slane %v5368, 4
        %v5370 = vmax.f32 %v5368, %v5369
        %v5371 = vrot.slane %v5370, 2
        %v5372 = vmax.f32 %v5370, %v5371
        %v5373 = vrot.slane %v5372, 1
        %v5374 = vmax.f32 %v5372, %v5373
        %v5375 = vsel %vm3939, %v3477, -inf
        %v5376 = vrot.slane %v5375, 4
        %v5377 = vmax.f32 %v5375, %v5376
        %v5378 = vrot.slane %v5377, 2
        %v5379 = vmax.f32 %v5377, %v5378
        %v5380 = vrot.slane %v5379, 1
        %v5381 = vmax.f32 %v5379, %v5380
        %v5382 = vsel %vm3939, %v3476, -inf
        %v5383 = vrot.slane %v5382, 4
        %v5384 = vmax.f32 %v5382, %v5383
        %v5385 = vrot.slane %v5384, 2
        %v5386 = vmax.f32 %v5384, %v5385
        %v5387 = vrot.slane %v5386, 1
        %v5388 = vmax.f32 %v5386, %v5387
        %v5389 = vsel %vm3939, %v3478, -inf
        %v5390 = vrot.slane %v5389, 4
        %v5391 = vmax.f32 %v5389, %v5390
        %v5392 = vrot.slane %v5391, 2
        %v5393 = vmax.f32 %v5391, %v5392
        %v5394 = vrot.slane %v5393, 1
        %v5395 = vmax.f32 %v5393, %v5394
        %v5396 = vsel %vm3939, %v3486, -inf
        %v5397 = vrot.slane %v5396, 4
        %v5398 = vmax.f32 %v5396, %v5397
        %v5399 = vrot.slane %v5398, 2
        %v5400 = vmax.f32 %v5398, %v5399
        %v5401 = vrot.slane %v5400, 1
        %v5402 = vmax.f32 %v5400, %v5401
        %v5403 = vsel %vm3939, %v3494, -inf
        %v5404 = vrot.slane %v5403, 4
        %v5405 = vmax.f32 %v5403, %v5404
        %v5406 = vrot.slane %v5405, 2
        %v5407 = vmax.f32 %v5405, %v5406
        %v5408 = vrot.slane %v5407, 1
        %v5409 = vmax.f32 %v5407, %v5408
        %v5410 = vsel %vm3939, %v3493, -inf
        %v5411 = vrot.slane %v5410, 4
        %v5412 = vmax.f32 %v5410, %v5411
        %v5413 = vrot.slane %v5412, 2
        %v5414 = vmax.f32 %v5412, %v5413
        %v5415 = vrot.slane %v5414, 1
        %v5416 = vmax.f32 %v5414, %v5415
        %v5417 = vsel %vm3939, %v3495, -inf
        %v5418 = vrot.slane %v5417, 4
        %v5419 = vmax.f32 %v5417, %v5418
        %v5420 = vrot.slane %v5419, 2
        %v5421 = vmax.f32 %v5419, %v5420
        %v5422 = vrot.slane %v5421, 1
        %v5423 = vmax.f32 %v5421, %v5422
        %v5424 = vsel %vm3939, %v3503, -inf
        %v5425 = vrot.slane %v5424, 4
        %v5426 = vmax.f32 %v5424, %v5425
        %v5427 = vrot.slane %v5426, 2
        %v5428 = vmax.f32 %v5426, %v5427
        %v5429 = vrot.slane %v5428, 1
        %v5430 = vmax.f32 %v5428, %v5429
        %v5431 = vsel %vm3939, %v3511, -inf
        %v5432 = vrot.slane %v5431, 4
        %v5433 = vmax.f32 %v5431, %v5432
        %v5434 = vrot.slane %v5433, 2
        %v5435 = vmax.f32 %v5433, %v5434
        %v5436 = vrot.slane %v5435, 1
        %v5437 = vmax.f32 %v5435, %v5436
        %v5438 = vsel %vm3939, %v3510, -inf
        %v5439 = vrot.slane %v5438, 4
        %v5440 = vmax.f32 %v5438, %v5439
        %v5441 = vrot.slane %v5440, 2
        %v5442 = vmax.f32 %v5440, %v5441
        %v5443 = vrot.slane %v5442, 1
        %v5444 = vmax.f32 %v5442, %v5443
        %v5445 = vsel %vm3939, %v3512, -inf
        %v5446 = vrot.slane %v5445, 4
        %v5447 = vmax.f32 %v5445, %v5446
        %v5448 = vrot.slane %v5447, 2
        %v5449 = vmax.f32 %v5447, %v5448
        %v5450 = vrot.slane %v5449, 1
        %v5451 = vmax.f32 %v5449, %v5450
        %v5452 = vsel %vm3939, %v3520, -inf
        %v5453 = vrot.slane %v5452, 4
        %v5454 = vmax.f32 %v5452, %v5453
        %v5455 = vrot.slane %v5454, 2
        %v5456 = vmax.f32 %v5454, %v5455
        %v5457 = vrot.slane %v5456, 1
        %v5458 = vmax.f32 %v5456, %v5457
        %v5459 = vsel %vm3939, %v3528, -inf
        %v5460 = vrot.slane %v5459, 4
        %v5461 = vmax.f32 %v5459, %v5460
        %v5462 = vrot.slane %v5461, 2
        %v5463 = vmax.f32 %v5461, %v5462
        %v5464 = vrot.slane %v5463, 1
        %v5465 = vmax.f32 %v5463, %v5464
        %v5466 = vsel %vm3939, %v3527, -inf
        %v5467 = vrot.slane %v5466, 4
        %v5468 = vmax.f32 %v5466, %v5467
        %v5469 = vrot.slane %v5468, 2
        %v5470 = vmax.f32 %v5468, %v5469
        %v5471 = vrot.slane %v5470, 1
        %v5472 = vmax.f32 %v5470, %v5471
        %v5473 = vsel %vm3939, %v3529, -inf
        %v5474 = vrot.slane %v5473, 4
        %v5475 = vmax.f32 %v5473, %v5474
        %v5476 = vrot.slane %v5475, 2
        %v5477 = vmax.f32 %v5475, %v5476
        %v5478 = vrot.slane %v5477, 1
        %v5479 = vmax.f32 %v5477, %v5478
        %v5480 = vsel %vm3939, %v3537, -inf
        %v5481 = vrot.slane %v5480, 4
        %v5482 = vmax.f32 %v5480, %v5481
        %v5483 = vrot.slane %v5482, 2
        %v5484 = vmax.f32 %v5482, %v5483
        %v5485 = vrot.slane %v5484, 1
        %v5486 = vmax.f32 %v5484, %v5485
        %v5487 = vsel %vm3939, %v3545, -inf
        %v5488 = vrot.slane %v5487, 4
        %v5489 = vmax.f32 %v5487, %v5488
        %v5490 = vrot.slane %v5489, 2
        %v5491 = vmax.f32 %v5489, %v5490
        %v5492 = vrot.slane %v5491, 1
        %v5493 = vmax.f32 %v5491, %v5492
        %v5494 = vsel %vm3939, %v3544, -inf
        %v5495 = vrot.slane %v5494, 4
        %v5496 = vmax.f32 %v5494, %v5495
        %v5497 = vrot.slane %v5496, 2
        %v5498 = vmax.f32 %v5496, %v5497
        %v5499 = vrot.slane %v5498, 1
        %v5500 = vmax.f32 %v5498, %v5499
        %v5501 = vsel %vm3939, %v3546, -inf
        %v5502 = vrot.slane %v5501, 4
        %v5503 = vmax.f32 %v5501, %v5502
        %v5504 = vrot.slane %v5503, 2
        %v5505 = vmax.f32 %v5503, %v5504
        %v5506 = vrot.slane %v5505, 1
        %v5507 = vmax.f32 %v5505, %v5506
        %v5508 = vsel %vm3939, %v3554, -inf
        %v5509 = vrot.slane %v5508, 4
        %v5510 = vmax.f32 %v5508, %v5509
        %v5511 = vrot.slane %v5510, 2
        %v5512 = vmax.f32 %v5510, %v5511
        %v5513 = vrot.slane %v5512, 1
        %v5514 = vmax.f32 %v5512, %v5513
        %v5515 = vsel %vm3939, %v3562, -inf
        %v5516 = vrot.slane %v5515, 4
        %v5517 = vmax.f32 %v5515, %v5516
        %v5518 = vrot.slane %v5517, 2
        %v5519 = vmax.f32 %v5517, %v5518
        %v5520 = vrot.slane %v5519, 1
        %v5521 = vmax.f32 %v5519, %v5520
        %v5522 = vsel %vm3939, %v3561, -inf
        %v5523 = vrot.slane %v5522, 4
        %v5524 = vmax.f32 %v5522, %v5523
        %v5525 = vrot.slane %v5524, 2
        %v5526 = vmax.f32 %v5524, %v5525
        %v5527 = vrot.slane %v5526, 1
        %v5528 = vmax.f32 %v5526, %v5527
        %v5529 = vsel %vm3939, %v3563, -inf
        %v5530 = vrot.slane %v5529, 4
        %v5531 = vmax.f32 %v5529, %v5530
        %v5532 = vrot.slane %v5531, 2
        %v5533 = vmax.f32 %v5531, %v5532
        %v5534 = vrot.slane %v5533, 1
        %v5535 = vmax.f32 %v5533, %v5534
        %v5536 = vsel %vm3939, %v3571, -inf
        %v5537 = vrot.slane %v5536, 4
        %v5538 = vmax.f32 %v5536, %v5537
        %v5539 = vrot.slane %v5538, 2
        %v5540 = vmax.f32 %v5538, %v5539
        %v5541 = vrot.slane %v5540, 1
        %v5542 = vmax.f32 %v5540, %v5541
        %v5543 = vsel %vm3939, %v3579, -inf
        %v5544 = vrot.slane %v5543, 4
        %v5545 = vmax.f32 %v5543, %v5544
        %v5546 = vrot.slane %v5545, 2
        %v5547 = vmax.f32 %v5545, %v5546
        %v5548 = vrot.slane %v5547, 1
        %v5549 = vmax.f32 %v5547, %v5548
        %v5550 = vsel %vm3939, %v3578, -inf
        %v5551 = vrot.slane %v5550, 4
        %v5552 = vmax.f32 %v5550, %v5551
        %v5553 = vrot.slane %v5552, 2
        %v5554 = vmax.f32 %v5552, %v5553
        %v5555 = vrot.slane %v5554, 1
        %v5556 = vmax.f32 %v5554, %v5555
        %v5557 = vsel %vm3939, %v3580, -inf
        %v5558 = vrot.slane %v5557, 4
        %v5559 = vmax.f32 %v5557, %v5558
        %v5560 = vrot.slane %v5559, 2
        %v5561 = vmax.f32 %v5559, %v5560
        %v5562 = vrot.slane %v5561, 1
        %v5563 = vmax.f32 %v5561, %v5562
        %v5564 = vsel %vm3939, %v3588, -inf
        %v5565 = vrot.slane %v5564, 4
        %v5566 = vmax.f32 %v5564, %v5565
        %v5567 = vrot.slane %v5566, 2
        %v5568 = vmax.f32 %v5566, %v5567
        %v5569 = vrot.slane %v5568, 1
        %v5570 = vmax.f32 %v5568, %v5569
        %v5571 = vsel %vm3939, %v3596, -inf
        %v5572 = vrot.slane %v5571, 4
        %v5573 = vmax.f32 %v5571, %v5572
        %v5574 = vrot.slane %v5573, 2
        %v5575 = vmax.f32 %v5573, %v5574
        %v5576 = vrot.slane %v5575, 1
        %v5577 = vmax.f32 %v5575, %v5576
        %v5578 = vsel %vm3939, %v3595, -inf
        %v5579 = vrot.slane %v5578, 4
        %v5580 = vmax.f32 %v5578, %v5579
        %v5581 = vrot.slane %v5580, 2
        %v5582 = vmax.f32 %v5580, %v5581
        %v5583 = vrot.slane %v5582, 1
        %v5584 = vmax.f32 %v5582, %v5583
        %v5585 = vsel %vm3939, %v3597, -inf
        %v5586 = vrot.slane %v5585, 4
        %v5587 = vmax.f32 %v5585, %v5586
        %v5588 = vrot.slane %v5587, 2
        %v5589 = vmax.f32 %v5587, %v5588
        %v5590 = vrot.slane %v5589, 1
        %v5591 = vmax.f32 %v5589, %v5590
        %v5592 = vsel %vm3939, %v3605, -inf
        %v5593 = vrot.slane %v5592, 4
        %v5594 = vmax.f32 %v5592, %v5593
        %v5595 = vrot.slane %v5594, 2
        %v5596 = vmax.f32 %v5594, %v5595
        %v5597 = vrot.slane %v5596, 1
        %v5598 = vmax.f32 %v5596, %v5597
        %v5599 = vsel %vm3939, %v3613, -inf
        %v5600 = vrot.slane %v5599, 4
        %v5601 = vmax.f32 %v5599, %v5600
        %v5602 = vrot.slane %v5601, 2
        %v5603 = vmax.f32 %v5601, %v5602
        %v5604 = vrot.slane %v5603, 1
        %v5605 = vmax.f32 %v5603, %v5604
        %v5606 = vsel %vm3939, %v3612, -inf
        %v5607 = vrot.slane %v5606, 4
        %v5608 = vmax.f32 %v5606, %v5607
        %v5609 = vrot.slane %v5608, 2
        %v5610 = vmax.f32 %v5608, %v5609
        %v5611 = vrot.slane %v5610, 1
        %v5612 = vmax.f32 %v5610, %v5611
        %v5613 = vsel %vm3939, %v3614, -inf
        %v5614 = vrot.slane %v5613, 4
        %v5615 = vmax.f32 %v5613, %v5614
        %v5616 = vrot.slane %v5615, 2
        %v5617 = vmax.f32 %v5615, %v5616
        %v5618 = vrot.slane %v5617, 1
        %v5619 = vmax.f32 %v5617, %v5618
        %v5620 = vsel %vm3939, %v3622, -inf
        %v5621 = vrot.slane %v5620, 4
        %v5622 = vmax.f32 %v5620, %v5621
        %v5623 = vrot.slane %v5622, 2
        %v5624 = vmax.f32 %v5622, %v5623
        %v5625 = vrot.slane %v5624, 1
        %v5626 = vmax.f32 %v5624, %v5625
        %v5627 = vsel %vm3939, %v3630, -inf
        %v5628 = vrot.slane %v5627, 4
        %v5629 = vmax.f32 %v5627, %v5628
        %v5630 = vrot.slane %v5629, 2
        %v5631 = vmax.f32 %v5629, %v5630
        %v5632 = vrot.slane %v5631, 1
        %v5633 = vmax.f32 %v5631, %v5632
        %v5634 = vsel %vm3939, %v3629, -inf
        %v5635 = vrot.slane %v5634, 4
        %v5636 = vmax.f32 %v5634, %v5635
        %v5637 = vrot.slane %v5636, 2
        %v5638 = vmax.f32 %v5636, %v5637
        %v5639 = vrot.slane %v5638, 1
        %v5640 = vmax.f32 %v5638, %v5639
        %v5641 = vsel %vm3939, %v3631, -inf
        %v5642 = vrot.slane %v5641, 4
        %v5643 = vmax.f32 %v5641, %v5642
        %v5644 = vrot.slane %v5643, 2
        %v5645 = vmax.f32 %v5643, %v5644
        %v5646 = vrot.slane %v5645, 1
        %v5647 = vmax.f32 %v5645, %v5646
        %v5648 = vsel %vm3939, %v3639, -inf
        %v5649 = vrot.slane %v5648, 4
        %v5650 = vmax.f32 %v5648, %v5649
        %v5651 = vrot.slane %v5650, 2
        %v5652 = vmax.f32 %v5650, %v5651
        %v5653 = vrot.slane %v5652, 1
        %v5654 = vmax.f32 %v5652, %v5653
        %v5655 = vsel %vm3939, %v3647, -inf
        %v5656 = vrot.slane %v5655, 4
        %v5657 = vmax.f32 %v5655, %v5656
        %v5658 = vrot.slane %v5657, 2
        %v5659 = vmax.f32 %v5657, %v5658
        %v5660 = vrot.slane %v5659, 1
        %v5661 = vmax.f32 %v5659, %v5660
        %v5662 = vsel %vm3939, %v3646, -inf
        %v5663 = vrot.slane %v5662, 4
        %v5664 = vmax.f32 %v5662, %v5663
        %v5665 = vrot.slane %v5664, 2
        %v5666 = vmax.f32 %v5664, %v5665
        %v5667 = vrot.slane %v5666, 1
        %v5668 = vmax.f32 %v5666, %v5667
        %v5669 = vsel %vm3939, %v3648, -inf
        %v5670 = vrot.slane %v5669, 4
        %v5671 = vmax.f32 %v5669, %v5670
        %v5672 = vrot.slane %v5671, 2
        %v5673 = vmax.f32 %v5671, %v5672
        %v5674 = vrot.slane %v5673, 1
        %v5675 = vmax.f32 %v5673, %v5674
        %v5676 = vsel %vm3939, %v3656, -inf
        %v5677 = vrot.slane %v5676, 4
        %v5678 = vmax.f32 %v5676, %v5677
        %v5679 = vrot.slane %v5678, 2
        %v5680 = vmax.f32 %v5678, %v5679
        %v5681 = vrot.slane %v5680, 1
        %v5682 = vmax.f32 %v5680, %v5681
        %v5683 = vsel %vm3939, %v3664, -inf
        %v5684 = vrot.slane %v5683, 4
        %v5685 = vmax.f32 %v5683, %v5684
        %v5686 = vrot.slane %v5685, 2
        %v5687 = vmax.f32 %v5685, %v5686
        %v5688 = vrot.slane %v5687, 1
        %v5689 = vmax.f32 %v5687, %v5688
        %v5690 = vsel %vm3939, %v3663, -inf
        %v5691 = vrot.slane %v5690, 4
        %v5692 = vmax.f32 %v5690, %v5691
        %v5693 = vrot.slane %v5692, 2
        %v5694 = vmax.f32 %v5692, %v5693
        %v5695 = vrot.slane %v5694, 1
        %v5696 = vmax.f32 %v5694, %v5695
        %v5697 = vsel %vm3939, %v3665, -inf
        %v5698 = vrot.slane %v5697, 4
        %v5699 = vmax.f32 %v5697, %v5698
        %v5700 = vrot.slane %v5699, 2
        %v5701 = vmax.f32 %v5699, %v5700
        %v5702 = vrot.slane %v5701, 1
        %v5703 = vmax.f32 %v5701, %v5702
        %v5704 = vsel %vm3939, %v3673, -inf
        %v5705 = vrot.slane %v5704, 4
        %v5706 = vmax.f32 %v5704, %v5705
        %v5707 = vrot.slane %v5706, 2
        %v5708 = vmax.f32 %v5706, %v5707
        %v5709 = vrot.slane %v5708, 1
        %v5710 = vmax.f32 %v5708, %v5709
        %v5711 = vsel %vm3939, %v3681, -inf
        %v5712 = vrot.slane %v5711, 4
        %v5713 = vmax.f32 %v5711, %v5712
        %v5714 = vrot.slane %v5713, 2
        %v5715 = vmax.f32 %v5713, %v5714
        %v5716 = vrot.slane %v5715, 1
        %v5717 = vmax.f32 %v5715, %v5716
        %v5718 = vsel %vm3939, %v3680, -inf
        %v5719 = vrot.slane %v5718, 4
        %v5720 = vmax.f32 %v5718, %v5719
        %v5721 = vrot.slane %v5720, 2
        %v5722 = vmax.f32 %v5720, %v5721
        %v5723 = vrot.slane %v5722, 1
        %v5724 = vmax.f32 %v5722, %v5723
        %v5725 = vsel %vm3939, %v3682, -inf
        %v5726 = vrot.slane %v5725, 4
        %v5727 = vmax.f32 %v5725, %v5726
        %v5728 = vrot.slane %v5727, 2
        %v5729 = vmax.f32 %v5727, %v5728
        %v5730 = vrot.slane %v5729, 1
        %v5731 = vmax.f32 %v5729, %v5730
        %v5732 = vld [vmem:[%s4] sm:$0x1]
        %v5734 = vlaneseq
        %v5735 = vshrl.u32 %v5734, 7
        %v5736 = vsub.s32 0, %v5735
        %v5737 = vrot.slane %v5732, %v5736
        %v5739 = vadd.f32 %v3946, %v5737
        %v5740 = vadd.f32 %v3953, %v5737
        %v5741 = vadd.f32 %v3960, %v5737
        %v5742 = vadd.f32 %v3967, %v5737
        %v5743 = vadd.f32 %v3974, %v5737
        %v5744 = vadd.f32 %v3981, %v5737
        %v5745 = vadd.f32 %v3988, %v5737
        %v5746 = vadd.f32 %v3995, %v5737
        %v5747 = vadd.f32 %v4002, %v5737
        %v5748 = vadd.f32 %v4009, %v5737
        %v5749 = vadd.f32 %v4016, %v5737
        %v5750 = vadd.f32 %v4023, %v5737
        %v5751 = vadd.f32 %v4030, %v5737
        %v5752 = vadd.f32 %v4037, %v5737
        %v5753 = vadd.f32 %v4044, %v5737
        %v5754 = vadd.f32 %v4051, %v5737
        %v5755 = vadd.f32 %v4058, %v5737
        %v5756 = vadd.f32 %v4065, %v5737
        %v5757 = vadd.f32 %v4072, %v5737
        %v5758 = vadd.f32 %v4079, %v5737
        %v5759 = vadd.f32 %v4086, %v5737
        %v5760 = vadd.f32 %v4093, %v5737
        %v5761 = vadd.f32 %v4100, %v5737
        %v5762 = vadd.f32 %v4107, %v5737
        %v5763 = vadd.f32 %v4114, %v5737
        %v5764 = vadd.f32 %v4121, %v5737
        %v5765 = vadd.f32 %v4128, %v5737
        %v5766 = vadd.f32 %v4135, %v5737
        %v5767 = vadd.f32 %v4142, %v5737
        %v5768 = vadd.f32 %v4149, %v5737
        %v5769 = vadd.f32 %v4156, %v5737
        %v5770 = vadd.f32 %v4163, %v5737
        %v5771 = vadd.f32 %v4170, %v5737
        %v5772 = vadd.f32 %v4177, %v5737
        %v5773 = vadd.f32 %v4184, %v5737
        %v5774 = vadd.f32 %v4191, %v5737
        %v5775 = vadd.f32 %v4198, %v5737
        %v5776 = vadd.f32 %v4205, %v5737
        %v5777 = vadd.f32 %v4212, %v5737
        %v5778 = vadd.f32 %v4219, %v5737
        %v5779 = vadd.f32 %v4226, %v5737
        %v5780 = vadd.f32 %v4233, %v5737
        %v5781 = vadd.f32 %v4240, %v5737
        %v5782 = vadd.f32 %v4247, %v5737
        %v5783 = vadd.f32 %v4254, %v5737
        %v5784 = vadd.f32 %v4261, %v5737
        %v5785 = vadd.f32 %v4268, %v5737
        %v5786 = vadd.f32 %v4275, %v5737
        %v5787 = vadd.f32 %v4282, %v5737
        %v5788 = vadd.f32 %v4289, %v5737
        %v5789 = vadd.f32 %v4296, %v5737
        %v5790 = vadd.f32 %v4303, %v5737
        %v5791 = vadd.f32 %v4310, %v5737
        %v5792 = vadd.f32 %v4317, %v5737
        %v5793 = vadd.f32 %v4324, %v5737
        %v5794 = vadd.f32 %v4331, %v5737
        %v5795 = vadd.f32 %v4338, %v5737
        %v5796 = vadd.f32 %v4345, %v5737
        %v5797 = vadd.f32 %v4352, %v5737
        %v5798 = vadd.f32 %v4359, %v5737
        %v5799 = vadd.f32 %v4366, %v5737
        %v5800 = vadd.f32 %v4373, %v5737
        %v5801 = vadd.f32 %v4380, %v5737
        %v5802 = vadd.f32 %v4387, %v5737
        %v5803 = vadd.f32 %v4394, %v5737
        %v5804 = vadd.f32 %v4401, %v5737
        %v5805 = vadd.f32 %v4408, %v5737
        %v5806 = vadd.f32 %v4415, %v5737
        %v5807 = vadd.f32 %v4422, %v5737
        %v5808 = vadd.f32 %v4429, %v5737
        %v5809 = vadd.f32 %v4436, %v5737
        %v5810 = vadd.f32 %v4443, %v5737
        %v5811 = vadd.f32 %v4450, %v5737
        %v5812 = vadd.f32 %v4457, %v5737
        %v5813 = vadd.f32 %v4464, %v5737
        %v5814 = vadd.f32 %v4471, %v5737
        %v5815 = vadd.f32 %v4478, %v5737
        %v5816 = vadd.f32 %v4485, %v5737
        %v5817 = vadd.f32 %v4492, %v5737
        %v5818 = vadd.f32 %v4499, %v5737
        %v5819 = vadd.f32 %v4506, %v5737
        %v5820 = vadd.f32 %v4513, %v5737
        %v5821 = vadd.f32 %v4520, %v5737
        %v5822 = vadd.f32 %v4527, %v5737
        %v5823 = vadd.f32 %v4534, %v5737
        %v5824 = vadd.f32 %v4541, %v5737
        %v5825 = vadd.f32 %v4548, %v5737
        %v5826 = vadd.f32 %v4555, %v5737
        %v5827 = vadd.f32 %v4562, %v5737
        %v5828 = vadd.f32 %v4569, %v5737
        %v5829 = vadd.f32 %v4576, %v5737
        %v5830 = vadd.f32 %v4583, %v5737
        %v5831 = vadd.f32 %v4590, %v5737
        %v5832 = vadd.f32 %v4597, %v5737
        %v5833 = vadd.f32 %v4604, %v5737
        %v5834 = vadd.f32 %v4611, %v5737
        %v5835 = vadd.f32 %v4618, %v5737
        %v5836 = vadd.f32 %v4625, %v5737
        %v5837 = vadd.f32 %v4632, %v5737
        %v5838 = vadd.f32 %v4639, %v5737
        %v5839 = vadd.f32 %v4646, %v5737
        %v5840 = vadd.f32 %v4653, %v5737
        %v5841 = vadd.f32 %v4660, %v5737
        %v5842 = vadd.f32 %v4667, %v5737
        %v5843 = vadd.f32 %v4674, %v5737
        %v5844 = vadd.f32 %v4681, %v5737
        %v5845 = vadd.f32 %v4688, %v5737
        %v5846 = vadd.f32 %v4695, %v5737
        %v5847 = vadd.f32 %v4702, %v5737
        %v5848 = vadd.f32 %v4709, %v5737
        %v5849 = vadd.f32 %v4716, %v5737
        %v5850 = vadd.f32 %v4723, %v5737
        %v5851 = vadd.f32 %v4730, %v5737
        %v5852 = vadd.f32 %v4737, %v5737
        %v5853 = vadd.f32 %v4744, %v5737
        %v5854 = vadd.f32 %v4751, %v5737
        %v5855 = vadd.f32 %v4758, %v5737
        %v5856 = vadd.f32 %v4765, %v5737
        %v5857 = vadd.f32 %v4772, %v5737
        %v5858 = vadd.f32 %v4779, %v5737
        %v5859 = vadd.f32 %v4786, %v5737
        %v5860 = vadd.f32 %v4793, %v5737
        %v5861 = vadd.f32 %v4800, %v5737
        %v5862 = vadd.f32 %v4807, %v5737
        %v5863 = vadd.f32 %v4814, %v5737
        %v5864 = vadd.f32 %v4821, %v5737
        %v5865 = vadd.f32 %v4828, %v5737
        %v5866 = vadd.f32 %v4835, %v5737
        %v5867 = vadd.f32 %v4842, %v5737
        %v5868 = vadd.f32 %v4849, %v5737
        %v5869 = vadd.f32 %v4856, %v5737
        %v5870 = vadd.f32 %v4863, %v5737
        %v5871 = vadd.f32 %v4870, %v5737
        %v5872 = vadd.f32 %v4877, %v5737
        %v5873 = vadd.f32 %v4884, %v5737
        %v5874 = vadd.f32 %v4891, %v5737
        %v5875 = vadd.f32 %v4898, %v5737
        %v5876 = vadd.f32 %v4905, %v5737
        %v5877 = vadd.f32 %v4912, %v5737
        %v5878 = vadd.f32 %v4919, %v5737
        %v5879 = vadd.f32 %v4926, %v5737
        %v5880 = vadd.f32 %v4933, %v5737
        %v5881 = vadd.f32 %v4940, %v5737
        %v5882 = vadd.f32 %v4947, %v5737
        %v5883 = vadd.f32 %v4954, %v5737
        %v5884 = vadd.f32 %v4961, %v5737
        %v5885 = vadd.f32 %v4968, %v5737
        %v5886 = vadd.f32 %v4975, %v5737
        %v5887 = vadd.f32 %v4982, %v5737
        %v5888 = vadd.f32 %v4989, %v5737
        %v5889 = vadd.f32 %v4996, %v5737
        %v5890 = vadd.f32 %v5003, %v5737
        %v5891 = vadd.f32 %v5010, %v5737
        %v5892 = vadd.f32 %v5017, %v5737
        %v5893 = vadd.f32 %v5024, %v5737
        %v5894 = vadd.f32 %v5031, %v5737
        %v5895 = vadd.f32 %v5038, %v5737
        %v5896 = vadd.f32 %v5045, %v5737
        %v5897 = vadd.f32 %v5052, %v5737
        %v5898 = vadd.f32 %v5059, %v5737
        %v5899 = vadd.f32 %v5066, %v5737
        %v5900 = vadd.f32 %v5073, %v5737
        %v5901 = vadd.f32 %v5080, %v5737
        %v5902 = vadd.f32 %v5087, %v5737
        %v5903 = vadd.f32 %v5094, %v5737
        %v5904 = vadd.f32 %v5101, %v5737
        %v5905 = vadd.f32 %v5108, %v5737
        %v5906 = vadd.f32 %v5115, %v5737
        %v5907 = vadd.f32 %v5122, %v5737
        %v5908 = vadd.f32 %v5129, %v5737
        %v5909 = vadd.f32 %v5136, %v5737
        %v5910 = vadd.f32 %v5143, %v5737
        %v5911 = vadd.f32 %v5150, %v5737
        %v5912 = vadd.f32 %v5157, %v5737
        %v5913 = vadd.f32 %v5164, %v5737
        %v5914 = vadd.f32 %v5171, %v5737
        %v5915 = vadd.f32 %v5178, %v5737
        %v5916 = vadd.f32 %v5185, %v5737
        %v5917 = vadd.f32 %v5192, %v5737
        %v5918 = vadd.f32 %v5199, %v5737
        %v5919 = vadd.f32 %v5206, %v5737
        %v5920 = vadd.f32 %v5213, %v5737
        %v5921 = vadd.f32 %v5220, %v5737
        %v5922 = vadd.f32 %v5227, %v5737
        %v5923 = vadd.f32 %v5234, %v5737
        %v5924 = vadd.f32 %v5241, %v5737
        %v5925 = vadd.f32 %v5248, %v5737
        %v5926 = vadd.f32 %v5255, %v5737
        %v5927 = vadd.f32 %v5262, %v5737
        %v5928 = vadd.f32 %v5269, %v5737
        %v5929 = vadd.f32 %v5276, %v5737
        %v5930 = vadd.f32 %v5283, %v5737
        %v5931 = vadd.f32 %v5290, %v5737
        %v5932 = vadd.f32 %v5297, %v5737
        %v5933 = vadd.f32 %v5304, %v5737
        %v5934 = vadd.f32 %v5311, %v5737
        %v5935 = vadd.f32 %v5318, %v5737
        %v5936 = vadd.f32 %v5325, %v5737
        %v5937 = vadd.f32 %v5332, %v5737
        %v5938 = vadd.f32 %v5339, %v5737
        %v5939 = vadd.f32 %v5346, %v5737
        %v5940 = vadd.f32 %v5353, %v5737
        %v5941 = vadd.f32 %v5360, %v5737
        %v5942 = vadd.f32 %v5367, %v5737
        %v5943 = vadd.f32 %v5374, %v5737
        %v5944 = vadd.f32 %v5381, %v5737
        %v5945 = vadd.f32 %v5388, %v5737
        %v5946 = vadd.f32 %v5395, %v5737
        %v5947 = vadd.f32 %v5402, %v5737
        %v5948 = vadd.f32 %v5409, %v5737
        %v5949 = vadd.f32 %v5416, %v5737
        %v5950 = vadd.f32 %v5423, %v5737
        %v5951 = vadd.f32 %v5430, %v5737
        %v5952 = vadd.f32 %v5437, %v5737
        %v5953 = vadd.f32 %v5444, %v5737
        %v5954 = vadd.f32 %v5451, %v5737
        %v5955 = vadd.f32 %v5458, %v5737
        %v5956 = vadd.f32 %v5465, %v5737
        %v5957 = vadd.f32 %v5472, %v5737
        %v5958 = vadd.f32 %v5479, %v5737
        %v5959 = vadd.f32 %v5486, %v5737
        %v5960 = vadd.f32 %v5493, %v5737
        %v5961 = vadd.f32 %v5500, %v5737
        %v5962 = vadd.f32 %v5507, %v5737
        %v5963 = vadd.f32 %v5514, %v5737
        %v5964 = vadd.f32 %v5521, %v5737
        %v5965 = vadd.f32 %v5528, %v5737
        %v5966 = vadd.f32 %v5535, %v5737
        %v5967 = vadd.f32 %v5542, %v5737
        %v5968 = vadd.f32 %v5549, %v5737
        %v5969 = vadd.f32 %v5556, %v5737
        %v5970 = vadd.f32 %v5563, %v5737
        %v5971 = vadd.f32 %v5570, %v5737
        %v5972 = vadd.f32 %v5577, %v5737
        %v5973 = vadd.f32 %v5584, %v5737
        %v5974 = vadd.f32 %v5591, %v5737
        %v5975 = vadd.f32 %v5598, %v5737
        %v5976 = vadd.f32 %v5605, %v5737
        %v5977 = vadd.f32 %v5612, %v5737
        %v5978 = vadd.f32 %v5619, %v5737
        %v5979 = vadd.f32 %v5626, %v5737
        %v5980 = vadd.f32 %v5633, %v5737
        %v5981 = vadd.f32 %v5640, %v5737
        %v5982 = vadd.f32 %v5647, %v5737
        %v5983 = vadd.f32 %v5654, %v5737
        %v5984 = vadd.f32 %v5661, %v5737
        %v5985 = vadd.f32 %v5668, %v5737
        %v5986 = vadd.f32 %v5675, %v5737
        %v5987 = vadd.f32 %v5682, %v5737
        %v5988 = vadd.f32 %v5689, %v5737
        %v5989 = vadd.f32 %v5696, %v5737
        %v5990 = vadd.f32 %v5703, %v5737
        %v5991 = vadd.f32 %v5710, %v5737
        %v5992 = vadd.f32 %v5717, %v5737
        %v5993 = vadd.f32 %v5724, %v5737
        %v5994 = vadd.f32 %v5731, %v5737
        %v5995 = vmax.f32 %v5739, 0.0
        %v5996 = vmax.f32 %v5740, 0.0
        %v5997 = vmax.f32 %v5741, 0.0
        %v5998 = vmax.f32 %v5742, 0.0
        %v5999 = vmax.f32 %v5743, 0.0
        %v6000 = vmax.f32 %v5744, 0.0
        %v6001 = vmax.f32 %v5745, 0.0
        %v6002 = vmax.f32 %v5746, 0.0
        %v6003 = vmax.f32 %v5747, 0.0
        %v6004 = vmax.f32 %v5748, 0.0
        %v6005 = vmax.f32 %v5749, 0.0
        %v6006 = vmax.f32 %v5750, 0.0
        %v6007 = vmax.f32 %v5751, 0.0
        %v6008 = vmax.f32 %v5752, 0.0
        %v6009 = vmax.f32 %v5753, 0.0
        %v6010 = vmax.f32 %v5754, 0.0
        %v6011 = vmax.f32 %v5755, 0.0
        %v6012 = vmax.f32 %v5756, 0.0
        %v6013 = vmax.f32 %v5757, 0.0
        %v6014 = vmax.f32 %v5758, 0.0
        %v6015 = vmax.f32 %v5759, 0.0
        %v6016 = vmax.f32 %v5760, 0.0
        %v6017 = vmax.f32 %v5761, 0.0
        %v6018 = vmax.f32 %v5762, 0.0
        %v6019 = vmax.f32 %v5763, 0.0
        %v6020 = vmax.f32 %v5764, 0.0
        %v6021 = vmax.f32 %v5765, 0.0
        %v6022 = vmax.f32 %v5766, 0.0
        %v6023 = vmax.f32 %v5767, 0.0
        %v6024 = vmax.f32 %v5768, 0.0
        %v6025 = vmax.f32 %v5769, 0.0
        %v6026 = vmax.f32 %v5770, 0.0
        %v6027 = vmax.f32 %v5771, 0.0
        %v6028 = vmax.f32 %v5772, 0.0
        %v6029 = vmax.f32 %v5773, 0.0
        %v6030 = vmax.f32 %v5774, 0.0
        %v6031 = vmax.f32 %v5775, 0.0
        %v6032 = vmax.f32 %v5776, 0.0
        %v6033 = vmax.f32 %v5777, 0.0
        %v6034 = vmax.f32 %v5778, 0.0
        %v6035 = vmax.f32 %v5779, 0.0
        %v6036 = vmax.f32 %v5780, 0.0
        %v6037 = vmax.f32 %v5781, 0.0
        %v6038 = vmax.f32 %v5782, 0.0
        %v6039 = vmax.f32 %v5783, 0.0
        %v6040 = vmax.f32 %v5784, 0.0
        %v6041 = vmax.f32 %v5785, 0.0
        %v6042 = vmax.f32 %v5786, 0.0
        %v6043 = vmax.f32 %v5787, 0.0
        %v6044 = vmax.f32 %v5788, 0.0
        %v6045 = vmax.f32 %v5789, 0.0
        %v6046 = vmax.f32 %v5790, 0.0
        %v6047 = vmax.f32 %v5791, 0.0
        %v6048 = vmax.f32 %v5792, 0.0
        %v6049 = vmax.f32 %v5793, 0.0
        %v6050 = vmax.f32 %v5794, 0.0
        %v6051 = vmax.f32 %v5795, 0.0
        %v6052 = vmax.f32 %v5796, 0.0
        %v6053 = vmax.f32 %v5797, 0.0
        %v6054 = vmax.f32 %v5798, 0.0
        %v6055 = vmax.f32 %v5799, 0.0
        %v6056 = vmax.f32 %v5800, 0.0
        %v6057 = vmax.f32 %v5801, 0.0
        %v6058 = vmax.f32 %v5802, 0.0
        %v6059 = vmax.f32 %v5803, 0.0
        %v6060 = vmax.f32 %v5804, 0.0
        %v6061 = vmax.f32 %v5805, 0.0
        %v6062 = vmax.f32 %v5806, 0.0
        %v6063 = vmax.f32 %v5807, 0.0
        %v6064 = vmax.f32 %v5808, 0.0
        %v6065 = vmax.f32 %v5809, 0.0
        %v6066 = vmax.f32 %v5810, 0.0
        %v6067 = vmax.f32 %v5811, 0.0
        %v6068 = vmax.f32 %v5812, 0.0
        %v6069 = vmax.f32 %v5813, 0.0
        %v6070 = vmax.f32 %v5814, 0.0
        %v6071 = vmax.f32 %v5815, 0.0
        %v6072 = vmax.f32 %v5816, 0.0
        %v6073 = vmax.f32 %v5817, 0.0
        %v6074 = vmax.f32 %v5818, 0.0
        %v6075 = vmax.f32 %v5819, 0.0
        %v6076 = vmax.f32 %v5820, 0.0
        %v6077 = vmax.f32 %v5821, 0.0
        %v6078 = vmax.f32 %v5822, 0.0
        %v6079 = vmax.f32 %v5823, 0.0
        %v6080 = vmax.f32 %v5824, 0.0
        %v6081 = vmax.f32 %v5825, 0.0
        %v6082 = vmax.f32 %v5826, 0.0
        %v6083 = vmax.f32 %v5827, 0.0
        %v6084 = vmax.f32 %v5828, 0.0
        %v6085 = vmax.f32 %v5829, 0.0
        %v6086 = vmax.f32 %v5830, 0.0
        %v6087 = vmax.f32 %v5831, 0.0
        %v6088 = vmax.f32 %v5832, 0.0
        %v6089 = vmax.f32 %v5833, 0.0
        %v6090 = vmax.f32 %v5834, 0.0
        %v6091 = vmax.f32 %v5835, 0.0
        %v6092 = vmax.f32 %v5836, 0.0
        %v6093 = vmax.f32 %v5837, 0.0
        %v6094 = vmax.f32 %v5838, 0.0
        %v6095 = vmax.f32 %v5839, 0.0
        %v6096 = vmax.f32 %v5840, 0.0
        %v6097 = vmax.f32 %v5841, 0.0
        %v6098 = vmax.f32 %v5842, 0.0
        %v6099 = vmax.f32 %v5843, 0.0
        %v6100 = vmax.f32 %v5844, 0.0
        %v6101 = vmax.f32 %v5845, 0.0
        %v6102 = vmax.f32 %v5846, 0.0
        %v6103 = vmax.f32 %v5847, 0.0
        %v6104 = vmax.f32 %v5848, 0.0
        %v6105 = vmax.f32 %v5849, 0.0
        %v6106 = vmax.f32 %v5850, 0.0
        %v6107 = vmax.f32 %v5851, 0.0
        %v6108 = vmax.f32 %v5852, 0.0
        %v6109 = vmax.f32 %v5853, 0.0
        %v6110 = vmax.f32 %v5854, 0.0
        %v6111 = vmax.f32 %v5855, 0.0
        %v6112 = vmax.f32 %v5856, 0.0
        %v6113 = vmax.f32 %v5857, 0.0
        %v6114 = vmax.f32 %v5858, 0.0
        %v6115 = vmax.f32 %v5859, 0.0
        %v6116 = vmax.f32 %v5860, 0.0
        %v6117 = vmax.f32 %v5861, 0.0
        %v6118 = vmax.f32 %v5862, 0.0
        %v6119 = vmax.f32 %v5863, 0.0
        %v6120 = vmax.f32 %v5864, 0.0
        %v6121 = vmax.f32 %v5865, 0.0
        %v6122 = vmax.f32 %v5866, 0.0
        %v6123 = vmax.f32 %v5867, 0.0
        %v6124 = vmax.f32 %v5868, 0.0
        %v6125 = vmax.f32 %v5869, 0.0
        %v6126 = vmax.f32 %v5870, 0.0
        %v6127 = vmax.f32 %v5871, 0.0
        %v6128 = vmax.f32 %v5872, 0.0
        %v6129 = vmax.f32 %v5873, 0.0
        %v6130 = vmax.f32 %v5874, 0.0
        %v6131 = vmax.f32 %v5875, 0.0
        %v6132 = vmax.f32 %v5876, 0.0
        %v6133 = vmax.f32 %v5877, 0.0
        %v6134 = vmax.f32 %v5878, 0.0
        %v6135 = vmax.f32 %v5879, 0.0
        %v6136 = vmax.f32 %v5880, 0.0
        %v6137 = vmax.f32 %v5881, 0.0
        %v6138 = vmax.f32 %v5882, 0.0
        %v6139 = vmax.f32 %v5883, 0.0
        %v6140 = vmax.f32 %v5884, 0.0
        %v6141 = vmax.f32 %v5885, 0.0
        %v6142 = vmax.f32 %v5886, 0.0
        %v6143 = vmax.f32 %v5887, 0.0
        %v6144 = vmax.f32 %v5888, 0.0
        %v6145 = vmax.f32 %v5889, 0.0
        %v6146 = vmax.f32 %v5890, 0.0
        %v6147 = vmax.f32 %v5891, 0.0
        %v6148 = vmax.f32 %v5892, 0.0
        %v6149 = vmax.f32 %v5893, 0.0
        %v6150 = vmax.f32 %v5894, 0.0
        %v6151 = vmax.f32 %v5895, 0.0
        %v6152 = vmax.f32 %v5896, 0.0
        %v6153 = vmax.f32 %v5897, 0.0
        %v6154 = vmax.f32 %v5898, 0.0
        %v6155 = vmax.f32 %v5899, 0.0
        %v6156 = vmax.f32 %v5900, 0.0
        %v6157 = vmax.f32 %v5901, 0.0
        %v6158 = vmax.f32 %v5902, 0.0
        %v6159 = vmax.f32 %v5903, 0.0
        %v6160 = vmax.f32 %v5904, 0.0
        %v6161 = vmax.f32 %v5905, 0.0
        %v6162 = vmax.f32 %v5906, 0.0
        %v6163 = vmax.f32 %v5907, 0.0
        %v6164 = vmax.f32 %v5908, 0.0
        %v6165 = vmax.f32 %v5909, 0.0
        %v6166 = vmax.f32 %v5910, 0.0
        %v6167 = vmax.f32 %v5911, 0.0
        %v6168 = vmax.f32 %v5912, 0.0
        %v6169 = vmax.f32 %v5913, 0.0
        %v6170 = vmax.f32 %v5914, 0.0
        %v6171 = vmax.f32 %v5915, 0.0
        %v6172 = vmax.f32 %v5916, 0.0
        %v6173 = vmax.f32 %v5917, 0.0
        %v6174 = vmax.f32 %v5918, 0.0
        %v6175 = vmax.f32 %v5919, 0.0
        %v6176 = vmax.f32 %v5920, 0.0
        %v6177 = vmax.f32 %v5921, 0.0
        %v6178 = vmax.f32 %v5922, 0.0
        %v6179 = vmax.f32 %v5923, 0.0
        %v6180 = vmax.f32 %v5924, 0.0
        %v6181 = vmax.f32 %v5925, 0.0
        %v6182 = vmax.f32 %v5926, 0.0
        %v6183 = vmax.f32 %v5927, 0.0
        %v6184 = vmax.f32 %v5928, 0.0
        %v6185 = vmax.f32 %v5929, 0.0
        %v6186 = vmax.f32 %v5930, 0.0
        %v6187 = vmax.f32 %v5931, 0.0
        %v6188 = vmax.f32 %v5932, 0.0
        %v6189 = vmax.f32 %v5933, 0.0
        %v6190 = vmax.f32 %v5934, 0.0
        %v6191 = vmax.f32 %v5935, 0.0
        %v6192 = vmax.f32 %v5936, 0.0
        %v6193 = vmax.f32 %v5937, 0.0
        %v6194 = vmax.f32 %v5938, 0.0
        %v6195 = vmax.f32 %v5939, 0.0
        %v6196 = vmax.f32 %v5940, 0.0
        %v6197 = vmax.f32 %v5941, 0.0
        %v6198 = vmax.f32 %v5942, 0.0
        %v6199 = vmax.f32 %v5943, 0.0
        %v6200 = vmax.f32 %v5944, 0.0
        %v6201 = vmax.f32 %v5945, 0.0
        %v6202 = vmax.f32 %v5946, 0.0
        %v6203 = vmax.f32 %v5947, 0.0
        %v6204 = vmax.f32 %v5948, 0.0
        %v6205 = vmax.f32 %v5949, 0.0
        %v6206 = vmax.f32 %v5950, 0.0
        %v6207 = vmax.f32 %v5951, 0.0
        %v6208 = vmax.f32 %v5952, 0.0
        %v6209 = vmax.f32 %v5953, 0.0
        %v6210 = vmax.f32 %v5954, 0.0
        %v6211 = vmax.f32 %v5955, 0.0
        %v6212 = vmax.f32 %v5956, 0.0
        %v6213 = vmax.f32 %v5957, 0.0
        %v6214 = vmax.f32 %v5958, 0.0
        %v6215 = vmax.f32 %v5959, 0.0
        %v6216 = vmax.f32 %v5960, 0.0
        %v6217 = vmax.f32 %v5961, 0.0
        %v6218 = vmax.f32 %v5962, 0.0
        %v6219 = vmax.f32 %v5963, 0.0
        %v6220 = vmax.f32 %v5964, 0.0
        %v6221 = vmax.f32 %v5965, 0.0
        %v6222 = vmax.f32 %v5966, 0.0
        %v6223 = vmax.f32 %v5967, 0.0
        %v6224 = vmax.f32 %v5968, 0.0
        %v6225 = vmax.f32 %v5969, 0.0
        %v6226 = vmax.f32 %v5970, 0.0
        %v6227 = vmax.f32 %v5971, 0.0
        %v6228 = vmax.f32 %v5972, 0.0
        %v6229 = vmax.f32 %v5973, 0.0
        %v6230 = vmax.f32 %v5974, 0.0
        %v6231 = vmax.f32 %v5975, 0.0
        %v6232 = vmax.f32 %v5976, 0.0
        %v6233 = vmax.f32 %v5977, 0.0
        %v6234 = vmax.f32 %v5978, 0.0
        %v6235 = vmax.f32 %v5979, 0.0
        %v6236 = vmax.f32 %v5980, 0.0
        %v6237 = vmax.f32 %v5981, 0.0
        %v6238 = vmax.f32 %v5982, 0.0
        %v6239 = vmax.f32 %v5983, 0.0
        %v6240 = vmax.f32 %v5984, 0.0
        %v6241 = vmax.f32 %v5985, 0.0
        %v6242 = vmax.f32 %v5986, 0.0
        %v6243 = vmax.f32 %v5987, 0.0
        %v6244 = vmax.f32 %v5988, 0.0
        %v6245 = vmax.f32 %v5989, 0.0
        %v6246 = vmax.f32 %v5990, 0.0
        %v6247 = vmax.f32 %v5991, 0.0
        %v6248 = vmax.f32 %v5992, 0.0
        %v6249 = vmax.f32 %v5993, 0.0
        %v6250 = vmax.f32 %v5994, 0.0
        %v6251 = vld [vmem:[%s9] sm:$0xff]
        %v6252 = vld [vmem:[%s9 + $0x8] sm:$0xff]
        %v6253 = vld [vmem:[%s9 + $0x10] sm:$0xff]
        %v6254 = vld [vmem:[%s9 + $0x18] sm:$0xff]
        %v6255 = vld [vmem:[%s9 + $0x20] sm:$0xff]
        %v6256 = vld [vmem:[%s9 + $0x28] sm:$0xff]
        %v6513 = vrot.slane %v5996, 7
        %vm6514 = vcmask 1041409
        %v6515 = vsel %vm6514, %v6513, %v5995
        %v6516 = vrot.slane %v5997, 6
        %vm6517 = vcmask 1042434
        %v6518 = vsel %vm6517, %v6516, %v6515
        %v6519 = vrot.slane %v5998, 5
        %vm6520 = vcmask 1043459
        %v6521 = vsel %vm6520, %v6519, %v6518
        %v6522 = vrot.slane %v5999, 4
        %vm6523 = vcmask 1044484
        %v6524 = vsel %vm6523, %v6522, %v6521
        %v6525 = vrot.slane %v6000, 3
        %vm6526 = vcmask 1045509
        %v6527 = vsel %vm6526, %v6525, %v6524
        %v6528 = vrot.slane %v6001, 2
        %vm6529 = vcmask 1046534
        %v6530 = vsel %vm6529, %v6528, %v6527
        %v6531 = vrot.slane %v6002, 1
        %vm6532 = vcmask 1047559
        %v6533 = vsel %vm6532, %v6531, %v6530
        %v6534 = vrot.slane %v6004, 7
        %v6535 = vsel %vm6514, %v6534, %v6003
        %v6536 = vrot.slane %v6005, 6
        %v6537 = vsel %vm6517, %v6536, %v6535
        %v6538 = vrot.slane %v6006, 5
        %v6539 = vsel %vm6520, %v6538, %v6537
        %v6540 = vrot.slane %v6007, 4
        %v6541 = vsel %vm6523, %v6540, %v6539
        %v6542 = vrot.slane %v6008, 3
        %v6543 = vsel %vm6526, %v6542, %v6541
        %v6544 = vrot.slane %v6009, 2
        %v6545 = vsel %vm6529, %v6544, %v6543
        %v6546 = vrot.slane %v6010, 1
        %v6547 = vsel %vm6532, %v6546, %v6545
        %v6548 = vrot.slane %v6012, 7
        %v6549 = vsel %vm6514, %v6548, %v6011
        %v6550 = vrot.slane %v6013, 6
        %v6551 = vsel %vm6517, %v6550, %v6549
        %v6552 = vrot.slane %v6014, 5
        %v6553 = vsel %vm6520, %v6552, %v6551
        %v6554 = vrot.slane %v6015, 4
        %v6555 = vsel %vm6523, %v6554, %v6553
        %v6556 = vrot.slane %v6016, 3
        %v6557 = vsel %vm6526, %v6556, %v6555
        %v6558 = vrot.slane %v6017, 2
        %v6559 = vsel %vm6529, %v6558, %v6557
        %v6560 = vrot.slane %v6018, 1
        %v6561 = vsel %vm6532, %v6560, %v6559
        %v6562 = vrot.slane %v6020, 7
        %v6563 = vsel %vm6514, %v6562, %v6019
        %v6564 = vrot.slane %v6021, 6
        %v6565 = vsel %vm6517, %v6564, %v6563
        %v6566 = vrot.slane %v6022, 5
        %v6567 = vsel %vm6520, %v6566, %v6565
        %v6568 = vrot.slane %v6023, 4
        %v6569 = vsel %vm6523, %v6568, %v6567
        %v6570 = vrot.slane %v6024, 3
        %v6571 = vsel %vm6526, %v6570, %v6569
        %v6572 = vrot.slane %v6025, 2
        %v6573 = vsel %vm6529, %v6572, %v6571
        %v6574 = vrot.slane %v6026, 1
        %v6575 = vsel %vm6532, %v6574, %v6573
        %v6576 = vrot.slane %v6028, 7
        %v6577 = vsel %vm6514, %v6576, %v6027
        %v6578 = vrot.slane %v6029, 6
        %v6579 = vsel %vm6517, %v6578, %v6577
        %v6580 = vrot.slane %v6030, 5
        %v6581 = vsel %vm6520, %v6580, %v6579
        %v6582 = vrot.slane %v6031, 4
        %v6583 = vsel %vm6523, %v6582, %v6581
        %v6584 = vrot.slane %v6032, 3
        %v6585 = vsel %vm6526, %v6584, %v6583
        %v6586 = vrot.slane %v6033, 2
        %v6587 = vsel %vm6529, %v6586, %v6585
        %v6588 = vrot.slane %v6034, 1
        %v6589 = vsel %vm6532, %v6588, %v6587
        %v6590 = vrot.slane %v6036, 7
        %v6591 = vsel %vm6514, %v6590, %v6035
        %v6592 = vrot.slane %v6037, 6
        %v6593 = vsel %vm6517, %v6592, %v6591
        %v6594 = vrot.slane %v6038, 5
        %v6595 = vsel %vm6520, %v6594, %v6593
        %v6596 = vrot.slane %v6039, 4
        %v6597 = vsel %vm6523, %v6596, %v6595
        %v6598 = vrot.slane %v6040, 3
        %v6599 = vsel %vm6526, %v6598, %v6597
        %v6600 = vrot.slane %v6041, 2
        %v6601 = vsel %vm6529, %v6600, %v6599
        %v6602 = vrot.slane %v6042, 1
        %v6603 = vsel %vm6532, %v6602, %v6601
        %v6604 = vrot.slane %v6044, 7
        %v6605 = vsel %vm6514, %v6604, %v6043
        %v6606 = vrot.slane %v6045, 6
        %v6607 = vsel %vm6517, %v6606, %v6605
        %v6608 = vrot.slane %v6046, 5
        %v6609 = vsel %vm6520, %v6608, %v6607
        %v6610 = vrot.slane %v6047, 4
        %v6611 = vsel %vm6523, %v6610, %v6609
        %v6612 = vrot.slane %v6048, 3
        %v6613 = vsel %vm6526, %v6612, %v6611
        %v6614 = vrot.slane %v6049, 2
        %v6615 = vsel %vm6529, %v6614, %v6613
        %v6616 = vrot.slane %v6050, 1
        %v6617 = vsel %vm6532, %v6616, %v6615
        %v6618 = vrot.slane %v6052, 7
        %v6619 = vsel %vm6514, %v6618, %v6051
        %v6620 = vrot.slane %v6053, 6
        %v6621 = vsel %vm6517, %v6620, %v6619
        %v6622 = vrot.slane %v6054, 5
        %v6623 = vsel %vm6520, %v6622, %v6621
        %v6624 = vrot.slane %v6055, 4
        %v6625 = vsel %vm6523, %v6624, %v6623
        %v6626 = vrot.slane %v6056, 3
        %v6627 = vsel %vm6526, %v6626, %v6625
        %v6628 = vrot.slane %v6057, 2
        %v6629 = vsel %vm6529, %v6628, %v6627
        %v6630 = vrot.slane %v6058, 1
        %v6631 = vsel %vm6532, %v6630, %v6629
        %v6632 = vrot.slane %v6060, 7
        %v6633 = vsel %vm6514, %v6632, %v6059
        %v6634 = vrot.slane %v6061, 6
        %v6635 = vsel %vm6517, %v6634, %v6633
        %v6636 = vrot.slane %v6062, 5
        %v6637 = vsel %vm6520, %v6636, %v6635
        %v6638 = vrot.slane %v6063, 4
        %v6639 = vsel %vm6523, %v6638, %v6637
        %v6640 = vrot.slane %v6064, 3
        %v6641 = vsel %vm6526, %v6640, %v6639
        %v6642 = vrot.slane %v6065, 2
        %v6643 = vsel %vm6529, %v6642, %v6641
        %v6644 = vrot.slane %v6066, 1
        %v6645 = vsel %vm6532, %v6644, %v6643
        %v6646 = vrot.slane %v6068, 7
        %v6647 = vsel %vm6514, %v6646, %v6067
        %v6648 = vrot.slane %v6069, 6
        %v6649 = vsel %vm6517, %v6648, %v6647
        %v6650 = vrot.slane %v6070, 5
        %v6651 = vsel %vm6520, %v6650, %v6649
        %v6652 = vrot.slane %v6071, 4
        %v6653 = vsel %vm6523, %v6652, %v6651
        %v6654 = vrot.slane %v6072, 3
        %v6655 = vsel %vm6526, %v6654, %v6653
        %v6656 = vrot.slane %v6073, 2
        %v6657 = vsel %vm6529, %v6656, %v6655
        %v6658 = vrot.slane %v6074, 1
        %v6659 = vsel %vm6532, %v6658, %v6657
        %v6660 = vrot.slane %v6076, 7
        %v6661 = vsel %vm6514, %v6660, %v6075
        %v6662 = vrot.slane %v6077, 6
        %v6663 = vsel %vm6517, %v6662, %v6661
        %v6664 = vrot.slane %v6078, 5
        %v6665 = vsel %vm6520, %v6664, %v6663
        %v6666 = vrot.slane %v6079, 4
        %v6667 = vsel %vm6523, %v6666, %v6665
        %v6668 = vrot.slane %v6080, 3
        %v6669 = vsel %vm6526, %v6668, %v6667
        %v6670 = vrot.slane %v6081, 2
        %v6671 = vsel %vm6529, %v6670, %v6669
        %v6672 = vrot.slane %v6082, 1
        %v6673 = vsel %vm6532, %v6672, %v6671
        %v6674 = vrot.slane %v6084, 7
        %v6675 = vsel %vm6514, %v6674, %v6083
        %v6676 = vrot.slane %v6085, 6
        %v6677 = vsel %vm6517, %v6676, %v6675
        %v6678 = vrot.slane %v6086, 5
        %v6679 = vsel %vm6520, %v6678, %v6677
        %v6680 = vrot.slane %v6087, 4
        %v6681 = vsel %vm6523, %v6680, %v6679
        %v6682 = vrot.slane %v6088, 3
        %v6683 = vsel %vm6526, %v6682, %v6681
        %v6684 = vrot.slane %v6089, 2
        %v6685 = vsel %vm6529, %v6684, %v6683
        %v6686 = vrot.slane %v6090, 1
        %v6687 = vsel %vm6532, %v6686, %v6685
        %v6688 = vrot.slane %v6092, 7
        %v6689 = vsel %vm6514, %v6688, %v6091
        %v6690 = vrot.slane %v6093, 6
        %v6691 = vsel %vm6517, %v6690, %v6689
        %v6692 = vrot.slane %v6094, 5
        %v6693 = vsel %vm6520, %v6692, %v6691
        %v6694 = vrot.slane %v6095, 4
        %v6695 = vsel %vm6523, %v6694, %v6693
        %v6696 = vrot.slane %v6096, 3
        %v6697 = vsel %vm6526, %v6696, %v6695
        %v6698 = vrot.slane %v6097, 2
        %v6699 = vsel %vm6529, %v6698, %v6697
        %v6700 = vrot.slane %v6098, 1
        %v6701 = vsel %vm6532, %v6700, %v6699
        %v6702 = vrot.slane %v6100, 7
        %v6703 = vsel %vm6514, %v6702, %v6099
        %v6704 = vrot.slane %v6101, 6
        %v6705 = vsel %vm6517, %v6704, %v6703
        %v6706 = vrot.slane %v6102, 5
        %v6707 = vsel %vm6520, %v6706, %v6705
        %v6708 = vrot.slane %v6103, 4
        %v6709 = vsel %vm6523, %v6708, %v6707
        %v6710 = vrot.slane %v6104, 3
        %v6711 = vsel %vm6526, %v6710, %v6709
        %v6712 = vrot.slane %v6105, 2
        %v6713 = vsel %vm6529, %v6712, %v6711
        %v6714 = vrot.slane %v6106, 1
        %v6715 = vsel %vm6532, %v6714, %v6713
        %v6716 = vrot.slane %v6108, 7
        %v6717 = vsel %vm6514, %v6716, %v6107
        %v6718 = vrot.slane %v6109, 6
        %v6719 = vsel %vm6517, %v6718, %v6717
        %v6720 = vrot.slane %v6110, 5
        %v6721 = vsel %vm6520, %v6720, %v6719
        %v6722 = vrot.slane %v6111, 4
        %v6723 = vsel %vm6523, %v6722, %v6721
        %v6724 = vrot.slane %v6112, 3
        %v6725 = vsel %vm6526, %v6724, %v6723
        %v6726 = vrot.slane %v6113, 2
        %v6727 = vsel %vm6529, %v6726, %v6725
        %v6728 = vrot.slane %v6114, 1
        %v6729 = vsel %vm6532, %v6728, %v6727
        %v6730 = vrot.slane %v6116, 7
        %v6731 = vsel %vm6514, %v6730, %v6115
        %v6732 = vrot.slane %v6117, 6
        %v6733 = vsel %vm6517, %v6732, %v6731
        %v6734 = vrot.slane %v6118, 5
        %v6735 = vsel %vm6520, %v6734, %v6733
        %v6736 = vrot.slane %v6119, 4
        %v6737 = vsel %vm6523, %v6736, %v6735
        %v6738 = vrot.slane %v6120, 3
        %v6739 = vsel %vm6526, %v6738, %v6737
        %v6740 = vrot.slane %v6121, 2
        %v6741 = vsel %vm6529, %v6740, %v6739
        %v6742 = vrot.slane %v6122, 1
        %v6743 = vsel %vm6532, %v6742, %v6741
        %v6744 = vrot.slane %v6124, 7
        %v6745 = vsel %vm6514, %v6744, %v6123
        %v6746 = vrot.slane %v6125, 6
        %v6747 = vsel %vm6517, %v6746, %v6745
        %v6748 = vrot.slane %v6126, 5
        %v6749 = vsel %vm6520, %v6748, %v6747
        %v6750 = vrot.slane %v6127, 4
        %v6751 = vsel %vm6523, %v6750, %v6749
        %v6752 = vrot.slane %v6128, 3
        %v6753 = vsel %vm6526, %v6752, %v6751
        %v6754 = vrot.slane %v6129, 2
        %v6755 = vsel %vm6529, %v6754, %v6753
        %v6756 = vrot.slane %v6130, 1
        %v6757 = vsel %vm6532, %v6756, %v6755
        %v6758 = vrot.slane %v6132, 7
        %v6759 = vsel %vm6514, %v6758, %v6131
        %v6760 = vrot.slane %v6133, 6
        %v6761 = vsel %vm6517, %v6760, %v6759
        %v6762 = vrot.slane %v6134, 5
        %v6763 = vsel %vm6520, %v6762, %v6761
        %v6764 = vrot.slane %v6135, 4
        %v6765 = vsel %vm6523, %v6764, %v6763
        %v6766 = vrot.slane %v6136, 3
        %v6767 = vsel %vm6526, %v6766, %v6765
        %v6768 = vrot.slane %v6137, 2
        %v6769 = vsel %vm6529, %v6768, %v6767
        %v6770 = vrot.slane %v6138, 1
        %v6771 = vsel %vm6532, %v6770, %v6769
        %v6772 = vrot.slane %v6140, 7
        %v6773 = vsel %vm6514, %v6772, %v6139
        %v6774 = vrot.slane %v6141, 6
        %v6775 = vsel %vm6517, %v6774, %v6773
        %v6776 = vrot.slane %v6142, 5
        %v6777 = vsel %vm6520, %v6776, %v6775
        %v6778 = vrot.slane %v6143, 4
        %v6779 = vsel %vm6523, %v6778, %v6777
        %v6780 = vrot.slane %v6144, 3
        %v6781 = vsel %vm6526, %v6780, %v6779
        %v6782 = vrot.slane %v6145, 2
        %v6783 = vsel %vm6529, %v6782, %v6781
        %v6784 = vrot.slane %v6146, 1
        %v6785 = vsel %vm6532, %v6784, %v6783
        %v6786 = vrot.slane %v6148, 7
        %v6787 = vsel %vm6514, %v6786, %v6147
        %v6788 = vrot.slane %v6149, 6
        %v6789 = vsel %vm6517, %v6788, %v6787
        %v6790 = vrot.slane %v6150, 5
        %v6791 = vsel %vm6520, %v6790, %v6789
        %v6792 = vrot.slane %v6151, 4
        %v6793 = vsel %vm6523, %v6792, %v6791
        %v6794 = vrot.slane %v6152, 3
        %v6795 = vsel %vm6526, %v6794, %v6793
        %v6796 = vrot.slane %v6153, 2
        %v6797 = vsel %vm6529, %v6796, %v6795
        %v6798 = vrot.slane %v6154, 1
        %v6799 = vsel %vm6532, %v6798, %v6797
        %v6800 = vrot.slane %v6156, 7
        %v6801 = vsel %vm6514, %v6800, %v6155
        %v6802 = vrot.slane %v6157, 6
        %v6803 = vsel %vm6517, %v6802, %v6801
        %v6804 = vrot.slane %v6158, 5
        %v6805 = vsel %vm6520, %v6804, %v6803
        %v6806 = vrot.slane %v6159, 4
        %v6807 = vsel %vm6523, %v6806, %v6805
        %v6808 = vrot.slane %v6160, 3
        %v6809 = vsel %vm6526, %v6808, %v6807
        %v6810 = vrot.slane %v6161, 2
        %v6811 = vsel %vm6529, %v6810, %v6809
        %v6812 = vrot.slane %v6162, 1
        %v6813 = vsel %vm6532, %v6812, %v6811
        %v6814 = vrot.slane %v6164, 7
        %v6815 = vsel %vm6514, %v6814, %v6163
        %v6816 = vrot.slane %v6165, 6
        %v6817 = vsel %vm6517, %v6816, %v6815
        %v6818 = vrot.slane %v6166, 5
        %v6819 = vsel %vm6520, %v6818, %v6817
        %v6820 = vrot.slane %v6167, 4
        %v6821 = vsel %vm6523, %v6820, %v6819
        %v6822 = vrot.slane %v6168, 3
        %v6823 = vsel %vm6526, %v6822, %v6821
        %v6824 = vrot.slane %v6169, 2
        %v6825 = vsel %vm6529, %v6824, %v6823
        %v6826 = vrot.slane %v6170, 1
        %v6827 = vsel %vm6532, %v6826, %v6825
        %v6828 = vrot.slane %v6172, 7
        %v6829 = vsel %vm6514, %v6828, %v6171
        %v6830 = vrot.slane %v6173, 6
        %v6831 = vsel %vm6517, %v6830, %v6829
        %v6832 = vrot.slane %v6174, 5
        %v6833 = vsel %vm6520, %v6832, %v6831
        %v6834 = vrot.slane %v6175, 4
        %v6835 = vsel %vm6523, %v6834, %v6833
        %v6836 = vrot.slane %v6176, 3
        %v6837 = vsel %vm6526, %v6836, %v6835
        %v6838 = vrot.slane %v6177, 2
        %v6839 = vsel %vm6529, %v6838, %v6837
        %v6840 = vrot.slane %v6178, 1
        %v6841 = vsel %vm6532, %v6840, %v6839
        %v6842 = vrot.slane %v6180, 7
        %v6843 = vsel %vm6514, %v6842, %v6179
        %v6844 = vrot.slane %v6181, 6
        %v6845 = vsel %vm6517, %v6844, %v6843
        %v6846 = vrot.slane %v6182, 5
        %v6847 = vsel %vm6520, %v6846, %v6845
        %v6848 = vrot.slane %v6183, 4
        %v6849 = vsel %vm6523, %v6848, %v6847
        %v6850 = vrot.slane %v6184, 3
        %v6851 = vsel %vm6526, %v6850, %v6849
        %v6852 = vrot.slane %v6185, 2
        %v6853 = vsel %vm6529, %v6852, %v6851
        %v6854 = vrot.slane %v6186, 1
        %v6855 = vsel %vm6532, %v6854, %v6853
        %v6856 = vrot.slane %v6188, 7
        %v6857 = vsel %vm6514, %v6856, %v6187
        %v6858 = vrot.slane %v6189, 6
        %v6859 = vsel %vm6517, %v6858, %v6857
        %v6860 = vrot.slane %v6190, 5
        %v6861 = vsel %vm6520, %v6860, %v6859
        %v6862 = vrot.slane %v6191, 4
        %v6863 = vsel %vm6523, %v6862, %v6861
        %v6864 = vrot.slane %v6192, 3
        %v6865 = vsel %vm6526, %v6864, %v6863
        %v6866 = vrot.slane %v6193, 2
        %v6867 = vsel %vm6529, %v6866, %v6865
        %v6868 = vrot.slane %v6194, 1
        %v6869 = vsel %vm6532, %v6868, %v6867
        %v6870 = vrot.slane %v6196, 7
        %v6871 = vsel %vm6514, %v6870, %v6195
        %v6872 = vrot.slane %v6197, 6
        %v6873 = vsel %vm6517, %v6872, %v6871
        %v6874 = vrot.slane %v6198, 5
        %v6875 = vsel %vm6520, %v6874, %v6873
        %v6876 = vrot.slane %v6199, 4
        %v6877 = vsel %vm6523, %v6876, %v6875
        %v6878 = vrot.slane %v6200, 3
        %v6879 = vsel %vm6526, %v6878, %v6877
        %v6880 = vrot.slane %v6201, 2
        %v6881 = vsel %vm6529, %v6880, %v6879
        %v6882 = vrot.slane %v6202, 1
        %v6883 = vsel %vm6532, %v6882, %v6881
        %v6884 = vrot.slane %v6204, 7
        %v6885 = vsel %vm6514, %v6884, %v6203
        %v6886 = vrot.slane %v6205, 6
        %v6887 = vsel %vm6517, %v6886, %v6885
        %v6888 = vrot.slane %v6206, 5
        %v6889 = vsel %vm6520, %v6888, %v6887
        %v6890 = vrot.slane %v6207, 4
        %v6891 = vsel %vm6523, %v6890, %v6889
        %v6892 = vrot.slane %v6208, 3
        %v6893 = vsel %vm6526, %v6892, %v6891
        %v6894 = vrot.slane %v6209, 2
        %v6895 = vsel %vm6529, %v6894, %v6893
        %v6896 = vrot.slane %v6210, 1
        %v6897 = vsel %vm6532, %v6896, %v6895
        %v6898 = vrot.slane %v6212, 7
        %v6899 = vsel %vm6514, %v6898, %v6211
        %v6900 = vrot.slane %v6213, 6
        %v6901 = vsel %vm6517, %v6900, %v6899
        %v6902 = vrot.slane %v6214, 5
        %v6903 = vsel %vm6520, %v6902, %v6901
        %v6904 = vrot.slane %v6215, 4
        %v6905 = vsel %vm6523, %v6904, %v6903
        %v6906 = vrot.slane %v6216, 3
        %v6907 = vsel %vm6526, %v6906, %v6905
        %v6908 = vrot.slane %v6217, 2
        %v6909 = vsel %vm6529, %v6908, %v6907
        %v6910 = vrot.slane %v6218, 1
        %v6911 = vsel %vm6532, %v6910, %v6909
        %v6912 = vrot.slane %v6220, 7
        %v6913 = vsel %vm6514, %v6912, %v6219
        %v6914 = vrot.slane %v6221, 6
        %v6915 = vsel %vm6517, %v6914, %v6913
        %v6916 = vrot.slane %v6222, 5
        %v6917 = vsel %vm6520, %v6916, %v6915
        %v6918 = vrot.slane %v6223, 4
        %v6919 = vsel %vm6523, %v6918, %v6917
        %v6920 = vrot.slane %v6224, 3
        %v6921 = vsel %vm6526, %v6920, %v6919
        %v6922 = vrot.slane %v6225, 2
        %v6923 = vsel %vm6529, %v6922, %v6921
        %v6924 = vrot.slane %v6226, 1
        %v6925 = vsel %vm6532, %v6924, %v6923
        %v6926 = vrot.slane %v6228, 7
        %v6927 = vsel %vm6514, %v6926, %v6227
        %v6928 = vrot.slane %v6229, 6
        %v6929 = vsel %vm6517, %v6928, %v6927
        %v6930 = vrot.slane %v6230, 5
        %v6931 = vsel %vm6520, %v6930, %v6929
        %v6932 = vrot.slane %v6231, 4
        %v6933 = vsel %vm6523, %v6932, %v6931
        %v6934 = vrot.slane %v6232, 3
        %v6935 = vsel %vm6526, %v6934, %v6933
        %v6936 = vrot.slane %v6233, 2
        %v6937 = vsel %vm6529, %v6936, %v6935
        %v6938 = vrot.slane %v6234, 1
        %v6939 = vsel %vm6532, %v6938, %v6937
        %v6940 = vrot.slane %v6236, 7
        %v6941 = vsel %vm6514, %v6940, %v6235
        %v6942 = vrot.slane %v6237, 6
        %v6943 = vsel %vm6517, %v6942, %v6941
        %v6944 = vrot.slane %v6238, 5
        %v6945 = vsel %vm6520, %v6944, %v6943
        %v6946 = vrot.slane %v6239, 4
        %v6947 = vsel %vm6523, %v6946, %v6945
        %v6948 = vrot.slane %v6240, 3
        %v6949 = vsel %vm6526, %v6948, %v6947
        %v6950 = vrot.slane %v6241, 2
        %v6951 = vsel %vm6529, %v6950, %v6949
        %v6952 = vrot.slane %v6242, 1
        %v6953 = vsel %vm6532, %v6952, %v6951
        %v6954 = vrot.slane %v6244, 7
        %v6955 = vsel %vm6514, %v6954, %v6243
        %v6956 = vrot.slane %v6245, 6
        %v6957 = vsel %vm6517, %v6956, %v6955
        %v6958 = vrot.slane %v6246, 5
        %v6959 = vsel %vm6520, %v6958, %v6957
        %v6960 = vrot.slane %v6247, 4
        %v6961 = vsel %vm6523, %v6960, %v6959
        %v6962 = vrot.slane %v6248, 3
        %v6963 = vsel %vm6526, %v6962, %v6961
        %v6964 = vrot.slane %v6249, 2
        %v6965 = vsel %vm6529, %v6964, %v6963
        %v6966 = vrot.slane %v6250, 1
        %v6967 = vsel %vm6532, %v6966, %v6965
        %v6969 = vsel %vm2338, %v6251, 0
        %v6972 = vsel %vm2338, %v6252, 0
        %v6975 = vsel %vm2338, %v6253, 0
        %v6978 = vsel %vm2338, %v6254, 0
        %v6981 = vsel %vm2338, %v6255, 0
        %v6984 = vsel %vm2338, %v6256, 0
        %v6986 = vsel %vm2338, %v6533, 0
        %v6988 = vsel %vm2338, %v6547, 0
        %v6990 = vsel %vm2338, %v6561, 0
        %v6992 = vsel %vm2338, %v6575, 0
        %v6994 = vsel %vm2338, %v6589, 0
        %v6996 = vsel %vm2338, %v6603, 0
        %v6998 = vsel %vm2338, %v6617, 0
        %v7000 = vsel %vm2338, %v6631, 0
        %v7002 = vsel %vm2338, %v6645, 0
        %v7004 = vsel %vm2338, %v6659, 0
        %v7006 = vsel %vm2338, %v6673, 0
        %v7008 = vsel %vm2338, %v6687, 0
        %v7010 = vsel %vm2338, %v6701, 0
        %v7012 = vsel %vm2338, %v6715, 0
        %v7014 = vsel %vm2338, %v6729, 0
        %v7016 = vsel %vm2338, %v6743, 0
        %v7018 = vsel %vm2338, %v6757, 0
        %v7020 = vsel %vm2338, %v6771, 0
        %v7022 = vsel %vm2338, %v6785, 0
        %v7024 = vsel %vm2338, %v6799, 0
        %v7026 = vsel %vm2338, %v6813, 0
        %v7028 = vsel %vm2338, %v6827, 0
        %v7030 = vsel %vm2338, %v6841, 0
        %v7032 = vsel %vm2338, %v6855, 0
        %v7034 = vsel %vm2338, %v6869, 0
        %v7036 = vsel %vm2338, %v6883, 0
        %v7038 = vsel %vm2338, %v6897, 0
        %v7040 = vsel %vm2338, %v6911, 0
        %v7042 = vsel %vm2338, %v6925, 0
        %v7044 = vsel %vm2338, %v6939, 0
        %v7046 = vsel %vm2338, %v6953, 0
        %v7048 = vsel %vm2338, %v6967, 0
        %7050 = vmatprep.subr.mxu0 0.0
        %7051 = vmatpush1.xpose.msra.mxu0 %v7016
        %7052 = vmatprep.subr.mxu0 0.0
        %7053 = vmatpush1.xpose.msra.mxu0 %v7014
        %7054 = vmatprep.subr.mxu0 0.0
        %7055 = vmatpush1.xpose.msra.mxu0 %v7012
        %7056 = vmatprep.subr.mxu0 0.0
        %7057 = vmatpush1.xpose.msra.mxu0 %v7010
        %7058 = vmatprep.subr.mxu0 0.0
        %7059 = vmatpush1.xpose.msra.mxu0 %v7008
        %7060 = vmatprep.subr.mxu0 0.0
        %7061 = vmatpush1.xpose.msra.mxu0 %v7006
        %7062 = vmatprep.subr.mxu0 0.0
        %7063 = vmatpush1.xpose.msra.mxu0 %v7004
        %7064 = vmatprep.subr.mxu0 0.0
        %7065 = vmatpush1.xpose.msra.mxu0 %v7002
        %7066 = vmatprep.subr.mxu0 0.0
        %7067 = vmatpush1.xpose.msra.mxu0 %v7000
        %7068 = vmatprep.subr.mxu0 0.0
        %7069 = vmatpush1.xpose.msra.mxu0 %v6998
        %7070 = vmatprep.subr.mxu0 0.0
        %7071 = vmatpush1.xpose.msra.mxu0 %v6996
        %7072 = vmatprep.subr.mxu0 0.0
        %7073 = vmatpush1.xpose.msra.mxu0 %v6994
        %7074 = vmatprep.subr.mxu0 0.0
        %7075 = vmatpush1.xpose.msra.mxu0 %v6992
        %7076 = vmatprep.subr.mxu0 0.0
        %7077 = vmatpush1.xpose.msra.mxu0 %v6990
        %7078 = vmatprep.subr.mxu0 0.0
        %7079 = vmatpush1.xpose.msra.mxu0 %v6988
        %7080 = vmatprep.subr.mxu0 0.0
        %7081 = vmatpush1.xpose.msra.mxu0 %v6986
        %7082 = vmatprep.subr.mxu0 0.0
        %7083 = vmatpush2.xpose.msra.mxu0 %v7048
        %7084 = vmatprep.subr.mxu0 0.0
        %7085 = vmatpush2.xpose.msra.mxu0 %v7046
        %7086 = vmatprep.subr.mxu0 0.0
        %7087 = vmatpush2.xpose.msra.mxu0 %v7044
        %7088 = vmatprep.subr.mxu0 0.0
        %7089 = vmatpush2.xpose.msra.mxu0 %v7042
        %7090 = vmatprep.subr.mxu0 0.0
        %7091 = vmatpush2.xpose.msra.mxu0 %v7040
        %7092 = vmatprep.subr.mxu0 0.0
        %7093 = vmatpush2.xpose.msra.mxu0 %v7038
        %7094 = vmatprep.subr.mxu0 0.0
        %7095 = vmatpush2.xpose.msra.mxu0 %v7036
        %7096 = vmatprep.subr.mxu0 0.0
        %7097 = vmatpush2.xpose.msra.mxu0 %v7034
        %7098 = vmatprep.subr.mxu0 0.0
        %7099 = vmatpush2.xpose.msra.mxu0 %v7032
        %7100 = vmatprep.subr.mxu0 0.0
        %7101 = vmatpush2.xpose.msra.mxu0 %v7030
        %7102 = vmatprep.subr.mxu0 0.0
        %7103 = vmatpush2.xpose.msra.mxu0 %v7028
        %7104 = vmatprep.subr.mxu0 0.0
        %7105 = vmatpush2.xpose.msra.mxu0 %v7026
        %7106 = vmatprep.subr.mxu0 0.0
        %7107 = vmatpush2.xpose.msra.mxu0 %v7024
        %7108 = vmatprep.subr.mxu0 0.0
        %7109 = vmatpush2.xpose.msra.mxu0 %v7022
        %7110 = vmatprep.subr.mxu0 0.0
        %7111 = vmatpush2.xpose.msra.mxu0 %v7020
        %7112 = vmatprep.subr.mxu0 0.0
        %7113 = vmatpush2.xpose.msra.mxu0 %v7018
        %7114 = vmatprep.mubr.f32.mxu0 0.0
        %7115 = vmatmul.mubr.f32.gmra.mxu0 %v6969
        %v7116 = vpop.f32.mrf.mxu0
        %v7117 = vadd.f32 0.0, %v7116
        %v7118 = vpop.f32.mrf.mxu0
        %v7119 = vadd.f32 0.0, %v7118
        %7120 = vmatprep.mubr.f32.mxu0 0.0
        %7121 = vmatmul.mubr.f32.gmra.mxu0 %v6972
        %v7122 = vpop.f32.mrf.mxu0
        %v7123 = vadd.f32 0.0, %v7122
        %v7124 = vpop.f32.mrf.mxu0
        %v7125 = vadd.f32 0.0, %v7124
        %7126 = vmatprep.mubr.f32.mxu0 0.0
        %7127 = vmatmul.mubr.f32.gmra.mxu0 %v6975
        %v7128 = vpop.f32.mrf.mxu0
        %v7129 = vadd.f32 0.0, %v7128
        %v7130 = vpop.f32.mrf.mxu0
        %v7131 = vadd.f32 0.0, %v7130
        %7132 = vmatprep.mubr.f32.mxu0 0.0
        %7133 = vmatmul.mubr.f32.gmra.mxu0 %v6978
        %v7134 = vpop.f32.mrf.mxu0
        %v7135 = vadd.f32 0.0, %v7134
        %v7136 = vpop.f32.mrf.mxu0
        %v7137 = vadd.f32 0.0, %v7136
        %7138 = vmatprep.mubr.f32.mxu0 0.0
        %7139 = vmatmul.mubr.f32.gmra.mxu0 %v6981
        %v7140 = vpop.f32.mrf.mxu0
        %v7141 = vadd.f32 0.0, %v7140
        %v7142 = vpop.f32.mrf.mxu0
        %v7143 = vadd.f32 0.0, %v7142
        %7144 = vmatprep.mubr.f32.mxu0 0.0
        %7145 = vmatmul.mubr.f32.gmra.mxu0 %v6984
        %v7146 = vpop.f32.mrf.mxu0
        %v7147 = vadd.f32 0.0, %v7146
        %v7148 = vpop.f32.mrf.mxu0
        %v7149 = vadd.f32 0.0, %v7148
        %7150 = vdwg.mxu0
        %v7152 = vsel %vm2338, %v965, 0
        %v7155 = vsel %vm2338, %v966, 0
        %v7158 = vsel %vm2338, %v967, 0
        %v7161 = vsel %vm2338, %v968, 0
        %v7164 = vsel %vm2338, %v969, 0
        %v7167 = vsel %vm2338, %v970, 0
        %v7170 = vsel %vm2338, %v933, 0
        %v7173 = vsel %vm2338, %v934, 0
        %v7176 = vsel %vm2338, %v935, 0
        %v7179 = vsel %vm2338, %v936, 0
        %v7182 = vsel %vm2338, %v937, 0
        %v7185 = vsel %vm2338, %v938, 0
        %v7188 = vsel %vm2338, %v939, 0
        %v7191 = vsel %vm2338, %v940, 0
        %v7194 = vsel %vm2338, %v941, 0
        %v7197 = vsel %vm2338, %v942, 0
        %v7200 = vsel %vm2338, %v943, 0
        %v7203 = vsel %vm2338, %v944, 0
        %v7206 = vsel %vm2338, %v945, 0
        %v7209 = vsel %vm2338, %v946, 0
        %v7212 = vsel %vm2338, %v947, 0
        %v7215 = vsel %vm2338, %v948, 0
        %v7218 = vsel %vm2338, %v949, 0
        %v7221 = vsel %vm2338, %v950, 0
        %v7224 = vsel %vm2338, %v951, 0
        %v7227 = vsel %vm2338, %v952, 0
        %v7230 = vsel %vm2338, %v953, 0
        %v7233 = vsel %vm2338, %v954, 0
        %v7236 = vsel %vm2338, %v955, 0
        %v7239 = vsel %vm2338, %v956, 0
        %v7242 = vsel %vm2338, %v957, 0
        %v7245 = vsel %vm2338, %v958, 0
        %v7248 = vsel %vm2338, %v959, 0
        %v7251 = vsel %vm2338, %v960, 0
        %v7254 = vsel %vm2338, %v961, 0
        %v7257 = vsel %vm2338, %v962, 0
        %v7260 = vsel %vm2338, %v963, 0
        %v7263 = vsel %vm2338, %v964, 0
        %7265 = vmatprep.subr.mxu0 0.0
        %7266 = vmatpush1.xpose.msra.mxu0 %v7215
        %7267 = vmatprep.subr.mxu0 0.0
        %7268 = vmatpush1.xpose.msra.mxu0 %v7212
        %7269 = vmatprep.subr.mxu0 0.0
        %7270 = vmatpush1.xpose.msra.mxu0 %v7209
        %7271 = vmatprep.subr.mxu0 0.0
        %7272 = vmatpush1.xpose.msra.mxu0 %v7206
        %7273 = vmatprep.subr.mxu0 0.0
        %7274 = vmatpush1.xpose.msra.mxu0 %v7203
        %7275 = vmatprep.subr.mxu0 0.0
        %7276 = vmatpush1.xpose.msra.mxu0 %v7200
        %7277 = vmatprep.subr.mxu0 0.0
        %7278 = vmatpush1.xpose.msra.mxu0 %v7197
        %7279 = vmatprep.subr.mxu0 0.0
        %7280 = vmatpush1.xpose.msra.mxu0 %v7194
        %7281 = vmatprep.subr.mxu0 0.0
        %7282 = vmatpush1.xpose.msra.mxu0 %v7191
        %7283 = vmatprep.subr.mxu0 0.0
        %7284 = vmatpush1.xpose.msra.mxu0 %v7188
        %7285 = vmatprep.subr.mxu0 0.0
        %7286 = vmatpush1.xpose.msra.mxu0 %v7185
        %7287 = vmatprep.subr.mxu0 0.0
        %7288 = vmatpush1.xpose.msra.mxu0 %v7182
        %7289 = vmatprep.subr.mxu0 0.0
        %7290 = vmatpush1.xpose.msra.mxu0 %v7179
        %7291 = vmatprep.subr.mxu0 0.0
        %7292 = vmatpush1.xpose.msra.mxu0 %v7176
        %7293 = vmatprep.subr.mxu0 0.0
        %7294 = vmatpush1.xpose.msra.mxu0 %v7173
        %7295 = vmatprep.subr.mxu0 0.0
        %7296 = vmatpush1.xpose.msra.mxu0 %v7170
        %7297 = vmatprep.subr.mxu0 0.0
        %7298 = vmatpush2.xpose.msra.mxu0 %v7263
        %7299 = vmatprep.subr.mxu0 0.0
        %7300 = vmatpush2.xpose.msra.mxu0 %v7260
        %7301 = vmatprep.subr.mxu0 0.0
        %7302 = vmatpush2.xpose.msra.mxu0 %v7257
        %7303 = vmatprep.subr.mxu0 0.0
        %7304 = vmatpush2.xpose.msra.mxu0 %v7254
        %7305 = vmatprep.subr.mxu0 0.0
        %7306 = vmatpush2.xpose.msra.mxu0 %v7251
        %7307 = vmatprep.subr.mxu0 0.0
        %7308 = vmatpush2.xpose.msra.mxu0 %v7248
        %7309 = vmatprep.subr.mxu0 0.0
        %7310 = vmatpush2.xpose.msra.mxu0 %v7245
        %7311 = vmatprep.subr.mxu0 0.0
        %7312 = vmatpush2.xpose.msra.mxu0 %v7242
        %7313 = vmatprep.subr.mxu0 0.0
        %7314 = vmatpush2.xpose.msra.mxu0 %v7239
        %7315 = vmatprep.subr.mxu0 0.0
        %7316 = vmatpush2.xpose.msra.mxu0 %v7236
        %7317 = vmatprep.subr.mxu0 0.0
        %7318 = vmatpush2.xpose.msra.mxu0 %v7233
        %7319 = vmatprep.subr.mxu0 0.0
        %7320 = vmatpush2.xpose.msra.mxu0 %v7230
        %7321 = vmatprep.subr.mxu0 0.0
        %7322 = vmatpush2.xpose.msra.mxu0 %v7227
        %7323 = vmatprep.subr.mxu0 0.0
        %7324 = vmatpush2.xpose.msra.mxu0 %v7224
        %7325 = vmatprep.subr.mxu0 0.0
        %7326 = vmatpush2.xpose.msra.mxu0 %v7221
        %7327 = vmatprep.subr.mxu0 0.0
        %7328 = vmatpush2.xpose.msra.mxu0 %v7218
        %7329 = vmatprep.mubr.f32.mxu0 0.0
        %7330 = vmatmul.mubr.f32.gmra.mxu0 %v7152
        %v7331 = vpop.f32.mrf.mxu0
        %v7332 = vadd.f32 %v7117, %v7331
        %v7333 = vpop.f32.mrf.mxu0
        %v7334 = vadd.f32 %v7119, %v7333
        %7335 = vmatprep.mubr.f32.mxu0 0.0
        %7336 = vmatmul.mubr.f32.gmra.mxu0 %v7155
        %v7337 = vpop.f32.mrf.mxu0
        %v7338 = vadd.f32 %v7123, %v7337
        %v7339 = vpop.f32.mrf.mxu0
        %v7340 = vadd.f32 %v7125, %v7339
        %7341 = vmatprep.mubr.f32.mxu0 0.0
        %7342 = vmatmul.mubr.f32.gmra.mxu0 %v7158
        %v7343 = vpop.f32.mrf.mxu0
        %v7344 = vadd.f32 %v7129, %v7343
        %v7345 = vpop.f32.mrf.mxu0
        %v7346 = vadd.f32 %v7131, %v7345
        %7347 = vmatprep.mubr.f32.mxu0 0.0
        %7348 = vmatmul.mubr.f32.gmra.mxu0 %v7161
        %v7349 = vpop.f32.mrf.mxu0
        %v7350 = vadd.f32 %v7135, %v7349
        %v7351 = vpop.f32.mrf.mxu0
        %v7352 = vadd.f32 %v7137, %v7351
        %7353 = vmatprep.mubr.f32.mxu0 0.0
        %7354 = vmatmul.mubr.f32.gmra.mxu0 %v7164
        %v7355 = vpop.f32.mrf.mxu0
        %v7356 = vadd.f32 %v7141, %v7355
        %v7357 = vpop.f32.mrf.mxu0
        %v7358 = vadd.f32 %v7143, %v7357
        %7359 = vmatprep.mubr.f32.mxu0 0.0
        %7360 = vmatmul.mubr.f32.gmra.mxu0 %v7167
        %v7361 = vpop.f32.mrf.mxu0
        %v7362 = vadd.f32 %v7147, %v7361
        %v7363 = vpop.f32.mrf.mxu0
        %v7364 = vadd.f32 %v7149, %v7363
        %7365 = vdwg.mxu0
        %v7366 = vld [vmem:[%s535] sm:$0xff]
        %v7367 = vld [vmem:[%s535 + $0x8] sm:$0xff]
        %v7368 = vld [vmem:[%s7] sm:$0xff]
        %v7369 = vld [vmem:[%s7 + $0x8] sm:$0xff]
        %v7370 = vld [vmem:[%s8] sm:$0x1]
        %v7372 = vlaneseq
        %v7373 = vshrl.u32 %v7372, 7
        %v7374 = vsub.s32 0, %v7373
        %v7375 = vrot.slane %v7370, %v7374
        %7377 = vxpose.xlu0.b32.start [1/16] %v7366, 128
        %7378 = vxpose.xlu0.b32.cont [2/16] %v7367, 128
        %7379 = vxpose.xlu0.b32.cont [3/16] 0.0, 128
        %7380 = vxpose.xlu0.b32.cont [4/16] 0.0, 128
        %7381 = vxpose.xlu0.b32.cont [5/16] 0.0, 128
        %7382 = vxpose.xlu0.b32.cont [6/16] 0.0, 128
        %7383 = vxpose.xlu0.b32.cont [7/16] 0.0, 128
        %7384 = vxpose.xlu0.b32.cont [8/16] 0.0, 128
        %7385 = vxpose.xlu0.b32.cont [9/16] 0.0, 128
        %7386 = vxpose.xlu0.b32.cont [10/16] 0.0, 128
        %7387 = vxpose.xlu0.b32.cont [11/16] 0.0, 128
        %7388 = vxpose.xlu0.b32.cont [12/16] 0.0, 128
        %7389 = vxpose.xlu0.b32.cont [13/16] 0.0, 128
        %7390 = vxpose.xlu0.b32.cont [14/16] 0.0, 128
        %7391 = vxpose.xlu0.b32.cont [15/16] 0.0, 128
        %7392 = vxpose.xlu0.b32.end [16/16] 0.0, 128
        %v7393 = vpop.trf.xlu0
        %v7394 = vpop.trf.xlu0
        %v7395 = vpop.trf.xlu0
        %v7396 = vpop.trf.xlu0
        %v7397 = vpop.trf.xlu0
        %v7398 = vpop.trf.xlu0
        %v7399 = vpop.trf.xlu0
        %v7400 = vpop.trf.xlu0
        %v7401 = vpop.trf.xlu0
        %v7402 = vpop.trf.xlu0
        %v7403 = vpop.trf.xlu0
        %v7404 = vpop.trf.xlu0
        %v7405 = vpop.trf.xlu0
        %v7406 = vpop.trf.xlu0
        %v7407 = vpop.trf.xlu0
        %v7408 = vpop.trf.xlu0
        %vm7409 = vcmask 130048
        %v7411 = vsel %vm7409, %v7393, 0
        %v7414 = vsel %vm7409, %v7394, 0
        %v7417 = vsel %vm7409, %v7395, 0
        %v7420 = vsel %vm7409, %v7396, 0
        %v7423 = vsel %vm7409, %v7397, 0
        %v7426 = vsel %vm7409, %v7398, 0
        %v7429 = vsel %vm7409, %v7399, 0
        %v7432 = vsel %vm7409, %v7400, 0
        %7434 = vmatprep.subr.mxu0 0.0
        %7435 = vmatpush1.msra.mxu0 0.0
        %7436 = vmatprep.subr.mxu0 0.0
        %7437 = vmatpush1.msra.mxu0 0.0
        %7438 = vmatprep.subr.mxu0 0.0
        %7439 = vmatpush1.msra.mxu0 0.0
        %7440 = vmatprep.subr.mxu0 0.0
        %7441 = vmatpush1.msra.mxu0 0.0
        %7442 = vmatprep.subr.mxu0 0.0
        %7443 = vmatpush1.msra.mxu0 0.0
        %7444 = vmatprep.subr.mxu0 0.0
        %7445 = vmatpush1.msra.mxu0 0.0
        %7446 = vmatprep.subr.mxu0 0.0
        %7447 = vmatpush1.msra.mxu0 0.0
        %7448 = vmatprep.subr.mxu0 0.0
        %7449 = vmatpush1.msra.mxu0 0.0
        %7450 = vmatprep.subr.mxu0 0.0
        %7451 = vmatpush1.msra.mxu0 0.0
        %7452 = vmatprep.subr.mxu0 0.0
        %7453 = vmatpush1.msra.mxu0 0.0
        %7454 = vmatprep.subr.mxu0 0.0
        %7455 = vmatpush1.msra.mxu0 0.0
        %7456 = vmatprep.subr.mxu0 0.0
        %7457 = vmatpush1.msra.mxu0 0.0
        %7458 = vmatprep.subr.mxu0 0.0
        %7459 = vmatpush1.msra.mxu0 0.0
        %7460 = vmatprep.subr.mxu0 0.0
        %7461 = vmatpush1.msra.mxu0 0.0
        %7462 = vmatprep.subr.mxu0 0.0
        %7463 = vmatpush1.msra.mxu0 %v7369
        %7464 = vmatprep.subr.mxu0 0.0
        %7465 = vmatpush1.msra.mxu0 %v7368
        %7466 = vmatprep.subr.mxu0 0.0
        %7467 = vmatpush2.msra.mxu0 0.0
        %7468 = vmatprep.subr.mxu0 0.0
        %7469 = vmatpush2.msra.mxu0 0.0
        %7470 = vmatprep.subr.mxu0 0.0
        %7471 = vmatpush2.msra.mxu0 0.0
        %7472 = vmatprep.subr.mxu0 0.0
        %7473 = vmatpush2.msra.mxu0 0.0
        %7474 = vmatprep.subr.mxu0 0.0
        %7475 = vmatpush2.msra.mxu0 0.0
        %7476 = vmatprep.subr.mxu0 0.0
        %7477 = vmatpush2.msra.mxu0 0.0
        %7478 = vmatprep.subr.mxu0 0.0
        %7479 = vmatpush2.msra.mxu0 0.0
        %7480 = vmatprep.subr.mxu0 0.0
        %7481 = vmatpush2.msra.mxu0 0.0
        %7482 = vmatprep.subr.mxu0 0.0
        %7483 = vmatpush2.msra.mxu0 0.0
        %7484 = vmatprep.subr.mxu0 0.0
        %7485 = vmatpush2.msra.mxu0 0.0
        %7486 = vmatprep.subr.mxu0 0.0
        %7487 = vmatpush2.msra.mxu0 0.0
        %7488 = vmatprep.subr.mxu0 0.0
        %7489 = vmatpush2.msra.mxu0 0.0
        %7490 = vmatprep.subr.mxu0 0.0
        %7491 = vmatpush2.msra.mxu0 0.0
        %7492 = vmatprep.subr.mxu0 0.0
        %7493 = vmatpush2.msra.mxu0 0.0
        %7494 = vmatprep.subr.mxu0 0.0
        %7495 = vmatpush2.msra.mxu0 0.0
        %7496 = vmatprep.subr.mxu0 0.0
        %7497 = vmatpush2.msra.mxu0 0.0
        %7498 = vmatprep.mubr.f32.mxu0 0.0
        %7499 = vmatmul.mubr.f32.gmra.mxu0 %v7411
        %v7500 = vpop.f32.mrf.mxu0
        %v7501 = vadd.f32 %v7375, %v7500
        %v7502 = vpop.f32.mrf.mxu0
        %7503 = vmatprep.mubr.f32.mxu0 0.0
        %7504 = vmatmul.mubr.f32.gmra.mxu0 %v7414
        %v7505 = vpop.f32.mrf.mxu0
        %v7506 = vadd.f32 %v7375, %v7505
        %v7507 = vpop.f32.mrf.mxu0
        %7508 = vmatprep.mubr.f32.mxu0 0.0
        %7509 = vmatmul.mubr.f32.gmra.mxu0 %v7417
        %v7510 = vpop.f32.mrf.mxu0
        %v7511 = vadd.f32 %v7375, %v7510
        %v7512 = vpop.f32.mrf.mxu0
        %7513 = vmatprep.mubr.f32.mxu0 0.0
        %7514 = vmatmul.mubr.f32.gmra.mxu0 %v7420
        %v7515 = vpop.f32.mrf.mxu0
        %v7516 = vadd.f32 %v7375, %v7515
        %v7517 = vpop.f32.mrf.mxu0
        %7518 = vmatprep.mubr.f32.mxu0 0.0
        %7519 = vmatmul.mubr.f32.gmra.mxu0 %v7423
        %v7520 = vpop.f32.mrf.mxu0
        %v7521 = vadd.f32 %v7375, %v7520
        %v7522 = vpop.f32.mrf.mxu0
        %7523 = vmatprep.mubr.f32.mxu0 0.0
        %7524 = vmatmul.mubr.f32.gmra.mxu0 %v7426
        %v7525 = vpop.f32.mrf.mxu0
        %v7526 = vadd.f32 %v7375, %v7525
        %v7527 = vpop.f32.mrf.mxu0
        %7528 = vmatprep.mubr.f32.mxu0 0.0
        %7529 = vmatmul.mubr.f32.gmra.mxu0 %v7429
        %v7530 = vpop.f32.mrf.mxu0
        %v7531 = vadd.f32 %v7375, %v7530
        %v7532 = vpop.f32.mrf.mxu0
        %7533 = vmatprep.mubr.f32.mxu0 0.0
        %7534 = vmatmul.mubr.f32.gmra.mxu0 %v7432
        %v7535 = vpop.f32.mrf.mxu0
        %v7536 = vadd.f32 %v7375, %v7535
        %v7537 = vpop.f32.mrf.mxu0
        %7538 = vdwg.mxu0
        %v7539 = vmax.f32 %v7501, 0.0
        %v7540 = vmax.f32 %v7506, 0.0
        %v7541 = vmax.f32 %v7511, 0.0
        %v7542 = vmax.f32 %v7516, 0.0
        %v7543 = vmax.f32 %v7521, 0.0
        %v7544 = vmax.f32 %v7526, 0.0
        %v7545 = vmax.f32 %v7531, 0.0
        %v7546 = vmax.f32 %v7536, 0.0
        %v7555 = vcombine.high %v7539, %v7539
        %v7557 = vunpack.c.l.s4 1966171168
        %v7558 = vunpack.c.0.s8 %v7557
        %v7559 = vlaneseq
        %v7560 = vshrl.u32 %v7559, 7
        %v7561 = vsub.s32 %v7558, %v7560
        %v7562 = vrot.slane %v7539, %v7561
        %v7564 = vunpack.c.l.s4 1966171168
        %v7565 = vunpack.c.0.s8 %v7564
        %v7566 = vlaneseq
        %v7567 = vshrl.u32 %v7566, 7
        %v7568 = vsub.s32 %v7565, %v7567
        %v7569 = vrot.slane %v7555, %v7568
        %v7570 = vcombine.high %v7562, %v7562
        %v7571 = vcombine.high %v7569, %v7569
        %v7573 = vunpack.c.l.s4 1966171168
        %v7574 = vunpack.c.0.s8 %v7573
        %v7575 = vlaneseq
        %v7576 = vshrl.u32 %v7575, 7
        %v7577 = vsub.s32 %v7574, %v7576
        %v7578 = vrot.slane %v7562, %v7577
        %v7580 = vunpack.c.l.s4 1966171168
        %v7581 = vunpack.c.0.s8 %v7580
        %v7582 = vlaneseq
        %v7583 = vshrl.u32 %v7582, 7
        %v7584 = vsub.s32 %v7581, %v7583
        %v7585 = vrot.slane %v7569, %v7584
        %v7587 = vunpack.c.l.s4 1966171168
        %v7588 = vunpack.c.0.s8 %v7587
        %v7589 = vlaneseq
        %v7590 = vshrl.u32 %v7589, 7
        %v7591 = vsub.s32 %v7588, %v7590
        %v7592 = vrot.slane %v7570, %v7591
        %v7594 = vunpack.c.l.s4 1966171168
        %v7595 = vunpack.c.0.s8 %v7594
        %v7596 = vlaneseq
        %v7597 = vshrl.u32 %v7596, 7
        %v7598 = vsub.s32 %v7595, %v7597
        %v7599 = vrot.slane %v7571, %v7598
        %v7600 = vcombine.high %v7578, %v7578
        %v7601 = vcombine.high %v7585, %v7585
        %v7602 = vcombine.high %v7592, %v7592
        %v7603 = vcombine.high %v7599, %v7599
        %v7604 = vcombine.high %v7540, %v7540
        %v7606 = vunpack.c.l.s4 1966171168
        %v7607 = vunpack.c.0.s8 %v7606
        %v7608 = vlaneseq
        %v7609 = vshrl.u32 %v7608, 7
        %v7610 = vsub.s32 %v7607, %v7609
        %v7611 = vrot.slane %v7540, %v7610
        %v7613 = vunpack.c.l.s4 1966171168
        %v7614 = vunpack.c.0.s8 %v7613
        %v7615 = vlaneseq
        %v7616 = vshrl.u32 %v7615, 7
        %v7617 = vsub.s32 %v7614, %v7616
        %v7618 = vrot.slane %v7604, %v7617
        %v7619 = vcombine.high %v7611, %v7611
        %v7620 = vcombine.high %v7618, %v7618
        %v7622 = vunpack.c.l.s4 1966171168
        %v7623 = vunpack.c.0.s8 %v7622
        %v7624 = vlaneseq
        %v7625 = vshrl.u32 %v7624, 7
        %v7626 = vsub.s32 %v7623, %v7625
        %v7627 = vrot.slane %v7611, %v7626
        %v7629 = vunpack.c.l.s4 1966171168
        %v7630 = vunpack.c.0.s8 %v7629
        %v7631 = vlaneseq
        %v7632 = vshrl.u32 %v7631, 7
        %v7633 = vsub.s32 %v7630, %v7632
        %v7634 = vrot.slane %v7618, %v7633
        %v7636 = vunpack.c.l.s4 1966171168
        %v7637 = vunpack.c.0.s8 %v7636
        %v7638 = vlaneseq
        %v7639 = vshrl.u32 %v7638, 7
        %v7640 = vsub.s32 %v7637, %v7639
        %v7641 = vrot.slane %v7619, %v7640
        %v7643 = vunpack.c.l.s4 1966171168
        %v7644 = vunpack.c.0.s8 %v7643
        %v7645 = vlaneseq
        %v7646 = vshrl.u32 %v7645, 7
        %v7647 = vsub.s32 %v7644, %v7646
        %v7648 = vrot.slane %v7620, %v7647
        %v7649 = vcombine.high %v7627, %v7627
        %v7650 = vcombine.high %v7634, %v7634
        %v7651 = vcombine.high %v7641, %v7641
        %v7652 = vcombine.high %v7648, %v7648
        %v7653 = vcombine.high %v7541, %v7541
        %v7655 = vunpack.c.l.s4 1966171168
        %v7656 = vunpack.c.0.s8 %v7655
        %v7657 = vlaneseq
        %v7658 = vshrl.u32 %v7657, 7
        %v7659 = vsub.s32 %v7656, %v7658
        %v7660 = vrot.slane %v7541, %v7659
        %v7662 = vunpack.c.l.s4 1966171168
        %v7663 = vunpack.c.0.s8 %v7662
        %v7664 = vlaneseq
        %v7665 = vshrl.u32 %v7664, 7
        %v7666 = vsub.s32 %v7663, %v7665
        %v7667 = vrot.slane %v7653, %v7666
        %v7668 = vcombine.high %v7660, %v7660
        %v7669 = vcombine.high %v7667, %v7667
        %v7671 = vunpack.c.l.s4 1966171168
        %v7672 = vunpack.c.0.s8 %v7671
        %v7673 = vlaneseq
        %v7674 = vshrl.u32 %v7673, 7
        %v7675 = vsub.s32 %v7672, %v7674
        %v7676 = vrot.slane %v7660, %v7675
        %v7678 = vunpack.c.l.s4 1966171168
        %v7679 = vunpack.c.0.s8 %v7678
        %v7680 = vlaneseq
        %v7681 = vshrl.u32 %v7680, 7
        %v7682 = vsub.s32 %v7679, %v7681
        %v7683 = vrot.slane %v7667, %v7682
        %v7685 = vunpack.c.l.s4 1966171168
        %v7686 = vunpack.c.0.s8 %v7685
        %v7687 = vlaneseq
        %v7688 = vshrl.u32 %v7687, 7
        %v7689 = vsub.s32 %v7686, %v7688
        %v7690 = vrot.slane %v7668, %v7689
        %v7692 = vunpack.c.l.s4 1966171168
        %v7693 = vunpack.c.0.s8 %v7692
        %v7694 = vlaneseq
        %v7695 = vshrl.u32 %v7694, 7
        %v7696 = vsub.s32 %v7693, %v7695
        %v7697 = vrot.slane %v7669, %v7696
        %v7698 = vcombine.high %v7676, %v7676
        %v7699 = vcombine.high %v7683, %v7683
        %v7700 = vcombine.high %v7690, %v7690
        %v7701 = vcombine.high %v7697, %v7697
        %v7702 = vcombine.high %v7542, %v7542
        %v7704 = vunpack.c.l.s4 1966171168
        %v7705 = vunpack.c.0.s8 %v7704
        %v7706 = vlaneseq
        %v7707 = vshrl.u32 %v7706, 7
        %v7708 = vsub.s32 %v7705, %v7707
        %v7709 = vrot.slane %v7542, %v7708
        %v7711 = vunpack.c.l.s4 1966171168
        %v7712 = vunpack.c.0.s8 %v7711
        %v7713 = vlaneseq
        %v7714 = vshrl.u32 %v7713, 7
        %v7715 = vsub.s32 %v7712, %v7714
        %v7716 = vrot.slane %v7702, %v7715
        %v7717 = vcombine.high %v7709, %v7709
        %v7718 = vcombine.high %v7716, %v7716
        %v7720 = vunpack.c.l.s4 1966171168
        %v7721 = vunpack.c.0.s8 %v7720
        %v7722 = vlaneseq
        %v7723 = vshrl.u32 %v7722, 7
        %v7724 = vsub.s32 %v7721, %v7723
        %v7725 = vrot.slane %v7709, %v7724
        %v7727 = vunpack.c.l.s4 1966171168
        %v7728 = vunpack.c.0.s8 %v7727
        %v7729 = vlaneseq
        %v7730 = vshrl.u32 %v7729, 7
        %v7731 = vsub.s32 %v7728, %v7730
        %v7732 = vrot.slane %v7716, %v7731
        %v7734 = vunpack.c.l.s4 1966171168
        %v7735 = vunpack.c.0.s8 %v7734
        %v7736 = vlaneseq
        %v7737 = vshrl.u32 %v7736, 7
        %v7738 = vsub.s32 %v7735, %v7737
        %v7739 = vrot.slane %v7717, %v7738
        %v7741 = vunpack.c.l.s4 1966171168
        %v7742 = vunpack.c.0.s8 %v7741
        %v7743 = vlaneseq
        %v7744 = vshrl.u32 %v7743, 7
        %v7745 = vsub.s32 %v7742, %v7744
        %v7746 = vrot.slane %v7718, %v7745
        %v7747 = vcombine.high %v7725, %v7725
        %v7748 = vcombine.high %v7732, %v7732
        %v7749 = vcombine.high %v7739, %v7739
        %v7750 = vcombine.high %v7746, %v7746
        %v7751 = vcombine.high %v7543, %v7543
        %v7753 = vunpack.c.l.s4 1966171168
        %v7754 = vunpack.c.0.s8 %v7753
        %v7755 = vlaneseq
        %v7756 = vshrl.u32 %v7755, 7
        %v7757 = vsub.s32 %v7754, %v7756
        %v7758 = vrot.slane %v7543, %v7757
        %v7760 = vunpack.c.l.s4 1966171168
        %v7761 = vunpack.c.0.s8 %v7760
        %v7762 = vlaneseq
        %v7763 = vshrl.u32 %v7762, 7
        %v7764 = vsub.s32 %v7761, %v7763
        %v7765 = vrot.slane %v7751, %v7764
        %v7766 = vcombine.high %v7758, %v7758
        %v7767 = vcombine.high %v7765, %v7765
        %v7769 = vunpack.c.l.s4 1966171168
        %v7770 = vunpack.c.0.s8 %v7769
        %v7771 = vlaneseq
        %v7772 = vshrl.u32 %v7771, 7
        %v7773 = vsub.s32 %v7770, %v7772
        %v7774 = vrot.slane %v7758, %v7773
        %v7776 = vunpack.c.l.s4 1966171168
        %v7777 = vunpack.c.0.s8 %v7776
        %v7778 = vlaneseq
        %v7779 = vshrl.u32 %v7778, 7
        %v7780 = vsub.s32 %v7777, %v7779
        %v7781 = vrot.slane %v7765, %v7780
        %v7783 = vunpack.c.l.s4 1966171168
        %v7784 = vunpack.c.0.s8 %v7783
        %v7785 = vlaneseq
        %v7786 = vshrl.u32 %v7785, 7
        %v7787 = vsub.s32 %v7784, %v7786
        %v7788 = vrot.slane %v7766, %v7787
        %v7790 = vunpack.c.l.s4 1966171168
        %v7791 = vunpack.c.0.s8 %v7790
        %v7792 = vlaneseq
        %v7793 = vshrl.u32 %v7792, 7
        %v7794 = vsub.s32 %v7791, %v7793
        %v7795 = vrot.slane %v7767, %v7794
        %v7796 = vcombine.high %v7774, %v7774
        %v7797 = vcombine.high %v7781, %v7781
        %v7798 = vcombine.high %v7788, %v7788
        %v7799 = vcombine.high %v7795, %v7795
        %v7800 = vcombine.high %v7544, %v7544
        %v7802 = vunpack.c.l.s4 1966171168
        %v7803 = vunpack.c.0.s8 %v7802
        %v7804 = vlaneseq
        %v7805 = vshrl.u32 %v7804, 7
        %v7806 = vsub.s32 %v7803, %v7805
        %v7807 = vrot.slane %v7544, %v7806
        %v7809 = vunpack.c.l.s4 1966171168
        %v7810 = vunpack.c.0.s8 %v7809
        %v7811 = vlaneseq
        %v7812 = vshrl.u32 %v7811, 7
        %v7813 = vsub.s32 %v7810, %v7812
        %v7814 = vrot.slane %v7800, %v7813
        %v7815 = vcombine.high %v7807, %v7807
        %v7816 = vcombine.high %v7814, %v7814
        %v7818 = vunpack.c.l.s4 1966171168
        %v7819 = vunpack.c.0.s8 %v7818
        %v7820 = vlaneseq
        %v7821 = vshrl.u32 %v7820, 7
        %v7822 = vsub.s32 %v7819, %v7821
        %v7823 = vrot.slane %v7807, %v7822
        %v7825 = vunpack.c.l.s4 1966171168
        %v7826 = vunpack.c.0.s8 %v7825
        %v7827 = vlaneseq
        %v7828 = vshrl.u32 %v7827, 7
        %v7829 = vsub.s32 %v7826, %v7828
        %v7830 = vrot.slane %v7814, %v7829
        %v7832 = vunpack.c.l.s4 1966171168
        %v7833 = vunpack.c.0.s8 %v7832
        %v7834 = vlaneseq
        %v7835 = vshrl.u32 %v7834, 7
        %v7836 = vsub.s32 %v7833, %v7835
        %v7837 = vrot.slane %v7815, %v7836
        %v7839 = vunpack.c.l.s4 1966171168
        %v7840 = vunpack.c.0.s8 %v7839
        %v7841 = vlaneseq
        %v7842 = vshrl.u32 %v7841, 7
        %v7843 = vsub.s32 %v7840, %v7842
        %v7844 = vrot.slane %v7816, %v7843
        %v7845 = vcombine.high %v7823, %v7823
        %v7846 = vcombine.high %v7830, %v7830
        %v7847 = vcombine.high %v7837, %v7837
        %v7848 = vcombine.high %v7844, %v7844
        %v7849 = vcombine.high %v7545, %v7545
        %v7851 = vunpack.c.l.s4 1966171168
        %v7852 = vunpack.c.0.s8 %v7851
        %v7853 = vlaneseq
        %v7854 = vshrl.u32 %v7853, 7
        %v7855 = vsub.s32 %v7852, %v7854
        %v7856 = vrot.slane %v7545, %v7855
        %v7858 = vunpack.c.l.s4 1966171168
        %v7859 = vunpack.c.0.s8 %v7858
        %v7860 = vlaneseq
        %v7861 = vshrl.u32 %v7860, 7
        %v7862 = vsub.s32 %v7859, %v7861
        %v7863 = vrot.slane %v7849, %v7862
        %v7864 = vcombine.high %v7856, %v7856
        %v7865 = vcombine.high %v7863, %v7863
        %v7867 = vunpack.c.l.s4 1966171168
        %v7868 = vunpack.c.0.s8 %v7867
        %v7869 = vlaneseq
        %v7870 = vshrl.u32 %v7869, 7
        %v7871 = vsub.s32 %v7868, %v7870
        %v7872 = vrot.slane %v7856, %v7871
        %v7874 = vunpack.c.l.s4 1966171168
        %v7875 = vunpack.c.0.s8 %v7874
        %v7876 = vlaneseq
        %v7877 = vshrl.u32 %v7876, 7
        %v7878 = vsub.s32 %v7875, %v7877
        %v7879 = vrot.slane %v7863, %v7878
        %v7881 = vunpack.c.l.s4 1966171168
        %v7882 = vunpack.c.0.s8 %v7881
        %v7883 = vlaneseq
        %v7884 = vshrl.u32 %v7883, 7
        %v7885 = vsub.s32 %v7882, %v7884
        %v7886 = vrot.slane %v7864, %v7885
        %v7888 = vunpack.c.l.s4 1966171168
        %v7889 = vunpack.c.0.s8 %v7888
        %v7890 = vlaneseq
        %v7891 = vshrl.u32 %v7890, 7
        %v7892 = vsub.s32 %v7889, %v7891
        %v7893 = vrot.slane %v7865, %v7892
        %v7894 = vcombine.high %v7872, %v7872
        %v7895 = vcombine.high %v7879, %v7879
        %v7896 = vcombine.high %v7886, %v7886
        %v7897 = vcombine.high %v7893, %v7893
        %v7898 = vcombine.high %v7546, %v7546
        %v7900 = vunpack.c.l.s4 1966171168
        %v7901 = vunpack.c.0.s8 %v7900
        %v7902 = vlaneseq
        %v7903 = vshrl.u32 %v7902, 7
        %v7904 = vsub.s32 %v7901, %v7903
        %v7905 = vrot.slane %v7546, %v7904
        %v7907 = vunpack.c.l.s4 1966171168
        %v7908 = vunpack.c.0.s8 %v7907
        %v7909 = vlaneseq
        %v7910 = vshrl.u32 %v7909, 7
        %v7911 = vsub.s32 %v7908, %v7910
        %v7912 = vrot.slane %v7898, %v7911
        %v7913 = vcombine.high %v7905, %v7905
        %v7914 = vcombine.high %v7912, %v7912
        %v7916 = vunpack.c.l.s4 1966171168
        %v7917 = vunpack.c.0.s8 %v7916
        %v7918 = vlaneseq
        %v7919 = vshrl.u32 %v7918, 7
        %v7920 = vsub.s32 %v7917, %v7919
        %v7921 = vrot.slane %v7905, %v7920
        %v7923 = vunpack.c.l.s4 1966171168
        %v7924 = vunpack.c.0.s8 %v7923
        %v7925 = vlaneseq
        %v7926 = vshrl.u32 %v7925, 7
        %v7927 = vsub.s32 %v7924, %v7926
        %v7928 = vrot.slane %v7912, %v7927
        %v7930 = vunpack.c.l.s4 1966171168
        %v7931 = vunpack.c.0.s8 %v7930
        %v7932 = vlaneseq
        %v7933 = vshrl.u32 %v7932, 7
        %v7934 = vsub.s32 %v7931, %v7933
        %v7935 = vrot.slane %v7913, %v7934
        %v7937 = vunpack.c.l.s4 1966171168
        %v7938 = vunpack.c.0.s8 %v7937
        %v7939 = vlaneseq
        %v7940 = vshrl.u32 %v7939, 7
        %v7941 = vsub.s32 %v7938, %v7940
        %v7942 = vrot.slane %v7914, %v7941
        %v7943 = vcombine.high %v7921, %v7921
        %v7944 = vcombine.high %v7928, %v7928
        %v7945 = vcombine.high %v7935, %v7935
        %v7946 = vcombine.high %v7942, %v7942
        %v7947 = vlaneseq
        %v7948 = vshrl.u32 %v7947, 7
        %v7949 = vsub.s32 0, %v7948
        %v7950 = vrot.slane %v7578, %v7949
        %v7951 = vlaneseq
        %v7952 = vshrl.u32 %v7951, 7
        %v7953 = vsub.s32 0, %v7952
        %v7954 = vrot.slane %v7592, %v7953
        %v7955 = vlaneseq
        %v7956 = vshrl.u32 %v7955, 7
        %v7957 = vsub.s32 0, %v7956
        %v7958 = vrot.slane %v7600, %v7957
        %v7959 = vlaneseq
        %v7960 = vshrl.u32 %v7959, 7
        %v7961 = vsub.s32 0, %v7960
        %v7962 = vrot.slane %v7602, %v7961
        %v7963 = vlaneseq
        %v7964 = vshrl.u32 %v7963, 7
        %v7965 = vsub.s32 0, %v7964
        %v7966 = vrot.slane %v7585, %v7965
        %v7967 = vlaneseq
        %v7968 = vshrl.u32 %v7967, 7
        %v7969 = vsub.s32 0, %v7968
        %v7970 = vrot.slane %v7599, %v7969
        %v7971 = vlaneseq
        %v7972 = vshrl.u32 %v7971, 7
        %v7973 = vsub.s32 0, %v7972
        %v7974 = vrot.slane %v7601, %v7973
        %v7975 = vlaneseq
        %v7976 = vshrl.u32 %v7975, 7
        %v7977 = vsub.s32 0, %v7976
        %v7978 = vrot.slane %v7603, %v7977
        %v7979 = vlaneseq
        %v7980 = vshrl.u32 %v7979, 7
        %v7981 = vsub.s32 0, %v7980
        %v7982 = vrot.slane %v7627, %v7981
        %v7983 = vlaneseq
        %v7984 = vshrl.u32 %v7983, 7
        %v7985 = vsub.s32 0, %v7984
        %v7986 = vrot.slane %v7641, %v7985
        %v7987 = vlaneseq
        %v7988 = vshrl.u32 %v7987, 7
        %v7989 = vsub.s32 0, %v7988
        %v7990 = vrot.slane %v7649, %v7989
        %v7991 = vlaneseq
        %v7992 = vshrl.u32 %v7991, 7
        %v7993 = vsub.s32 0, %v7992
        %v7994 = vrot.slane %v7651, %v7993
        %v7995 = vlaneseq
        %v7996 = vshrl.u32 %v7995, 7
        %v7997 = vsub.s32 0, %v7996
        %v7998 = vrot.slane %v7634, %v7997
        %v7999 = vlaneseq
        %v8000 = vshrl.u32 %v7999, 7
        %v8001 = vsub.s32 0, %v8000
        %v8002 = vrot.slane %v7648, %v8001
        %v8003 = vlaneseq
        %v8004 = vshrl.u32 %v8003, 7
        %v8005 = vsub.s32 0, %v8004
        %v8006 = vrot.slane %v7650, %v8005
        %v8007 = vlaneseq
        %v8008 = vshrl.u32 %v8007, 7
        %v8009 = vsub.s32 0, %v8008
        %v8010 = vrot.slane %v7652, %v8009
        %v8011 = vlaneseq
        %v8012 = vshrl.u32 %v8011, 7
        %v8013 = vsub.s32 0, %v8012
        %v8014 = vrot.slane %v7676, %v8013
        %v8015 = vlaneseq
        %v8016 = vshrl.u32 %v8015, 7
        %v8017 = vsub.s32 0, %v8016
        %v8018 = vrot.slane %v7690, %v8017
        %v8019 = vlaneseq
        %v8020 = vshrl.u32 %v8019, 7
        %v8021 = vsub.s32 0, %v8020
        %v8022 = vrot.slane %v7698, %v8021
        %v8023 = vlaneseq
        %v8024 = vshrl.u32 %v8023, 7
        %v8025 = vsub.s32 0, %v8024
        %v8026 = vrot.slane %v7700, %v8025
        %v8027 = vlaneseq
        %v8028 = vshrl.u32 %v8027, 7
        %v8029 = vsub.s32 0, %v8028
        %v8030 = vrot.slane %v7683, %v8029
        %v8031 = vlaneseq
        %v8032 = vshrl.u32 %v8031, 7
        %v8033 = vsub.s32 0, %v8032
        %v8034 = vrot.slane %v7697, %v8033
        %v8035 = vlaneseq
        %v8036 = vshrl.u32 %v8035, 7
        %v8037 = vsub.s32 0, %v8036
        %v8038 = vrot.slane %v7699, %v8037
        %v8039 = vlaneseq
        %v8040 = vshrl.u32 %v8039, 7
        %v8041 = vsub.s32 0, %v8040
        %v8042 = vrot.slane %v7701, %v8041
        %v8043 = vlaneseq
        %v8044 = vshrl.u32 %v8043, 7
        %v8045 = vsub.s32 0, %v8044
        %v8046 = vrot.slane %v7725, %v8045
        %v8047 = vlaneseq
        %v8048 = vshrl.u32 %v8047, 7
        %v8049 = vsub.s32 0, %v8048
        %v8050 = vrot.slane %v7739, %v8049
        %v8051 = vlaneseq
        %v8052 = vshrl.u32 %v8051, 7
        %v8053 = vsub.s32 0, %v8052
        %v8054 = vrot.slane %v7747, %v8053
        %v8055 = vlaneseq
        %v8056 = vshrl.u32 %v8055, 7
        %v8057 = vsub.s32 0, %v8056
        %v8058 = vrot.slane %v7749, %v8057
        %v8059 = vlaneseq
        %v8060 = vshrl.u32 %v8059, 7
        %v8061 = vsub.s32 0, %v8060
        %v8062 = vrot.slane %v7732, %v8061
        %v8063 = vlaneseq
        %v8064 = vshrl.u32 %v8063, 7
        %v8065 = vsub.s32 0, %v8064
        %v8066 = vrot.slane %v7746, %v8065
        %v8067 = vlaneseq
        %v8068 = vshrl.u32 %v8067, 7
        %v8069 = vsub.s32 0, %v8068
        %v8070 = vrot.slane %v7748, %v8069
        %v8071 = vlaneseq
        %v8072 = vshrl.u32 %v8071, 7
        %v8073 = vsub.s32 0, %v8072
        %v8074 = vrot.slane %v7750, %v8073
        %v8075 = vlaneseq
        %v8076 = vshrl.u32 %v8075, 7
        %v8077 = vsub.s32 0, %v8076
        %v8078 = vrot.slane %v7774, %v8077
        %v8079 = vlaneseq
        %v8080 = vshrl.u32 %v8079, 7
        %v8081 = vsub.s32 0, %v8080
        %v8082 = vrot.slane %v7788, %v8081
        %v8083 = vlaneseq
        %v8084 = vshrl.u32 %v8083, 7
        %v8085 = vsub.s32 0, %v8084
        %v8086 = vrot.slane %v7796, %v8085
        %v8087 = vlaneseq
        %v8088 = vshrl.u32 %v8087, 7
        %v8089 = vsub.s32 0, %v8088
        %v8090 = vrot.slane %v7798, %v8089
        %v8091 = vlaneseq
        %v8092 = vshrl.u32 %v8091, 7
        %v8093 = vsub.s32 0, %v8092
        %v8094 = vrot.slane %v7781, %v8093
        %v8095 = vlaneseq
        %v8096 = vshrl.u32 %v8095, 7
        %v8097 = vsub.s32 0, %v8096
        %v8098 = vrot.slane %v7795, %v8097
        %v8099 = vlaneseq
        %v8100 = vshrl.u32 %v8099, 7
        %v8101 = vsub.s32 0, %v8100
        %v8102 = vrot.slane %v7797, %v8101
        %v8103 = vlaneseq
        %v8104 = vshrl.u32 %v8103, 7
        %v8105 = vsub.s32 0, %v8104
        %v8106 = vrot.slane %v7799, %v8105
        %v8107 = vlaneseq
        %v8108 = vshrl.u32 %v8107, 7
        %v8109 = vsub.s32 0, %v8108
        %v8110 = vrot.slane %v7823, %v8109
        %v8111 = vlaneseq
        %v8112 = vshrl.u32 %v8111, 7
        %v8113 = vsub.s32 0, %v8112
        %v8114 = vrot.slane %v7837, %v8113
        %v8115 = vlaneseq
        %v8116 = vshrl.u32 %v8115, 7
        %v8117 = vsub.s32 0, %v8116
        %v8118 = vrot.slane %v7845, %v8117
        %v8119 = vlaneseq
        %v8120 = vshrl.u32 %v8119, 7
        %v8121 = vsub.s32 0, %v8120
        %v8122 = vrot.slane %v7847, %v8121
        %v8123 = vlaneseq
        %v8124 = vshrl.u32 %v8123, 7
        %v8125 = vsub.s32 0, %v8124
        %v8126 = vrot.slane %v7830, %v8125
        %v8127 = vlaneseq
        %v8128 = vshrl.u32 %v8127, 7
        %v8129 = vsub.s32 0, %v8128
        %v8130 = vrot.slane %v7844, %v8129
        %v8131 = vlaneseq
        %v8132 = vshrl.u32 %v8131, 7
        %v8133 = vsub.s32 0, %v8132
        %v8134 = vrot.slane %v7846, %v8133
        %v8135 = vlaneseq
        %v8136 = vshrl.u32 %v8135, 7
        %v8137 = vsub.s32 0, %v8136
        %v8138 = vrot.slane %v7848, %v8137
        %v8139 = vlaneseq
        %v8140 = vshrl.u32 %v8139, 7
        %v8141 = vsub.s32 0, %v8140
        %v8142 = vrot.slane %v7872, %v8141
        %v8143 = vlaneseq
        %v8144 = vshrl.u32 %v8143, 7
        %v8145 = vsub.s32 0, %v8144
        %v8146 = vrot.slane %v7886, %v8145
        %v8147 = vlaneseq
        %v8148 = vshrl.u32 %v8147, 7
        %v8149 = vsub.s32 0, %v8148
        %v8150 = vrot.slane %v7894, %v8149
        %v8151 = vlaneseq
        %v8152 = vshrl.u32 %v8151, 7
        %v8153 = vsub.s32 0, %v8152
        %v8154 = vrot.slane %v7896, %v8153
        %v8155 = vlaneseq
        %v8156 = vshrl.u32 %v8155, 7
        %v8157 = vsub.s32 0, %v8156
        %v8158 = vrot.slane %v7879, %v8157
        %v8159 = vlaneseq
        %v8160 = vshrl.u32 %v8159, 7
        %v8161 = vsub.s32 0, %v8160
        %v8162 = vrot.slane %v7893, %v8161
        %v8163 = vlaneseq
        %v8164 = vshrl.u32 %v8163, 7
        %v8165 = vsub.s32 0, %v8164
        %v8166 = vrot.slane %v7895, %v8165
        %v8167 = vlaneseq
        %v8168 = vshrl.u32 %v8167, 7
        %v8169 = vsub.s32 0, %v8168
        %v8170 = vrot.slane %v7897, %v8169
        %v8171 = vlaneseq
        %v8172 = vshrl.u32 %v8171, 7
        %v8173 = vsub.s32 0, %v8172
        %v8174 = vrot.slane %v7921, %v8173
        %v8175 = vlaneseq
        %v8176 = vshrl.u32 %v8175, 7
        %v8177 = vsub.s32 0, %v8176
        %v8178 = vrot.slane %v7935, %v8177
        %v8179 = vlaneseq
        %v8180 = vshrl.u32 %v8179, 7
        %v8181 = vsub.s32 0, %v8180
        %v8182 = vrot.slane %v7943, %v8181
        %v8183 = vlaneseq
        %v8184 = vshrl.u32 %v8183, 7
        %v8185 = vsub.s32 0, %v8184
        %v8186 = vrot.slane %v7945, %v8185
        %v8187 = vlaneseq
        %v8188 = vshrl.u32 %v8187, 7
        %v8189 = vsub.s32 0, %v8188
        %v8190 = vrot.slane %v7928, %v8189
        %v8191 = vlaneseq
        %v8192 = vshrl.u32 %v8191, 7
        %v8193 = vsub.s32 0, %v8192
        %v8194 = vrot.slane %v7942, %v8193
        %v8195 = vlaneseq
        %v8196 = vshrl.u32 %v8195, 7
        %v8197 = vsub.s32 0, %v8196
        %v8198 = vrot.slane %v7944, %v8197
        %v8199 = vlaneseq
        %v8200 = vshrl.u32 %v8199, 7
        %v8201 = vsub.s32 0, %v8200
        %v8202 = vrot.slane %v7946, %v8201
        %v8203 = vld [vmem:[%s11] sm:$0xff]
        %v8204 = vld [vmem:[%s11 + $0x8] sm:$0xff]
        %v8205 = vld [vmem:[%s11 + $0x10] sm:$0xff]
        %v8206 = vld [vmem:[%s11 + $0x18] sm:$0xff]
        %v8207 = vld [vmem:[%s11 + $0x20] sm:$0xff]
        %v8208 = vld [vmem:[%s11 + $0x28] sm:$0xff]
        %v8209 = vcombine.low %v7950, %v7954
        %v8210 = vcombine.low %v7958, %v7962
        %v8212 = vunpack.c.l.s4 1983009808
        %v8213 = vunpack.c.0.s8 %v8212
        %v8214 = vlaneseq
        %v8215 = vshrl.u32 %v8214, 7
        %v8216 = vsub.s32 %v8213, %v8215
        %v8217 = vrot.slane %v8209, %v8216
        %v8219 = vunpack.c.l.s4 1983009808
        %v8220 = vunpack.c.0.s8 %v8219
        %v8221 = vlaneseq
        %v8222 = vshrl.u32 %v8221, 7
        %v8223 = vsub.s32 %v8220, %v8222
        %v8224 = vrot.slane %v8210, %v8223
        %v8225 = vcombine.low %v8217, %v8224
        %v8226 = vcombine.low %v7966, %v7970
        %v8227 = vcombine.low %v7974, %v7978
        %v8229 = vunpack.c.l.s4 1983009808
        %v8230 = vunpack.c.0.s8 %v8229
        %v8231 = vlaneseq
        %v8232 = vshrl.u32 %v8231, 7
        %v8233 = vsub.s32 %v8230, %v8232
        %v8234 = vrot.slane %v8226, %v8233
        %v8236 = vunpack.c.l.s4 1983009808
        %v8237 = vunpack.c.0.s8 %v8236
        %v8238 = vlaneseq
        %v8239 = vshrl.u32 %v8238, 7
        %v8240 = vsub.s32 %v8237, %v8239
        %v8241 = vrot.slane %v8227, %v8240
        %v8242 = vcombine.low %v8234, %v8241
        %v8243 = vcombine.low %v7982, %v7986
        %v8244 = vcombine.low %v7990, %v7994
        %v8246 = vunpack.c.l.s4 1983009808
        %v8247 = vunpack.c.0.s8 %v8246
        %v8248 = vlaneseq
        %v8249 = vshrl.u32 %v8248, 7
        %v8250 = vsub.s32 %v8247, %v8249
        %v8251 = vrot.slane %v8243, %v8250
        %v8253 = vunpack.c.l.s4 1983009808
        %v8254 = vunpack.c.0.s8 %v8253
        %v8255 = vlaneseq
        %v8256 = vshrl.u32 %v8255, 7
        %v8257 = vsub.s32 %v8254, %v8256
        %v8258 = vrot.slane %v8244, %v8257
        %v8259 = vcombine.low %v8251, %v8258
        %v8260 = vcombine.low %v7998, %v8002
        %v8261 = vcombine.low %v8006, %v8010
        %v8263 = vunpack.c.l.s4 1983009808
        %v8264 = vunpack.c.0.s8 %v8263
        %v8265 = vlaneseq
        %v8266 = vshrl.u32 %v8265, 7
        %v8267 = vsub.s32 %v8264, %v8266
        %v8268 = vrot.slane %v8260, %v8267
        %v8270 = vunpack.c.l.s4 1983009808
        %v8271 = vunpack.c.0.s8 %v8270
        %v8272 = vlaneseq
        %v8273 = vshrl.u32 %v8272, 7
        %v8274 = vsub.s32 %v8271, %v8273
        %v8275 = vrot.slane %v8261, %v8274
        %v8276 = vcombine.low %v8268, %v8275
        %v8277 = vcombine.low %v8014, %v8018
        %v8278 = vcombine.low %v8022, %v8026
        %v8280 = vunpack.c.l.s4 1983009808
        %v8281 = vunpack.c.0.s8 %v8280
        %v8282 = vlaneseq
        %v8283 = vshrl.u32 %v8282, 7
        %v8284 = vsub.s32 %v8281, %v8283
        %v8285 = vrot.slane %v8277, %v8284
        %v8287 = vunpack.c.l.s4 1983009808
        %v8288 = vunpack.c.0.s8 %v8287
        %v8289 = vlaneseq
        %v8290 = vshrl.u32 %v8289, 7
        %v8291 = vsub.s32 %v8288, %v8290
        %v8292 = vrot.slane %v8278, %v8291
        %v8293 = vcombine.low %v8285, %v8292
        %v8294 = vcombine.low %v8030, %v8034
        %v8295 = vcombine.low %v8038, %v8042
        %v8297 = vunpack.c.l.s4 1983009808
        %v8298 = vunpack.c.0.s8 %v8297
        %v8299 = vlaneseq
        %v8300 = vshrl.u32 %v8299, 7
        %v8301 = vsub.s32 %v8298, %v8300
        %v8302 = vrot.slane %v8294, %v8301
        %v8304 = vunpack.c.l.s4 1983009808
        %v8305 = vunpack.c.0.s8 %v8304
        %v8306 = vlaneseq
        %v8307 = vshrl.u32 %v8306, 7
        %v8308 = vsub.s32 %v8305, %v8307
        %v8309 = vrot.slane %v8295, %v8308
        %v8310 = vcombine.low %v8302, %v8309
        %v8311 = vcombine.low %v8046, %v8050
        %v8312 = vcombine.low %v8054, %v8058
        %v8314 = vunpack.c.l.s4 1983009808
        %v8315 = vunpack.c.0.s8 %v8314
        %v8316 = vlaneseq
        %v8317 = vshrl.u32 %v8316, 7
        %v8318 = vsub.s32 %v8315, %v8317
        %v8319 = vrot.slane %v8311, %v8318
        %v8321 = vunpack.c.l.s4 1983009808
        %v8322 = vunpack.c.0.s8 %v8321
        %v8323 = vlaneseq
        %v8324 = vshrl.u32 %v8323, 7
        %v8325 = vsub.s32 %v8322, %v8324
        %v8326 = vrot.slane %v8312, %v8325
        %v8327 = vcombine.low %v8319, %v8326
        %v8328 = vcombine.low %v8062, %v8066
        %v8329 = vcombine.low %v8070, %v8074
        %v8331 = vunpack.c.l.s4 1983009808
        %v8332 = vunpack.c.0.s8 %v8331
        %v8333 = vlaneseq
        %v8334 = vshrl.u32 %v8333, 7
        %v8335 = vsub.s32 %v8332, %v8334
        %v8336 = vrot.slane %v8328, %v8335
        %v8338 = vunpack.c.l.s4 1983009808
        %v8339 = vunpack.c.0.s8 %v8338
        %v8340 = vlaneseq
        %v8341 = vshrl.u32 %v8340, 7
        %v8342 = vsub.s32 %v8339, %v8341
        %v8343 = vrot.slane %v8329, %v8342
        %v8344 = vcombine.low %v8336, %v8343
        %v8345 = vcombine.low %v8078, %v8082
        %v8346 = vcombine.low %v8086, %v8090
        %v8348 = vunpack.c.l.s4 1983009808
        %v8349 = vunpack.c.0.s8 %v8348
        %v8350 = vlaneseq
        %v8351 = vshrl.u32 %v8350, 7
        %v8352 = vsub.s32 %v8349, %v8351
        %v8353 = vrot.slane %v8345, %v8352
        %v8355 = vunpack.c.l.s4 1983009808
        %v8356 = vunpack.c.0.s8 %v8355
        %v8357 = vlaneseq
        %v8358 = vshrl.u32 %v8357, 7
        %v8359 = vsub.s32 %v8356, %v8358
        %v8360 = vrot.slane %v8346, %v8359
        %v8361 = vcombine.low %v8353, %v8360
        %v8362 = vcombine.low %v8094, %v8098
        %v8363 = vcombine.low %v8102, %v8106
        %v8365 = vunpack.c.l.s4 1983009808
        %v8366 = vunpack.c.0.s8 %v8365
        %v8367 = vlaneseq
        %v8368 = vshrl.u32 %v8367, 7
        %v8369 = vsub.s32 %v8366, %v8368
        %v8370 = vrot.slane %v8362, %v8369
        %v8372 = vunpack.c.l.s4 1983009808
        %v8373 = vunpack.c.0.s8 %v8372
        %v8374 = vlaneseq
        %v8375 = vshrl.u32 %v8374, 7
        %v8376 = vsub.s32 %v8373, %v8375
        %v8377 = vrot.slane %v8363, %v8376
        %v8378 = vcombine.low %v8370, %v8377
        %v8379 = vcombine.low %v8110, %v8114
        %v8380 = vcombine.low %v8118, %v8122
        %v8382 = vunpack.c.l.s4 1983009808
        %v8383 = vunpack.c.0.s8 %v8382
        %v8384 = vlaneseq
        %v8385 = vshrl.u32 %v8384, 7
        %v8386 = vsub.s32 %v8383, %v8385
        %v8387 = vrot.slane %v8379, %v8386
        %v8389 = vunpack.c.l.s4 1983009808
        %v8390 = vunpack.c.0.s8 %v8389
        %v8391 = vlaneseq
        %v8392 = vshrl.u32 %v8391, 7
        %v8393 = vsub.s32 %v8390, %v8392
        %v8394 = vrot.slane %v8380, %v8393
        %v8395 = vcombine.low %v8387, %v8394
        %v8396 = vcombine.low %v8126, %v8130
        %v8397 = vcombine.low %v8134, %v8138
        %v8399 = vunpack.c.l.s4 1983009808
        %v8400 = vunpack.c.0.s8 %v8399
        %v8401 = vlaneseq
        %v8402 = vshrl.u32 %v8401, 7
        %v8403 = vsub.s32 %v8400, %v8402
        %v8404 = vrot.slane %v8396, %v8403
        %v8406 = vunpack.c.l.s4 1983009808
        %v8407 = vunpack.c.0.s8 %v8406
        %v8408 = vlaneseq
        %v8409 = vshrl.u32 %v8408, 7
        %v8410 = vsub.s32 %v8407, %v8409
        %v8411 = vrot.slane %v8397, %v8410
        %v8412 = vcombine.low %v8404, %v8411
        %v8413 = vcombine.low %v8142, %v8146
        %v8414 = vcombine.low %v8150, %v8154
        %v8416 = vunpack.c.l.s4 1983009808
        %v8417 = vunpack.c.0.s8 %v8416
        %v8418 = vlaneseq
        %v8419 = vshrl.u32 %v8418, 7
        %v8420 = vsub.s32 %v8417, %v8419
        %v8421 = vrot.slane %v8413, %v8420
        %v8423 = vunpack.c.l.s4 1983009808
        %v8424 = vunpack.c.0.s8 %v8423
        %v8425 = vlaneseq
        %v8426 = vshrl.u32 %v8425, 7
        %v8427 = vsub.s32 %v8424, %v8426
        %v8428 = vrot.slane %v8414, %v8427
        %v8429 = vcombine.low %v8421, %v8428
        %v8430 = vcombine.low %v8158, %v8162
        %v8431 = vcombine.low %v8166, %v8170
        %v8433 = vunpack.c.l.s4 1983009808
        %v8434 = vunpack.c.0.s8 %v8433
        %v8435 = vlaneseq
        %v8436 = vshrl.u32 %v8435, 7
        %v8437 = vsub.s32 %v8434, %v8436
        %v8438 = vrot.slane %v8430, %v8437
        %v8440 = vunpack.c.l.s4 1983009808
        %v8441 = vunpack.c.0.s8 %v8440
        %v8442 = vlaneseq
        %v8443 = vshrl.u32 %v8442, 7
        %v8444 = vsub.s32 %v8441, %v8443
        %v8445 = vrot.slane %v8431, %v8444
        %v8446 = vcombine.low %v8438, %v8445
        %v8447 = vcombine.low %v8174, %v8178
        %v8448 = vcombine.low %v8182, %v8186
        %v8450 = vunpack.c.l.s4 1983009808
        %v8451 = vunpack.c.0.s8 %v8450
        %v8452 = vlaneseq
        %v8453 = vshrl.u32 %v8452, 7
        %v8454 = vsub.s32 %v8451, %v8453
        %v8455 = vrot.slane %v8447, %v8454
        %v8457 = vunpack.c.l.s4 1983009808
        %v8458 = vunpack.c.0.s8 %v8457
        %v8459 = vlaneseq
        %v8460 = vshrl.u32 %v8459, 7
        %v8461 = vsub.s32 %v8458, %v8460
        %v8462 = vrot.slane %v8448, %v8461
        %v8463 = vcombine.low %v8455, %v8462
        %v8464 = vcombine.low %v8190, %v8194
        %v8465 = vcombine.low %v8198, %v8202
        %v8467 = vunpack.c.l.s4 1983009808
        %v8468 = vunpack.c.0.s8 %v8467
        %v8469 = vlaneseq
        %v8470 = vshrl.u32 %v8469, 7
        %v8471 = vsub.s32 %v8468, %v8470
        %v8472 = vrot.slane %v8464, %v8471
        %v8474 = vunpack.c.l.s4 1983009808
        %v8475 = vunpack.c.0.s8 %v8474
        %v8476 = vlaneseq
        %v8477 = vshrl.u32 %v8476, 7
        %v8478 = vsub.s32 %v8475, %v8477
        %v8479 = vrot.slane %v8465, %v8478
        %v8480 = vcombine.low %v8472, %v8479
        %v8482 = vsel %vm2338, %v8203, 0
        %v8485 = vsel %vm2338, %v8204, 0
        %v8488 = vsel %vm2338, %v8205, 0
        %v8491 = vsel %vm2338, %v8206, 0
        %v8494 = vsel %vm2338, %v8207, 0
        %v8497 = vsel %vm2338, %v8208, 0
        %v8499 = vsel %vm2338, %v8225, 0
        %v8501 = vsel %vm2338, %v8242, 0
        %v8503 = vsel %vm2338, %v8259, 0
        %v8505 = vsel %vm2338, %v8276, 0
        %v8507 = vsel %vm2338, %v8293, 0
        %v8509 = vsel %vm2338, %v8310, 0
        %v8511 = vsel %vm2338, %v8327, 0
        %v8513 = vsel %vm2338, %v8344, 0
        %v8515 = vsel %vm2338, %v8361, 0
        %v8517 = vsel %vm2338, %v8378, 0
        %v8519 = vsel %vm2338, %v8395, 0
        %v8521 = vsel %vm2338, %v8412, 0
        %v8523 = vsel %vm2338, %v8429, 0
        %v8525 = vsel %vm2338, %v8446, 0
        %v8527 = vsel %vm2338, %v8463, 0
        %v8529 = vsel %vm2338, %v8480, 0
        %8531 = vmatprep.subr.mxu0 0.0
        %8532 = vmatpush1.xpose.msra.mxu0 %v8513
        %8533 = vmatprep.subr.mxu0 0.0
        %8534 = vmatpush1.xpose.msra.mxu0 %v8511
        %8535 = vmatprep.subr.mxu0 0.0
        %8536 = vmatpush1.xpose.msra.mxu0 %v8513
        %8537 = vmatprep.subr.mxu0 0.0
        %8538 = vmatpush1.xpose.msra.mxu0 %v8511
        %8539 = vmatprep.subr.mxu0 0.0
        %8540 = vmatpush1.xpose.msra.mxu0 %v8509
        %8541 = vmatprep.subr.mxu0 0.0
        %8542 = vmatpush1.xpose.msra.mxu0 %v8507
        %8543 = vmatprep.subr.mxu0 0.0
        %8544 = vmatpush1.xpose.msra.mxu0 %v8509
        %8545 = vmatprep.subr.mxu0 0.0
        %8546 = vmatpush1.xpose.msra.mxu0 %v8507
        %8547 = vmatprep.subr.mxu0 0.0
        %8548 = vmatpush1.xpose.msra.mxu0 %v8505
        %8549 = vmatprep.subr.mxu0 0.0
        %8550 = vmatpush1.xpose.msra.mxu0 %v8503
        %8551 = vmatprep.subr.mxu0 0.0
        %8552 = vmatpush1.xpose.msra.mxu0 %v8505
        %8553 = vmatprep.subr.mxu0 0.0
        %8554 = vmatpush1.xpose.msra.mxu0 %v8503
        %8555 = vmatprep.subr.mxu0 0.0
        %8556 = vmatpush1.xpose.msra.mxu0 %v8501
        %8557 = vmatprep.subr.mxu0 0.0
        %8558 = vmatpush1.xpose.msra.mxu0 %v8499
        %8559 = vmatprep.subr.mxu0 0.0
        %8560 = vmatpush1.xpose.msra.mxu0 %v8501
        %8561 = vmatprep.subr.mxu0 0.0
        %8562 = vmatpush1.xpose.msra.mxu0 %v8499
        %8563 = vmatprep.subr.mxu0 0.0
        %8564 = vmatpush2.xpose.msra.mxu0 %v8529
        %8565 = vmatprep.subr.mxu0 0.0
        %8566 = vmatpush2.xpose.msra.mxu0 %v8527
        %8567 = vmatprep.subr.mxu0 0.0
        %8568 = vmatpush2.xpose.msra.mxu0 %v8529
        %8569 = vmatprep.subr.mxu0 0.0
        %8570 = vmatpush2.xpose.msra.mxu0 %v8527
        %8571 = vmatprep.subr.mxu0 0.0
        %8572 = vmatpush2.xpose.msra.mxu0 %v8525
        %8573 = vmatprep.subr.mxu0 0.0
        %8574 = vmatpush2.xpose.msra.mxu0 %v8523
        %8575 = vmatprep.subr.mxu0 0.0
        %8576 = vmatpush2.xpose.msra.mxu0 %v8525
        %8577 = vmatprep.subr.mxu0 0.0
        %8578 = vmatpush2.xpose.msra.mxu0 %v8523
        %8579 = vmatprep.subr.mxu0 0.0
        %8580 = vmatpush2.xpose.msra.mxu0 %v8521
        %8581 = vmatprep.subr.mxu0 0.0
        %8582 = vmatpush2.xpose.msra.mxu0 %v8519
        %8583 = vmatprep.subr.mxu0 0.0
        %8584 = vmatpush2.xpose.msra.mxu0 %v8521
        %8585 = vmatprep.subr.mxu0 0.0
        %8586 = vmatpush2.xpose.msra.mxu0 %v8519
        %8587 = vmatprep.subr.mxu0 0.0
        %8588 = vmatpush2.xpose.msra.mxu0 %v8517
        %8589 = vmatprep.subr.mxu0 0.0
        %8590 = vmatpush2.xpose.msra.mxu0 %v8515
        %8591 = vmatprep.subr.mxu0 0.0
        %8592 = vmatpush2.xpose.msra.mxu0 %v8517
        %8593 = vmatprep.subr.mxu0 0.0
        %8594 = vmatpush2.xpose.msra.mxu0 %v8515
        %8595 = vmatprep.mubr.f32.mxu0 0.0
        %8596 = vmatmul.mubr.f32.gmra.mxu0 %v8482
        %v8597 = vpop.f32.mrf.mxu0
        %v8598 = vadd.f32 0.0, %v8597
        %v8599 = vpop.f32.mrf.mxu0
        %v8600 = vadd.f32 0.0, %v8599
        %8601 = vmatprep.mubr.f32.mxu0 0.0
        %8602 = vmatmul.mubr.f32.gmra.mxu0 %v8485
        %v8603 = vpop.f32.mrf.mxu0
        %v8604 = vadd.f32 0.0, %v8603
        %v8605 = vpop.f32.mrf.mxu0
        %v8606 = vadd.f32 0.0, %v8605
        %8607 = vmatprep.mubr.f32.mxu0 0.0
        %8608 = vmatmul.mubr.f32.gmra.mxu0 %v8488
        %v8609 = vpop.f32.mrf.mxu0
        %v8610 = vadd.f32 0.0, %v8609
        %v8611 = vpop.f32.mrf.mxu0
        %v8612 = vadd.f32 0.0, %v8611
        %8613 = vmatprep.mubr.f32.mxu0 0.0
        %8614 = vmatmul.mubr.f32.gmra.mxu0 %v8491
        %v8615 = vpop.f32.mrf.mxu0
        %v8616 = vadd.f32 0.0, %v8615
        %v8617 = vpop.f32.mrf.mxu0
        %v8618 = vadd.f32 0.0, %v8617
        %8619 = vmatprep.mubr.f32.mxu0 0.0
        %8620 = vmatmul.mubr.f32.gmra.mxu0 %v8494
        %v8621 = vpop.f32.mrf.mxu0
        %v8622 = vadd.f32 0.0, %v8621
        %v8623 = vpop.f32.mrf.mxu0
        %v8624 = vadd.f32 0.0, %v8623
        %8625 = vmatprep.mubr.f32.mxu0 0.0
        %8626 = vmatmul.mubr.f32.gmra.mxu0 %v8497
        %v8627 = vpop.f32.mrf.mxu0
        %v8628 = vadd.f32 0.0, %v8627
        %v8629 = vpop.f32.mrf.mxu0
        %v8630 = vadd.f32 0.0, %v8629
        %8631 = vdwg.mxu0
        %v8632 = vadd.f32 %v7332, %v8598
        %v8633 = vadd.f32 %v7334, %v8600
        %v8634 = vadd.f32 %v7338, %v8604
        %v8635 = vadd.f32 %v7340, %v8606
        %v8636 = vadd.f32 %v7344, %v8610
        %v8637 = vadd.f32 %v7346, %v8612
        %v8638 = vadd.f32 %v7350, %v8616
        %v8639 = vadd.f32 %v7352, %v8618
        %v8640 = vadd.f32 %v7356, %v8622
        %v8641 = vadd.f32 %v7358, %v8624
        %v8642 = vadd.f32 %v7362, %v8628
        %v8643 = vadd.f32 %v7364, %v8630
        %v8644 = vld [vmem:[%s12] sm:$0xff]
        %v8645 = vld [vmem:[%s12 + $0x8] sm:$0xff]
        %v8646 = vld [vmem:[%s12 + $0x10] sm:$0xff]
        %v8647 = vld [vmem:[%s12 + $0x18] sm:$0xff]
        %v8648 = vld [vmem:[%s12 + $0x20] sm:$0xff]
        %v8649 = vld [vmem:[%s12 + $0x28] sm:$0xff]
        %8651 = vset.pattern.permute.xlu0 0
        %8652 = vperm.xlu0 %8651, %v8644
        %v8653 = vpop.permute.xlu0 %8652
        %8656 = vset.pattern.permute.xlu0 0
        %8657 = vperm.xlu0 %8656, %v8645
        %v8658 = vpop.permute.xlu0 %8657
        %8661 = vset.pattern.permute.xlu0 0
        %8662 = vperm.xlu0 %8661, %v8646
        %v8663 = vpop.permute.xlu0 %8662
        %8666 = vset.pattern.permute.xlu0 0
        %8667 = vperm.xlu0 %8666, %v8647
        %v8668 = vpop.permute.xlu0 %8667
        %8671 = vset.pattern.permute.xlu0 0
        %8672 = vperm.xlu0 %8671, %v8648
        %v8673 = vpop.permute.xlu0 %8672
        %8676 = vset.pattern.permute.xlu0 0
        %8677 = vperm.xlu0 %8676, %v8649
        %v8678 = vpop.permute.xlu0 %8677
        %v8680 = vadd.f32 %v8632, %v8653
        %v8681 = vadd.f32 %v8633, %v8653
        %v8682 = vadd.f32 %v8634, %v8658
        %v8683 = vadd.f32 %v8635, %v8658
        %v8684 = vadd.f32 %v8636, %v8663
        %v8685 = vadd.f32 %v8637, %v8663
        %v8686 = vadd.f32 %v8638, %v8668
        %v8687 = vadd.f32 %v8639, %v8668
        %v8688 = vadd.f32 %v8640, %v8673
        %v8689 = vadd.f32 %v8641, %v8673
        %v8690 = vadd.f32 %v8642, %v8678
        %v8691 = vadd.f32 %v8643, %v8678
        %v8692 = vmax.f32 %v8680, 0.0
        %v8693 = vmax.f32 %v8681, 0.0
        %v8694 = vmax.f32 %v8682, 0.0
        %v8695 = vmax.f32 %v8683, 0.0
        %v8696 = vmax.f32 %v8684, 0.0
        %v8697 = vmax.f32 %v8685, 0.0
        %v8698 = vmax.f32 %v8686, 0.0
        %v8699 = vmax.f32 %v8687, 0.0
        %v8700 = vmax.f32 %v8688, 0.0
        %v8701 = vmax.f32 %v8689, 0.0
        %v8702 = vmax.f32 %v8690, 0.0
        %v8703 = vmax.f32 %v8691, 0.0
        %8704 = vst [vmem:[%s507] sm:$0xff] %v8692
        %8705 = vst [vmem:[%s507 + $0x8] sm:$0xff] %v8693
        %8706 = vst [vmem:[%s507 + $0x10] sm:$0xff] %v8694
        %8707 = vst [vmem:[%s507 + $0x18] sm:$0xff] %v8695
        %8708 = vst [vmem:[%s507 + $0x20] sm:$0xff] %v8696
        %8709 = vst [vmem:[%s507 + $0x28] sm:$0xff] %v8697
        %8710 = vst [vmem:[%s507 + $0x30] sm:$0xff] %v8698
        %8711 = vst [vmem:[%s507 + $0x38] sm:$0xff] %v8699
        %8712 = vst [vmem:[%s507 + $0x40] sm:$0xff] %v8700
        %8713 = vst [vmem:[%s507 + $0x48] sm:$0xff] %v8701
        %8714 = vst [vmem:[%s507 + $0x50] sm:$0xff] %v8702
        %8715 = vst [vmem:[%s507 + $0x58] sm:$0xff] %v8703
        %s8716 = sand.u32 %s343, 1
        %s8717 = scalar_lea.sflag [#allocation3], %s8716
        %s8718 = sand.u32 %s343, 1
        %s8719 = smul.addr %s8718, 96
        %s8720 = scalar_lea.vmem [#allocation2], %s8719
        // Predicated region
        $region73: #{tpu_custom_call.1} parent=71 // pred_check
          %p8721 = pneg %p353
        $region74: #{tpu_custom_call.1} parent=71 // pred_check_branch
          %8723 = sbr.rel (%p8721) target = $region76
        $region75: #{tpu_custom_call.1} parent=71 // pred_region
          %s8724 = smul.u32 2, %s32
          %s8726 = ssub.s32 1536, 1536
          %8727 = vsyncadd %s8717, %s8726
          %s8728 = smul.addr %s31, 12
          %s8729 = sadd.s32 %s8724, %s8728
          %s8730 = smul.addr %s8729, 128
          %s8731 = scalar_lea.hbm %s13, %s8730
          %s8732 = sshll.u32 %s8720, 4
          %s8733 = int_to_ptr.vmem [resolvable:$true] %s8732
          %8738 = dma.vmem_to_hbm [thread:$0]  %s8733, 1536, %s8731, %s8717, 256, 256, 16
        $region76: #{tpu_custom_call.1} parent=71 // pred_fallthru
          _
      $region72: #{tpu_custom_call.1} parent=5 // pred_fallthru
        _
      %p8739 = scmp.le.s32.totalorder 2, %s22
      // Predicated region
      $region77: #{tpu_custom_call.1} parent=5 // pred_check
        %p8740 = pneg %p8739
      $region78: #{tpu_custom_call.1} parent=5 // pred_check_branch
        %8742 = sbr.rel (%p8740) target = $region80
      $region79: #{tpu_custom_call.1} parent=5 // pred_region
        %s8743 = ssub.s32 %s22, 2
        // Predicated region
        $region81: #{tpu_custom_call.1} parent=79 // pred_check
          %p8744 = pneg %p359
        $region82: #{tpu_custom_call.1} parent=79 // pred_check_branch
          %8746 = sbr.rel (%p8744) target = $region84
        $region83: #{tpu_custom_call.1} parent=79 // pred_region
          %s8747 = sand.u32 %s344, 1
          %s8748 = scalar_lea.sflag [#allocation3], %s8747
          %s8749 = sand.u32 %s344, 1
          %s8750 = smul.addr %s8749, 96
          %s8751 = scalar_lea.vmem [#allocation2], %s8750
          %8752 = dma.done %s8748, 1536
        $region84: #{tpu_custom_call.1} parent=79 // pred_fallthru
          _
      $region80: #{tpu_custom_call.1} parent=5 // pred_fallthru
        _
    $region6: #{tpu_custom_call.1} parent=1 // loop_footer
      %s26 = sadd.s32 1, %s22
    $region7: #{tpu_custom_call.1} parent=1 // loop_footer_branch
      %21 = sbr.rel target = $region3
    $region8: #{tpu_custom_call.1} parent=1 // loop_exit
      _
    %8753 = vsyncpa [#allocation3], 1
    %s8754 = scalar_lea.sflag [#allocation3], 1
    %8755 = vsyncpa %s8754, 1

</llo_original>
